<compile_context>
chip_gen: v7x
topology: tpu7x:2x2x1
jax: 0.10.0
libtpu: 0.0.40
codegen_flags: <defaults>
</compile_context>

<pallas_src>
import jax
import jax.numpy as jnp
from jax import lax
from jax.experimental import pallas as pl
from jax.experimental.pallas import tpu as pltpu
import numpy as np

# ----------------------------- problem sizes --------------------------------
SRC_LEN, TGT_LEN, BATCH, VOCAB, EMB, HID = 8, 6, 2, 16, 32, 32
TDEC = TGT_LEN - 1          # decoder runs over tgt[:-1]
BP = 8                      # batch padded to one f32 sublane group
GATE = 3 * HID              # GRU gate width (r,z,n)


def _up(x, m):
    return ((x + m - 1) // m) * m


# int32 ids/lengths buffer layout: [ID_ROWS, BP] (batch on lanes)
ROW_SRC = 0
ROW_TGT = _up(ROW_SRC + SRC_LEN, 8)
ROW_LEN = _up(ROW_TGT + TDEC, 8)
ID_ROWS = _up(ROW_LEN + 1, 8)

# packed f32 parameter buffer layout: [P_ROWS, 128]
R_EWIH = 0
R_EWHH = _up(R_EWIH + EMB, 8)
R_DWIH = _up(R_EWHH + HID, 8)
R_DWHH = _up(R_DWIH + EMB, 8)
R_BIAS = _up(R_DWHH + HID, 8)        # 4 rows: enc_bih, enc_bhh, dec_bih, dec_bhh
R_WA = _up(R_BIAS + 4, 8)
R_WC = _up(R_WA + HID, 8)
R_EMB = _up(R_WC + 2 * HID, 8)
P_ROWS = _up(R_EMB + VOCAB, 8)
P_COLS = 128

# lane-dense output slab layout: [BP, SLAB_W]
C_DEC = 0                            # decoder outputs  [B, TDEC*H]
C_ATT = C_DEC + TDEC * HID           # attention        [B, TDEC*S]
C_HID = C_ATT + TDEC * SRC_LEN       # final dec state  [B, H]
C_MEM = C_HID + HID                  # memory bank      [B, S*H]
SLAB_W = _up(C_MEM + SRC_LEN * HID, 128)


# --------------------------------- kernel -----------------------------------
def nmt_kernel(ids_ref, p_ref, out_ref):
    f32 = jnp.float32
    S, TD, B, H, V, E, G = SRC_LEN, TDEC, BP, HID, VOCAB, EMB, GATE

    # ---- parameters: static slices of one packed VMEM buffer ----
    enc_wih = p_ref[R_EWIH:R_EWIH + E, 0:G]
    enc_whh = p_ref[R_EWHH:R_EWHH + H, 0:G]
    dec_wih = p_ref[R_DWIH:R_DWIH + E, 0:G]
    dec_whh = p_ref[R_DWHH:R_DWHH + H, 0:G]
    biases = p_ref[R_BIAS:R_BIAS + 4, 0:G]
    wa = p_ref[R_WA:R_WA + H, 0:H]
    wc = p_ref[R_WC:R_WC + 2 * H, 0:H]
    emb = p_ref[R_EMB:R_EMB + V, 0:E]

    enc_bih = biases[0:1]                                   # [1, 3H]
    enc_bhh = jnp.broadcast_to(biases[1:2], (B, G))         # hoisted broadcast
    dec_bih = biases[2:3]
    dec_bhh = jnp.broadcast_to(biases[3:4], (B, G))

    # ---- token ids / lengths / masks (built in-kernel) ----
    ids = ids_ref[...]                                      # [ID_ROWS, B] int32
    src_ids = ids[ROW_SRC:ROW_SRC + S]                      # [S, B]
    tgt_ids = ids[ROW_TGT:ROW_TGT + TD]                     # [TD, B]
    len_row = ids[ROW_LEN:ROW_LEN + 1]                      # [1, B]

    # lengths as a column without a transpose: select the diagonal + lane reduce
    ident = (lax.broadcasted_iota(jnp.int32, (B, B), 0) ==
             lax.broadcasted_iota(jnp.int32, (B, B), 1)).astype(jnp.int32)
    len_col = jnp.sum(ident * len_row, axis=1, keepdims=True)            # [B, 1]
    keep_bs = (lax.broadcasted_iota(jnp.int32, (B, S), 1) <
               len_col).astype(f32)                                      # [B, S]

    # ---- fused embedding lookup + GRU input projection (off critical path) ----
    # gather(emb, id) @ W_ih == onehot(id) @ (emb @ W_ih)
    emb_wih_enc = jnp.dot(emb, enc_wih, preferred_element_type=f32)      # [V, 3H]
    emb_wih_dec = jnp.dot(emb, dec_wih, preferred_element_type=f32)      # [V, 3H]

    src_oh = (src_ids[:, :, None] ==
              lax.broadcasted_iota(jnp.int32, (S, B, V), 2)).astype(f32)
    tgt_oh = (tgt_ids[:, :, None] ==
              lax.broadcasted_iota(jnp.int32, (TD, B, V), 2)).astype(f32)
    gi_enc = jnp.dot(src_oh.reshape(S * B, V), emb_wih_enc,
                     preferred_element_type=f32) + enc_bih               # [S*B, 3H]
    gi_dec = jnp.dot(tgt_oh.reshape(TD * B, V), emb_wih_dec,
                     preferred_element_type=f32) + dec_bih               # [TD*B, 3H]

    def gru_step(gi, h, w_hh, b_hh):
        # Only the hidden-to-hidden projection stays on the serial chain.
        # PyTorch GRU gate order: r, z, n.
        gh = jnp.dot(h, w_hh, preferred_element_type=f32) + b_hh
        r = jax.nn.sigmoid(gi[:, 0:H] + gh[:, 0:H])
        z = jax.nn.sigmoid(gi[:, H:2 * H] + gh[:, H:2 * H])
        n = jnp.tanh(gi[:, 2 * H:3 * H] + r * gh[:, 2 * H:3 * H])
        return (1.0 - z) * n + z * h

    # ---- encoder GRU (pack/unpack emulated with length masks), unrolled ----
    h = jnp.zeros((B, H), f32)
    mem_steps = []                                           # single memory layout
    for t in range(S):
        m = keep_bs[:, t:t + 1]                              # [B, 1] in {0,1}
        h_new = gru_step(gi_enc[t * B:(t + 1) * B], h, enc_whh, enc_bhh)
        mem_steps.append(h_new * m)                          # zero padded rows
        h = m * h_new + (1.0 - m) * h                        # freeze past length
    # enc_final == h  (decoder init state)

    # ---- decoder GRU: only the recurrence in the unrolled loop ----
    hd = h
    hds = []
    for t in range(TD):
        hd = gru_step(gi_dec[t * B:(t + 1) * B], hd, dec_whh, dec_bhh)
        hds.append(hd)
    hds_flat = jnp.concatenate(hds, axis=0)                  # [TD*B, H]

    # ---- Luong "general" attention: bulk, post-loop, VPU multiply+reduce ----
    hq = jnp.dot(hds_flat, wa, preferred_element_type=f32).reshape(TD, B, H)
    score_cols = [jnp.sum(hq * mem_steps[s][None], axis=-1, keepdims=True)
                  for s in range(S)]                         # S x [TD, B, 1]
    scores = jnp.concatenate(score_cols, axis=-1)            # [TD, B, S]
    scores = jnp.where(keep_bs[None] > 0.5, scores, -1e9)
    scores = scores - jnp.max(scores, axis=-1, keepdims=True)
    e = jnp.exp(scores)
    inv_den = pl.reciprocal(jnp.sum(e, axis=-1, keepdims=True), approx=False)
    align = e * inv_den                                      # [TD, B, S]

    ctx = jnp.zeros((TD, B, H), f32)
    for s in range(S):
        ctx = ctx + align[:, :, s:s + 1] * mem_steps[s][None]
    cat = jnp.concatenate([ctx.reshape(TD * B, H), hds_flat], axis=-1)   # [TD*B, 2H]
    attn_h = jnp.tanh(jnp.dot(cat, wc, preferred_element_type=f32))      # [TD*B, H]

    # ---- single lane-dense output slab [B, SLAB_W], one unmasked store ----
    pieces = ([attn_h[t * B:(t + 1) * B] for t in range(TD)]   # dec outputs  (TD*H)
              + [align[t] for t in range(TD)]                  # attention    (TD*S)
              + [hd]                                           # final state  (H)
              + mem_steps                                      # memory bank  (S*H)
              + [jnp.zeros((B, SLAB_W - C_MEM - S * H), f32)]) # lane pad
    out_ref[...] = jnp.concatenate(pieces, axis=1)


# -------------------------------- wrappers -----------------------------------
def pack_params(emb_table, params):
    """Pack all weights + embedding table into one 128-lane f32 buffer (done once)."""
    (enc_wih, enc_whh, enc_bih, enc_bhh,
     dec_wih, dec_whh, dec_bih, dec_bhh, wa, wc) = params
    buf = jnp.zeros((P_ROWS, P_COLS), jnp.float32)
    buf = buf.at[R_EWIH:R_EWIH + EMB, 0:GATE].set(enc_wih)
    buf = buf.at[R_EWHH:R_EWHH + HID, 0:GATE].set(enc_whh)
    buf = buf.at[R_DWIH:R_DWIH + EMB, 0:GATE].set(dec_wih)
    buf = buf.at[R_DWHH:R_DWHH + HID, 0:GATE].set(dec_whh)
    buf = buf.at[R_BIAS + 0:R_BIAS + 1, 0:GATE].set(enc_bih)
    buf = buf.at[R_BIAS + 1:R_BIAS + 2, 0:GATE].set(enc_bhh)
    buf = buf.at[R_BIAS + 2:R_BIAS + 3, 0:GATE].set(dec_bih)
    buf = buf.at[R_BIAS + 3:R_BIAS + 4, 0:GATE].set(dec_bhh)
    buf = buf.at[R_WA:R_WA + HID, 0:HID].set(wa)
    buf = buf.at[R_WC:R_WC + 2 * HID, 0:HID].set(wc)
    buf = buf.at[R_EMB:R_EMB + VOCAB, 0:EMB].set(emb_table)
    return buf


@jax.jit
def nmt_forward(src, tgt, lengths, param_buf):
    """NMTModel.forward: (src, tgt, lengths) -> (dec_outputs, attns, dec_state, memory_bank)."""
    B = src.shape[1]
    tgt_in = tgt[:-1]
    # one small int32 buffer with ids + lengths; padded batch lanes get length 0
    ids = jnp.zeros((ID_ROWS, BP), jnp.int32)
    ids = ids.at[ROW_SRC:ROW_SRC + SRC_LEN, 0:B].set(src)
    ids = ids.at[ROW_TGT:ROW_TGT + TDEC, 0:B].set(tgt_in)
    ids = ids.at[ROW_LEN, 0:B].set(lengths)

    vmem = pl.BlockSpec(memory_space=pltpu.MemorySpace.VMEM)
    slab = pl.pallas_call(
        nmt_kernel,
        out_shape=jax.ShapeDtypeStruct((BP, SLAB_W), jnp.float32),
        in_specs=[vmem, vmem],
        out_specs=vmem,
    )(ids, param_buf)

    sb = slab[:B]
    dec_out = sb[:, C_DEC:C_DEC + TDEC * HID].reshape(B, TDEC, HID).transpose(1, 0, 2)
    attn = sb[:, C_ATT:C_ATT + TDEC * SRC_LEN].reshape(B, TDEC, SRC_LEN).transpose(1, 0, 2)
    dec_h = sb[:, C_HID:C_HID + HID][None]                   # [1, B, H]
    mem = sb[:, C_MEM:C_MEM + SRC_LEN * HID].reshape(B, SRC_LEN, HID).transpose(1, 0, 2)
    # TODO(synk): the original returns an RNNDecoderState object; we return the raw
    # final hidden state array instead.
    return dec_out, {"std": attn}, dec_h, mem


# --------------------- pure-JAX reference (same math) ------------------------
def _gru_step_ref(x, h, w_ih, w_hh, b_ih, b_hh):
    H = h.shape[-1]
    gi = x @ w_ih + b_ih
    gh = h @ w_hh + b_hh
    r = jax.nn.sigmoid(gi[:, :H] + gh[:, :H])
    z = jax.nn.sigmoid(gi[:, H:2 * H] + gh[:, H:2 * H])
    n = jnp.tanh(gi[:, 2 * H:] + r * gh[:, 2 * H:])
    return (1.0 - z) * n + z * h


def reference(src, tgt, lengths, emb_table, params):
    (enc_wih, enc_whh, enc_bih, enc_bhh,
     dec_wih, dec_whh, dec_bih, dec_bhh, wa, wc) = params
    S, B = src.shape
    src_emb = emb_table[src]
    tgt_emb = emb_table[tgt[:-1]]
    valid = (jnp.arange(S)[:, None] < lengths[None, :]).astype(jnp.float32)  # [S, B]
    h = jnp.zeros((B, HID), jnp.float32)
    mem = []
    for t in range(S):
        m = valid[t][:, None]
        h_new = _gru_step_ref(src_emb[t], h, enc_wih, enc_whh, enc_bih, enc_bhh)
        mem.append(h_new * m)
        h = m * h_new + (1.0 - m) * h
    memory = jnp.stack(mem, 0)                               # [S, B, H]
    attn_mask = valid.T                                      # [B, S]
    hd = h
    dec_outs, attns = [], []
    for t in range(TDEC):
        hd = _gru_step_ref(tgt_emb[t], hd, dec_wih, dec_whh, dec_bih, dec_bhh)
        hq = hd @ wa
        scores = jnp.einsum('bh,sbh->bs', hq, memory)
        scores = jnp.where(attn_mask > 0, scores, -1e9)
        scores = scores - jnp.max(scores, -1, keepdims=True)
        e = jnp.exp(scores)
        align = e / jnp.sum(e, -1, keepdims=True)
        ctx = jnp.einsum('bs,sbh->bh', align, memory)
        dec_outs.append(jnp.tanh(jnp.concatenate([ctx, hd], -1) @ wc))
        attns.append(align)
    return jnp.stack(dec_outs, 0), jnp.stack(attns, 0), hd[None], memory


# ----------------------------------- main ------------------------------------
if __name__ == "__main__":
    jax.config.update("jax_default_matmul_precision", "highest")
    key = jax.random.PRNGKey(0)
    ks = jax.random.split(key, 16)

    emb_table = 0.1 * jax.random.normal(ks[0], (VOCAB, EMB), jnp.float32)
    src = jax.random.randint(ks[1], (SRC_LEN, BATCH), 0, VOCAB, dtype=jnp.int32)
    tgt = jax.random.randint(ks[2], (TGT_LEN, BATCH), 0, VOCAB, dtype=jnp.int32)
    lengths = jnp.array([SRC_LEN, 5], jnp.int32)             # pre-padding src lengths

    params = (
        0.1 * jax.random.normal(ks[3], (EMB, GATE), jnp.float32),    # enc W_ih
        0.1 * jax.random.normal(ks[4], (HID, GATE), jnp.float32),    # enc W_hh
        0.1 * jax.random.normal(ks[5], (1, GATE), jnp.float32),      # enc b_ih
        0.1 * jax.random.normal(ks[6], (1, GATE), jnp.float32),      # enc b_hh
        0.1 * jax.random.normal(ks[7], (EMB, GATE), jnp.float32),    # dec W_ih
        0.1 * jax.random.normal(ks[8], (HID, GATE), jnp.float32),    # dec W_hh
        0.1 * jax.random.normal(ks[9], (1, GATE), jnp.float32),      # dec b_ih
        0.1 * jax.random.normal(ks[10], (1, GATE), jnp.float32),     # dec b_hh
        0.1 * jax.random.normal(ks[11], (HID, HID), jnp.float32),    # attn W_a
        0.1 * jax.random.normal(ks[12], (2 * HID, HID), jnp.float32),  # attn out W_c (no bias)
    )

    param_buf = pack_params(emb_table, params)               # packed once

    dec_out, attns, dec_state, memory_bank = nmt_forward(src, tgt, lengths, param_buf)
    jax.block_until_ready((dec_out, attns["std"], dec_state, memory_bank))

    r_out, r_attn, r_state, r_mem = reference(src, tgt, lengths, emb_table, params)
    np.testing.assert_allclose(np.asarray(dec_out), np.asarray(r_out), atol=2e-3, rtol=2e-3)
    np.testing.assert_allclose(np.asarray(attns["std"]), np.asarray(r_attn), atol=2e-3, rtol=2e-3)
    np.testing.assert_allclose(np.asarray(dec_state), np.asarray(r_state), atol=2e-3, rtol=2e-3)
    np.testing.assert_allclose(np.asarray(memory_bank), np.asarray(r_mem), atol=2e-3, rtol=2e-3)

    print("KERNEL_OK")
</pallas_src>

<mosaic_0001>
module attributes {stable_mosaic.version = 11 : i64} {
  func.func @nmt_kernel(%arg0: memref<24x8xi32, #tpu.memory_space<vmem>>, %arg1: memref<248x128xf32, #tpu.memory_space<vmem>>, %arg2: memref<8x512xf32, #tpu.memory_space<vmem>>) attributes {dimension_semantics = [], scalar_prefetch = 0 : i64, scratch_operands = 0 : i64, tpu.core_type = #tpu.core_type<tc>} {
    %c0 = arith.constant 0 : index
    %c0_0 = arith.constant 0 : index
    %0 = vector.load %arg1[%c0, %c0_0] : memref<248x128xf32, #tpu.memory_space<vmem>>, vector<32x96xf32>
    %c32 = arith.constant 32 : index
    %c0_1 = arith.constant 0 : index
    %1 = vector.load %arg1[%c32, %c0_1] : memref<248x128xf32, #tpu.memory_space<vmem>>, vector<32x96xf32>
    %c64 = arith.constant 64 : index
    %c0_2 = arith.constant 0 : index
    %2 = vector.load %arg1[%c64, %c0_2] : memref<248x128xf32, #tpu.memory_space<vmem>>, vector<32x96xf32>
    %c96 = arith.constant 96 : index
    %c0_3 = arith.constant 0 : index
    %3 = vector.load %arg1[%c96, %c0_3] : memref<248x128xf32, #tpu.memory_space<vmem>>, vector<32x96xf32>
    %c128 = arith.constant 128 : index
    %c0_4 = arith.constant 0 : index
    %4 = vector.load %arg1[%c128, %c0_4] : memref<248x128xf32, #tpu.memory_space<vmem>>, vector<4x96xf32>
    %c136 = arith.constant 136 : index
    %c0_5 = arith.constant 0 : index
    %5 = vector.load %arg1[%c136, %c0_5] : memref<248x128xf32, #tpu.memory_space<vmem>>, vector<32x32xf32>
    %c168 = arith.constant 168 : index
    %c0_6 = arith.constant 0 : index
    %6 = vector.load %arg1[%c168, %c0_6] : memref<248x128xf32, #tpu.memory_space<vmem>>, vector<64x32xf32>
    %c232 = arith.constant 232 : index
    %c0_7 = arith.constant 0 : index
    %7 = vector.load %arg1[%c232, %c0_7] : memref<248x128xf32, #tpu.memory_space<vmem>>, vector<16x32xf32>
    %8 = vector.extract_strided_slice %4 {offsets = [0, 0], sizes = [1, 96], strides = [1, 1]} : vector<4x96xf32> to vector<1x96xf32>
    %9 = vector.extract_strided_slice %4 {offsets = [1, 0], sizes = [1, 96], strides = [1, 1]} : vector<4x96xf32> to vector<1x96xf32>
    %10 = vector.shape_cast %9 : vector<1x96xf32> to vector<1x96xf32>
    %11 = vector.broadcast %10 : vector<1x96xf32> to vector<8x96xf32>
    %12 = vector.extract_strided_slice %4 {offsets = [2, 0], sizes = [1, 96], strides = [1, 1]} : vector<4x96xf32> to vector<1x96xf32>
    %13 = vector.extract_strided_slice %4 {offsets = [3, 0], sizes = [1, 96], strides = [1, 1]} : vector<4x96xf32> to vector<1x96xf32>
    %14 = vector.shape_cast %13 : vector<1x96xf32> to vector<1x96xf32>
    %15 = vector.broadcast %14 : vector<1x96xf32> to vector<8x96xf32>
    %c0_8 = arith.constant 0 : index
    %c0_9 = arith.constant 0 : index
    %16 = vector.load %arg0[%c0_8, %c0_9] : memref<24x8xi32, #tpu.memory_space<vmem>>, vector<24x8xi32>
    %17 = vector.extract_strided_slice %16 {offsets = [0, 0], sizes = [8, 8], strides = [1, 1]} : vector<24x8xi32> to vector<8x8xi32>
    %18 = vector.extract_strided_slice %16 {offsets = [8, 0], sizes = [5, 8], strides = [1, 1]} : vector<24x8xi32> to vector<5x8xi32>
    %19 = vector.extract_strided_slice %16 {offsets = [16, 0], sizes = [1, 8], strides = [1, 1]} : vector<24x8xi32> to vector<1x8xi32>
    %20 = tpu.iota {dimensions = array<i32: 0>} : vector<8x8xi32>
    %21 = tpu.iota {dimensions = array<i32: 1>} : vector<8x8xi32>
    %22 = arith.cmpi eq, %20, %21 : vector<8x8xi32>
    %23 = arith.extui %22 : vector<8x8xi1> to vector<8x8xi32>
    %24 = vector.broadcast %19 : vector<1x8xi32> to vector<8x8xi32>
    %25 = arith.muli %23, %24 : vector<8x8xi32>
    %cst = arith.constant dense<0> : vector<8xi32>
    %26 = vector.multi_reduction <add>, %25, %cst [1] : vector<8x8xi32> to vector<8xi32>
    %27 = vector.shape_cast %26 : vector<8xi32> to vector<8x1xi32>
    %28 = tpu.iota {dimensions = array<i32: 1>} : vector<8x8xi32>
    %29 = vector.broadcast %27 : vector<8x1xi32> to vector<8x8xi32>
    %30 = arith.cmpi slt, %28, %29 : vector<8x8xi32>
    %31 = arith.extui %30 : vector<8x8xi1> to vector<8x8xi32>
    %32 = arith.sitofp %31 : vector<8x8xi32> to vector<8x8xf32>
    %cst_10 = arith.constant dense<0.000000e+00> : vector<16x96xf32>
    %33 = tpu.matmul %7, %0, %cst_10 {dimension_numbers = #tpu.dot_dimension_numbers<[1], [0], [0], [1], [0, 0, 1, 1], [], []>, precision = #tpu.contract_precision<fp32>} : vector<16x32xf32>, vector<32x96xf32>, vector<16x96xf32> -> vector<16x96xf32>
    %cst_11 = arith.constant dense<0.000000e+00> : vector<16x96xf32>
    %34 = tpu.matmul %7, %2, %cst_11 {dimension_numbers = #tpu.dot_dimension_numbers<[1], [0], [0], [1], [0, 0, 1, 1], [], []>, precision = #tpu.contract_precision<fp32>} : vector<16x32xf32>, vector<32x96xf32>, vector<16x96xf32> -> vector<16x96xf32>
    %35 = vector.shape_cast %17 : vector<8x8xi32> to vector<8x8x1xi32>
    %36 = tpu.iota {dimensions = array<i32: 2>} : vector<8x8x16xi32>
    %37 = vector.broadcast %35 : vector<8x8x1xi32> to vector<8x8x16xi32>
    %38 = arith.cmpi eq, %37, %36 : vector<8x8x16xi32>
    %39 = arith.extui %38 : vector<8x8x16xi1> to vector<8x8x16xi32>
    %40 = arith.sitofp %39 : vector<8x8x16xi32> to vector<8x8x16xf32>
    %41 = vector.shape_cast %18 : vector<5x8xi32> to vector<5x8x1xi32>
    %42 = tpu.iota {dimensions = array<i32: 2>} : vector<5x8x16xi32>
    %43 = vector.broadcast %41 : vector<5x8x1xi32> to vector<5x8x16xi32>
    %44 = arith.cmpi eq, %43, %42 : vector<5x8x16xi32>
    %45 = arith.extui %44 : vector<5x8x16xi1> to vector<5x8x16xi32>
    %46 = arith.sitofp %45 : vector<5x8x16xi32> to vector<5x8x16xf32>
    %47 = vector.shape_cast %40 : vector<8x8x16xf32> to vector<64x16xf32>
    %cst_12 = arith.constant dense<0.000000e+00> : vector<64x96xf32>
    %48 = tpu.matmul %47, %33, %cst_12 {dimension_numbers = #tpu.dot_dimension_numbers<[1], [0], [0], [1], [0, 0, 1, 1], [], []>, precision = #tpu.contract_precision<fp32>} : vector<64x16xf32>, vector<16x96xf32>, vector<64x96xf32> -> vector<64x96xf32>
    %49 = vector.broadcast %8 : vector<1x96xf32> to vector<64x96xf32>
    %50 = arith.addf %48, %49 : vector<64x96xf32>
    %51 = vector.shape_cast %46 : vector<5x8x16xf32> to vector<40x16xf32>
    %cst_13 = arith.constant dense<0.000000e+00> : vector<40x96xf32>
    %52 = tpu.matmul %51, %34, %cst_13 {dimension_numbers = #tpu.dot_dimension_numbers<[1], [0], [0], [1], [0, 0, 1, 1], [], []>, precision = #tpu.contract_precision<fp32>} : vector<40x16xf32>, vector<16x96xf32>, vector<40x96xf32> -> vector<40x96xf32>
    %53 = vector.broadcast %12 : vector<1x96xf32> to vector<40x96xf32>
    %54 = arith.addf %52, %53 : vector<40x96xf32>
    %cst_14 = arith.constant 0.000000e+00 : f32
    %55 = vector.broadcast %cst_14 : f32 to vector<8x32xf32>
    %56 = vector.extract_strided_slice %32 {offsets = [0, 0], sizes = [8, 1], strides = [1, 1]} : vector<8x8xf32> to vector<8x1xf32>
    %57 = vector.extract_strided_slice %50 {offsets = [0, 0], sizes = [8, 96], strides = [1, 1]} : vector<64x96xf32> to vector<8x96xf32>
    %cst_15 = arith.constant dense<0.000000e+00> : vector<8x96xf32>
    %58 = tpu.matmul %55, %1, %cst_15 {dimension_numbers = #tpu.dot_dimension_numbers<[1], [0], [0], [1], [0, 0, 1, 1], [], []>, precision = #tpu.contract_precision<fp32>} : vector<8x32xf32>, vector<32x96xf32>, vector<8x96xf32> -> vector<8x96xf32>
    %59 = arith.addf %58, %11 : vector<8x96xf32>
    %60 = vector.extract_strided_slice %57 {offsets = [0, 0], sizes = [8, 32], strides = [1, 1]} : vector<8x96xf32> to vector<8x32xf32>
    %61 = vector.extract_strided_slice %59 {offsets = [0, 0], sizes = [8, 32], strides = [1, 1]} : vector<8x96xf32> to vector<8x32xf32>
    %62 = arith.addf %60, %61 : vector<8x32xf32>
    %63 = arith.negf %62 : vector<8x32xf32>
    %64 = math.exp %63 : vector<8x32xf32>
    %cst_16 = arith.constant 1.000000e+00 : f32
    %65 = vector.broadcast %cst_16 : f32 to vector<8x32xf32>
    %66 = arith.addf %65, %64 : vector<8x32xf32>
    %67 = arith.divf %65, %66 : vector<8x32xf32>
    %68 = vector.extract_strided_slice %57 {offsets = [0, 32], sizes = [8, 32], strides = [1, 1]} : vector<8x96xf32> to vector<8x32xf32>
    %69 = vector.extract_strided_slice %59 {offsets = [0, 32], sizes = [8, 32], strides = [1, 1]} : vector<8x96xf32> to vector<8x32xf32>
    %70 = arith.addf %68, %69 : vector<8x32xf32>
    %71 = arith.negf %70 : vector<8x32xf32>
    %72 = math.exp %71 : vector<8x32xf32>
    %cst_17 = arith.constant 1.000000e+00 : f32
    %73 = vector.broadcast %cst_17 : f32 to vector<8x32xf32>
    %74 = arith.addf %73, %72 : vector<8x32xf32>
    %75 = arith.divf %73, %74 : vector<8x32xf32>
    %76 = vector.extract_strided_slice %57 {offsets = [0, 64], sizes = [8, 32], strides = [1, 1]} : vector<8x96xf32> to vector<8x32xf32>
    %77 = vector.extract_strided_slice %59 {offsets = [0, 64], sizes = [8, 32], strides = [1, 1]} : vector<8x96xf32> to vector<8x32xf32>
    %78 = arith.mulf %67, %77 : vector<8x32xf32>
    %79 = arith.addf %76, %78 : vector<8x32xf32>
    %80 = math.tanh %79 : vector<8x32xf32>
    %cst_18 = arith.constant 1.000000e+00 : f32
    %81 = vector.broadcast %cst_18 : f32 to vector<8x32xf32>
    %82 = arith.subf %81, %75 : vector<8x32xf32>
    %83 = arith.mulf %82, %80 : vector<8x32xf32>
    %84 = arith.mulf %75, %55 : vector<8x32xf32>
    %85 = arith.addf %83, %84 : vector<8x32xf32>
    %86 = vector.broadcast %56 : vector<8x1xf32> to vector<8x32xf32>
    %87 = arith.mulf %85, %86 : vector<8x32xf32>
    %88 = vector.broadcast %56 : vector<8x1xf32> to vector<8x32xf32>
    %89 = arith.mulf %88, %85 : vector<8x32xf32>
    %cst_19 = arith.constant 1.000000e+00 : f32
    %90 = vector.broadcast %cst_19 : f32 to vector<8x1xf32>
    %91 = arith.subf %90, %56 : vector<8x1xf32>
    %92 = vector.broadcast %91 : vector<8x1xf32> to vector<8x32xf32>
    %93 = arith.mulf %92, %55 : vector<8x32xf32>
    %94 = arith.addf %89, %93 : vector<8x32xf32>
    %95 = vector.extract_strided_slice %32 {offsets = [0, 1], sizes = [8, 1], strides = [1, 1]} : vector<8x8xf32> to vector<8x1xf32>
    %96 = vector.extract_strided_slice %50 {offsets = [8, 0], sizes = [8, 96], strides = [1, 1]} : vector<64x96xf32> to vector<8x96xf32>
    %cst_20 = arith.constant dense<0.000000e+00> : vector<8x96xf32>
    %97 = tpu.matmul %94, %1, %cst_20 {dimension_numbers = #tpu.dot_dimension_numbers<[1], [0], [0], [1], [0, 0, 1, 1], [], []>, precision = #tpu.contract_precision<fp32>} : vector<8x32xf32>, vector<32x96xf32>, vector<8x96xf32> -> vector<8x96xf32>
    %98 = arith.addf %97, %11 : vector<8x96xf32>
    %99 = vector.extract_strided_slice %96 {offsets = [0, 0], sizes = [8, 32], strides = [1, 1]} : vector<8x96xf32> to vector<8x32xf32>
    %100 = vector.extract_strided_slice %98 {offsets = [0, 0], sizes = [8, 32], strides = [1, 1]} : vector<8x96xf32> to vector<8x32xf32>
    %101 = arith.addf %99, %100 : vector<8x32xf32>
    %102 = arith.negf %101 : vector<8x32xf32>
    %103 = math.exp %102 : vector<8x32xf32>
    %cst_21 = arith.constant 1.000000e+00 : f32
    %104 = vector.broadcast %cst_21 : f32 to vector<8x32xf32>
    %105 = arith.addf %104, %103 : vector<8x32xf32>
    %106 = arith.divf %104, %105 : vector<8x32xf32>
    %107 = vector.extract_strided_slice %96 {offsets = [0, 32], sizes = [8, 32], strides = [1, 1]} : vector<8x96xf32> to vector<8x32xf32>
    %108 = vector.extract_strided_slice %98 {offsets = [0, 32], sizes = [8, 32], strides = [1, 1]} : vector<8x96xf32> to vector<8x32xf32>
    %109 = arith.addf %107, %108 : vector<8x32xf32>
    %110 = arith.negf %109 : vector<8x32xf32>
    %111 = math.exp %110 : vector<8x32xf32>
    %cst_22 = arith.constant 1.000000e+00 : f32
    %112 = vector.broadcast %cst_22 : f32 to vector<8x32xf32>
    %113 = arith.addf %112, %111 : vector<8x32xf32>
    %114 = arith.divf %112, %113 : vector<8x32xf32>
    %115 = vector.extract_strided_slice %96 {offsets = [0, 64], sizes = [8, 32], strides = [1, 1]} : vector<8x96xf32> to vector<8x32xf32>
    %116 = vector.extract_strided_slice %98 {offsets = [0, 64], sizes = [8, 32], strides = [1, 1]} : vector<8x96xf32> to vector<8x32xf32>
    %117 = arith.mulf %106, %116 : vector<8x32xf32>
    %118 = arith.addf %115, %117 : vector<8x32xf32>
    %119 = math.tanh %118 : vector<8x32xf32>
    %cst_23 = arith.constant 1.000000e+00 : f32
    %120 = vector.broadcast %cst_23 : f32 to vector<8x32xf32>
    %121 = arith.subf %120, %114 : vector<8x32xf32>
    %122 = arith.mulf %121, %119 : vector<8x32xf32>
    %123 = arith.mulf %114, %94 : vector<8x32xf32>
    %124 = arith.addf %122, %123 : vector<8x32xf32>
    %125 = vector.broadcast %95 : vector<8x1xf32> to vector<8x32xf32>
    %126 = arith.mulf %124, %125 : vector<8x32xf32>
    %127 = vector.broadcast %95 : vector<8x1xf32> to vector<8x32xf32>
    %128 = arith.mulf %127, %124 : vector<8x32xf32>
    %cst_24 = arith.constant 1.000000e+00 : f32
    %129 = vector.broadcast %cst_24 : f32 to vector<8x1xf32>
    %130 = arith.subf %129, %95 : vector<8x1xf32>
    %131 = vector.broadcast %130 : vector<8x1xf32> to vector<8x32xf32>
    %132 = arith.mulf %131, %94 : vector<8x32xf32>
    %133 = arith.addf %128, %132 : vector<8x32xf32>
    %134 = vector.extract_strided_slice %32 {offsets = [0, 2], sizes = [8, 1], strides = [1, 1]} : vector<8x8xf32> to vector<8x1xf32>
    %135 = vector.extract_strided_slice %50 {offsets = [16, 0], sizes = [8, 96], strides = [1, 1]} : vector<64x96xf32> to vector<8x96xf32>
    %cst_25 = arith.constant dense<0.000000e+00> : vector<8x96xf32>
    %136 = tpu.matmul %133, %1, %cst_25 {dimension_numbers = #tpu.dot_dimension_numbers<[1], [0], [0], [1], [0, 0, 1, 1], [], []>, precision = #tpu.contract_precision<fp32>} : vector<8x32xf32>, vector<32x96xf32>, vector<8x96xf32> -> vector<8x96xf32>
    %137 = arith.addf %136, %11 : vector<8x96xf32>
    %138 = vector.extract_strided_slice %135 {offsets = [0, 0], sizes = [8, 32], strides = [1, 1]} : vector<8x96xf32> to vector<8x32xf32>
    %139 = vector.extract_strided_slice %137 {offsets = [0, 0], sizes = [8, 32], strides = [1, 1]} : vector<8x96xf32> to vector<8x32xf32>
    %140 = arith.addf %138, %139 : vector<8x32xf32>
    %141 = arith.negf %140 : vector<8x32xf32>
    %142 = math.exp %141 : vector<8x32xf32>
    %cst_26 = arith.constant 1.000000e+00 : f32
    %143 = vector.broadcast %cst_26 : f32 to vector<8x32xf32>
    %144 = arith.addf %143, %142 : vector<8x32xf32>
    %145 = arith.divf %143, %144 : vector<8x32xf32>
    %146 = vector.extract_strided_slice %135 {offsets = [0, 32], sizes = [8, 32], strides = [1, 1]} : vector<8x96xf32> to vector<8x32xf32>
    %147 = vector.extract_strided_slice %137 {offsets = [0, 32], sizes = [8, 32], strides = [1, 1]} : vector<8x96xf32> to vector<8x32xf32>
    %148 = arith.addf %146, %147 : vector<8x32xf32>
    %149 = arith.negf %148 : vector<8x32xf32>
    %150 = math.exp %149 : vector<8x32xf32>
    %cst_27 = arith.constant 1.000000e+00 : f32
    %151 = vector.broadcast %cst_27 : f32 to vector<8x32xf32>
    %152 = arith.addf %151, %150 : vector<8x32xf32>
    %153 = arith.divf %151, %152 : vector<8x32xf32>
    %154 = vector.extract_strided_slice %135 {offsets = [0, 64], sizes = [8, 32], strides = [1, 1]} : vector<8x96xf32> to vector<8x32xf32>
    %155 = vector.extract_strided_slice %137 {offsets = [0, 64], sizes = [8, 32], strides = [1, 1]} : vector<8x96xf32> to vector<8x32xf32>
    %156 = arith.mulf %145, %155 : vector<8x32xf32>
    %157 = arith.addf %154, %156 : vector<8x32xf32>
    %158 = math.tanh %157 : vector<8x32xf32>
    %cst_28 = arith.constant 1.000000e+00 : f32
    %159 = vector.broadcast %cst_28 : f32 to vector<8x32xf32>
    %160 = arith.subf %159, %153 : vector<8x32xf32>
    %161 = arith.mulf %160, %158 : vector<8x32xf32>
    %162 = arith.mulf %153, %133 : vector<8x32xf32>
    %163 = arith.addf %161, %162 : vector<8x32xf32>
    %164 = vector.broadcast %134 : vector<8x1xf32> to vector<8x32xf32>
    %165 = arith.mulf %163, %164 : vector<8x32xf32>
    %166 = vector.broadcast %134 : vector<8x1xf32> to vector<8x32xf32>
    %167 = arith.mulf %166, %163 : vector<8x32xf32>
    %cst_29 = arith.constant 1.000000e+00 : f32
    %168 = vector.broadcast %cst_29 : f32 to vector<8x1xf32>
    %169 = arith.subf %168, %134 : vector<8x1xf32>
    %170 = vector.broadcast %169 : vector<8x1xf32> to vector<8x32xf32>
    %171 = arith.mulf %170, %133 : vector<8x32xf32>
    %172 = arith.addf %167, %171 : vector<8x32xf32>
    %173 = vector.extract_strided_slice %32 {offsets = [0, 3], sizes = [8, 1], strides = [1, 1]} : vector<8x8xf32> to vector<8x1xf32>
    %174 = vector.extract_strided_slice %50 {offsets = [24, 0], sizes = [8, 96], strides = [1, 1]} : vector<64x96xf32> to vector<8x96xf32>
    %cst_30 = arith.constant dense<0.000000e+00> : vector<8x96xf32>
    %175 = tpu.matmul %172, %1, %cst_30 {dimension_numbers = #tpu.dot_dimension_numbers<[1], [0], [0], [1], [0, 0, 1, 1], [], []>, precision = #tpu.contract_precision<fp32>} : vector<8x32xf32>, vector<32x96xf32>, vector<8x96xf32> -> vector<8x96xf32>
    %176 = arith.addf %175, %11 : vector<8x96xf32>
    %177 = vector.extract_strided_slice %174 {offsets = [0, 0], sizes = [8, 32], strides = [1, 1]} : vector<8x96xf32> to vector<8x32xf32>
    %178 = vector.extract_strided_slice %176 {offsets = [0, 0], sizes = [8, 32], strides = [1, 1]} : vector<8x96xf32> to vector<8x32xf32>
    %179 = arith.addf %177, %178 : vector<8x32xf32>
    %180 = arith.negf %179 : vector<8x32xf32>
    %181 = math.exp %180 : vector<8x32xf32>
    %cst_31 = arith.constant 1.000000e+00 : f32
    %182 = vector.broadcast %cst_31 : f32 to vector<8x32xf32>
    %183 = arith.addf %182, %181 : vector<8x32xf32>
    %184 = arith.divf %182, %183 : vector<8x32xf32>
    %185 = vector.extract_strided_slice %174 {offsets = [0, 32], sizes = [8, 32], strides = [1, 1]} : vector<8x96xf32> to vector<8x32xf32>
    %186 = vector.extract_strided_slice %176 {offsets = [0, 32], sizes = [8, 32], strides = [1, 1]} : vector<8x96xf32> to vector<8x32xf32>
    %187 = arith.addf %185, %186 : vector<8x32xf32>
    %188 = arith.negf %187 : vector<8x32xf32>
    %189 = math.exp %188 : vector<8x32xf32>
    %cst_32 = arith.constant 1.000000e+00 : f32
    %190 = vector.broadcast %cst_32 : f32 to vector<8x32xf32>
    %191 = arith.addf %190, %189 : vector<8x32xf32>
    %192 = arith.divf %190, %191 : vector<8x32xf32>
    %193 = vector.extract_strided_slice %174 {offsets = [0, 64], sizes = [8, 32], strides = [1, 1]} : vector<8x96xf32> to vector<8x32xf32>
    %194 = vector.extract_strided_slice %176 {offsets = [0, 64], sizes = [8, 32], strides = [1, 1]} : vector<8x96xf32> to vector<8x32xf32>
    %195 = arith.mulf %184, %194 : vector<8x32xf32>
    %196 = arith.addf %193, %195 : vector<8x32xf32>
    %197 = math.tanh %196 : vector<8x32xf32>
    %cst_33 = arith.constant 1.000000e+00 : f32
    %198 = vector.broadcast %cst_33 : f32 to vector<8x32xf32>
    %199 = arith.subf %198, %192 : vector<8x32xf32>
    %200 = arith.mulf %199, %197 : vector<8x32xf32>
    %201 = arith.mulf %192, %172 : vector<8x32xf32>
    %202 = arith.addf %200, %201 : vector<8x32xf32>
    %203 = vector.broadcast %173 : vector<8x1xf32> to vector<8x32xf32>
    %204 = arith.mulf %202, %203 : vector<8x32xf32>
    %205 = vector.broadcast %173 : vector<8x1xf32> to vector<8x32xf32>
    %206 = arith.mulf %205, %202 : vector<8x32xf32>
    %cst_34 = arith.constant 1.000000e+00 : f32
    %207 = vector.broadcast %cst_34 : f32 to vector<8x1xf32>
    %208 = arith.subf %207, %173 : vector<8x1xf32>
    %209 = vector.broadcast %208 : vector<8x1xf32> to vector<8x32xf32>
    %210 = arith.mulf %209, %172 : vector<8x32xf32>
    %211 = arith.addf %206, %210 : vector<8x32xf32>
    %212 = vector.extract_strided_slice %32 {offsets = [0, 4], sizes = [8, 1], strides = [1, 1]} : vector<8x8xf32> to vector<8x1xf32>
    %213 = vector.extract_strided_slice %50 {offsets = [32, 0], sizes = [8, 96], strides = [1, 1]} : vector<64x96xf32> to vector<8x96xf32>
    %cst_35 = arith.constant dense<0.000000e+00> : vector<8x96xf32>
    %214 = tpu.matmul %211, %1, %cst_35 {dimension_numbers = #tpu.dot_dimension_numbers<[1], [0], [0], [1], [0, 0, 1, 1], [], []>, precision = #tpu.contract_precision<fp32>} : vector<8x32xf32>, vector<32x96xf32>, vector<8x96xf32> -> vector<8x96xf32>
    %215 = arith.addf %214, %11 : vector<8x96xf32>
    %216 = vector.extract_strided_slice %213 {offsets = [0, 0], sizes = [8, 32], strides = [1, 1]} : vector<8x96xf32> to vector<8x32xf32>
    %217 = vector.extract_strided_slice %215 {offsets = [0, 0], sizes = [8, 32], strides = [1, 1]} : vector<8x96xf32> to vector<8x32xf32>
    %218 = arith.addf %216, %217 : vector<8x32xf32>
    %219 = arith.negf %218 : vector<8x32xf32>
    %220 = math.exp %219 : vector<8x32xf32>
    %cst_36 = arith.constant 1.000000e+00 : f32
    %221 = vector.broadcast %cst_36 : f32 to vector<8x32xf32>
    %222 = arith.addf %221, %220 : vector<8x32xf32>
    %223 = arith.divf %221, %222 : vector<8x32xf32>
    %224 = vector.extract_strided_slice %213 {offsets = [0, 32], sizes = [8, 32], strides = [1, 1]} : vector<8x96xf32> to vector<8x32xf32>
    %225 = vector.extract_strided_slice %215 {offsets = [0, 32], sizes = [8, 32], strides = [1, 1]} : vector<8x96xf32> to vector<8x32xf32>
    %226 = arith.addf %224, %225 : vector<8x32xf32>
    %227 = arith.negf %226 : vector<8x32xf32>
    %228 = math.exp %227 : vector<8x32xf32>
    %cst_37 = arith.constant 1.000000e+00 : f32
    %229 = vector.broadcast %cst_37 : f32 to vector<8x32xf32>
    %230 = arith.addf %229, %228 : vector<8x32xf32>
    %231 = arith.divf %229, %230 : vector<8x32xf32>
    %232 = vector.extract_strided_slice %213 {offsets = [0, 64], sizes = [8, 32], strides = [1, 1]} : vector<8x96xf32> to vector<8x32xf32>
    %233 = vector.extract_strided_slice %215 {offsets = [0, 64], sizes = [8, 32], strides = [1, 1]} : vector<8x96xf32> to vector<8x32xf32>
    %234 = arith.mulf %223, %233 : vector<8x32xf32>
    %235 = arith.addf %232, %234 : vector<8x32xf32>
    %236 = math.tanh %235 : vector<8x32xf32>
    %cst_38 = arith.constant 1.000000e+00 : f32
    %237 = vector.broadcast %cst_38 : f32 to vector<8x32xf32>
    %238 = arith.subf %237, %231 : vector<8x32xf32>
    %239 = arith.mulf %238, %236 : vector<8x32xf32>
    %240 = arith.mulf %231, %211 : vector<8x32xf32>
    %241 = arith.addf %239, %240 : vector<8x32xf32>
    %242 = vector.broadcast %212 : vector<8x1xf32> to vector<8x32xf32>
    %243 = arith.mulf %241, %242 : vector<8x32xf32>
    %244 = vector.broadcast %212 : vector<8x1xf32> to vector<8x32xf32>
    %245 = arith.mulf %244, %241 : vector<8x32xf32>
    %cst_39 = arith.constant 1.000000e+00 : f32
    %246 = vector.broadcast %cst_39 : f32 to vector<8x1xf32>
    %247 = arith.subf %246, %212 : vector<8x1xf32>
    %248 = vector.broadcast %247 : vector<8x1xf32> to vector<8x32xf32>
    %249 = arith.mulf %248, %211 : vector<8x32xf32>
    %250 = arith.addf %245, %249 : vector<8x32xf32>
    %251 = vector.extract_strided_slice %32 {offsets = [0, 5], sizes = [8, 1], strides = [1, 1]} : vector<8x8xf32> to vector<8x1xf32>
    %252 = vector.extract_strided_slice %50 {offsets = [40, 0], sizes = [8, 96], strides = [1, 1]} : vector<64x96xf32> to vector<8x96xf32>
    %cst_40 = arith.constant dense<0.000000e+00> : vector<8x96xf32>
    %253 = tpu.matmul %250, %1, %cst_40 {dimension_numbers = #tpu.dot_dimension_numbers<[1], [0], [0], [1], [0, 0, 1, 1], [], []>, precision = #tpu.contract_precision<fp32>} : vector<8x32xf32>, vector<32x96xf32>, vector<8x96xf32> -> vector<8x96xf32>
    %254 = arith.addf %253, %11 : vector<8x96xf32>
    %255 = vector.extract_strided_slice %252 {offsets = [0, 0], sizes = [8, 32], strides = [1, 1]} : vector<8x96xf32> to vector<8x32xf32>
    %256 = vector.extract_strided_slice %254 {offsets = [0, 0], sizes = [8, 32], strides = [1, 1]} : vector<8x96xf32> to vector<8x32xf32>
    %257 = arith.addf %255, %256 : vector<8x32xf32>
    %258 = arith.negf %257 : vector<8x32xf32>
    %259 = math.exp %258 : vector<8x32xf32>
    %cst_41 = arith.constant 1.000000e+00 : f32
    %260 = vector.broadcast %cst_41 : f32 to vector<8x32xf32>
    %261 = arith.addf %260, %259 : vector<8x32xf32>
    %262 = arith.divf %260, %261 : vector<8x32xf32>
    %263 = vector.extract_strided_slice %252 {offsets = [0, 32], sizes = [8, 32], strides = [1, 1]} : vector<8x96xf32> to vector<8x32xf32>
    %264 = vector.extract_strided_slice %254 {offsets = [0, 32], sizes = [8, 32], strides = [1, 1]} : vector<8x96xf32> to vector<8x32xf32>
    %265 = arith.addf %263, %264 : vector<8x32xf32>
    %266 = arith.negf %265 : vector<8x32xf32>
    %267 = math.exp %266 : vector<8x32xf32>
    %cst_42 = arith.constant 1.000000e+00 : f32
    %268 = vector.broadcast %cst_42 : f32 to vector<8x32xf32>
    %269 = arith.addf %268, %267 : vector<8x32xf32>
    %270 = arith.divf %268, %269 : vector<8x32xf32>
    %271 = vector.extract_strided_slice %252 {offsets = [0, 64], sizes = [8, 32], strides = [1, 1]} : vector<8x96xf32> to vector<8x32xf32>
    %272 = vector.extract_strided_slice %254 {offsets = [0, 64], sizes = [8, 32], strides = [1, 1]} : vector<8x96xf32> to vector<8x32xf32>
    %273 = arith.mulf %262, %272 : vector<8x32xf32>
    %274 = arith.addf %271, %273 : vector<8x32xf32>
    %275 = math.tanh %274 : vector<8x32xf32>
    %cst_43 = arith.constant 1.000000e+00 : f32
    %276 = vector.broadcast %cst_43 : f32 to vector<8x32xf32>
    %277 = arith.subf %276, %270 : vector<8x32xf32>
    %278 = arith.mulf %277, %275 : vector<8x32xf32>
    %279 = arith.mulf %270, %250 : vector<8x32xf32>
    %280 = arith.addf %278, %279 : vector<8x32xf32>
    %281 = vector.broadcast %251 : vector<8x1xf32> to vector<8x32xf32>
    %282 = arith.mulf %280, %281 : vector<8x32xf32>
    %283 = vector.broadcast %251 : vector<8x1xf32> to vector<8x32xf32>
    %284 = arith.mulf %283, %280 : vector<8x32xf32>
    %cst_44 = arith.constant 1.000000e+00 : f32
    %285 = vector.broadcast %cst_44 : f32 to vector<8x1xf32>
    %286 = arith.subf %285, %251 : vector<8x1xf32>
    %287 = vector.broadcast %286 : vector<8x1xf32> to vector<8x32xf32>
    %288 = arith.mulf %287, %250 : vector<8x32xf32>
    %289 = arith.addf %284, %288 : vector<8x32xf32>
    %290 = vector.extract_strided_slice %32 {offsets = [0, 6], sizes = [8, 1], strides = [1, 1]} : vector<8x8xf32> to vector<8x1xf32>
    %291 = vector.extract_strided_slice %50 {offsets = [48, 0], sizes = [8, 96], strides = [1, 1]} : vector<64x96xf32> to vector<8x96xf32>
    %cst_45 = arith.constant dense<0.000000e+00> : vector<8x96xf32>
    %292 = tpu.matmul %289, %1, %cst_45 {dimension_numbers = #tpu.dot_dimension_numbers<[1], [0], [0], [1], [0, 0, 1, 1], [], []>, precision = #tpu.contract_precision<fp32>} : vector<8x32xf32>, vector<32x96xf32>, vector<8x96xf32> -> vector<8x96xf32>
    %293 = arith.addf %292, %11 : vector<8x96xf32>
    %294 = vector.extract_strided_slice %291 {offsets = [0, 0], sizes = [8, 32], strides = [1, 1]} : vector<8x96xf32> to vector<8x32xf32>
    %295 = vector.extract_strided_slice %293 {offsets = [0, 0], sizes = [8, 32], strides = [1, 1]} : vector<8x96xf32> to vector<8x32xf32>
    %296 = arith.addf %294, %295 : vector<8x32xf32>
    %297 = arith.negf %296 : vector<8x32xf32>
    %298 = math.exp %297 : vector<8x32xf32>
    %cst_46 = arith.constant 1.000000e+00 : f32
    %299 = vector.broadcast %cst_46 : f32 to vector<8x32xf32>
    %300 = arith.addf %299, %298 : vector<8x32xf32>
    %301 = arith.divf %299, %300 : vector<8x32xf32>
    %302 = vector.extract_strided_slice %291 {offsets = [0, 32], sizes = [8, 32], strides = [1, 1]} : vector<8x96xf32> to vector<8x32xf32>
    %303 = vector.extract_strided_slice %293 {offsets = [0, 32], sizes = [8, 32], strides = [1, 1]} : vector<8x96xf32> to vector<8x32xf32>
    %304 = arith.addf %302, %303 : vector<8x32xf32>
    %305 = arith.negf %304 : vector<8x32xf32>
    %306 = math.exp %305 : vector<8x32xf32>
    %cst_47 = arith.constant 1.000000e+00 : f32
    %307 = vector.broadcast %cst_47 : f32 to vector<8x32xf32>
    %308 = arith.addf %307, %306 : vector<8x32xf32>
    %309 = arith.divf %307, %308 : vector<8x32xf32>
    %310 = vector.extract_strided_slice %291 {offsets = [0, 64], sizes = [8, 32], strides = [1, 1]} : vector<8x96xf32> to vector<8x32xf32>
    %311 = vector.extract_strided_slice %293 {offsets = [0, 64], sizes = [8, 32], strides = [1, 1]} : vector<8x96xf32> to vector<8x32xf32>
    %312 = arith.mulf %301, %311 : vector<8x32xf32>
    %313 = arith.addf %310, %312 : vector<8x32xf32>
    %314 = math.tanh %313 : vector<8x32xf32>
    %cst_48 = arith.constant 1.000000e+00 : f32
    %315 = vector.broadcast %cst_48 : f32 to vector<8x32xf32>
    %316 = arith.subf %315, %309 : vector<8x32xf32>
    %317 = arith.mulf %316, %314 : vector<8x32xf32>
    %318 = arith.mulf %309, %289 : vector<8x32xf32>
    %319 = arith.addf %317, %318 : vector<8x32xf32>
    %320 = vector.broadcast %290 : vector<8x1xf32> to vector<8x32xf32>
    %321 = arith.mulf %319, %320 : vector<8x32xf32>
    %322 = vector.broadcast %290 : vector<8x1xf32> to vector<8x32xf32>
    %323 = arith.mulf %322, %319 : vector<8x32xf32>
    %cst_49 = arith.constant 1.000000e+00 : f32
    %324 = vector.broadcast %cst_49 : f32 to vector<8x1xf32>
    %325 = arith.subf %324, %290 : vector<8x1xf32>
    %326 = vector.broadcast %325 : vector<8x1xf32> to vector<8x32xf32>
    %327 = arith.mulf %326, %289 : vector<8x32xf32>
    %328 = arith.addf %323, %327 : vector<8x32xf32>
    %329 = vector.extract_strided_slice %32 {offsets = [0, 7], sizes = [8, 1], strides = [1, 1]} : vector<8x8xf32> to vector<8x1xf32>
    %330 = vector.extract_strided_slice %50 {offsets = [56, 0], sizes = [8, 96], strides = [1, 1]} : vector<64x96xf32> to vector<8x96xf32>
    %cst_50 = arith.constant dense<0.000000e+00> : vector<8x96xf32>
    %331 = tpu.matmul %328, %1, %cst_50 {dimension_numbers = #tpu.dot_dimension_numbers<[1], [0], [0], [1], [0, 0, 1, 1], [], []>, precision = #tpu.contract_precision<fp32>} : vector<8x32xf32>, vector<32x96xf32>, vector<8x96xf32> -> vector<8x96xf32>
    %332 = arith.addf %331, %11 : vector<8x96xf32>
    %333 = vector.extract_strided_slice %330 {offsets = [0, 0], sizes = [8, 32], strides = [1, 1]} : vector<8x96xf32> to vector<8x32xf32>
    %334 = vector.extract_strided_slice %332 {offsets = [0, 0], sizes = [8, 32], strides = [1, 1]} : vector<8x96xf32> to vector<8x32xf32>
    %335 = arith.addf %333, %334 : vector<8x32xf32>
    %336 = arith.negf %335 : vector<8x32xf32>
    %337 = math.exp %336 : vector<8x32xf32>
    %cst_51 = arith.constant 1.000000e+00 : f32
    %338 = vector.broadcast %cst_51 : f32 to vector<8x32xf32>
    %339 = arith.addf %338, %337 : vector<8x32xf32>
    %340 = arith.divf %338, %339 : vector<8x32xf32>
    %341 = vector.extract_strided_slice %330 {offsets = [0, 32], sizes = [8, 32], strides = [1, 1]} : vector<8x96xf32> to vector<8x32xf32>
    %342 = vector.extract_strided_slice %332 {offsets = [0, 32], sizes = [8, 32], strides = [1, 1]} : vector<8x96xf32> to vector<8x32xf32>
    %343 = arith.addf %341, %342 : vector<8x32xf32>
    %344 = arith.negf %343 : vector<8x32xf32>
    %345 = math.exp %344 : vector<8x32xf32>
    %cst_52 = arith.constant 1.000000e+00 : f32
    %346 = vector.broadcast %cst_52 : f32 to vector<8x32xf32>
    %347 = arith.addf %346, %345 : vector<8x32xf32>
    %348 = arith.divf %346, %347 : vector<8x32xf32>
    %349 = vector.extract_strided_slice %330 {offsets = [0, 64], sizes = [8, 32], strides = [1, 1]} : vector<8x96xf32> to vector<8x32xf32>
    %350 = vector.extract_strided_slice %332 {offsets = [0, 64], sizes = [8, 32], strides = [1, 1]} : vector<8x96xf32> to vector<8x32xf32>
    %351 = arith.mulf %340, %350 : vector<8x32xf32>
    %352 = arith.addf %349, %351 : vector<8x32xf32>
    %353 = math.tanh %352 : vector<8x32xf32>
    %cst_53 = arith.constant 1.000000e+00 : f32
    %354 = vector.broadcast %cst_53 : f32 to vector<8x32xf32>
    %355 = arith.subf %354, %348 : vector<8x32xf32>
    %356 = arith.mulf %355, %353 : vector<8x32xf32>
    %357 = arith.mulf %348, %328 : vector<8x32xf32>
    %358 = arith.addf %356, %357 : vector<8x32xf32>
    %359 = vector.broadcast %329 : vector<8x1xf32> to vector<8x32xf32>
    %360 = arith.mulf %358, %359 : vector<8x32xf32>
    %361 = vector.broadcast %329 : vector<8x1xf32> to vector<8x32xf32>
    %362 = arith.mulf %361, %358 : vector<8x32xf32>
    %cst_54 = arith.constant 1.000000e+00 : f32
    %363 = vector.broadcast %cst_54 : f32 to vector<8x1xf32>
    %364 = arith.subf %363, %329 : vector<8x1xf32>
    %365 = vector.broadcast %364 : vector<8x1xf32> to vector<8x32xf32>
    %366 = arith.mulf %365, %328 : vector<8x32xf32>
    %367 = arith.addf %362, %366 : vector<8x32xf32>
    %368 = vector.extract_strided_slice %54 {offsets = [0, 0], sizes = [8, 96], strides = [1, 1]} : vector<40x96xf32> to vector<8x96xf32>
    %cst_55 = arith.constant dense<0.000000e+00> : vector<8x96xf32>
    %369 = tpu.matmul %367, %3, %cst_55 {dimension_numbers = #tpu.dot_dimension_numbers<[1], [0], [0], [1], [0, 0, 1, 1], [], []>, precision = #tpu.contract_precision<fp32>} : vector<8x32xf32>, vector<32x96xf32>, vector<8x96xf32> -> vector<8x96xf32>
    %370 = arith.addf %369, %15 : vector<8x96xf32>
    %371 = vector.extract_strided_slice %368 {offsets = [0, 0], sizes = [8, 32], strides = [1, 1]} : vector<8x96xf32> to vector<8x32xf32>
    %372 = vector.extract_strided_slice %370 {offsets = [0, 0], sizes = [8, 32], strides = [1, 1]} : vector<8x96xf32> to vector<8x32xf32>
    %373 = arith.addf %371, %372 : vector<8x32xf32>
    %374 = arith.negf %373 : vector<8x32xf32>
    %375 = math.exp %374 : vector<8x32xf32>
    %cst_56 = arith.constant 1.000000e+00 : f32
    %376 = vector.broadcast %cst_56 : f32 to vector<8x32xf32>
    %377 = arith.addf %376, %375 : vector<8x32xf32>
    %378 = arith.divf %376, %377 : vector<8x32xf32>
    %379 = vector.extract_strided_slice %368 {offsets = [0, 32], sizes = [8, 32], strides = [1, 1]} : vector<8x96xf32> to vector<8x32xf32>
    %380 = vector.extract_strided_slice %370 {offsets = [0, 32], sizes = [8, 32], strides = [1, 1]} : vector<8x96xf32> to vector<8x32xf32>
    %381 = arith.addf %379, %380 : vector<8x32xf32>
    %382 = arith.negf %381 : vector<8x32xf32>
    %383 = math.exp %382 : vector<8x32xf32>
    %cst_57 = arith.constant 1.000000e+00 : f32
    %384 = vector.broadcast %cst_57 : f32 to vector<8x32xf32>
    %385 = arith.addf %384, %383 : vector<8x32xf32>
    %386 = arith.divf %384, %385 : vector<8x32xf32>
    %387 = vector.extract_strided_slice %368 {offsets = [0, 64], sizes = [8, 32], strides = [1, 1]} : vector<8x96xf32> to vector<8x32xf32>
    %388 = vector.extract_strided_slice %370 {offsets = [0, 64], sizes = [8, 32], strides = [1, 1]} : vector<8x96xf32> to vector<8x32xf32>
    %389 = arith.mulf %378, %388 : vector<8x32xf32>
    %390 = arith.addf %387, %389 : vector<8x32xf32>
    %391 = math.tanh %390 : vector<8x32xf32>
    %cst_58 = arith.constant 1.000000e+00 : f32
    %392 = vector.broadcast %cst_58 : f32 to vector<8x32xf32>
    %393 = arith.subf %392, %386 : vector<8x32xf32>
    %394 = arith.mulf %393, %391 : vector<8x32xf32>
    %395 = arith.mulf %386, %367 : vector<8x32xf32>
    %396 = arith.addf %394, %395 : vector<8x32xf32>
    %397 = vector.extract_strided_slice %54 {offsets = [8, 0], sizes = [8, 96], strides = [1, 1]} : vector<40x96xf32> to vector<8x96xf32>
    %cst_59 = arith.constant dense<0.000000e+00> : vector<8x96xf32>
    %398 = tpu.matmul %396, %3, %cst_59 {dimension_numbers = #tpu.dot_dimension_numbers<[1], [0], [0], [1], [0, 0, 1, 1], [], []>, precision = #tpu.contract_precision<fp32>} : vector<8x32xf32>, vector<32x96xf32>, vector<8x96xf32> -> vector<8x96xf32>
    %399 = arith.addf %398, %15 : vector<8x96xf32>
    %400 = vector.extract_strided_slice %397 {offsets = [0, 0], sizes = [8, 32], strides = [1, 1]} : vector<8x96xf32> to vector<8x32xf32>
    %401 = vector.extract_strided_slice %399 {offsets = [0, 0], sizes = [8, 32], strides = [1, 1]} : vector<8x96xf32> to vector<8x32xf32>
    %402 = arith.addf %400, %401 : vector<8x32xf32>
    %403 = arith.negf %402 : vector<8x32xf32>
    %404 = math.exp %403 : vector<8x32xf32>
    %cst_60 = arith.constant 1.000000e+00 : f32
    %405 = vector.broadcast %cst_60 : f32 to vector<8x32xf32>
    %406 = arith.addf %405, %404 : vector<8x32xf32>
    %407 = arith.divf %405, %406 : vector<8x32xf32>
    %408 = vector.extract_strided_slice %397 {offsets = [0, 32], sizes = [8, 32], strides = [1, 1]} : vector<8x96xf32> to vector<8x32xf32>
    %409 = vector.extract_strided_slice %399 {offsets = [0, 32], sizes = [8, 32], strides = [1, 1]} : vector<8x96xf32> to vector<8x32xf32>
    %410 = arith.addf %408, %409 : vector<8x32xf32>
    %411 = arith.negf %410 : vector<8x32xf32>
    %412 = math.exp %411 : vector<8x32xf32>
    %cst_61 = arith.constant 1.000000e+00 : f32
    %413 = vector.broadcast %cst_61 : f32 to vector<8x32xf32>
    %414 = arith.addf %413, %412 : vector<8x32xf32>
    %415 = arith.divf %413, %414 : vector<8x32xf32>
    %416 = vector.extract_strided_slice %397 {offsets = [0, 64], sizes = [8, 32], strides = [1, 1]} : vector<8x96xf32> to vector<8x32xf32>
    %417 = vector.extract_strided_slice %399 {offsets = [0, 64], sizes = [8, 32], strides = [1, 1]} : vector<8x96xf32> to vector<8x32xf32>
    %418 = arith.mulf %407, %417 : vector<8x32xf32>
    %419 = arith.addf %416, %418 : vector<8x32xf32>
    %420 = math.tanh %419 : vector<8x32xf32>
    %cst_62 = arith.constant 1.000000e+00 : f32
    %421 = vector.broadcast %cst_62 : f32 to vector<8x32xf32>
    %422 = arith.subf %421, %415 : vector<8x32xf32>
    %423 = arith.mulf %422, %420 : vector<8x32xf32>
    %424 = arith.mulf %415, %396 : vector<8x32xf32>
    %425 = arith.addf %423, %424 : vector<8x32xf32>
    %426 = vector.extract_strided_slice %54 {offsets = [16, 0], sizes = [8, 96], strides = [1, 1]} : vector<40x96xf32> to vector<8x96xf32>
    %cst_63 = arith.constant dense<0.000000e+00> : vector<8x96xf32>
    %427 = tpu.matmul %425, %3, %cst_63 {dimension_numbers = #tpu.dot_dimension_numbers<[1], [0], [0], [1], [0, 0, 1, 1], [], []>, precision = #tpu.contract_precision<fp32>} : vector<8x32xf32>, vector<32x96xf32>, vector<8x96xf32> -> vector<8x96xf32>
    %428 = arith.addf %427, %15 : vector<8x96xf32>
    %429 = vector.extract_strided_slice %426 {offsets = [0, 0], sizes = [8, 32], strides = [1, 1]} : vector<8x96xf32> to vector<8x32xf32>
    %430 = vector.extract_strided_slice %428 {offsets = [0, 0], sizes = [8, 32], strides = [1, 1]} : vector<8x96xf32> to vector<8x32xf32>
    %431 = arith.addf %429, %430 : vector<8x32xf32>
    %432 = arith.negf %431 : vector<8x32xf32>
    %433 = math.exp %432 : vector<8x32xf32>
    %cst_64 = arith.constant 1.000000e+00 : f32
    %434 = vector.broadcast %cst_64 : f32 to vector<8x32xf32>
    %435 = arith.addf %434, %433 : vector<8x32xf32>
    %436 = arith.divf %434, %435 : vector<8x32xf32>
    %437 = vector.extract_strided_slice %426 {offsets = [0, 32], sizes = [8, 32], strides = [1, 1]} : vector<8x96xf32> to vector<8x32xf32>
    %438 = vector.extract_strided_slice %428 {offsets = [0, 32], sizes = [8, 32], strides = [1, 1]} : vector<8x96xf32> to vector<8x32xf32>
    %439 = arith.addf %437, %438 : vector<8x32xf32>
    %440 = arith.negf %439 : vector<8x32xf32>
    %441 = math.exp %440 : vector<8x32xf32>
    %cst_65 = arith.constant 1.000000e+00 : f32
    %442 = vector.broadcast %cst_65 : f32 to vector<8x32xf32>
    %443 = arith.addf %442, %441 : vector<8x32xf32>
    %444 = arith.divf %442, %443 : vector<8x32xf32>
    %445 = vector.extract_strided_slice %426 {offsets = [0, 64], sizes = [8, 32], strides = [1, 1]} : vector<8x96xf32> to vector<8x32xf32>
    %446 = vector.extract_strided_slice %428 {offsets = [0, 64], sizes = [8, 32], strides = [1, 1]} : vector<8x96xf32> to vector<8x32xf32>
    %447 = arith.mulf %436, %446 : vector<8x32xf32>
    %448 = arith.addf %445, %447 : vector<8x32xf32>
    %449 = math.tanh %448 : vector<8x32xf32>
    %cst_66 = arith.constant 1.000000e+00 : f32
    %450 = vector.broadcast %cst_66 : f32 to vector<8x32xf32>
    %451 = arith.subf %450, %444 : vector<8x32xf32>
    %452 = arith.mulf %451, %449 : vector<8x32xf32>
    %453 = arith.mulf %444, %425 : vector<8x32xf32>
    %454 = arith.addf %452, %453 : vector<8x32xf32>
    %455 = vector.extract_strided_slice %54 {offsets = [24, 0], sizes = [8, 96], strides = [1, 1]} : vector<40x96xf32> to vector<8x96xf32>
    %cst_67 = arith.constant dense<0.000000e+00> : vector<8x96xf32>
    %456 = tpu.matmul %454, %3, %cst_67 {dimension_numbers = #tpu.dot_dimension_numbers<[1], [0], [0], [1], [0, 0, 1, 1], [], []>, precision = #tpu.contract_precision<fp32>} : vector<8x32xf32>, vector<32x96xf32>, vector<8x96xf32> -> vector<8x96xf32>
    %457 = arith.addf %456, %15 : vector<8x96xf32>
    %458 = vector.extract_strided_slice %455 {offsets = [0, 0], sizes = [8, 32], strides = [1, 1]} : vector<8x96xf32> to vector<8x32xf32>
    %459 = vector.extract_strided_slice %457 {offsets = [0, 0], sizes = [8, 32], strides = [1, 1]} : vector<8x96xf32> to vector<8x32xf32>
    %460 = arith.addf %458, %459 : vector<8x32xf32>
    %461 = arith.negf %460 : vector<8x32xf32>
    %462 = math.exp %461 : vector<8x32xf32>
    %cst_68 = arith.constant 1.000000e+00 : f32
    %463 = vector.broadcast %cst_68 : f32 to vector<8x32xf32>
    %464 = arith.addf %463, %462 : vector<8x32xf32>
    %465 = arith.divf %463, %464 : vector<8x32xf32>
    %466 = vector.extract_strided_slice %455 {offsets = [0, 32], sizes = [8, 32], strides = [1, 1]} : vector<8x96xf32> to vector<8x32xf32>
    %467 = vector.extract_strided_slice %457 {offsets = [0, 32], sizes = [8, 32], strides = [1, 1]} : vector<8x96xf32> to vector<8x32xf32>
    %468 = arith.addf %466, %467 : vector<8x32xf32>
    %469 = arith.negf %468 : vector<8x32xf32>
    %470 = math.exp %469 : vector<8x32xf32>
    %cst_69 = arith.constant 1.000000e+00 : f32
    %471 = vector.broadcast %cst_69 : f32 to vector<8x32xf32>
    %472 = arith.addf %471, %470 : vector<8x32xf32>
    %473 = arith.divf %471, %472 : vector<8x32xf32>
    %474 = vector.extract_strided_slice %455 {offsets = [0, 64], sizes = [8, 32], strides = [1, 1]} : vector<8x96xf32> to vector<8x32xf32>
    %475 = vector.extract_strided_slice %457 {offsets = [0, 64], sizes = [8, 32], strides = [1, 1]} : vector<8x96xf32> to vector<8x32xf32>
    %476 = arith.mulf %465, %475 : vector<8x32xf32>
    %477 = arith.addf %474, %476 : vector<8x32xf32>
    %478 = math.tanh %477 : vector<8x32xf32>
    %cst_70 = arith.constant 1.000000e+00 : f32
    %479 = vector.broadcast %cst_70 : f32 to vector<8x32xf32>
    %480 = arith.subf %479, %473 : vector<8x32xf32>
    %481 = arith.mulf %480, %478 : vector<8x32xf32>
    %482 = arith.mulf %473, %454 : vector<8x32xf32>
    %483 = arith.addf %481, %482 : vector<8x32xf32>
    %484 = vector.extract_strided_slice %54 {offsets = [32, 0], sizes = [8, 96], strides = [1, 1]} : vector<40x96xf32> to vector<8x96xf32>
    %cst_71 = arith.constant dense<0.000000e+00> : vector<8x96xf32>
    %485 = tpu.matmul %483, %3, %cst_71 {dimension_numbers = #tpu.dot_dimension_numbers<[1], [0], [0], [1], [0, 0, 1, 1], [], []>, precision = #tpu.contract_precision<fp32>} : vector<8x32xf32>, vector<32x96xf32>, vector<8x96xf32> -> vector<8x96xf32>
    %486 = arith.addf %485, %15 : vector<8x96xf32>
    %487 = vector.extract_strided_slice %484 {offsets = [0, 0], sizes = [8, 32], strides = [1, 1]} : vector<8x96xf32> to vector<8x32xf32>
    %488 = vector.extract_strided_slice %486 {offsets = [0, 0], sizes = [8, 32], strides = [1, 1]} : vector<8x96xf32> to vector<8x32xf32>
    %489 = arith.addf %487, %488 : vector<8x32xf32>
    %490 = arith.negf %489 : vector<8x32xf32>
    %491 = math.exp %490 : vector<8x32xf32>
    %cst_72 = arith.constant 1.000000e+00 : f32
    %492 = vector.broadcast %cst_72 : f32 to vector<8x32xf32>
    %493 = arith.addf %492, %491 : vector<8x32xf32>
    %494 = arith.divf %492, %493 : vector<8x32xf32>
    %495 = vector.extract_strided_slice %484 {offsets = [0, 32], sizes = [8, 32], strides = [1, 1]} : vector<8x96xf32> to vector<8x32xf32>
    %496 = vector.extract_strided_slice %486 {offsets = [0, 32], sizes = [8, 32], strides = [1, 1]} : vector<8x96xf32> to vector<8x32xf32>
    %497 = arith.addf %495, %496 : vector<8x32xf32>
    %498 = arith.negf %497 : vector<8x32xf32>
    %499 = math.exp %498 : vector<8x32xf32>
    %cst_73 = arith.constant 1.000000e+00 : f32
    %500 = vector.broadcast %cst_73 : f32 to vector<8x32xf32>
    %501 = arith.addf %500, %499 : vector<8x32xf32>
    %502 = arith.divf %500, %501 : vector<8x32xf32>
    %503 = vector.extract_strided_slice %484 {offsets = [0, 64], sizes = [8, 32], strides = [1, 1]} : vector<8x96xf32> to vector<8x32xf32>
    %504 = vector.extract_strided_slice %486 {offsets = [0, 64], sizes = [8, 32], strides = [1, 1]} : vector<8x96xf32> to vector<8x32xf32>
    %505 = arith.mulf %494, %504 : vector<8x32xf32>
    %506 = arith.addf %503, %505 : vector<8x32xf32>
    %507 = math.tanh %506 : vector<8x32xf32>
    %cst_74 = arith.constant 1.000000e+00 : f32
    %508 = vector.broadcast %cst_74 : f32 to vector<8x32xf32>
    %509 = arith.subf %508, %502 : vector<8x32xf32>
    %510 = arith.mulf %509, %507 : vector<8x32xf32>
    %511 = arith.mulf %502, %483 : vector<8x32xf32>
    %512 = arith.addf %510, %511 : vector<8x32xf32>
    %513 = tpu.concatenate %396, %425, %454, %483, %512 in 0 : vector<8x32xf32>, vector<8x32xf32>, vector<8x32xf32>, vector<8x32xf32>, vector<8x32xf32> -> vector<40x32xf32>
    %cst_75 = arith.constant dense<0.000000e+00> : vector<40x32xf32>
    %514 = tpu.matmul %513, %5, %cst_75 {dimension_numbers = #tpu.dot_dimension_numbers<[1], [0], [0], [1], [0, 0, 1, 1], [], []>, precision = #tpu.contract_precision<fp32>} : vector<40x32xf32>, vector<32x32xf32>, vector<40x32xf32> -> vector<40x32xf32>
    %515 = vector.shape_cast %514 : vector<40x32xf32> to vector<5x8x32xf32>
    %516 = vector.shape_cast %87 : vector<8x32xf32> to vector<1x8x32xf32>
    %517 = vector.broadcast %516 : vector<1x8x32xf32> to vector<5x8x32xf32>
    %518 = arith.mulf %515, %517 : vector<5x8x32xf32>
    %cst_76 = arith.constant dense<0.000000e+00> : vector<5x8xf32>
    %519 = vector.multi_reduction <add>, %518, %cst_76 [2] : vector<5x8x32xf32> to vector<5x8xf32>
    %520 = vector.shape_cast %519 : vector<5x8xf32> to vector<5x8x1xf32>
    %521 = vector.shape_cast %126 : vector<8x32xf32> to vector<1x8x32xf32>
    %522 = vector.broadcast %521 : vector<1x8x32xf32> to vector<5x8x32xf32>
    %523 = arith.mulf %515, %522 : vector<5x8x32xf32>
    %cst_77 = arith.constant dense<0.000000e+00> : vector<5x8xf32>
    %524 = vector.multi_reduction <add>, %523, %cst_77 [2] : vector<5x8x32xf32> to vector<5x8xf32>
    %525 = vector.shape_cast %524 : vector<5x8xf32> to vector<5x8x1xf32>
    %526 = vector.shape_cast %165 : vector<8x32xf32> to vector<1x8x32xf32>
    %527 = vector.broadcast %526 : vector<1x8x32xf32> to vector<5x8x32xf32>
    %528 = arith.mulf %515, %527 : vector<5x8x32xf32>
    %cst_78 = arith.constant dense<0.000000e+00> : vector<5x8xf32>
    %529 = vector.multi_reduction <add>, %528, %cst_78 [2] : vector<5x8x32xf32> to vector<5x8xf32>
    %530 = vector.shape_cast %529 : vector<5x8xf32> to vector<5x8x1xf32>
    %531 = vector.shape_cast %204 : vector<8x32xf32> to vector<1x8x32xf32>
    %532 = vector.broadcast %531 : vector<1x8x32xf32> to vector<5x8x32xf32>
    %533 = arith.mulf %515, %532 : vector<5x8x32xf32>
    %cst_79 = arith.constant dense<0.000000e+00> : vector<5x8xf32>
    %534 = vector.multi_reduction <add>, %533, %cst_79 [2] : vector<5x8x32xf32> to vector<5x8xf32>
    %535 = vector.shape_cast %534 : vector<5x8xf32> to vector<5x8x1xf32>
    %536 = vector.shape_cast %243 : vector<8x32xf32> to vector<1x8x32xf32>
    %537 = vector.broadcast %536 : vector<1x8x32xf32> to vector<5x8x32xf32>
    %538 = arith.mulf %515, %537 : vector<5x8x32xf32>
    %cst_80 = arith.constant dense<0.000000e+00> : vector<5x8xf32>
    %539 = vector.multi_reduction <add>, %538, %cst_80 [2] : vector<5x8x32xf32> to vector<5x8xf32>
    %540 = vector.shape_cast %539 : vector<5x8xf32> to vector<5x8x1xf32>
    %541 = vector.shape_cast %282 : vector<8x32xf32> to vector<1x8x32xf32>
    %542 = vector.broadcast %541 : vector<1x8x32xf32> to vector<5x8x32xf32>
    %543 = arith.mulf %515, %542 : vector<5x8x32xf32>
    %cst_81 = arith.constant dense<0.000000e+00> : vector<5x8xf32>
    %544 = vector.multi_reduction <add>, %543, %cst_81 [2] : vector<5x8x32xf32> to vector<5x8xf32>
    %545 = vector.shape_cast %544 : vector<5x8xf32> to vector<5x8x1xf32>
    %546 = vector.shape_cast %321 : vector<8x32xf32> to vector<1x8x32xf32>
    %547 = vector.broadcast %546 : vector<1x8x32xf32> to vector<5x8x32xf32>
    %548 = arith.mulf %515, %547 : vector<5x8x32xf32>
    %cst_82 = arith.constant dense<0.000000e+00> : vector<5x8xf32>
    %549 = vector.multi_reduction <add>, %548, %cst_82 [2] : vector<5x8x32xf32> to vector<5x8xf32>
    %550 = vector.shape_cast %549 : vector<5x8xf32> to vector<5x8x1xf32>
    %551 = vector.shape_cast %360 : vector<8x32xf32> to vector<1x8x32xf32>
    %552 = vector.broadcast %551 : vector<1x8x32xf32> to vector<5x8x32xf32>
    %553 = arith.mulf %515, %552 : vector<5x8x32xf32>
    %cst_83 = arith.constant dense<0.000000e+00> : vector<5x8xf32>
    %554 = vector.multi_reduction <add>, %553, %cst_83 [2] : vector<5x8x32xf32> to vector<5x8xf32>
    %555 = vector.shape_cast %554 : vector<5x8xf32> to vector<5x8x1xf32>
    %556 = tpu.concatenate %520, %525, %530, %535, %540, %545, %550, %555 in 2 : vector<5x8x1xf32>, vector<5x8x1xf32>, vector<5x8x1xf32>, vector<5x8x1xf32>, vector<5x8x1xf32>, vector<5x8x1xf32>, vector<5x8x1xf32>, vector<5x8x1xf32> -> vector<5x8x8xf32>
    %557 = vector.shape_cast %32 : vector<8x8xf32> to vector<1x8x8xf32>
    %cst_84 = arith.constant 5.000000e-01 : f32
    %558 = vector.broadcast %cst_84 : f32 to vector<1x8x8xf32>
    %559 = arith.cmpf ogt, %557, %558 : vector<1x8x8xf32>
    %cst_85 = arith.constant -1.000000e+09 : f32
    %560 = vector.shape_cast %559 : vector<1x8x8xi1> to vector<1x8x8xi1>
    %561 = vector.broadcast %560 : vector<1x8x8xi1> to vector<5x8x8xi1>
    %562 = vector.broadcast %cst_85 : f32 to vector<5x8x8xf32>
    %563 = arith.select %561, %556, %562 : vector<5x8x8xi1>, vector<5x8x8xf32>
    %cst_86 = arith.constant dense<0xFF800000> : vector<5x8xf32>
    %564 = vector.multi_reduction <maximumf>, %563, %cst_86 [2] : vector<5x8x8xf32> to vector<5x8xf32>
    %565 = vector.shape_cast %564 : vector<5x8xf32> to vector<5x8x1xf32>
    %566 = vector.broadcast %565 : vector<5x8x1xf32> to vector<5x8x8xf32>
    %567 = arith.subf %563, %566 : vector<5x8x8xf32>
    %568 = math.exp %567 : vector<5x8x8xf32>
    %cst_87 = arith.constant dense<0.000000e+00> : vector<5x8xf32>
    %569 = vector.multi_reduction <add>, %568, %cst_87 [2] : vector<5x8x8xf32> to vector<5x8xf32>
    %570 = vector.shape_cast %569 : vector<5x8xf32> to vector<5x8x1xf32>
    %571 = tpu.reciprocal %570 : vector<5x8x1xf32> -> vector<5x8x1xf32>
    %572 = vector.broadcast %571 : vector<5x8x1xf32> to vector<5x8x8xf32>
    %573 = arith.mulf %568, %572 : vector<5x8x8xf32>
    %cst_88 = arith.constant 0.000000e+00 : f32
    %574 = vector.broadcast %cst_88 : f32 to vector<5x8x32xf32>
    %575 = vector.extract_strided_slice %573 {offsets = [0, 0, 0], sizes = [5, 8, 1], strides = [1, 1, 1]} : vector<5x8x8xf32> to vector<5x8x1xf32>
    %576 = vector.shape_cast %87 : vector<8x32xf32> to vector<1x8x32xf32>
    %577 = vector.broadcast %575 : vector<5x8x1xf32> to vector<5x8x32xf32>
    %578 = vector.broadcast %576 : vector<1x8x32xf32> to vector<5x8x32xf32>
    %579 = arith.mulf %577, %578 : vector<5x8x32xf32>
    %580 = arith.addf %574, %579 : vector<5x8x32xf32>
    %581 = vector.extract_strided_slice %573 {offsets = [0, 0, 1], sizes = [5, 8, 1], strides = [1, 1, 1]} : vector<5x8x8xf32> to vector<5x8x1xf32>
    %582 = vector.shape_cast %126 : vector<8x32xf32> to vector<1x8x32xf32>
    %583 = vector.broadcast %581 : vector<5x8x1xf32> to vector<5x8x32xf32>
    %584 = vector.broadcast %582 : vector<1x8x32xf32> to vector<5x8x32xf32>
    %585 = arith.mulf %583, %584 : vector<5x8x32xf32>
    %586 = arith.addf %580, %585 : vector<5x8x32xf32>
    %587 = vector.extract_strided_slice %573 {offsets = [0, 0, 2], sizes = [5, 8, 1], strides = [1, 1, 1]} : vector<5x8x8xf32> to vector<5x8x1xf32>
    %588 = vector.shape_cast %165 : vector<8x32xf32> to vector<1x8x32xf32>
    %589 = vector.broadcast %587 : vector<5x8x1xf32> to vector<5x8x32xf32>
    %590 = vector.broadcast %588 : vector<1x8x32xf32> to vector<5x8x32xf32>
    %591 = arith.mulf %589, %590 : vector<5x8x32xf32>
    %592 = arith.addf %586, %591 : vector<5x8x32xf32>
    %593 = vector.extract_strided_slice %573 {offsets = [0, 0, 3], sizes = [5, 8, 1], strides = [1, 1, 1]} : vector<5x8x8xf32> to vector<5x8x1xf32>
    %594 = vector.shape_cast %204 : vector<8x32xf32> to vector<1x8x32xf32>
    %595 = vector.broadcast %593 : vector<5x8x1xf32> to vector<5x8x32xf32>
    %596 = vector.broadcast %594 : vector<1x8x32xf32> to vector<5x8x32xf32>
    %597 = arith.mulf %595, %596 : vector<5x8x32xf32>
    %598 = arith.addf %592, %597 : vector<5x8x32xf32>
    %599 = vector.extract_strided_slice %573 {offsets = [0, 0, 4], sizes = [5, 8, 1], strides = [1, 1, 1]} : vector<5x8x8xf32> to vector<5x8x1xf32>
    %600 = vector.shape_cast %243 : vector<8x32xf32> to vector<1x8x32xf32>
    %601 = vector.broadcast %599 : vector<5x8x1xf32> to vector<5x8x32xf32>
    %602 = vector.broadcast %600 : vector<1x8x32xf32> to vector<5x8x32xf32>
    %603 = arith.mulf %601, %602 : vector<5x8x32xf32>
    %604 = arith.addf %598, %603 : vector<5x8x32xf32>
    %605 = vector.extract_strided_slice %573 {offsets = [0, 0, 5], sizes = [5, 8, 1], strides = [1, 1, 1]} : vector<5x8x8xf32> to vector<5x8x1xf32>
    %606 = vector.shape_cast %282 : vector<8x32xf32> to vector<1x8x32xf32>
    %607 = vector.broadcast %605 : vector<5x8x1xf32> to vector<5x8x32xf32>
    %608 = vector.broadcast %606 : vector<1x8x32xf32> to vector<5x8x32xf32>
    %609 = arith.mulf %607, %608 : vector<5x8x32xf32>
    %610 = arith.addf %604, %609 : vector<5x8x32xf32>
    %611 = vector.extract_strided_slice %573 {offsets = [0, 0, 6], sizes = [5, 8, 1], strides = [1, 1, 1]} : vector<5x8x8xf32> to vector<5x8x1xf32>
    %612 = vector.shape_cast %321 : vector<8x32xf32> to vector<1x8x32xf32>
    %613 = vector.broadcast %611 : vector<5x8x1xf32> to vector<5x8x32xf32>
    %614 = vector.broadcast %612 : vector<1x8x32xf32> to vector<5x8x32xf32>
    %615 = arith.mulf %613, %614 : vector<5x8x32xf32>
    %616 = arith.addf %610, %615 : vector<5x8x32xf32>
    %617 = vector.extract_strided_slice %573 {offsets = [0, 0, 7], sizes = [5, 8, 1], strides = [1, 1, 1]} : vector<5x8x8xf32> to vector<5x8x1xf32>
    %618 = vector.shape_cast %360 : vector<8x32xf32> to vector<1x8x32xf32>
    %619 = vector.broadcast %617 : vector<5x8x1xf32> to vector<5x8x32xf32>
    %620 = vector.broadcast %618 : vector<1x8x32xf32> to vector<5x8x32xf32>
    %621 = arith.mulf %619, %620 : vector<5x8x32xf32>
    %622 = arith.addf %616, %621 : vector<5x8x32xf32>
    %623 = vector.shape_cast %622 : vector<5x8x32xf32> to vector<40x32xf32>
    %624 = tpu.concatenate %623, %513 in 1 : vector<40x32xf32>, vector<40x32xf32> -> vector<40x64xf32>
    %cst_89 = arith.constant dense<0.000000e+00> : vector<40x32xf32>
    %625 = tpu.matmul %624, %6, %cst_89 {dimension_numbers = #tpu.dot_dimension_numbers<[1], [0], [0], [1], [0, 0, 1, 1], [], []>, precision = #tpu.contract_precision<fp32>} : vector<40x64xf32>, vector<64x32xf32>, vector<40x32xf32> -> vector<40x32xf32>
    %626 = math.tanh %625 : vector<40x32xf32>
    %627 = vector.extract_strided_slice %626 {offsets = [0, 0], sizes = [8, 32], strides = [1, 1]} : vector<40x32xf32> to vector<8x32xf32>
    %628 = vector.extract_strided_slice %626 {offsets = [8, 0], sizes = [8, 32], strides = [1, 1]} : vector<40x32xf32> to vector<8x32xf32>
    %629 = vector.extract_strided_slice %626 {offsets = [16, 0], sizes = [8, 32], strides = [1, 1]} : vector<40x32xf32> to vector<8x32xf32>
    %630 = vector.extract_strided_slice %626 {offsets = [24, 0], sizes = [8, 32], strides = [1, 1]} : vector<40x32xf32> to vector<8x32xf32>
    %631 = vector.extract_strided_slice %626 {offsets = [32, 0], sizes = [8, 32], strides = [1, 1]} : vector<40x32xf32> to vector<8x32xf32>
    %632 = vector.extract_strided_slice %573 {offsets = [0, 0, 0], sizes = [1, 8, 8], strides = [1, 1, 1]} : vector<5x8x8xf32> to vector<1x8x8xf32>
    %633 = vector.shape_cast %632 : vector<1x8x8xf32> to vector<8x8xf32>
    %634 = vector.extract_strided_slice %573 {offsets = [1, 0, 0], sizes = [1, 8, 8], strides = [1, 1, 1]} : vector<5x8x8xf32> to vector<1x8x8xf32>
    %635 = vector.shape_cast %634 : vector<1x8x8xf32> to vector<8x8xf32>
    %636 = vector.extract_strided_slice %573 {offsets = [2, 0, 0], sizes = [1, 8, 8], strides = [1, 1, 1]} : vector<5x8x8xf32> to vector<1x8x8xf32>
    %637 = vector.shape_cast %636 : vector<1x8x8xf32> to vector<8x8xf32>
    %638 = vector.extract_strided_slice %573 {offsets = [3, 0, 0], sizes = [1, 8, 8], strides = [1, 1, 1]} : vector<5x8x8xf32> to vector<1x8x8xf32>
    %639 = vector.shape_cast %638 : vector<1x8x8xf32> to vector<8x8xf32>
    %640 = vector.extract_strided_slice %573 {offsets = [4, 0, 0], sizes = [1, 8, 8], strides = [1, 1, 1]} : vector<5x8x8xf32> to vector<1x8x8xf32>
    %641 = vector.shape_cast %640 : vector<1x8x8xf32> to vector<8x8xf32>
    %cst_90 = arith.constant 0.000000e+00 : f32
    %642 = vector.broadcast %cst_90 : f32 to vector<8x24xf32>
    %643 = tpu.concatenate %627, %628, %629, %630, %631, %633, %635, %637, %639, %641, %512, %87, %126, %165, %204, %243 in 1 : vector<8x32xf32>, vector<8x32xf32>, vector<8x32xf32>, vector<8x32xf32>, vector<8x32xf32>, vector<8x8xf32>, vector<8x8xf32>, vector<8x8xf32>, vector<8x8xf32>, vector<8x8xf32>, vector<8x32xf32>, vector<8x32xf32>, vector<8x32xf32>, vector<8x32xf32>, vector<8x32xf32>, vector<8x32xf32> -> vector<8x392xf32>
    %644 = tpu.concatenate %282, %321, %360, %642 in 1 : vector<8x32xf32>, vector<8x32xf32>, vector<8x32xf32>, vector<8x24xf32> -> vector<8x120xf32>
    %645 = tpu.concatenate %643, %644 in 1 : vector<8x392xf32>, vector<8x120xf32> -> vector<8x512xf32>
    %c0_91 = arith.constant 0 : index
    %c0_92 = arith.constant 0 : index
    %646 = vector.load %arg2[%c0_91, %c0_92] : memref<8x512xf32, #tpu.memory_space<vmem>>, vector<8x512xf32>
    tpu.vector_store %arg2[%c0_91, %c0_92], %645 {strides = array<i32>} : memref<8x512xf32, #tpu.memory_space<vmem>>, vector<8x512xf32>,
    return
  }
}

</mosaic_0001>

<llo_original>
// kernel: nmt_forward.1
$region0: #{nmt_forward.1}
  #allocation0 [shape = 'u32[]', space=smem, size = 0x4, offset = 0x4, fixed_abs, tag = 'smem constant byte address 0x4 - core index']
  #allocation1 [shape = 'u32[144,128]{1,0:T(1,128)}', space=vmem, size = 0x12000, scoped, tag = 'internal scratch']
  %s0 = inlined_call_operand.vmem [shape: s32[24,8], index: 0, kind: input, shape index: {}]
  %s1 = inlined_call_operand.hbm [shape: f32[248,128], index: 1, kind: input, shape index: {}]
  %s2 = inlined_call_operand.vmem [shape: f32[8,512], index: 2, kind: output, shape index: {}]
  %s3 = sld [smem:[#allocation0]]
  $region22: #{nmt_forward.1} parent=0
    _
  %s5 = ssub.s32 1, %s3
  %s6 = scalar_select 0, %s5, %s3
  $region1: #{nmt_forward.1} parent=0
    #allocation2 [shape = 'u8[126976]{0}', space=vmem, size = 0x1f000, scoped, tag = 'input window, operand 1, single buffered']
    #allocation3 [shape = 's32[1]{0}', space=sflag, size = 0x4, scoped, tag = 'scoped memory for nmt_forward.1']
    %7 = vsyncpa [#allocation3], 0
    // Predicated region
    $region2: #{nmt_forward.1} parent=1 // pred_check
      _
    $region3: #{nmt_forward.1} parent=1 // pred_check_branch
      %9 = sbr.rel (0) target = $region5
    $region4: #{nmt_forward.1} parent=1 // pred_region
      _
    $region5: #{nmt_forward.1} parent=1 // pred_fallthru
      _
    // Predicated region
    $region6: #{nmt_forward.1} parent=1 // pred_check
      _
    $region7: #{nmt_forward.1} parent=1 // pred_check_branch
      %11 = sbr.rel (0) target = $region9
    $region8: #{nmt_forward.1} parent=1 // pred_region
      %s13 = ssub.s32 3968, 3968
      %14 = vsyncadd [#allocation3], %s13
      %s15 = sshll.u32 [#allocation2], 4
      %s16 = int_to_ptr.vmem [resolvable:$true] %s15
      %21 = dma.hbm_to_vmem [thread:$0]  %s1, 3968, %s16, [#allocation3], 128, 128, 8
    $region9: #{nmt_forward.1} parent=1 // pred_fallthru
      _
    // Predicated region
    $region10: #{nmt_forward.1} parent=1 // pred_check
      _
    $region11: #{nmt_forward.1} parent=1 // pred_check_branch
      %23 = sbr.rel (0) target = $region13
    $region12: #{nmt_forward.1} parent=1 // pred_region
      %24 = dma.done [#allocation3], 3968
    $region13: #{nmt_forward.1} parent=1 // pred_fallthru
      _
    %v25 = vld [vmem:[#allocation2] sm:$0xff]
    %v26 = vld [vmem:[#allocation2 + $0x8] sm:$0xff]
    %v27 = vld [vmem:[#allocation2 + $0x10] sm:$0xff]
    %v28 = vld [vmem:[#allocation2 + $0x18] sm:$0xff]
    %v29 = vld [vmem:[#allocation2 + $0x20] sm:$0xff]
    %v30 = vld [vmem:[#allocation2 + $0x28] sm:$0xff]
    %v31 = vld [vmem:[#allocation2 + $0x30] sm:$0xff]
    %v32 = vld [vmem:[#allocation2 + $0x38] sm:$0xff]
    %v33 = vld [vmem:[#allocation2 + $0x40] sm:$0xff]
    %v34 = vld [vmem:[#allocation2 + $0x48] sm:$0xff]
    %v35 = vld [vmem:[#allocation2 + $0x50] sm:$0xff]
    %v36 = vld [vmem:[#allocation2 + $0x58] sm:$0xff]
    %v37 = vld [vmem:[#allocation2 + $0x60] sm:$0xff]
    %v38 = vld [vmem:[#allocation2 + $0x68] sm:$0xff]
    %v39 = vld [vmem:[#allocation2 + $0x70] sm:$0xff]
    %v40 = vld [vmem:[#allocation2 + $0x78] sm:$0xff]
    %v41 = vld [vmem:[#allocation2 + $0x80] sm:$0xf]
    %v42 = vld [vmem:[#allocation2 + $0x88] sm:$0xff]
    %v43 = vld [vmem:[#allocation2 + $0x90] sm:$0xff]
    %v44 = vld [vmem:[#allocation2 + $0x98] sm:$0xff]
    %v45 = vld [vmem:[#allocation2 + $0xa0] sm:$0xff]
    %v46 = vld [vmem:[#allocation2 + $0xa8] sm:$0xff]
    %v47 = vld [vmem:[#allocation2 + $0xb0] sm:$0xff]
    %v48 = vld [vmem:[#allocation2 + $0xb8] sm:$0xff]
    %v49 = vld [vmem:[#allocation2 + $0xc0] sm:$0xff]
    %v50 = vld [vmem:[#allocation2 + $0xc8] sm:$0xff]
    %v51 = vld [vmem:[#allocation2 + $0xd0] sm:$0xff]
    %v52 = vld [vmem:[#allocation2 + $0xd8] sm:$0xff]
    %v53 = vld [vmem:[#allocation2 + $0xe0] sm:$0xff]
    %v54 = vld [vmem:[#allocation2 + $0xe8] sm:$0xff]
    %v55 = vld [vmem:[#allocation2 + $0xf0] sm:$0xff]
    %v56 = vlaneseq
    %v57 = vshrl.u32 %v56, 7
    %v58 = vsub.s32 1, %v57
    %v59 = vrot.slane %v41, %v58
    %v60 = vlaneseq
    %v61 = vshrl.u32 %v60, 7
    %v62 = vsub.s32 3, %v61
    %v63 = vrot.slane %v41, %v62
    %v64 = vld [vmem:[%s0] sm:$0xff]
    %v65 = vld [vmem:[%s0 + $0x8] sm:$0xff]
    %v66 = vld [vmem:[%s0 + $0x10] sm:$0xff]
    %v67 = vlaneseq
    %v68 = vshrl.u32 %v67, 7
    %v69 = vlaneseq
    %v70 = vand.u32 %v69, 127
    %vm71 = vcmp.eq.s32.totalorder %v68, %v70
    %v72 = vsel %vm71, 1, 0
    %v73 = vlaneseq
    %v74 = vshrl.u32 %v73, 7
    %v75 = vsub.s32 0, %v74
    %v76 = vrot.slane %v66, %v75
    %v77 = vmul.u32 %v72, %v76
    %vm78 = vcmask 64512
    %v79 = vsel %vm78, %v77, 0
    %v80 = vand.u32 %v79, 65535
    %v81 = vshrl.u32 %v79, 16
    %v82 = vcvt.s32.f32 %v80
    %v83 = vcvt.s32.f32 %v81
    %84 = vadd.xlane.f32.xlu0 %v82
    %v85 = vpop.xlane.xlu0 %84
    %86 = vadd.xlane.f32.xlu0 %v83
    %v87 = vpop.xlane.xlu0 %86
    %v88 = vcvt.f32.s32 %v85
    %v89 = vcvt.f32.s32 %v87
    %v90 = vshll.u32 %v89, 16
    %v91 = vadd.s32 %v90, %v88
    %vm92 = vcmp.lt.s32.totalorder %v70, %v91
    %v93 = vsel %vm92, 1, 0
    %v94 = vcvt.s32.f32 %v93
    %vm95 = vcmask 261120
    %v97 = vsel %vm95, %v54, 0
    %v100 = vsel %vm95, %v55, 0
    %102 = vmatprep.subr.mxu0 0.0
    %v103 = vand.u32 %v25, 4294901760
    %104 = vmatpush1.msra.mxu0 %v103
    %105 = vmatprep.subr.mxu0 0.0
    %v106 = vand.u32 %v26, 4294901760
    %107 = vmatpush1.msra.mxu0 %v106
    %108 = vmatprep.subr.mxu0 0.0
    %v109 = vand.u32 %v27, 4294901760
    %110 = vmatpush1.msra.mxu0 %v109
    %111 = vmatprep.subr.mxu0 0.0
    %v112 = vand.u32 %v28, 4294901760
    %113 = vmatpush1.msra.mxu0 %v112
    %114 = vmatprep.subr.mxu0 0.0
    %115 = vmatpush1.msra.mxu0 0.0
    %116 = vmatprep.subr.mxu0 0.0
    %117 = vmatpush1.msra.mxu0 0.0
    %118 = vmatprep.subr.mxu0 0.0
    %119 = vmatpush1.msra.mxu0 0.0
    %120 = vmatprep.subr.mxu0 0.0
    %121 = vmatpush1.msra.mxu0 0.0
    %122 = vmatprep.subr.mxu0 0.0
    %123 = vmatpush1.msra.mxu0 0.0
    %124 = vmatprep.subr.mxu0 0.0
    %125 = vmatpush1.msra.mxu0 0.0
    %126 = vmatprep.subr.mxu0 0.0
    %127 = vmatpush1.msra.mxu0 0.0
    %128 = vmatprep.subr.mxu0 0.0
    %129 = vmatpush1.msra.mxu0 0.0
    %130 = vmatprep.subr.mxu0 0.0
    %131 = vmatpush1.msra.mxu0 0.0
    %132 = vmatprep.subr.mxu0 0.0
    %133 = vmatpush1.msra.mxu0 0.0
    %134 = vmatprep.subr.mxu0 0.0
    %135 = vmatpush1.msra.mxu0 0.0
    %136 = vmatprep.subr.mxu0 0.0
    %137 = vmatpush1.msra.mxu0 0.0
    %138 = vmatprep.subr.mxu0 0.0
    %139 = vmatpush1.msra.mxu0 0.0
    %140 = vmatprep.subr.mxu0 0.0
    %141 = vmatpush1.msra.mxu0 0.0
    %142 = vmatprep.subr.mxu0 0.0
    %143 = vmatpush1.msra.mxu0 0.0
    %144 = vmatprep.subr.mxu0 0.0
    %145 = vmatpush1.msra.mxu0 0.0
    %146 = vmatprep.subr.mxu0 0.0
    %147 = vmatpush1.msra.mxu0 0.0
    %148 = vmatprep.subr.mxu0 0.0
    %149 = vmatpush1.msra.mxu0 0.0
    %150 = vmatprep.subr.mxu0 0.0
    %151 = vmatpush1.msra.mxu0 0.0
    %152 = vmatprep.subr.mxu0 0.0
    %153 = vmatpush1.msra.mxu0 0.0
    %154 = vmatprep.subr.mxu0 0.0
    %155 = vmatpush1.msra.mxu0 0.0
    %156 = vmatprep.subr.mxu0 0.0
    %157 = vmatpush1.msra.mxu0 0.0
    %158 = vmatprep.subr.mxu0 0.0
    %159 = vmatpush1.msra.mxu0 0.0
    %160 = vmatprep.subr.mxu0 0.0
    %161 = vmatpush1.msra.mxu0 0.0
    %162 = vmatprep.subr.mxu0 0.0
    %163 = vmatpush1.msra.mxu0 0.0
    %164 = vmatprep.subr.mxu0 0.0
    %165 = vmatpush1.msra.mxu0 0.0
    %166 = vmatprep.subr.mxu0 0.0
    %167 = vmatpush1.msra.mxu0 0.0
    %168 = vmatprep.subr.mxu0 0.0
    %169 = vmatpush1.msra.mxu0 0.0
    %170 = vmatprep.mubr.f32.mxu0 0.0
    %v171 = vand.u32 %v97, 4294901760
    %v172 = vsub.f32 %v97, %v171
    %v173 = vand.u32 %v172, 4294901760
    %v174 = vsub.f32 %v172, %v173
    %v175 = vand.u32 %v174, 4294901760
    %176 = vmatmul.mubr.f32.gmra.mrb[0].mxu0 %v175
    %v177 = vpop.f32.mrb[0].mxu0
    %v178 = vadd.f32 0.0, %v177
    %v179 = vpop.f32.mrb[0].mxu0
    %180 = vmatprep.mubr.f32.mxu0 0.0
    %v181 = vand.u32 %v100, 4294901760
    %v182 = vsub.f32 %v100, %v181
    %v183 = vand.u32 %v182, 4294901760
    %v184 = vsub.f32 %v182, %v183
    %v185 = vand.u32 %v184, 4294901760
    %186 = vmatmul.mubr.f32.gmra.mrb[0].mxu0 %v185
    %v187 = vpop.f32.mrb[0].mxu0
    %v188 = vadd.f32 0.0, %v187
    %v189 = vpop.f32.mrb[0].mxu0
    %190 = vdwg.mxu0
    %191 = vmatprep.subr.mxu0 0.0
    %v192 = vand.u32 %v25, 4294901760
    %v193 = vsub.f32 %v25, %v192
    %v194 = vand.u32 %v193, 4294901760
    %v195 = vsub.f32 %v193, %v194
    %v196 = vand.u32 %v195, 4294901760
    %197 = vmatpush1.msra.mxu0 %v196
    %198 = vmatprep.subr.mxu0 0.0
    %v199 = vand.u32 %v26, 4294901760
    %v200 = vsub.f32 %v26, %v199
    %v201 = vand.u32 %v200, 4294901760
    %v202 = vsub.f32 %v200, %v201
    %v203 = vand.u32 %v202, 4294901760
    %204 = vmatpush1.msra.mxu0 %v203
    %205 = vmatprep.subr.mxu0 0.0
    %v206 = vand.u32 %v27, 4294901760
    %v207 = vsub.f32 %v27, %v206
    %v208 = vand.u32 %v207, 4294901760
    %v209 = vsub.f32 %v207, %v208
    %v210 = vand.u32 %v209, 4294901760
    %211 = vmatpush1.msra.mxu0 %v210
    %212 = vmatprep.subr.mxu0 0.0
    %v213 = vand.u32 %v28, 4294901760
    %v214 = vsub.f32 %v28, %v213
    %v215 = vand.u32 %v214, 4294901760
    %v216 = vsub.f32 %v214, %v215
    %v217 = vand.u32 %v216, 4294901760
    %218 = vmatpush1.msra.mxu0 %v217
    %219 = vmatprep.subr.mxu0 0.0
    %220 = vmatpush1.msra.mxu0 0.0
    %221 = vmatprep.subr.mxu0 0.0
    %222 = vmatpush1.msra.mxu0 0.0
    %223 = vmatprep.subr.mxu0 0.0
    %224 = vmatpush1.msra.mxu0 0.0
    %225 = vmatprep.subr.mxu0 0.0
    %226 = vmatpush1.msra.mxu0 0.0
    %227 = vmatprep.subr.mxu0 0.0
    %228 = vmatpush1.msra.mxu0 0.0
    %229 = vmatprep.subr.mxu0 0.0
    %230 = vmatpush1.msra.mxu0 0.0
    %231 = vmatprep.subr.mxu0 0.0
    %232 = vmatpush1.msra.mxu0 0.0
    %233 = vmatprep.subr.mxu0 0.0
    %234 = vmatpush1.msra.mxu0 0.0
    %235 = vmatprep.subr.mxu0 0.0
    %236 = vmatpush1.msra.mxu0 0.0
    %237 = vmatprep.subr.mxu0 0.0
    %238 = vmatpush1.msra.mxu0 0.0
    %239 = vmatprep.subr.mxu0 0.0
    %240 = vmatpush1.msra.mxu0 0.0
    %241 = vmatprep.subr.mxu0 0.0
    %242 = vmatpush1.msra.mxu0 0.0
    %243 = vmatprep.subr.mxu0 0.0
    %244 = vmatpush1.msra.mxu0 0.0
    %245 = vmatprep.subr.mxu0 0.0
    %246 = vmatpush1.msra.mxu0 0.0
    %247 = vmatprep.subr.mxu0 0.0
    %248 = vmatpush1.msra.mxu0 0.0
    %249 = vmatprep.subr.mxu0 0.0
    %250 = vmatpush1.msra.mxu0 0.0
    %251 = vmatprep.subr.mxu0 0.0
    %252 = vmatpush1.msra.mxu0 0.0
    %253 = vmatprep.subr.mxu0 0.0
    %254 = vmatpush1.msra.mxu0 0.0
    %255 = vmatprep.subr.mxu0 0.0
    %256 = vmatpush1.msra.mxu0 0.0
    %257 = vmatprep.subr.mxu0 0.0
    %258 = vmatpush1.msra.mxu0 0.0
    %259 = vmatprep.subr.mxu0 0.0
    %260 = vmatpush1.msra.mxu0 0.0
    %261 = vmatprep.subr.mxu0 0.0
    %262 = vmatpush1.msra.mxu0 0.0
    %263 = vmatprep.subr.mxu0 0.0
    %264 = vmatpush1.msra.mxu0 0.0
    %265 = vmatprep.subr.mxu0 0.0
    %266 = vmatpush1.msra.mxu0 0.0
    %267 = vmatprep.subr.mxu0 0.0
    %268 = vmatpush1.msra.mxu0 0.0
    %269 = vmatprep.subr.mxu0 0.0
    %270 = vmatpush1.msra.mxu0 0.0
    %271 = vmatprep.subr.mxu0 0.0
    %272 = vmatpush1.msra.mxu0 0.0
    %273 = vmatprep.subr.mxu0 0.0
    %274 = vmatpush1.msra.mxu0 0.0
    %275 = vmatprep.mubr.f32.mxu0 0.0
    %v276 = vand.u32 %v97, 4294901760
    %277 = vmatmul.mubr.f32.gmra.mrb[0].mxu0 %v276
    %v278 = vpop.f32.mrb[0].mxu0
    %v279 = vadd.f32 %v178, %v278
    %v280 = vpop.f32.mrb[0].mxu0
    %281 = vmatprep.mubr.f32.mxu0 0.0
    %v282 = vand.u32 %v100, 4294901760
    %283 = vmatmul.mubr.f32.gmra.mrb[0].mxu0 %v282
    %v284 = vpop.f32.mrb[0].mxu0
    %v285 = vadd.f32 %v188, %v284
    %v286 = vpop.f32.mrb[0].mxu0
    %287 = vdwg.mxu0
    %288 = vmatprep.subr.mxu0 0.0
    %v289 = vand.u32 %v25, 4294901760
    %v290 = vsub.f32 %v25, %v289
    %291 = vmatpush1.msra.mxu0 %v290
    %292 = vmatprep.subr.mxu0 0.0
    %v293 = vand.u32 %v26, 4294901760
    %v294 = vsub.f32 %v26, %v293
    %295 = vmatpush1.msra.mxu0 %v294
    %296 = vmatprep.subr.mxu0 0.0
    %v297 = vand.u32 %v27, 4294901760
    %v298 = vsub.f32 %v27, %v297
    %299 = vmatpush1.msra.mxu0 %v298
    %300 = vmatprep.subr.mxu0 0.0
    %v301 = vand.u32 %v28, 4294901760
    %v302 = vsub.f32 %v28, %v301
    %303 = vmatpush1.msra.mxu0 %v302
    %304 = vmatprep.subr.mxu0 0.0
    %305 = vmatpush1.msra.mxu0 0.0
    %306 = vmatprep.subr.mxu0 0.0
    %307 = vmatpush1.msra.mxu0 0.0
    %308 = vmatprep.subr.mxu0 0.0
    %309 = vmatpush1.msra.mxu0 0.0
    %310 = vmatprep.subr.mxu0 0.0
    %311 = vmatpush1.msra.mxu0 0.0
    %312 = vmatprep.subr.mxu0 0.0
    %313 = vmatpush1.msra.mxu0 0.0
    %314 = vmatprep.subr.mxu0 0.0
    %315 = vmatpush1.msra.mxu0 0.0
    %316 = vmatprep.subr.mxu0 0.0
    %317 = vmatpush1.msra.mxu0 0.0
    %318 = vmatprep.subr.mxu0 0.0
    %319 = vmatpush1.msra.mxu0 0.0
    %320 = vmatprep.subr.mxu0 0.0
    %321 = vmatpush1.msra.mxu0 0.0
    %322 = vmatprep.subr.mxu0 0.0
    %323 = vmatpush1.msra.mxu0 0.0
    %324 = vmatprep.subr.mxu0 0.0
    %325 = vmatpush1.msra.mxu0 0.0
    %326 = vmatprep.subr.mxu0 0.0
    %327 = vmatpush1.msra.mxu0 0.0
    %328 = vmatprep.subr.mxu0 0.0
    %329 = vmatpush1.msra.mxu0 0.0
    %330 = vmatprep.subr.mxu0 0.0
    %331 = vmatpush1.msra.mxu0 0.0
    %332 = vmatprep.subr.mxu0 0.0
    %333 = vmatpush1.msra.mxu0 0.0
    %334 = vmatprep.subr.mxu0 0.0
    %335 = vmatpush1.msra.mxu0 0.0
    %336 = vmatprep.subr.mxu0 0.0
    %337 = vmatpush1.msra.mxu0 0.0
    %338 = vmatprep.subr.mxu0 0.0
    %339 = vmatpush1.msra.mxu0 0.0
    %340 = vmatprep.subr.mxu0 0.0
    %341 = vmatpush1.msra.mxu0 0.0
    %342 = vmatprep.subr.mxu0 0.0
    %343 = vmatpush1.msra.mxu0 0.0
    %344 = vmatprep.subr.mxu0 0.0
    %345 = vmatpush1.msra.mxu0 0.0
    %346 = vmatprep.subr.mxu0 0.0
    %347 = vmatpush1.msra.mxu0 0.0
    %348 = vmatprep.subr.mxu0 0.0
    %349 = vmatpush1.msra.mxu0 0.0
    %350 = vmatprep.subr.mxu0 0.0
    %351 = vmatpush1.msra.mxu0 0.0
    %352 = vmatprep.subr.mxu0 0.0
    %353 = vmatpush1.msra.mxu0 0.0
    %354 = vmatprep.subr.mxu0 0.0
    %355 = vmatpush1.msra.mxu0 0.0
    %356 = vmatprep.subr.mxu0 0.0
    %357 = vmatpush1.msra.mxu0 0.0
    %358 = vmatprep.subr.mxu0 0.0
    %359 = vmatpush1.msra.mxu0 0.0
    %360 = vmatprep.mubr.f32.mxu0 0.0
    %v361 = vand.u32 %v97, 4294901760
    %v362 = vsub.f32 %v97, %v361
    %363 = vmatmul.mubr.f32.gmra.mrb[0].mxu0 %v362
    %v364 = vpop.f32.mrb[0].mxu0
    %v365 = vadd.f32 %v279, %v364
    %v366 = vpop.f32.mrb[0].mxu0
    %367 = vmatprep.mubr.f32.mxu0 0.0
    %v368 = vand.u32 %v100, 4294901760
    %v369 = vsub.f32 %v100, %v368
    %370 = vmatmul.mubr.f32.gmra.mrb[0].mxu0 %v369
    %v371 = vpop.f32.mrb[0].mxu0
    %v372 = vadd.f32 %v285, %v371
    %v373 = vpop.f32.mrb[0].mxu0
    %374 = vdwg.mxu0
    %375 = vmatprep.subr.mxu0 0.0
    %v376 = vand.u32 %v25, 4294901760
    %377 = vmatpush1.msra.mxu0 %v376
    %378 = vmatprep.subr.mxu0 0.0
    %v379 = vand.u32 %v26, 4294901760
    %380 = vmatpush1.msra.mxu0 %v379
    %381 = vmatprep.subr.mxu0 0.0
    %v382 = vand.u32 %v27, 4294901760
    %383 = vmatpush1.msra.mxu0 %v382
    %384 = vmatprep.subr.mxu0 0.0
    %v385 = vand.u32 %v28, 4294901760
    %386 = vmatpush1.msra.mxu0 %v385
    %387 = vmatprep.subr.mxu0 0.0
    %388 = vmatpush1.msra.mxu0 0.0
    %389 = vmatprep.subr.mxu0 0.0
    %390 = vmatpush1.msra.mxu0 0.0
    %391 = vmatprep.subr.mxu0 0.0
    %392 = vmatpush1.msra.mxu0 0.0
    %393 = vmatprep.subr.mxu0 0.0
    %394 = vmatpush1.msra.mxu0 0.0
    %395 = vmatprep.subr.mxu0 0.0
    %396 = vmatpush1.msra.mxu0 0.0
    %397 = vmatprep.subr.mxu0 0.0
    %398 = vmatpush1.msra.mxu0 0.0
    %399 = vmatprep.subr.mxu0 0.0
    %400 = vmatpush1.msra.mxu0 0.0
    %401 = vmatprep.subr.mxu0 0.0
    %402 = vmatpush1.msra.mxu0 0.0
    %403 = vmatprep.subr.mxu0 0.0
    %404 = vmatpush1.msra.mxu0 0.0
    %405 = vmatprep.subr.mxu0 0.0
    %406 = vmatpush1.msra.mxu0 0.0
    %407 = vmatprep.subr.mxu0 0.0
    %408 = vmatpush1.msra.mxu0 0.0
    %409 = vmatprep.subr.mxu0 0.0
    %410 = vmatpush1.msra.mxu0 0.0
    %411 = vmatprep.subr.mxu0 0.0
    %412 = vmatpush1.msra.mxu0 0.0
    %413 = vmatprep.subr.mxu0 0.0
    %414 = vmatpush1.msra.mxu0 0.0
    %415 = vmatprep.subr.mxu0 0.0
    %416 = vmatpush1.msra.mxu0 0.0
    %417 = vmatprep.subr.mxu0 0.0
    %418 = vmatpush1.msra.mxu0 0.0
    %419 = vmatprep.subr.mxu0 0.0
    %420 = vmatpush1.msra.mxu0 0.0
    %421 = vmatprep.subr.mxu0 0.0
    %422 = vmatpush1.msra.mxu0 0.0
    %423 = vmatprep.subr.mxu0 0.0
    %424 = vmatpush1.msra.mxu0 0.0
    %425 = vmatprep.subr.mxu0 0.0
    %426 = vmatpush1.msra.mxu0 0.0
    %427 = vmatprep.subr.mxu0 0.0
    %428 = vmatpush1.msra.mxu0 0.0
    %429 = vmatprep.subr.mxu0 0.0
    %430 = vmatpush1.msra.mxu0 0.0
    %431 = vmatprep.subr.mxu0 0.0
    %432 = vmatpush1.msra.mxu0 0.0
    %433 = vmatprep.subr.mxu0 0.0
    %434 = vmatpush1.msra.mxu0 0.0
    %435 = vmatprep.subr.mxu0 0.0
    %436 = vmatpush1.msra.mxu0 0.0
    %437 = vmatprep.subr.mxu0 0.0
    %438 = vmatpush1.msra.mxu0 0.0
    %439 = vmatprep.subr.mxu0 0.0
    %440 = vmatpush1.msra.mxu0 0.0
    %441 = vmatprep.subr.mxu0 0.0
    %442 = vmatpush1.msra.mxu0 0.0
    %443 = vmatprep.mubr.f32.mxu0 0.0
    %v444 = vand.u32 %v97, 4294901760
    %v445 = vsub.f32 %v97, %v444
    %v446 = vand.u32 %v445, 4294901760
    %447 = vmatmul.mubr.f32.gmra.mrb[0].mxu0 %v446
    %v448 = vpop.f32.mrb[0].mxu0
    %v449 = vadd.f32 %v365, %v448
    %v450 = vpop.f32.mrb[0].mxu0
    %451 = vmatprep.mubr.f32.mxu0 0.0
    %v452 = vand.u32 %v100, 4294901760
    %v453 = vsub.f32 %v100, %v452
    %v454 = vand.u32 %v453, 4294901760
    %455 = vmatmul.mubr.f32.gmra.mrb[0].mxu0 %v454
    %v456 = vpop.f32.mrb[0].mxu0
    %v457 = vadd.f32 %v372, %v456
    %v458 = vpop.f32.mrb[0].mxu0
    %459 = vdwg.mxu0
    %460 = vmatprep.subr.mxu0 0.0
    %v461 = vand.u32 %v25, 4294901760
    %v462 = vsub.f32 %v25, %v461
    %v463 = vand.u32 %v462, 4294901760
    %464 = vmatpush1.msra.mxu0 %v463
    %465 = vmatprep.subr.mxu0 0.0
    %v466 = vand.u32 %v26, 4294901760
    %v467 = vsub.f32 %v26, %v466
    %v468 = vand.u32 %v467, 4294901760
    %469 = vmatpush1.msra.mxu0 %v468
    %470 = vmatprep.subr.mxu0 0.0
    %v471 = vand.u32 %v27, 4294901760
    %v472 = vsub.f32 %v27, %v471
    %v473 = vand.u32 %v472, 4294901760
    %474 = vmatpush1.msra.mxu0 %v473
    %475 = vmatprep.subr.mxu0 0.0
    %v476 = vand.u32 %v28, 4294901760
    %v477 = vsub.f32 %v28, %v476
    %v478 = vand.u32 %v477, 4294901760
    %479 = vmatpush1.msra.mxu0 %v478
    %480 = vmatprep.subr.mxu0 0.0
    %481 = vmatpush1.msra.mxu0 0.0
    %482 = vmatprep.subr.mxu0 0.0
    %483 = vmatpush1.msra.mxu0 0.0
    %484 = vmatprep.subr.mxu0 0.0
    %485 = vmatpush1.msra.mxu0 0.0
    %486 = vmatprep.subr.mxu0 0.0
    %487 = vmatpush1.msra.mxu0 0.0
    %488 = vmatprep.subr.mxu0 0.0
    %489 = vmatpush1.msra.mxu0 0.0
    %490 = vmatprep.subr.mxu0 0.0
    %491 = vmatpush1.msra.mxu0 0.0
    %492 = vmatprep.subr.mxu0 0.0
    %493 = vmatpush1.msra.mxu0 0.0
    %494 = vmatprep.subr.mxu0 0.0
    %495 = vmatpush1.msra.mxu0 0.0
    %496 = vmatprep.subr.mxu0 0.0
    %497 = vmatpush1.msra.mxu0 0.0
    %498 = vmatprep.subr.mxu0 0.0
    %499 = vmatpush1.msra.mxu0 0.0
    %500 = vmatprep.subr.mxu0 0.0
    %501 = vmatpush1.msra.mxu0 0.0
    %502 = vmatprep.subr.mxu0 0.0
    %503 = vmatpush1.msra.mxu0 0.0
    %504 = vmatprep.subr.mxu0 0.0
    %505 = vmatpush1.msra.mxu0 0.0
    %506 = vmatprep.subr.mxu0 0.0
    %507 = vmatpush1.msra.mxu0 0.0
    %508 = vmatprep.subr.mxu0 0.0
    %509 = vmatpush1.msra.mxu0 0.0
    %510 = vmatprep.subr.mxu0 0.0
    %511 = vmatpush1.msra.mxu0 0.0
    %512 = vmatprep.subr.mxu0 0.0
    %513 = vmatpush1.msra.mxu0 0.0
    %514 = vmatprep.subr.mxu0 0.0
    %515 = vmatpush1.msra.mxu0 0.0
    %516 = vmatprep.subr.mxu0 0.0
    %517 = vmatpush1.msra.mxu0 0.0
    %518 = vmatprep.subr.mxu0 0.0
    %519 = vmatpush1.msra.mxu0 0.0
    %520 = vmatprep.subr.mxu0 0.0
    %521 = vmatpush1.msra.mxu0 0.0
    %522 = vmatprep.subr.mxu0 0.0
    %523 = vmatpush1.msra.mxu0 0.0
    %524 = vmatprep.subr.mxu0 0.0
    %525 = vmatpush1.msra.mxu0 0.0
    %526 = vmatprep.subr.mxu0 0.0
    %527 = vmatpush1.msra.mxu0 0.0
    %528 = vmatprep.subr.mxu0 0.0
    %529 = vmatpush1.msra.mxu0 0.0
    %530 = vmatprep.subr.mxu0 0.0
    %531 = vmatpush1.msra.mxu0 0.0
    %532 = vmatprep.subr.mxu0 0.0
    %533 = vmatpush1.msra.mxu0 0.0
    %534 = vmatprep.subr.mxu0 0.0
    %535 = vmatpush1.msra.mxu0 0.0
    %536 = vmatprep.mubr.f32.mxu0 0.0
    %v537 = vand.u32 %v97, 4294901760
    %538 = vmatmul.mubr.f32.gmra.mrb[0].mxu0 %v537
    %v539 = vpop.f32.mrb[0].mxu0
    %v540 = vadd.f32 %v449, %v539
    %v541 = vpop.f32.mrb[0].mxu0
    %542 = vmatprep.mubr.f32.mxu0 0.0
    %v543 = vand.u32 %v100, 4294901760
    %544 = vmatmul.mubr.f32.gmra.mrb[0].mxu0 %v543
    %v545 = vpop.f32.mrb[0].mxu0
    %v546 = vadd.f32 %v457, %v545
    %v547 = vpop.f32.mrb[0].mxu0
    %548 = vdwg.mxu0
    %549 = vmatprep.subr.mxu0 0.0
    %v550 = vand.u32 %v25, 4294901760
    %551 = vmatpush1.msra.mxu0 %v550
    %552 = vmatprep.subr.mxu0 0.0
    %v553 = vand.u32 %v26, 4294901760
    %554 = vmatpush1.msra.mxu0 %v553
    %555 = vmatprep.subr.mxu0 0.0
    %v556 = vand.u32 %v27, 4294901760
    %557 = vmatpush1.msra.mxu0 %v556
    %558 = vmatprep.subr.mxu0 0.0
    %v559 = vand.u32 %v28, 4294901760
    %560 = vmatpush1.msra.mxu0 %v559
    %561 = vmatprep.subr.mxu0 0.0
    %562 = vmatpush1.msra.mxu0 0.0
    %563 = vmatprep.subr.mxu0 0.0
    %564 = vmatpush1.msra.mxu0 0.0
    %565 = vmatprep.subr.mxu0 0.0
    %566 = vmatpush1.msra.mxu0 0.0
    %567 = vmatprep.subr.mxu0 0.0
    %568 = vmatpush1.msra.mxu0 0.0
    %569 = vmatprep.subr.mxu0 0.0
    %570 = vmatpush1.msra.mxu0 0.0
    %571 = vmatprep.subr.mxu0 0.0
    %572 = vmatpush1.msra.mxu0 0.0
    %573 = vmatprep.subr.mxu0 0.0
    %574 = vmatpush1.msra.mxu0 0.0
    %575 = vmatprep.subr.mxu0 0.0
    %576 = vmatpush1.msra.mxu0 0.0
    %577 = vmatprep.subr.mxu0 0.0
    %578 = vmatpush1.msra.mxu0 0.0
    %579 = vmatprep.subr.mxu0 0.0
    %580 = vmatpush1.msra.mxu0 0.0
    %581 = vmatprep.subr.mxu0 0.0
    %582 = vmatpush1.msra.mxu0 0.0
    %583 = vmatprep.subr.mxu0 0.0
    %584 = vmatpush1.msra.mxu0 0.0
    %585 = vmatprep.subr.mxu0 0.0
    %586 = vmatpush1.msra.mxu0 0.0
    %587 = vmatprep.subr.mxu0 0.0
    %588 = vmatpush1.msra.mxu0 0.0
    %589 = vmatprep.subr.mxu0 0.0
    %590 = vmatpush1.msra.mxu0 0.0
    %591 = vmatprep.subr.mxu0 0.0
    %592 = vmatpush1.msra.mxu0 0.0
    %593 = vmatprep.subr.mxu0 0.0
    %594 = vmatpush1.msra.mxu0 0.0
    %595 = vmatprep.subr.mxu0 0.0
    %596 = vmatpush1.msra.mxu0 0.0
    %597 = vmatprep.subr.mxu0 0.0
    %598 = vmatpush1.msra.mxu0 0.0
    %599 = vmatprep.subr.mxu0 0.0
    %600 = vmatpush1.msra.mxu0 0.0
    %601 = vmatprep.subr.mxu0 0.0
    %602 = vmatpush1.msra.mxu0 0.0
    %603 = vmatprep.subr.mxu0 0.0
    %604 = vmatpush1.msra.mxu0 0.0
    %605 = vmatprep.subr.mxu0 0.0
    %606 = vmatpush1.msra.mxu0 0.0
    %607 = vmatprep.subr.mxu0 0.0
    %608 = vmatpush1.msra.mxu0 0.0
    %609 = vmatprep.subr.mxu0 0.0
    %610 = vmatpush1.msra.mxu0 0.0
    %611 = vmatprep.subr.mxu0 0.0
    %612 = vmatpush1.msra.mxu0 0.0
    %613 = vmatprep.subr.mxu0 0.0
    %614 = vmatpush1.msra.mxu0 0.0
    %615 = vmatprep.subr.mxu0 0.0
    %616 = vmatpush1.msra.mxu0 0.0
    %617 = vmatprep.mubr.f32.mxu0 0.0
    %v618 = vand.u32 %v97, 4294901760
    %619 = vmatmul.mubr.f32.gmra.mrb[0].mxu0 %v618
    %v620 = vpop.f32.mrb[0].mxu0
    %v621 = vadd.f32 %v540, %v620
    %v622 = vpop.f32.mrb[0].mxu0
    %623 = vmatprep.mubr.f32.mxu0 0.0
    %v624 = vand.u32 %v100, 4294901760
    %625 = vmatmul.mubr.f32.gmra.mrb[0].mxu0 %v624
    %v626 = vpop.f32.mrb[0].mxu0
    %v627 = vadd.f32 %v546, %v626
    %v628 = vpop.f32.mrb[0].mxu0
    %629 = vdwg.mxu0
    %630 = vmatprep.subr.mxu0 0.0
    %v631 = vand.u32 %v33, 4294901760
    %632 = vmatpush1.msra.mxu0 %v631
    %633 = vmatprep.subr.mxu0 0.0
    %v634 = vand.u32 %v34, 4294901760
    %635 = vmatpush1.msra.mxu0 %v634
    %636 = vmatprep.subr.mxu0 0.0
    %v637 = vand.u32 %v35, 4294901760
    %638 = vmatpush1.msra.mxu0 %v637
    %639 = vmatprep.subr.mxu0 0.0
    %v640 = vand.u32 %v36, 4294901760
    %641 = vmatpush1.msra.mxu0 %v640
    %642 = vmatprep.subr.mxu0 0.0
    %643 = vmatpush1.msra.mxu0 0.0
    %644 = vmatprep.subr.mxu0 0.0
    %645 = vmatpush1.msra.mxu0 0.0
    %646 = vmatprep.subr.mxu0 0.0
    %647 = vmatpush1.msra.mxu0 0.0
    %648 = vmatprep.subr.mxu0 0.0
    %649 = vmatpush1.msra.mxu0 0.0
    %650 = vmatprep.subr.mxu0 0.0
    %651 = vmatpush1.msra.mxu0 0.0
    %652 = vmatprep.subr.mxu0 0.0
    %653 = vmatpush1.msra.mxu0 0.0
    %654 = vmatprep.subr.mxu0 0.0
    %655 = vmatpush1.msra.mxu0 0.0
    %656 = vmatprep.subr.mxu0 0.0
    %657 = vmatpush1.msra.mxu0 0.0
    %658 = vmatprep.subr.mxu0 0.0
    %659 = vmatpush1.msra.mxu0 0.0
    %660 = vmatprep.subr.mxu0 0.0
    %661 = vmatpush1.msra.mxu0 0.0
    %662 = vmatprep.subr.mxu0 0.0
    %663 = vmatpush1.msra.mxu0 0.0
    %664 = vmatprep.subr.mxu0 0.0
    %665 = vmatpush1.msra.mxu0 0.0
    %666 = vmatprep.subr.mxu0 0.0
    %667 = vmatpush1.msra.mxu0 0.0
    %668 = vmatprep.subr.mxu0 0.0
    %669 = vmatpush1.msra.mxu0 0.0
    %670 = vmatprep.subr.mxu0 0.0
    %671 = vmatpush1.msra.mxu0 0.0
    %672 = vmatprep.subr.mxu0 0.0
    %673 = vmatpush1.msra.mxu0 0.0
    %674 = vmatprep.subr.mxu0 0.0
    %675 = vmatpush1.msra.mxu0 0.0
    %676 = vmatprep.subr.mxu0 0.0
    %677 = vmatpush1.msra.mxu0 0.0
    %678 = vmatprep.subr.mxu0 0.0
    %679 = vmatpush1.msra.mxu0 0.0
    %680 = vmatprep.subr.mxu0 0.0
    %681 = vmatpush1.msra.mxu0 0.0
    %682 = vmatprep.subr.mxu0 0.0
    %683 = vmatpush1.msra.mxu0 0.0
    %684 = vmatprep.subr.mxu0 0.0
    %685 = vmatpush1.msra.mxu0 0.0
    %686 = vmatprep.subr.mxu0 0.0
    %687 = vmatpush1.msra.mxu0 0.0
    %688 = vmatprep.subr.mxu0 0.0
    %689 = vmatpush1.msra.mxu0 0.0
    %690 = vmatprep.subr.mxu0 0.0
    %691 = vmatpush1.msra.mxu0 0.0
    %692 = vmatprep.subr.mxu0 0.0
    %693 = vmatpush1.msra.mxu0 0.0
    %694 = vmatprep.subr.mxu0 0.0
    %695 = vmatpush1.msra.mxu0 0.0
    %696 = vmatprep.subr.mxu0 0.0
    %697 = vmatpush1.msra.mxu0 0.0
    %698 = vmatprep.mubr.f32.mxu0 0.0
    %v699 = vand.u32 %v97, 4294901760
    %v700 = vsub.f32 %v97, %v699
    %v701 = vand.u32 %v700, 4294901760
    %v702 = vsub.f32 %v700, %v701
    %v703 = vand.u32 %v702, 4294901760
    %704 = vmatmul.mubr.f32.gmra.mrb[0].mxu0 %v703
    %v705 = vpop.f32.mrb[0].mxu0
    %v706 = vadd.f32 0.0, %v705
    %v707 = vpop.f32.mrb[0].mxu0
    %708 = vmatprep.mubr.f32.mxu0 0.0
    %v709 = vand.u32 %v100, 4294901760
    %v710 = vsub.f32 %v100, %v709
    %v711 = vand.u32 %v710, 4294901760
    %v712 = vsub.f32 %v710, %v711
    %v713 = vand.u32 %v712, 4294901760
    %714 = vmatmul.mubr.f32.gmra.mrb[0].mxu0 %v713
    %v715 = vpop.f32.mrb[0].mxu0
    %v716 = vadd.f32 0.0, %v715
    %v717 = vpop.f32.mrb[0].mxu0
    %718 = vdwg.mxu0
    %719 = vmatprep.subr.mxu0 0.0
    %v720 = vand.u32 %v33, 4294901760
    %v721 = vsub.f32 %v33, %v720
    %v722 = vand.u32 %v721, 4294901760
    %v723 = vsub.f32 %v721, %v722
    %v724 = vand.u32 %v723, 4294901760
    %725 = vmatpush1.msra.mxu0 %v724
    %726 = vmatprep.subr.mxu0 0.0
    %v727 = vand.u32 %v34, 4294901760
    %v728 = vsub.f32 %v34, %v727
    %v729 = vand.u32 %v728, 4294901760
    %v730 = vsub.f32 %v728, %v729
    %v731 = vand.u32 %v730, 4294901760
    %732 = vmatpush1.msra.mxu0 %v731
    %733 = vmatprep.subr.mxu0 0.0
    %v734 = vand.u32 %v35, 4294901760
    %v735 = vsub.f32 %v35, %v734
    %v736 = vand.u32 %v735, 4294901760
    %v737 = vsub.f32 %v735, %v736
    %v738 = vand.u32 %v737, 4294901760
    %739 = vmatpush1.msra.mxu0 %v738
    %740 = vmatprep.subr.mxu0 0.0
    %v741 = vand.u32 %v36, 4294901760
    %v742 = vsub.f32 %v36, %v741
    %v743 = vand.u32 %v742, 4294901760
    %v744 = vsub.f32 %v742, %v743
    %v745 = vand.u32 %v744, 4294901760
    %746 = vmatpush1.msra.mxu0 %v745
    %747 = vmatprep.subr.mxu0 0.0
    %748 = vmatpush1.msra.mxu0 0.0
    %749 = vmatprep.subr.mxu0 0.0
    %750 = vmatpush1.msra.mxu0 0.0
    %751 = vmatprep.subr.mxu0 0.0
    %752 = vmatpush1.msra.mxu0 0.0
    %753 = vmatprep.subr.mxu0 0.0
    %754 = vmatpush1.msra.mxu0 0.0
    %755 = vmatprep.subr.mxu0 0.0
    %756 = vmatpush1.msra.mxu0 0.0
    %757 = vmatprep.subr.mxu0 0.0
    %758 = vmatpush1.msra.mxu0 0.0
    %759 = vmatprep.subr.mxu0 0.0
    %760 = vmatpush1.msra.mxu0 0.0
    %761 = vmatprep.subr.mxu0 0.0
    %762 = vmatpush1.msra.mxu0 0.0
    %763 = vmatprep.subr.mxu0 0.0
    %764 = vmatpush1.msra.mxu0 0.0
    %765 = vmatprep.subr.mxu0 0.0
    %766 = vmatpush1.msra.mxu0 0.0
    %767 = vmatprep.subr.mxu0 0.0
    %768 = vmatpush1.msra.mxu0 0.0
    %769 = vmatprep.subr.mxu0 0.0
    %770 = vmatpush1.msra.mxu0 0.0
    %771 = vmatprep.subr.mxu0 0.0
    %772 = vmatpush1.msra.mxu0 0.0
    %773 = vmatprep.subr.mxu0 0.0
    %774 = vmatpush1.msra.mxu0 0.0
    %775 = vmatprep.subr.mxu0 0.0
    %776 = vmatpush1.msra.mxu0 0.0
    %777 = vmatprep.subr.mxu0 0.0
    %778 = vmatpush1.msra.mxu0 0.0
    %779 = vmatprep.subr.mxu0 0.0
    %780 = vmatpush1.msra.mxu0 0.0
    %781 = vmatprep.subr.mxu0 0.0
    %782 = vmatpush1.msra.mxu0 0.0
    %783 = vmatprep.subr.mxu0 0.0
    %784 = vmatpush1.msra.mxu0 0.0
    %785 = vmatprep.subr.mxu0 0.0
    %786 = vmatpush1.msra.mxu0 0.0
    %787 = vmatprep.subr.mxu0 0.0
    %788 = vmatpush1.msra.mxu0 0.0
    %789 = vmatprep.subr.mxu0 0.0
    %790 = vmatpush1.msra.mxu0 0.0
    %791 = vmatprep.subr.mxu0 0.0
    %792 = vmatpush1.msra.mxu0 0.0
    %793 = vmatprep.subr.mxu0 0.0
    %794 = vmatpush1.msra.mxu0 0.0
    %795 = vmatprep.subr.mxu0 0.0
    %796 = vmatpush1.msra.mxu0 0.0
    %797 = vmatprep.subr.mxu0 0.0
    %798 = vmatpush1.msra.mxu0 0.0
    %799 = vmatprep.subr.mxu0 0.0
    %800 = vmatpush1.msra.mxu0 0.0
    %801 = vmatprep.subr.mxu0 0.0
    %802 = vmatpush1.msra.mxu0 0.0
    %803 = vmatprep.mubr.f32.mxu0 0.0
    %v804 = vand.u32 %v97, 4294901760
    %805 = vmatmul.mubr.f32.gmra.mrb[0].mxu0 %v804
    %v806 = vpop.f32.mrb[0].mxu0
    %v807 = vadd.f32 %v706, %v806
    %v808 = vpop.f32.mrb[0].mxu0
    %809 = vmatprep.mubr.f32.mxu0 0.0
    %v810 = vand.u32 %v100, 4294901760
    %811 = vmatmul.mubr.f32.gmra.mrb[0].mxu0 %v810
    %v812 = vpop.f32.mrb[0].mxu0
    %v813 = vadd.f32 %v716, %v812
    %v814 = vpop.f32.mrb[0].mxu0
    %815 = vdwg.mxu0
    %816 = vmatprep.subr.mxu0 0.0
    %v817 = vand.u32 %v33, 4294901760
    %v818 = vsub.f32 %v33, %v817
    %819 = vmatpush1.msra.mxu0 %v818
    %820 = vmatprep.subr.mxu0 0.0
    %v821 = vand.u32 %v34, 4294901760
    %v822 = vsub.f32 %v34, %v821
    %823 = vmatpush1.msra.mxu0 %v822
    %824 = vmatprep.subr.mxu0 0.0
    %v825 = vand.u32 %v35, 4294901760
    %v826 = vsub.f32 %v35, %v825
    %827 = vmatpush1.msra.mxu0 %v826
    %828 = vmatprep.subr.mxu0 0.0
    %v829 = vand.u32 %v36, 4294901760
    %v830 = vsub.f32 %v36, %v829
    %831 = vmatpush1.msra.mxu0 %v830
    %832 = vmatprep.subr.mxu0 0.0
    %833 = vmatpush1.msra.mxu0 0.0
    %834 = vmatprep.subr.mxu0 0.0
    %835 = vmatpush1.msra.mxu0 0.0
    %836 = vmatprep.subr.mxu0 0.0
    %837 = vmatpush1.msra.mxu0 0.0
    %838 = vmatprep.subr.mxu0 0.0
    %839 = vmatpush1.msra.mxu0 0.0
    %840 = vmatprep.subr.mxu0 0.0
    %841 = vmatpush1.msra.mxu0 0.0
    %842 = vmatprep.subr.mxu0 0.0
    %843 = vmatpush1.msra.mxu0 0.0
    %844 = vmatprep.subr.mxu0 0.0
    %845 = vmatpush1.msra.mxu0 0.0
    %846 = vmatprep.subr.mxu0 0.0
    %847 = vmatpush1.msra.mxu0 0.0
    %848 = vmatprep.subr.mxu0 0.0
    %849 = vmatpush1.msra.mxu0 0.0
    %850 = vmatprep.subr.mxu0 0.0
    %851 = vmatpush1.msra.mxu0 0.0
    %852 = vmatprep.subr.mxu0 0.0
    %853 = vmatpush1.msra.mxu0 0.0
    %854 = vmatprep.subr.mxu0 0.0
    %855 = vmatpush1.msra.mxu0 0.0
    %856 = vmatprep.subr.mxu0 0.0
    %857 = vmatpush1.msra.mxu0 0.0
    %858 = vmatprep.subr.mxu0 0.0
    %859 = vmatpush1.msra.mxu0 0.0
    %860 = vmatprep.subr.mxu0 0.0
    %861 = vmatpush1.msra.mxu0 0.0
    %862 = vmatprep.subr.mxu0 0.0
    %863 = vmatpush1.msra.mxu0 0.0
    %864 = vmatprep.subr.mxu0 0.0
    %865 = vmatpush1.msra.mxu0 0.0
    %866 = vmatprep.subr.mxu0 0.0
    %867 = vmatpush1.msra.mxu0 0.0
    %868 = vmatprep.subr.mxu0 0.0
    %869 = vmatpush1.msra.mxu0 0.0
    %870 = vmatprep.subr.mxu0 0.0
    %871 = vmatpush1.msra.mxu0 0.0
    %872 = vmatprep.subr.mxu0 0.0
    %873 = vmatpush1.msra.mxu0 0.0
    %874 = vmatprep.subr.mxu0 0.0
    %875 = vmatpush1.msra.mxu0 0.0
    %876 = vmatprep.subr.mxu0 0.0
    %877 = vmatpush1.msra.mxu0 0.0
    %878 = vmatprep.subr.mxu0 0.0
    %879 = vmatpush1.msra.mxu0 0.0
    %880 = vmatprep.subr.mxu0 0.0
    %881 = vmatpush1.msra.mxu0 0.0
    %882 = vmatprep.subr.mxu0 0.0
    %883 = vmatpush1.msra.mxu0 0.0
    %884 = vmatprep.subr.mxu0 0.0
    %885 = vmatpush1.msra.mxu0 0.0
    %886 = vmatprep.subr.mxu0 0.0
    %887 = vmatpush1.msra.mxu0 0.0
    %888 = vmatprep.mubr.f32.mxu0 0.0
    %v889 = vand.u32 %v97, 4294901760
    %v890 = vsub.f32 %v97, %v889
    %891 = vmatmul.mubr.f32.gmra.mrb[0].mxu0 %v890
    %v892 = vpop.f32.mrb[0].mxu0
    %v893 = vadd.f32 %v807, %v892
    %v894 = vpop.f32.mrb[0].mxu0
    %895 = vmatprep.mubr.f32.mxu0 0.0
    %v896 = vand.u32 %v100, 4294901760
    %v897 = vsub.f32 %v100, %v896
    %898 = vmatmul.mubr.f32.gmra.mrb[0].mxu0 %v897
    %v899 = vpop.f32.mrb[0].mxu0
    %v900 = vadd.f32 %v813, %v899
    %v901 = vpop.f32.mrb[0].mxu0
    %902 = vdwg.mxu0
    %903 = vmatprep.subr.mxu0 0.0
    %v904 = vand.u32 %v33, 4294901760
    %905 = vmatpush1.msra.mxu0 %v904
    %906 = vmatprep.subr.mxu0 0.0
    %v907 = vand.u32 %v34, 4294901760
    %908 = vmatpush1.msra.mxu0 %v907
    %909 = vmatprep.subr.mxu0 0.0
    %v910 = vand.u32 %v35, 4294901760
    %911 = vmatpush1.msra.mxu0 %v910
    %912 = vmatprep.subr.mxu0 0.0
    %v913 = vand.u32 %v36, 4294901760
    %914 = vmatpush1.msra.mxu0 %v913
    %915 = vmatprep.subr.mxu0 0.0
    %916 = vmatpush1.msra.mxu0 0.0
    %917 = vmatprep.subr.mxu0 0.0
    %918 = vmatpush1.msra.mxu0 0.0
    %919 = vmatprep.subr.mxu0 0.0
    %920 = vmatpush1.msra.mxu0 0.0
    %921 = vmatprep.subr.mxu0 0.0
    %922 = vmatpush1.msra.mxu0 0.0
    %923 = vmatprep.subr.mxu0 0.0
    %924 = vmatpush1.msra.mxu0 0.0
    %925 = vmatprep.subr.mxu0 0.0
    %926 = vmatpush1.msra.mxu0 0.0
    %927 = vmatprep.subr.mxu0 0.0
    %928 = vmatpush1.msra.mxu0 0.0
    %929 = vmatprep.subr.mxu0 0.0
    %930 = vmatpush1.msra.mxu0 0.0
    %931 = vmatprep.subr.mxu0 0.0
    %932 = vmatpush1.msra.mxu0 0.0
    %933 = vmatprep.subr.mxu0 0.0
    %934 = vmatpush1.msra.mxu0 0.0
    %935 = vmatprep.subr.mxu0 0.0
    %936 = vmatpush1.msra.mxu0 0.0
    %937 = vmatprep.subr.mxu0 0.0
    %938 = vmatpush1.msra.mxu0 0.0
    %939 = vmatprep.subr.mxu0 0.0
    %940 = vmatpush1.msra.mxu0 0.0
    %941 = vmatprep.subr.mxu0 0.0
    %942 = vmatpush1.msra.mxu0 0.0
    %943 = vmatprep.subr.mxu0 0.0
    %944 = vmatpush1.msra.mxu0 0.0
    %945 = vmatprep.subr.mxu0 0.0
    %946 = vmatpush1.msra.mxu0 0.0
    %947 = vmatprep.subr.mxu0 0.0
    %948 = vmatpush1.msra.mxu0 0.0
    %949 = vmatprep.subr.mxu0 0.0
    %950 = vmatpush1.msra.mxu0 0.0
    %951 = vmatprep.subr.mxu0 0.0
    %952 = vmatpush1.msra.mxu0 0.0
    %953 = vmatprep.subr.mxu0 0.0
    %954 = vmatpush1.msra.mxu0 0.0
    %955 = vmatprep.subr.mxu0 0.0
    %956 = vmatpush1.msra.mxu0 0.0
    %957 = vmatprep.subr.mxu0 0.0
    %958 = vmatpush1.msra.mxu0 0.0
    %959 = vmatprep.subr.mxu0 0.0
    %960 = vmatpush1.msra.mxu0 0.0
    %961 = vmatprep.subr.mxu0 0.0
    %962 = vmatpush1.msra.mxu0 0.0
    %963 = vmatprep.subr.mxu0 0.0
    %964 = vmatpush1.msra.mxu0 0.0
    %965 = vmatprep.subr.mxu0 0.0
    %966 = vmatpush1.msra.mxu0 0.0
    %967 = vmatprep.subr.mxu0 0.0
    %968 = vmatpush1.msra.mxu0 0.0
    %969 = vmatprep.subr.mxu0 0.0
    %970 = vmatpush1.msra.mxu0 0.0
    %971 = vmatprep.mubr.f32.mxu0 0.0
    %v972 = vand.u32 %v97, 4294901760
    %v973 = vsub.f32 %v97, %v972
    %v974 = vand.u32 %v973, 4294901760
    %975 = vmatmul.mubr.f32.gmra.mrb[0].mxu0 %v974
    %v976 = vpop.f32.mrb[0].mxu0
    %v977 = vadd.f32 %v893, %v976
    %v978 = vpop.f32.mrb[0].mxu0
    %979 = vmatprep.mubr.f32.mxu0 0.0
    %v980 = vand.u32 %v100, 4294901760
    %v981 = vsub.f32 %v100, %v980
    %v982 = vand.u32 %v981, 4294901760
    %983 = vmatmul.mubr.f32.gmra.mrb[0].mxu0 %v982
    %v984 = vpop.f32.mrb[0].mxu0
    %v985 = vadd.f32 %v900, %v984
    %v986 = vpop.f32.mrb[0].mxu0
    %987 = vdwg.mxu0
    %988 = vmatprep.subr.mxu0 0.0
    %v989 = vand.u32 %v33, 4294901760
    %v990 = vsub.f32 %v33, %v989
    %v991 = vand.u32 %v990, 4294901760
    %992 = vmatpush1.msra.mxu0 %v991
    %993 = vmatprep.subr.mxu0 0.0
    %v994 = vand.u32 %v34, 4294901760
    %v995 = vsub.f32 %v34, %v994
    %v996 = vand.u32 %v995, 4294901760
    %997 = vmatpush1.msra.mxu0 %v996
    %998 = vmatprep.subr.mxu0 0.0
    %v999 = vand.u32 %v35, 4294901760
    %v1000 = vsub.f32 %v35, %v999
    %v1001 = vand.u32 %v1000, 4294901760
    %1002 = vmatpush1.msra.mxu0 %v1001
    %1003 = vmatprep.subr.mxu0 0.0
    %v1004 = vand.u32 %v36, 4294901760
    %v1005 = vsub.f32 %v36, %v1004
    %v1006 = vand.u32 %v1005, 4294901760
    %1007 = vmatpush1.msra.mxu0 %v1006
    %1008 = vmatprep.subr.mxu0 0.0
    %1009 = vmatpush1.msra.mxu0 0.0
    %1010 = vmatprep.subr.mxu0 0.0
    %1011 = vmatpush1.msra.mxu0 0.0
    %1012 = vmatprep.subr.mxu0 0.0
    %1013 = vmatpush1.msra.mxu0 0.0
    %1014 = vmatprep.subr.mxu0 0.0
    %1015 = vmatpush1.msra.mxu0 0.0
    %1016 = vmatprep.subr.mxu0 0.0
    %1017 = vmatpush1.msra.mxu0 0.0
    %1018 = vmatprep.subr.mxu0 0.0
    %1019 = vmatpush1.msra.mxu0 0.0
    %1020 = vmatprep.subr.mxu0 0.0
    %1021 = vmatpush1.msra.mxu0 0.0
    %1022 = vmatprep.subr.mxu0 0.0
    %1023 = vmatpush1.msra.mxu0 0.0
    %1024 = vmatprep.subr.mxu0 0.0
    %1025 = vmatpush1.msra.mxu0 0.0
    %1026 = vmatprep.subr.mxu0 0.0
    %1027 = vmatpush1.msra.mxu0 0.0
    %1028 = vmatprep.subr.mxu0 0.0
    %1029 = vmatpush1.msra.mxu0 0.0
    %1030 = vmatprep.subr.mxu0 0.0
    %1031 = vmatpush1.msra.mxu0 0.0
    %1032 = vmatprep.subr.mxu0 0.0
    %1033 = vmatpush1.msra.mxu0 0.0
    %1034 = vmatprep.subr.mxu0 0.0
    %1035 = vmatpush1.msra.mxu0 0.0
    %1036 = vmatprep.subr.mxu0 0.0
    %1037 = vmatpush1.msra.mxu0 0.0
    %1038 = vmatprep.subr.mxu0 0.0
    %1039 = vmatpush1.msra.mxu0 0.0
    %1040 = vmatprep.subr.mxu0 0.0
    %1041 = vmatpush1.msra.mxu0 0.0
    %1042 = vmatprep.subr.mxu0 0.0
    %1043 = vmatpush1.msra.mxu0 0.0
    %1044 = vmatprep.subr.mxu0 0.0
    %1045 = vmatpush1.msra.mxu0 0.0
    %1046 = vmatprep.subr.mxu0 0.0
    %1047 = vmatpush1.msra.mxu0 0.0
    %1048 = vmatprep.subr.mxu0 0.0
    %1049 = vmatpush1.msra.mxu0 0.0
    %1050 = vmatprep.subr.mxu0 0.0
    %1051 = vmatpush1.msra.mxu0 0.0
    %1052 = vmatprep.subr.mxu0 0.0
    %1053 = vmatpush1.msra.mxu0 0.0
    %1054 = vmatprep.subr.mxu0 0.0
    %1055 = vmatpush1.msra.mxu0 0.0
    %1056 = vmatprep.subr.mxu0 0.0
    %1057 = vmatpush1.msra.mxu0 0.0
    %1058 = vmatprep.subr.mxu0 0.0
    %1059 = vmatpush1.msra.mxu0 0.0
    %1060 = vmatprep.subr.mxu0 0.0
    %1061 = vmatpush1.msra.mxu0 0.0
    %1062 = vmatprep.subr.mxu0 0.0
    %1063 = vmatpush1.msra.mxu0 0.0
    %1064 = vmatprep.mubr.f32.mxu0 0.0
    %v1065 = vand.u32 %v97, 4294901760
    %1066 = vmatmul.mubr.f32.gmra.mrb[0].mxu0 %v1065
    %v1067 = vpop.f32.mrb[0].mxu0
    %v1068 = vadd.f32 %v977, %v1067
    %v1069 = vpop.f32.mrb[0].mxu0
    %1070 = vmatprep.mubr.f32.mxu0 0.0
    %v1071 = vand.u32 %v100, 4294901760
    %1072 = vmatmul.mubr.f32.gmra.mrb[0].mxu0 %v1071
    %v1073 = vpop.f32.mrb[0].mxu0
    %v1074 = vadd.f32 %v985, %v1073
    %v1075 = vpop.f32.mrb[0].mxu0
    %1076 = vdwg.mxu0
    %1077 = vmatprep.subr.mxu0 0.0
    %v1078 = vand.u32 %v33, 4294901760
    %1079 = vmatpush1.msra.mxu0 %v1078
    %1080 = vmatprep.subr.mxu0 0.0
    %v1081 = vand.u32 %v34, 4294901760
    %1082 = vmatpush1.msra.mxu0 %v1081
    %1083 = vmatprep.subr.mxu0 0.0
    %v1084 = vand.u32 %v35, 4294901760
    %1085 = vmatpush1.msra.mxu0 %v1084
    %1086 = vmatprep.subr.mxu0 0.0
    %v1087 = vand.u32 %v36, 4294901760
    %1088 = vmatpush1.msra.mxu0 %v1087
    %1089 = vmatprep.subr.mxu0 0.0
    %1090 = vmatpush1.msra.mxu0 0.0
    %1091 = vmatprep.subr.mxu0 0.0
    %1092 = vmatpush1.msra.mxu0 0.0
    %1093 = vmatprep.subr.mxu0 0.0
    %1094 = vmatpush1.msra.mxu0 0.0
    %1095 = vmatprep.subr.mxu0 0.0
    %1096 = vmatpush1.msra.mxu0 0.0
    %1097 = vmatprep.subr.mxu0 0.0
    %1098 = vmatpush1.msra.mxu0 0.0
    %1099 = vmatprep.subr.mxu0 0.0
    %1100 = vmatpush1.msra.mxu0 0.0
    %1101 = vmatprep.subr.mxu0 0.0
    %1102 = vmatpush1.msra.mxu0 0.0
    %1103 = vmatprep.subr.mxu0 0.0
    %1104 = vmatpush1.msra.mxu0 0.0
    %1105 = vmatprep.subr.mxu0 0.0
    %1106 = vmatpush1.msra.mxu0 0.0
    %1107 = vmatprep.subr.mxu0 0.0
    %1108 = vmatpush1.msra.mxu0 0.0
    %1109 = vmatprep.subr.mxu0 0.0
    %1110 = vmatpush1.msra.mxu0 0.0
    %1111 = vmatprep.subr.mxu0 0.0
    %1112 = vmatpush1.msra.mxu0 0.0
    %1113 = vmatprep.subr.mxu0 0.0
    %1114 = vmatpush1.msra.mxu0 0.0
    %1115 = vmatprep.subr.mxu0 0.0
    %1116 = vmatpush1.msra.mxu0 0.0
    %1117 = vmatprep.subr.mxu0 0.0
    %1118 = vmatpush1.msra.mxu0 0.0
    %1119 = vmatprep.subr.mxu0 0.0
    %1120 = vmatpush1.msra.mxu0 0.0
    %1121 = vmatprep.subr.mxu0 0.0
    %1122 = vmatpush1.msra.mxu0 0.0
    %1123 = vmatprep.subr.mxu0 0.0
    %1124 = vmatpush1.msra.mxu0 0.0
    %1125 = vmatprep.subr.mxu0 0.0
    %1126 = vmatpush1.msra.mxu0 0.0
    %1127 = vmatprep.subr.mxu0 0.0
    %1128 = vmatpush1.msra.mxu0 0.0
    %1129 = vmatprep.subr.mxu0 0.0
    %1130 = vmatpush1.msra.mxu0 0.0
    %1131 = vmatprep.subr.mxu0 0.0
    %1132 = vmatpush1.msra.mxu0 0.0
    %1133 = vmatprep.subr.mxu0 0.0
    %1134 = vmatpush1.msra.mxu0 0.0
    %1135 = vmatprep.subr.mxu0 0.0
    %1136 = vmatpush1.msra.mxu0 0.0
    %1137 = vmatprep.subr.mxu0 0.0
    %1138 = vmatpush1.msra.mxu0 0.0
    %1139 = vmatprep.subr.mxu0 0.0
    %1140 = vmatpush1.msra.mxu0 0.0
    %1141 = vmatprep.subr.mxu0 0.0
    %1142 = vmatpush1.msra.mxu0 0.0
    %1143 = vmatprep.subr.mxu0 0.0
    %1144 = vmatpush1.msra.mxu0 0.0
    %1145 = vmatprep.mubr.f32.mxu0 0.0
    %v1146 = vand.u32 %v97, 4294901760
    %1147 = vmatmul.mubr.f32.gmra.mrb[0].mxu0 %v1146
    %v1148 = vpop.f32.mrb[0].mxu0
    %v1149 = vadd.f32 %v1068, %v1148
    %v1150 = vpop.f32.mrb[0].mxu0
    %1151 = vmatprep.mubr.f32.mxu0 0.0
    %v1152 = vand.u32 %v100, 4294901760
    %1153 = vmatmul.mubr.f32.gmra.mrb[0].mxu0 %v1152
    %v1154 = vpop.f32.mrb[0].mxu0
    %v1155 = vadd.f32 %v1074, %v1154
    %v1156 = vpop.f32.mrb[0].mxu0
    %1157 = vdwg.mxu0
    %v1158 = vlaneseq
    %v1159 = vshrl.u32 %v1158, 7
    %v1160 = vsub.s32 0, %v1159
    %v1161 = vrot.slane %v64, %v1160
    %1163 = vbcast.lane.b32.xlu0 %v1161, 256
    %v1164 = vpop.permute.xlu0 %1163
    %v1165 = vlaneseq
    %v1166 = vshrl.u32 %v1165, 7
    %v1167 = vsub.s32 1, %v1166
    %v1168 = vrot.slane %v64, %v1167
    %1170 = vbcast.lane.b32.xlu0 %v1168, 256
    %v1171 = vpop.permute.xlu0 %1170
    %v1172 = vlaneseq
    %v1173 = vshrl.u32 %v1172, 7
    %v1174 = vsub.s32 2, %v1173
    %v1175 = vrot.slane %v64, %v1174
    %1177 = vbcast.lane.b32.xlu0 %v1175, 256
    %v1178 = vpop.permute.xlu0 %1177
    %v1179 = vlaneseq
    %v1180 = vshrl.u32 %v1179, 7
    %v1181 = vsub.s32 3, %v1180
    %v1182 = vrot.slane %v64, %v1181
    %1184 = vbcast.lane.b32.xlu0 %v1182, 256
    %v1185 = vpop.permute.xlu0 %1184
    %v1186 = vlaneseq
    %v1187 = vshrl.u32 %v1186, 7
    %v1188 = vsub.s32 4, %v1187
    %v1189 = vrot.slane %v64, %v1188
    %1191 = vbcast.lane.b32.xlu0 %v1189, 256
    %v1192 = vpop.permute.xlu0 %1191
    %v1193 = vlaneseq
    %v1194 = vshrl.u32 %v1193, 7
    %v1195 = vsub.s32 5, %v1194
    %v1196 = vrot.slane %v64, %v1195
    %1198 = vbcast.lane.b32.xlu0 %v1196, 256
    %v1199 = vpop.permute.xlu0 %1198
    %v1200 = vlaneseq
    %v1201 = vshrl.u32 %v1200, 7
    %v1202 = vsub.s32 6, %v1201
    %v1203 = vrot.slane %v64, %v1202
    %1205 = vbcast.lane.b32.xlu0 %v1203, 256
    %v1206 = vpop.permute.xlu0 %1205
    %v1207 = vlaneseq
    %v1208 = vshrl.u32 %v1207, 7
    %v1209 = vsub.s32 7, %v1208
    %v1210 = vrot.slane %v64, %v1209
    %1212 = vbcast.lane.b32.xlu0 %v1210, 256
    %v1213 = vpop.permute.xlu0 %1212
    %vm1214 = vcmp.eq.s32.totalorder %v1164, %v70
    %vm1215 = vcmp.eq.s32.totalorder %v1171, %v70
    %vm1216 = vcmp.eq.s32.totalorder %v1178, %v70
    %vm1217 = vcmp.eq.s32.totalorder %v1185, %v70
    %vm1218 = vcmp.eq.s32.totalorder %v1192, %v70
    %vm1219 = vcmp.eq.s32.totalorder %v1199, %v70
    %vm1220 = vcmp.eq.s32.totalorder %v1206, %v70
    %vm1221 = vcmp.eq.s32.totalorder %v1213, %v70
    %v1222 = vsel %vm1214, 1, 0
    %v1223 = vsel %vm1215, 1, 0
    %v1224 = vsel %vm1216, 1, 0
    %v1225 = vsel %vm1217, 1, 0
    %v1226 = vsel %vm1218, 1, 0
    %v1227 = vsel %vm1219, 1, 0
    %v1228 = vsel %vm1220, 1, 0
    %v1229 = vsel %vm1221, 1, 0
    %v1230 = vcvt.s32.f32 %v1222
    %v1231 = vcvt.s32.f32 %v1223
    %v1232 = vcvt.s32.f32 %v1224
    %v1233 = vcvt.s32.f32 %v1225
    %v1234 = vcvt.s32.f32 %v1226
    %v1235 = vcvt.s32.f32 %v1227
    %v1236 = vcvt.s32.f32 %v1228
    %v1237 = vcvt.s32.f32 %v1229
    %v1238 = vlaneseq
    %v1239 = vshrl.u32 %v1238, 7
    %v1240 = vsub.s32 0, %v1239
    %v1241 = vrot.slane %v65, %v1240
    %1243 = vbcast.lane.b32.xlu0 %v1241, 256
    %v1244 = vpop.permute.xlu0 %1243
    %v1245 = vlaneseq
    %v1246 = vshrl.u32 %v1245, 7
    %v1247 = vsub.s32 1, %v1246
    %v1248 = vrot.slane %v65, %v1247
    %1250 = vbcast.lane.b32.xlu0 %v1248, 256
    %v1251 = vpop.permute.xlu0 %1250
    %v1252 = vlaneseq
    %v1253 = vshrl.u32 %v1252, 7
    %v1254 = vsub.s32 2, %v1253
    %v1255 = vrot.slane %v65, %v1254
    %1257 = vbcast.lane.b32.xlu0 %v1255, 256
    %v1258 = vpop.permute.xlu0 %1257
    %v1259 = vlaneseq
    %v1260 = vshrl.u32 %v1259, 7
    %v1261 = vsub.s32 3, %v1260
    %v1262 = vrot.slane %v65, %v1261
    %1264 = vbcast.lane.b32.xlu0 %v1262, 256
    %v1265 = vpop.permute.xlu0 %1264
    %v1266 = vlaneseq
    %v1267 = vshrl.u32 %v1266, 7
    %v1268 = vsub.s32 4, %v1267
    %v1269 = vrot.slane %v65, %v1268
    %1271 = vbcast.lane.b32.xlu0 %v1269, 256
    %v1272 = vpop.permute.xlu0 %1271
    %vm1273 = vcmp.eq.s32.totalorder %v1244, %v70
    %vm1274 = vcmp.eq.s32.totalorder %v1251, %v70
    %vm1275 = vcmp.eq.s32.totalorder %v1258, %v70
    %vm1276 = vcmp.eq.s32.totalorder %v1265, %v70
    %vm1277 = vcmp.eq.s32.totalorder %v1272, %v70
    %v1278 = vsel %vm1273, 1, 0
    %v1279 = vsel %vm1274, 1, 0
    %v1280 = vsel %vm1275, 1, 0
    %v1281 = vsel %vm1276, 1, 0
    %v1282 = vsel %vm1277, 1, 0
    %v1283 = vcvt.s32.f32 %v1278
    %v1284 = vcvt.s32.f32 %v1279
    %v1285 = vcvt.s32.f32 %v1280
    %v1286 = vcvt.s32.f32 %v1281
    %v1287 = vcvt.s32.f32 %v1282
    %v1288 = vlaneseq
    %v1289 = vshrl.u32 %v1288, 7
    %v1290 = vsub.s32 0, %v1289
    %v1291 = vrot.slane %v41, %v1290
    %vm1292 = vcmask 130048
    %v1294 = vsel %vm1292, %v1230, 0
    %v1297 = vsel %vm1292, %v1231, 0
    %v1300 = vsel %vm1292, %v1232, 0
    %v1303 = vsel %vm1292, %v1233, 0
    %v1306 = vsel %vm1292, %v1234, 0
    %v1309 = vsel %vm1292, %v1235, 0
    %v1312 = vsel %vm1292, %v1236, 0
    %v1315 = vsel %vm1292, %v1237, 0
    %1317 = vmatprep.subr.mxu0 0.0
    %v1318 = vand.u32 %v621, 4294901760
    %1319 = vmatpush1.msra.mxu0 %v1318
    %1320 = vmatprep.subr.mxu0 0.0
    %v1321 = vand.u32 %v627, 4294901760
    %1322 = vmatpush1.msra.mxu0 %v1321
    %1323 = vmatprep.subr.mxu0 0.0
    %1324 = vmatpush1.msra.mxu0 0.0
    %1325 = vmatprep.subr.mxu0 0.0
    %1326 = vmatpush1.msra.mxu0 0.0
    %1327 = vmatprep.subr.mxu0 0.0
    %1328 = vmatpush1.msra.mxu0 0.0
    %1329 = vmatprep.subr.mxu0 0.0
    %1330 = vmatpush1.msra.mxu0 0.0
    %1331 = vmatprep.subr.mxu0 0.0
    %1332 = vmatpush1.msra.mxu0 0.0
    %1333 = vmatprep.subr.mxu0 0.0
    %1334 = vmatpush1.msra.mxu0 0.0
    %1335 = vmatprep.subr.mxu0 0.0
    %1336 = vmatpush1.msra.mxu0 0.0
    %1337 = vmatprep.subr.mxu0 0.0
    %1338 = vmatpush1.msra.mxu0 0.0
    %1339 = vmatprep.subr.mxu0 0.0
    %1340 = vmatpush1.msra.mxu0 0.0
    %1341 = vmatprep.subr.mxu0 0.0
    %1342 = vmatpush1.msra.mxu0 0.0
    %1343 = vmatprep.subr.mxu0 0.0
    %1344 = vmatpush1.msra.mxu0 0.0
    %1345 = vmatprep.subr.mxu0 0.0
    %1346 = vmatpush1.msra.mxu0 0.0
    %1347 = vmatprep.subr.mxu0 0.0
    %1348 = vmatpush1.msra.mxu0 0.0
    %1349 = vmatprep.subr.mxu0 0.0
    %1350 = vmatpush1.msra.mxu0 0.0
    %1351 = vmatprep.subr.mxu0 0.0
    %1352 = vmatpush1.msra.mxu0 0.0
    %1353 = vmatprep.subr.mxu0 0.0
    %1354 = vmatpush1.msra.mxu0 0.0
    %1355 = vmatprep.subr.mxu0 0.0
    %1356 = vmatpush1.msra.mxu0 0.0
    %1357 = vmatprep.subr.mxu0 0.0
    %1358 = vmatpush1.msra.mxu0 0.0
    %1359 = vmatprep.subr.mxu0 0.0
    %1360 = vmatpush1.msra.mxu0 0.0
    %1361 = vmatprep.subr.mxu0 0.0
    %1362 = vmatpush1.msra.mxu0 0.0
    %1363 = vmatprep.subr.mxu0 0.0
    %1364 = vmatpush1.msra.mxu0 0.0
    %1365 = vmatprep.subr.mxu0 0.0
    %1366 = vmatpush1.msra.mxu0 0.0
    %1367 = vmatprep.subr.mxu0 0.0
    %1368 = vmatpush1.msra.mxu0 0.0
    %1369 = vmatprep.subr.mxu0 0.0
    %1370 = vmatpush1.msra.mxu0 0.0
    %1371 = vmatprep.subr.mxu0 0.0
    %1372 = vmatpush1.msra.mxu0 0.0
    %1373 = vmatprep.subr.mxu0 0.0
    %1374 = vmatpush1.msra.mxu0 0.0
    %1375 = vmatprep.subr.mxu0 0.0
    %1376 = vmatpush1.msra.mxu0 0.0
    %1377 = vmatprep.subr.mxu0 0.0
    %1378 = vmatpush1.msra.mxu0 0.0
    %1379 = vmatprep.subr.mxu0 0.0
    %1380 = vmatpush1.msra.mxu0 0.0
    %1381 = vmatprep.subr.mxu0 0.0
    %1382 = vmatpush1.msra.mxu0 0.0
    %1383 = vmatprep.mubr.f32.mxu0 0.0
    %v1384 = vand.u32 %v1294, 4294901760
    %v1385 = vsub.f32 %v1294, %v1384
    %v1386 = vand.u32 %v1385, 4294901760
    %v1387 = vsub.f32 %v1385, %v1386
    %v1388 = vand.u32 %v1387, 4294901760
    %1389 = vmatmul.mubr.f32.gmra.mrb[0].mxu0 %v1388
    %v1390 = vpop.f32.mrb[0].mxu0
    %v1391 = vadd.f32 %v1291, %v1390
    %v1392 = vpop.f32.mrb[0].mxu0
    %1393 = vmatprep.mubr.f32.mxu0 0.0
    %v1394 = vand.u32 %v1297, 4294901760
    %v1395 = vsub.f32 %v1297, %v1394
    %v1396 = vand.u32 %v1395, 4294901760
    %v1397 = vsub.f32 %v1395, %v1396
    %v1398 = vand.u32 %v1397, 4294901760
    %1399 = vmatmul.mubr.f32.gmra.mrb[0].mxu0 %v1398
    %v1400 = vpop.f32.mrb[0].mxu0
    %v1401 = vadd.f32 %v1291, %v1400
    %v1402 = vpop.f32.mrb[0].mxu0
    %1403 = vmatprep.mubr.f32.mxu0 0.0
    %v1404 = vand.u32 %v1300, 4294901760
    %v1405 = vsub.f32 %v1300, %v1404
    %v1406 = vand.u32 %v1405, 4294901760
    %v1407 = vsub.f32 %v1405, %v1406
    %v1408 = vand.u32 %v1407, 4294901760
    %1409 = vmatmul.mubr.f32.gmra.mrb[0].mxu0 %v1408
    %v1410 = vpop.f32.mrb[0].mxu0
    %v1411 = vadd.f32 %v1291, %v1410
    %v1412 = vpop.f32.mrb[0].mxu0
    %1413 = vmatprep.mubr.f32.mxu0 0.0
    %v1414 = vand.u32 %v1303, 4294901760
    %v1415 = vsub.f32 %v1303, %v1414
    %v1416 = vand.u32 %v1415, 4294901760
    %v1417 = vsub.f32 %v1415, %v1416
    %v1418 = vand.u32 %v1417, 4294901760
    %1419 = vmatmul.mubr.f32.gmra.mrb[0].mxu0 %v1418
    %v1420 = vpop.f32.mrb[0].mxu0
    %v1421 = vadd.f32 %v1291, %v1420
    %v1422 = vpop.f32.mrb[0].mxu0
    %1423 = vmatprep.mubr.f32.mxu0 0.0
    %v1424 = vand.u32 %v1306, 4294901760
    %v1425 = vsub.f32 %v1306, %v1424
    %v1426 = vand.u32 %v1425, 4294901760
    %v1427 = vsub.f32 %v1425, %v1426
    %v1428 = vand.u32 %v1427, 4294901760
    %1429 = vmatmul.mubr.f32.gmra.mrb[0].mxu0 %v1428
    %v1430 = vpop.f32.mrb[0].mxu0
    %v1431 = vadd.f32 %v1291, %v1430
    %v1432 = vpop.f32.mrb[0].mxu0
    %1433 = vmatprep.mubr.f32.mxu0 0.0
    %v1434 = vand.u32 %v1309, 4294901760
    %v1435 = vsub.f32 %v1309, %v1434
    %v1436 = vand.u32 %v1435, 4294901760
    %v1437 = vsub.f32 %v1435, %v1436
    %v1438 = vand.u32 %v1437, 4294901760
    %1439 = vmatmul.mubr.f32.gmra.mrb[0].mxu0 %v1438
    %v1440 = vpop.f32.mrb[0].mxu0
    %v1441 = vadd.f32 %v1291, %v1440
    %v1442 = vpop.f32.mrb[0].mxu0
    %1443 = vmatprep.mubr.f32.mxu0 0.0
    %v1444 = vand.u32 %v1312, 4294901760
    %v1445 = vsub.f32 %v1312, %v1444
    %v1446 = vand.u32 %v1445, 4294901760
    %v1447 = vsub.f32 %v1445, %v1446
    %v1448 = vand.u32 %v1447, 4294901760
    %1449 = vmatmul.mubr.f32.gmra.mrb[0].mxu0 %v1448
    %v1450 = vpop.f32.mrb[0].mxu0
    %v1451 = vadd.f32 %v1291, %v1450
    %v1452 = vpop.f32.mrb[0].mxu0
    %1453 = vmatprep.mubr.f32.mxu0 0.0
    %v1454 = vand.u32 %v1315, 4294901760
    %v1455 = vsub.f32 %v1315, %v1454
    %v1456 = vand.u32 %v1455, 4294901760
    %v1457 = vsub.f32 %v1455, %v1456
    %v1458 = vand.u32 %v1457, 4294901760
    %1459 = vmatmul.mubr.f32.gmra.mrb[0].mxu0 %v1458
    %v1460 = vpop.f32.mrb[0].mxu0
    %v1461 = vadd.f32 %v1291, %v1460
    %v1462 = vpop.f32.mrb[0].mxu0
    %1463 = vdwg.mxu0
    %1464 = vmatprep.subr.mxu0 0.0
    %v1465 = vand.u32 %v621, 4294901760
    %v1466 = vsub.f32 %v621, %v1465
    %v1467 = vand.u32 %v1466, 4294901760
    %v1468 = vsub.f32 %v1466, %v1467
    %v1469 = vand.u32 %v1468, 4294901760
    %1470 = vmatpush1.msra.mxu0 %v1469
    %1471 = vmatprep.subr.mxu0 0.0
    %v1472 = vand.u32 %v627, 4294901760
    %v1473 = vsub.f32 %v627, %v1472
    %v1474 = vand.u32 %v1473, 4294901760
    %v1475 = vsub.f32 %v1473, %v1474
    %v1476 = vand.u32 %v1475, 4294901760
    %1477 = vmatpush1.msra.mxu0 %v1476
    %1478 = vmatprep.subr.mxu0 0.0
    %1479 = vmatpush1.msra.mxu0 0.0
    %1480 = vmatprep.subr.mxu0 0.0
    %1481 = vmatpush1.msra.mxu0 0.0
    %1482 = vmatprep.subr.mxu0 0.0
    %1483 = vmatpush1.msra.mxu0 0.0
    %1484 = vmatprep.subr.mxu0 0.0
    %1485 = vmatpush1.msra.mxu0 0.0
    %1486 = vmatprep.subr.mxu0 0.0
    %1487 = vmatpush1.msra.mxu0 0.0
    %1488 = vmatprep.subr.mxu0 0.0
    %1489 = vmatpush1.msra.mxu0 0.0
    %1490 = vmatprep.subr.mxu0 0.0
    %1491 = vmatpush1.msra.mxu0 0.0
    %1492 = vmatprep.subr.mxu0 0.0
    %1493 = vmatpush1.msra.mxu0 0.0
    %1494 = vmatprep.subr.mxu0 0.0
    %1495 = vmatpush1.msra.mxu0 0.0
    %1496 = vmatprep.subr.mxu0 0.0
    %1497 = vmatpush1.msra.mxu0 0.0
    %1498 = vmatprep.subr.mxu0 0.0
    %1499 = vmatpush1.msra.mxu0 0.0
    %1500 = vmatprep.subr.mxu0 0.0
    %1501 = vmatpush1.msra.mxu0 0.0
    %1502 = vmatprep.subr.mxu0 0.0
    %1503 = vmatpush1.msra.mxu0 0.0
    %1504 = vmatprep.subr.mxu0 0.0
    %1505 = vmatpush1.msra.mxu0 0.0
    %1506 = vmatprep.subr.mxu0 0.0
    %1507 = vmatpush1.msra.mxu0 0.0
    %1508 = vmatprep.subr.mxu0 0.0
    %1509 = vmatpush1.msra.mxu0 0.0
    %1510 = vmatprep.subr.mxu0 0.0
    %1511 = vmatpush1.msra.mxu0 0.0
    %1512 = vmatprep.subr.mxu0 0.0
    %1513 = vmatpush1.msra.mxu0 0.0
    %1514 = vmatprep.subr.mxu0 0.0
    %1515 = vmatpush1.msra.mxu0 0.0
    %1516 = vmatprep.subr.mxu0 0.0
    %1517 = vmatpush1.msra.mxu0 0.0
    %1518 = vmatprep.subr.mxu0 0.0
    %1519 = vmatpush1.msra.mxu0 0.0
    %1520 = vmatprep.subr.mxu0 0.0
    %1521 = vmatpush1.msra.mxu0 0.0
    %1522 = vmatprep.subr.mxu0 0.0
    %1523 = vmatpush1.msra.mxu0 0.0
    %1524 = vmatprep.subr.mxu0 0.0
    %1525 = vmatpush1.msra.mxu0 0.0
    %1526 = vmatprep.subr.mxu0 0.0
    %1527 = vmatpush1.msra.mxu0 0.0
    %1528 = vmatprep.subr.mxu0 0.0
    %1529 = vmatpush1.msra.mxu0 0.0
    %1530 = vmatprep.subr.mxu0 0.0
    %1531 = vmatpush1.msra.mxu0 0.0
    %1532 = vmatprep.subr.mxu0 0.0
    %1533 = vmatpush1.msra.mxu0 0.0
    %1534 = vmatprep.subr.mxu0 0.0
    %1535 = vmatpush1.msra.mxu0 0.0
    %1536 = vmatprep.subr.mxu0 0.0
    %1537 = vmatpush1.msra.mxu0 0.0
    %1538 = vmatprep.mubr.f32.mxu0 0.0
    %v1539 = vand.u32 %v1294, 4294901760
    %1540 = vmatmul.mubr.f32.gmra.mrb[0].mxu0 %v1539
    %v1541 = vpop.f32.mrb[0].mxu0
    %v1542 = vadd.f32 %v1391, %v1541
    %v1543 = vpop.f32.mrb[0].mxu0
    %1544 = vmatprep.mubr.f32.mxu0 0.0
    %v1545 = vand.u32 %v1297, 4294901760
    %1546 = vmatmul.mubr.f32.gmra.mrb[0].mxu0 %v1545
    %v1547 = vpop.f32.mrb[0].mxu0
    %v1548 = vadd.f32 %v1401, %v1547
    %v1549 = vpop.f32.mrb[0].mxu0
    %1550 = vmatprep.mubr.f32.mxu0 0.0
    %v1551 = vand.u32 %v1300, 4294901760
    %1552 = vmatmul.mubr.f32.gmra.mrb[0].mxu0 %v1551
    %v1553 = vpop.f32.mrb[0].mxu0
    %v1554 = vadd.f32 %v1411, %v1553
    %v1555 = vpop.f32.mrb[0].mxu0
    %1556 = vmatprep.mubr.f32.mxu0 0.0
    %v1557 = vand.u32 %v1303, 4294901760
    %1558 = vmatmul.mubr.f32.gmra.mrb[0].mxu0 %v1557
    %v1559 = vpop.f32.mrb[0].mxu0
    %v1560 = vadd.f32 %v1421, %v1559
    %v1561 = vpop.f32.mrb[0].mxu0
    %1562 = vmatprep.mubr.f32.mxu0 0.0
    %v1563 = vand.u32 %v1306, 4294901760
    %1564 = vmatmul.mubr.f32.gmra.mrb[0].mxu0 %v1563
    %v1565 = vpop.f32.mrb[0].mxu0
    %v1566 = vadd.f32 %v1431, %v1565
    %v1567 = vpop.f32.mrb[0].mxu0
    %1568 = vmatprep.mubr.f32.mxu0 0.0
    %v1569 = vand.u32 %v1309, 4294901760
    %1570 = vmatmul.mubr.f32.gmra.mrb[0].mxu0 %v1569
    %v1571 = vpop.f32.mrb[0].mxu0
    %v1572 = vadd.f32 %v1441, %v1571
    %v1573 = vpop.f32.mrb[0].mxu0
    %1574 = vmatprep.mubr.f32.mxu0 0.0
    %v1575 = vand.u32 %v1312, 4294901760
    %1576 = vmatmul.mubr.f32.gmra.mrb[0].mxu0 %v1575
    %v1577 = vpop.f32.mrb[0].mxu0
    %v1578 = vadd.f32 %v1451, %v1577
    %v1579 = vpop.f32.mrb[0].mxu0
    %1580 = vmatprep.mubr.f32.mxu0 0.0
    %v1581 = vand.u32 %v1315, 4294901760
    %1582 = vmatmul.mubr.f32.gmra.mrb[0].mxu0 %v1581
    %v1583 = vpop.f32.mrb[0].mxu0
    %v1584 = vadd.f32 %v1461, %v1583
    %v1585 = vpop.f32.mrb[0].mxu0
    %1586 = vdwg.mxu0
    %1587 = vmatprep.subr.mxu0 0.0
    %v1588 = vand.u32 %v621, 4294901760
    %v1589 = vsub.f32 %v621, %v1588
    %1590 = vmatpush1.msra.mxu0 %v1589
    %1591 = vmatprep.subr.mxu0 0.0
    %v1592 = vand.u32 %v627, 4294901760
    %v1593 = vsub.f32 %v627, %v1592
    %1594 = vmatpush1.msra.mxu0 %v1593
    %1595 = vmatprep.subr.mxu0 0.0
    %1596 = vmatpush1.msra.mxu0 0.0
    %1597 = vmatprep.subr.mxu0 0.0
    %1598 = vmatpush1.msra.mxu0 0.0
    %1599 = vmatprep.subr.mxu0 0.0
    %1600 = vmatpush1.msra.mxu0 0.0
    %1601 = vmatprep.subr.mxu0 0.0
    %1602 = vmatpush1.msra.mxu0 0.0
    %1603 = vmatprep.subr.mxu0 0.0
    %1604 = vmatpush1.msra.mxu0 0.0
    %1605 = vmatprep.subr.mxu0 0.0
    %1606 = vmatpush1.msra.mxu0 0.0
    %1607 = vmatprep.subr.mxu0 0.0
    %1608 = vmatpush1.msra.mxu0 0.0
    %1609 = vmatprep.subr.mxu0 0.0
    %1610 = vmatpush1.msra.mxu0 0.0
    %1611 = vmatprep.subr.mxu0 0.0
    %1612 = vmatpush1.msra.mxu0 0.0
    %1613 = vmatprep.subr.mxu0 0.0
    %1614 = vmatpush1.msra.mxu0 0.0
    %1615 = vmatprep.subr.mxu0 0.0
    %1616 = vmatpush1.msra.mxu0 0.0
    %1617 = vmatprep.subr.mxu0 0.0
    %1618 = vmatpush1.msra.mxu0 0.0
    %1619 = vmatprep.subr.mxu0 0.0
    %1620 = vmatpush1.msra.mxu0 0.0
    %1621 = vmatprep.subr.mxu0 0.0
    %1622 = vmatpush1.msra.mxu0 0.0
    %1623 = vmatprep.subr.mxu0 0.0
    %1624 = vmatpush1.msra.mxu0 0.0
    %1625 = vmatprep.subr.mxu0 0.0
    %1626 = vmatpush1.msra.mxu0 0.0
    %1627 = vmatprep.subr.mxu0 0.0
    %1628 = vmatpush1.msra.mxu0 0.0
    %1629 = vmatprep.subr.mxu0 0.0
    %1630 = vmatpush1.msra.mxu0 0.0
    %1631 = vmatprep.subr.mxu0 0.0
    %1632 = vmatpush1.msra.mxu0 0.0
    %1633 = vmatprep.subr.mxu0 0.0
    %1634 = vmatpush1.msra.mxu0 0.0
    %1635 = vmatprep.subr.mxu0 0.0
    %1636 = vmatpush1.msra.mxu0 0.0
    %1637 = vmatprep.subr.mxu0 0.0
    %1638 = vmatpush1.msra.mxu0 0.0
    %1639 = vmatprep.subr.mxu0 0.0
    %1640 = vmatpush1.msra.mxu0 0.0
    %1641 = vmatprep.subr.mxu0 0.0
    %1642 = vmatpush1.msra.mxu0 0.0
    %1643 = vmatprep.subr.mxu0 0.0
    %1644 = vmatpush1.msra.mxu0 0.0
    %1645 = vmatprep.subr.mxu0 0.0
    %1646 = vmatpush1.msra.mxu0 0.0
    %1647 = vmatprep.subr.mxu0 0.0
    %1648 = vmatpush1.msra.mxu0 0.0
    %1649 = vmatprep.subr.mxu0 0.0
    %1650 = vmatpush1.msra.mxu0 0.0
    %1651 = vmatprep.subr.mxu0 0.0
    %1652 = vmatpush1.msra.mxu0 0.0
    %1653 = vmatprep.subr.mxu0 0.0
    %1654 = vmatpush1.msra.mxu0 0.0
    %1655 = vmatprep.mubr.f32.mxu0 0.0
    %v1656 = vand.u32 %v1294, 4294901760
    %v1657 = vsub.f32 %v1294, %v1656
    %1658 = vmatmul.mubr.f32.gmra.mrb[0].mxu0 %v1657
    %v1659 = vpop.f32.mrb[0].mxu0
    %v1660 = vadd.f32 %v1542, %v1659
    %v1661 = vpop.f32.mrb[0].mxu0
    %1662 = vmatprep.mubr.f32.mxu0 0.0
    %v1663 = vand.u32 %v1297, 4294901760
    %v1664 = vsub.f32 %v1297, %v1663
    %1665 = vmatmul.mubr.f32.gmra.mrb[0].mxu0 %v1664
    %v1666 = vpop.f32.mrb[0].mxu0
    %v1667 = vadd.f32 %v1548, %v1666
    %v1668 = vpop.f32.mrb[0].mxu0
    %1669 = vmatprep.mubr.f32.mxu0 0.0
    %v1670 = vand.u32 %v1300, 4294901760
    %v1671 = vsub.f32 %v1300, %v1670
    %1672 = vmatmul.mubr.f32.gmra.mrb[0].mxu0 %v1671
    %v1673 = vpop.f32.mrb[0].mxu0
    %v1674 = vadd.f32 %v1554, %v1673
    %v1675 = vpop.f32.mrb[0].mxu0
    %1676 = vmatprep.mubr.f32.mxu0 0.0
    %v1677 = vand.u32 %v1303, 4294901760
    %v1678 = vsub.f32 %v1303, %v1677
    %1679 = vmatmul.mubr.f32.gmra.mrb[0].mxu0 %v1678
    %v1680 = vpop.f32.mrb[0].mxu0
    %v1681 = vadd.f32 %v1560, %v1680
    %v1682 = vpop.f32.mrb[0].mxu0
    %1683 = vmatprep.mubr.f32.mxu0 0.0
    %v1684 = vand.u32 %v1306, 4294901760
    %v1685 = vsub.f32 %v1306, %v1684
    %1686 = vmatmul.mubr.f32.gmra.mrb[0].mxu0 %v1685
    %v1687 = vpop.f32.mrb[0].mxu0
    %v1688 = vadd.f32 %v1566, %v1687
    %v1689 = vpop.f32.mrb[0].mxu0
    %1690 = vmatprep.mubr.f32.mxu0 0.0
    %v1691 = vand.u32 %v1309, 4294901760
    %v1692 = vsub.f32 %v1309, %v1691
    %1693 = vmatmul.mubr.f32.gmra.mrb[0].mxu0 %v1692
    %v1694 = vpop.f32.mrb[0].mxu0
    %v1695 = vadd.f32 %v1572, %v1694
    %v1696 = vpop.f32.mrb[0].mxu0
    %1697 = vmatprep.mubr.f32.mxu0 0.0
    %v1698 = vand.u32 %v1312, 4294901760
    %v1699 = vsub.f32 %v1312, %v1698
    %1700 = vmatmul.mubr.f32.gmra.mrb[0].mxu0 %v1699
    %v1701 = vpop.f32.mrb[0].mxu0
    %v1702 = vadd.f32 %v1578, %v1701
    %v1703 = vpop.f32.mrb[0].mxu0
    %1704 = vmatprep.mubr.f32.mxu0 0.0
    %v1705 = vand.u32 %v1315, 4294901760
    %v1706 = vsub.f32 %v1315, %v1705
    %1707 = vmatmul.mubr.f32.gmra.mrb[0].mxu0 %v1706
    %v1708 = vpop.f32.mrb[0].mxu0
    %v1709 = vadd.f32 %v1584, %v1708
    %v1710 = vpop.f32.mrb[0].mxu0
    %1711 = vdwg.mxu0
    %1712 = vmatprep.subr.mxu0 0.0
    %v1713 = vand.u32 %v621, 4294901760
    %1714 = vmatpush1.msra.mxu0 %v1713
    %1715 = vmatprep.subr.mxu0 0.0
    %v1716 = vand.u32 %v627, 4294901760
    %1717 = vmatpush1.msra.mxu0 %v1716
    %1718 = vmatprep.subr.mxu0 0.0
    %1719 = vmatpush1.msra.mxu0 0.0
    %1720 = vmatprep.subr.mxu0 0.0
    %1721 = vmatpush1.msra.mxu0 0.0
    %1722 = vmatprep.subr.mxu0 0.0
    %1723 = vmatpush1.msra.mxu0 0.0
    %1724 = vmatprep.subr.mxu0 0.0
    %1725 = vmatpush1.msra.mxu0 0.0
    %1726 = vmatprep.subr.mxu0 0.0
    %1727 = vmatpush1.msra.mxu0 0.0
    %1728 = vmatprep.subr.mxu0 0.0
    %1729 = vmatpush1.msra.mxu0 0.0
    %1730 = vmatprep.subr.mxu0 0.0
    %1731 = vmatpush1.msra.mxu0 0.0
    %1732 = vmatprep.subr.mxu0 0.0
    %1733 = vmatpush1.msra.mxu0 0.0
    %1734 = vmatprep.subr.mxu0 0.0
    %1735 = vmatpush1.msra.mxu0 0.0
    %1736 = vmatprep.subr.mxu0 0.0
    %1737 = vmatpush1.msra.mxu0 0.0
    %1738 = vmatprep.subr.mxu0 0.0
    %1739 = vmatpush1.msra.mxu0 0.0
    %1740 = vmatprep.subr.mxu0 0.0
    %1741 = vmatpush1.msra.mxu0 0.0
    %1742 = vmatprep.subr.mxu0 0.0
    %1743 = vmatpush1.msra.mxu0 0.0
    %1744 = vmatprep.subr.mxu0 0.0
    %1745 = vmatpush1.msra.mxu0 0.0
    %1746 = vmatprep.subr.mxu0 0.0
    %1747 = vmatpush1.msra.mxu0 0.0
    %1748 = vmatprep.subr.mxu0 0.0
    %1749 = vmatpush1.msra.mxu0 0.0
    %1750 = vmatprep.subr.mxu0 0.0
    %1751 = vmatpush1.msra.mxu0 0.0
    %1752 = vmatprep.subr.mxu0 0.0
    %1753 = vmatpush1.msra.mxu0 0.0
    %1754 = vmatprep.subr.mxu0 0.0
    %1755 = vmatpush1.msra.mxu0 0.0
    %1756 = vmatprep.subr.mxu0 0.0
    %1757 = vmatpush1.msra.mxu0 0.0
    %1758 = vmatprep.subr.mxu0 0.0
    %1759 = vmatpush1.msra.mxu0 0.0
    %1760 = vmatprep.subr.mxu0 0.0
    %1761 = vmatpush1.msra.mxu0 0.0
    %1762 = vmatprep.subr.mxu0 0.0
    %1763 = vmatpush1.msra.mxu0 0.0
    %1764 = vmatprep.subr.mxu0 0.0
    %1765 = vmatpush1.msra.mxu0 0.0
    %1766 = vmatprep.subr.mxu0 0.0
    %1767 = vmatpush1.msra.mxu0 0.0
    %1768 = vmatprep.subr.mxu0 0.0
    %1769 = vmatpush1.msra.mxu0 0.0
    %1770 = vmatprep.subr.mxu0 0.0
    %1771 = vmatpush1.msra.mxu0 0.0
    %1772 = vmatprep.subr.mxu0 0.0
    %1773 = vmatpush1.msra.mxu0 0.0
    %1774 = vmatprep.subr.mxu0 0.0
    %1775 = vmatpush1.msra.mxu0 0.0
    %1776 = vmatprep.subr.mxu0 0.0
    %1777 = vmatpush1.msra.mxu0 0.0
    %1778 = vmatprep.mubr.f32.mxu0 0.0
    %v1779 = vand.u32 %v1294, 4294901760
    %v1780 = vsub.f32 %v1294, %v1779
    %v1781 = vand.u32 %v1780, 4294901760
    %1782 = vmatmul.mubr.f32.gmra.mrb[0].mxu0 %v1781
    %v1783 = vpop.f32.mrb[0].mxu0
    %v1784 = vadd.f32 %v1660, %v1783
    %v1785 = vpop.f32.mrb[0].mxu0
    %1786 = vmatprep.mubr.f32.mxu0 0.0
    %v1787 = vand.u32 %v1297, 4294901760
    %v1788 = vsub.f32 %v1297, %v1787
    %v1789 = vand.u32 %v1788, 4294901760
    %1790 = vmatmul.mubr.f32.gmra.mrb[0].mxu0 %v1789
    %v1791 = vpop.f32.mrb[0].mxu0
    %v1792 = vadd.f32 %v1667, %v1791
    %v1793 = vpop.f32.mrb[0].mxu0
    %1794 = vmatprep.mubr.f32.mxu0 0.0
    %v1795 = vand.u32 %v1300, 4294901760
    %v1796 = vsub.f32 %v1300, %v1795
    %v1797 = vand.u32 %v1796, 4294901760
    %1798 = vmatmul.mubr.f32.gmra.mrb[0].mxu0 %v1797
    %v1799 = vpop.f32.mrb[0].mxu0
    %v1800 = vadd.f32 %v1674, %v1799
    %v1801 = vpop.f32.mrb[0].mxu0
    %1802 = vmatprep.mubr.f32.mxu0 0.0
    %v1803 = vand.u32 %v1303, 4294901760
    %v1804 = vsub.f32 %v1303, %v1803
    %v1805 = vand.u32 %v1804, 4294901760
    %1806 = vmatmul.mubr.f32.gmra.mrb[0].mxu0 %v1805
    %v1807 = vpop.f32.mrb[0].mxu0
    %v1808 = vadd.f32 %v1681, %v1807
    %v1809 = vpop.f32.mrb[0].mxu0
    %1810 = vmatprep.mubr.f32.mxu0 0.0
    %v1811 = vand.u32 %v1306, 4294901760
    %v1812 = vsub.f32 %v1306, %v1811
    %v1813 = vand.u32 %v1812, 4294901760
    %1814 = vmatmul.mubr.f32.gmra.mrb[0].mxu0 %v1813
    %v1815 = vpop.f32.mrb[0].mxu0
    %v1816 = vadd.f32 %v1688, %v1815
    %v1817 = vpop.f32.mrb[0].mxu0
    %1818 = vmatprep.mubr.f32.mxu0 0.0
    %v1819 = vand.u32 %v1309, 4294901760
    %v1820 = vsub.f32 %v1309, %v1819
    %v1821 = vand.u32 %v1820, 4294901760
    %1822 = vmatmul.mubr.f32.gmra.mrb[0].mxu0 %v1821
    %v1823 = vpop.f32.mrb[0].mxu0
    %v1824 = vadd.f32 %v1695, %v1823
    %v1825 = vpop.f32.mrb[0].mxu0
    %1826 = vmatprep.mubr.f32.mxu0 0.0
    %v1827 = vand.u32 %v1312, 4294901760
    %v1828 = vsub.f32 %v1312, %v1827
    %v1829 = vand.u32 %v1828, 4294901760
    %1830 = vmatmul.mubr.f32.gmra.mrb[0].mxu0 %v1829
    %v1831 = vpop.f32.mrb[0].mxu0
    %v1832 = vadd.f32 %v1702, %v1831
    %v1833 = vpop.f32.mrb[0].mxu0
    %1834 = vmatprep.mubr.f32.mxu0 0.0
    %v1835 = vand.u32 %v1315, 4294901760
    %v1836 = vsub.f32 %v1315, %v1835
    %v1837 = vand.u32 %v1836, 4294901760
    %1838 = vmatmul.mubr.f32.gmra.mrb[0].mxu0 %v1837
    %v1839 = vpop.f32.mrb[0].mxu0
    %v1840 = vadd.f32 %v1709, %v1839
    %v1841 = vpop.f32.mrb[0].mxu0
    %1842 = vdwg.mxu0
    %1843 = vmatprep.subr.mxu0 0.0
    %v1844 = vand.u32 %v621, 4294901760
    %v1845 = vsub.f32 %v621, %v1844
    %v1846 = vand.u32 %v1845, 4294901760
    %1847 = vmatpush1.msra.mxu0 %v1846
    %1848 = vmatprep.subr.mxu0 0.0
    %v1849 = vand.u32 %v627, 4294901760
    %v1850 = vsub.f32 %v627, %v1849
    %v1851 = vand.u32 %v1850, 4294901760
    %1852 = vmatpush1.msra.mxu0 %v1851
    %1853 = vmatprep.subr.mxu0 0.0
    %1854 = vmatpush1.msra.mxu0 0.0
    %1855 = vmatprep.subr.mxu0 0.0
    %1856 = vmatpush1.msra.mxu0 0.0
    %1857 = vmatprep.subr.mxu0 0.0
    %1858 = vmatpush1.msra.mxu0 0.0
    %1859 = vmatprep.subr.mxu0 0.0
    %1860 = vmatpush1.msra.mxu0 0.0
    %1861 = vmatprep.subr.mxu0 0.0
    %1862 = vmatpush1.msra.mxu0 0.0
    %1863 = vmatprep.subr.mxu0 0.0
    %1864 = vmatpush1.msra.mxu0 0.0
    %1865 = vmatprep.subr.mxu0 0.0
    %1866 = vmatpush1.msra.mxu0 0.0
    %1867 = vmatprep.subr.mxu0 0.0
    %1868 = vmatpush1.msra.mxu0 0.0
    %1869 = vmatprep.subr.mxu0 0.0
    %1870 = vmatpush1.msra.mxu0 0.0
    %1871 = vmatprep.subr.mxu0 0.0
    %1872 = vmatpush1.msra.mxu0 0.0
    %1873 = vmatprep.subr.mxu0 0.0
    %1874 = vmatpush1.msra.mxu0 0.0
    %1875 = vmatprep.subr.mxu0 0.0
    %1876 = vmatpush1.msra.mxu0 0.0
    %1877 = vmatprep.subr.mxu0 0.0
    %1878 = vmatpush1.msra.mxu0 0.0
    %1879 = vmatprep.subr.mxu0 0.0
    %1880 = vmatpush1.msra.mxu0 0.0
    %1881 = vmatprep.subr.mxu0 0.0
    %1882 = vmatpush1.msra.mxu0 0.0
    %1883 = vmatprep.subr.mxu0 0.0
    %1884 = vmatpush1.msra.mxu0 0.0
    %1885 = vmatprep.subr.mxu0 0.0
    %1886 = vmatpush1.msra.mxu0 0.0
    %1887 = vmatprep.subr.mxu0 0.0
    %1888 = vmatpush1.msra.mxu0 0.0
    %1889 = vmatprep.subr.mxu0 0.0
    %1890 = vmatpush1.msra.mxu0 0.0
    %1891 = vmatprep.subr.mxu0 0.0
    %1892 = vmatpush1.msra.mxu0 0.0
    %1893 = vmatprep.subr.mxu0 0.0
    %1894 = vmatpush1.msra.mxu0 0.0
    %1895 = vmatprep.subr.mxu0 0.0
    %1896 = vmatpush1.msra.mxu0 0.0
    %1897 = vmatprep.subr.mxu0 0.0
    %1898 = vmatpush1.msra.mxu0 0.0
    %1899 = vmatprep.subr.mxu0 0.0
    %1900 = vmatpush1.msra.mxu0 0.0
    %1901 = vmatprep.subr.mxu0 0.0
    %1902 = vmatpush1.msra.mxu0 0.0
    %1903 = vmatprep.subr.mxu0 0.0
    %1904 = vmatpush1.msra.mxu0 0.0
    %1905 = vmatprep.subr.mxu0 0.0
    %1906 = vmatpush1.msra.mxu0 0.0
    %1907 = vmatprep.subr.mxu0 0.0
    %1908 = vmatpush1.msra.mxu0 0.0
    %1909 = vmatprep.subr.mxu0 0.0
    %1910 = vmatpush1.msra.mxu0 0.0
    %1911 = vmatprep.subr.mxu0 0.0
    %1912 = vmatpush1.msra.mxu0 0.0
    %1913 = vmatprep.mubr.f32.mxu0 0.0
    %v1914 = vand.u32 %v1294, 4294901760
    %1915 = vmatmul.mubr.f32.gmra.mrb[0].mxu0 %v1914
    %v1916 = vpop.f32.mrb[0].mxu0
    %v1917 = vadd.f32 %v1784, %v1916
    %v1918 = vpop.f32.mrb[0].mxu0
    %1919 = vmatprep.mubr.f32.mxu0 0.0
    %v1920 = vand.u32 %v1297, 4294901760
    %1921 = vmatmul.mubr.f32.gmra.mrb[0].mxu0 %v1920
    %v1922 = vpop.f32.mrb[0].mxu0
    %v1923 = vadd.f32 %v1792, %v1922
    %v1924 = vpop.f32.mrb[0].mxu0
    %1925 = vmatprep.mubr.f32.mxu0 0.0
    %v1926 = vand.u32 %v1300, 4294901760
    %1927 = vmatmul.mubr.f32.gmra.mrb[0].mxu0 %v1926
    %v1928 = vpop.f32.mrb[0].mxu0
    %v1929 = vadd.f32 %v1800, %v1928
    %v1930 = vpop.f32.mrb[0].mxu0
    %1931 = vmatprep.mubr.f32.mxu0 0.0
    %v1932 = vand.u32 %v1303, 4294901760
    %1933 = vmatmul.mubr.f32.gmra.mrb[0].mxu0 %v1932
    %v1934 = vpop.f32.mrb[0].mxu0
    %v1935 = vadd.f32 %v1808, %v1934
    %v1936 = vpop.f32.mrb[0].mxu0
    %1937 = vmatprep.mubr.f32.mxu0 0.0
    %v1938 = vand.u32 %v1306, 4294901760
    %1939 = vmatmul.mubr.f32.gmra.mrb[0].mxu0 %v1938
    %v1940 = vpop.f32.mrb[0].mxu0
    %v1941 = vadd.f32 %v1816, %v1940
    %v1942 = vpop.f32.mrb[0].mxu0
    %1943 = vmatprep.mubr.f32.mxu0 0.0
    %v1944 = vand.u32 %v1309, 4294901760
    %1945 = vmatmul.mubr.f32.gmra.mrb[0].mxu0 %v1944
    %v1946 = vpop.f32.mrb[0].mxu0
    %v1947 = vadd.f32 %v1824, %v1946
    %v1948 = vpop.f32.mrb[0].mxu0
    %1949 = vmatprep.mubr.f32.mxu0 0.0
    %v1950 = vand.u32 %v1312, 4294901760
    %1951 = vmatmul.mubr.f32.gmra.mrb[0].mxu0 %v1950
    %v1952 = vpop.f32.mrb[0].mxu0
    %v1953 = vadd.f32 %v1832, %v1952
    %v1954 = vpop.f32.mrb[0].mxu0
    %1955 = vmatprep.mubr.f32.mxu0 0.0
    %v1956 = vand.u32 %v1315, 4294901760
    %1957 = vmatmul.mubr.f32.gmra.mrb[0].mxu0 %v1956
    %v1958 = vpop.f32.mrb[0].mxu0
    %v1959 = vadd.f32 %v1840, %v1958
    %v1960 = vpop.f32.mrb[0].mxu0
    %1961 = vdwg.mxu0
    %1962 = vmatprep.subr.mxu0 0.0
    %v1963 = vand.u32 %v621, 4294901760
    %1964 = vmatpush1.msra.mxu0 %v1963
    %1965 = vmatprep.subr.mxu0 0.0
    %v1966 = vand.u32 %v627, 4294901760
    %1967 = vmatpush1.msra.mxu0 %v1966
    %1968 = vmatprep.subr.mxu0 0.0
    %1969 = vmatpush1.msra.mxu0 0.0
    %1970 = vmatprep.subr.mxu0 0.0
    %1971 = vmatpush1.msra.mxu0 0.0
    %1972 = vmatprep.subr.mxu0 0.0
    %1973 = vmatpush1.msra.mxu0 0.0
    %1974 = vmatprep.subr.mxu0 0.0
    %1975 = vmatpush1.msra.mxu0 0.0
    %1976 = vmatprep.subr.mxu0 0.0
    %1977 = vmatpush1.msra.mxu0 0.0
    %1978 = vmatprep.subr.mxu0 0.0
    %1979 = vmatpush1.msra.mxu0 0.0
    %1980 = vmatprep.subr.mxu0 0.0
    %1981 = vmatpush1.msra.mxu0 0.0
    %1982 = vmatprep.subr.mxu0 0.0
    %1983 = vmatpush1.msra.mxu0 0.0
    %1984 = vmatprep.subr.mxu0 0.0
    %1985 = vmatpush1.msra.mxu0 0.0
    %1986 = vmatprep.subr.mxu0 0.0
    %1987 = vmatpush1.msra.mxu0 0.0
    %1988 = vmatprep.subr.mxu0 0.0
    %1989 = vmatpush1.msra.mxu0 0.0
    %1990 = vmatprep.subr.mxu0 0.0
    %1991 = vmatpush1.msra.mxu0 0.0
    %1992 = vmatprep.subr.mxu0 0.0
    %1993 = vmatpush1.msra.mxu0 0.0
    %1994 = vmatprep.subr.mxu0 0.0
    %1995 = vmatpush1.msra.mxu0 0.0
    %1996 = vmatprep.subr.mxu0 0.0
    %1997 = vmatpush1.msra.mxu0 0.0
    %1998 = vmatprep.subr.mxu0 0.0
    %1999 = vmatpush1.msra.mxu0 0.0
    %2000 = vmatprep.subr.mxu0 0.0
    %2001 = vmatpush1.msra.mxu0 0.0
    %2002 = vmatprep.subr.mxu0 0.0
    %2003 = vmatpush1.msra.mxu0 0.0
    %2004 = vmatprep.subr.mxu0 0.0
    %2005 = vmatpush1.msra.mxu0 0.0
    %2006 = vmatprep.subr.mxu0 0.0
    %2007 = vmatpush1.msra.mxu0 0.0
    %2008 = vmatprep.subr.mxu0 0.0
    %2009 = vmatpush1.msra.mxu0 0.0
    %2010 = vmatprep.subr.mxu0 0.0
    %2011 = vmatpush1.msra.mxu0 0.0
    %2012 = vmatprep.subr.mxu0 0.0
    %2013 = vmatpush1.msra.mxu0 0.0
    %2014 = vmatprep.subr.mxu0 0.0
    %2015 = vmatpush1.msra.mxu0 0.0
    %2016 = vmatprep.subr.mxu0 0.0
    %2017 = vmatpush1.msra.mxu0 0.0
    %2018 = vmatprep.subr.mxu0 0.0
    %2019 = vmatpush1.msra.mxu0 0.0
    %2020 = vmatprep.subr.mxu0 0.0
    %2021 = vmatpush1.msra.mxu0 0.0
    %2022 = vmatprep.subr.mxu0 0.0
    %2023 = vmatpush1.msra.mxu0 0.0
    %2024 = vmatprep.subr.mxu0 0.0
    %2025 = vmatpush1.msra.mxu0 0.0
    %2026 = vmatprep.subr.mxu0 0.0
    %2027 = vmatpush1.msra.mxu0 0.0
    %2028 = vmatprep.mubr.f32.mxu0 0.0
    %v2029 = vand.u32 %v1294, 4294901760
    %2030 = vmatmul.mubr.f32.gmra.mrb[0].mxu0 %v2029
    %v2031 = vpop.f32.mrb[0].mxu0
    %v2032 = vadd.f32 %v1917, %v2031
    %v2033 = vpop.f32.mrb[0].mxu0
    %2034 = vmatprep.mubr.f32.mxu0 0.0
    %v2035 = vand.u32 %v1297, 4294901760
    %2036 = vmatmul.mubr.f32.gmra.mrb[0].mxu0 %v2035
    %v2037 = vpop.f32.mrb[0].mxu0
    %v2038 = vadd.f32 %v1923, %v2037
    %v2039 = vpop.f32.mrb[0].mxu0
    %2040 = vmatprep.mubr.f32.mxu0 0.0
    %v2041 = vand.u32 %v1300, 4294901760
    %2042 = vmatmul.mubr.f32.gmra.mrb[0].mxu0 %v2041
    %v2043 = vpop.f32.mrb[0].mxu0
    %v2044 = vadd.f32 %v1929, %v2043
    %v2045 = vpop.f32.mrb[0].mxu0
    %2046 = vmatprep.mubr.f32.mxu0 0.0
    %v2047 = vand.u32 %v1303, 4294901760
    %2048 = vmatmul.mubr.f32.gmra.mrb[0].mxu0 %v2047
    %v2049 = vpop.f32.mrb[0].mxu0
    %v2050 = vadd.f32 %v1935, %v2049
    %v2051 = vpop.f32.mrb[0].mxu0
    %2052 = vmatprep.mubr.f32.mxu0 0.0
    %v2053 = vand.u32 %v1306, 4294901760
    %2054 = vmatmul.mubr.f32.gmra.mrb[0].mxu0 %v2053
    %v2055 = vpop.f32.mrb[0].mxu0
    %v2056 = vadd.f32 %v1941, %v2055
    %v2057 = vpop.f32.mrb[0].mxu0
    %2058 = vmatprep.mubr.f32.mxu0 0.0
    %v2059 = vand.u32 %v1309, 4294901760
    %2060 = vmatmul.mubr.f32.gmra.mrb[0].mxu0 %v2059
    %v2061 = vpop.f32.mrb[0].mxu0
    %v2062 = vadd.f32 %v1947, %v2061
    %v2063 = vpop.f32.mrb[0].mxu0
    %2064 = vmatprep.mubr.f32.mxu0 0.0
    %v2065 = vand.u32 %v1312, 4294901760
    %2066 = vmatmul.mubr.f32.gmra.mrb[0].mxu0 %v2065
    %v2067 = vpop.f32.mrb[0].mxu0
    %v2068 = vadd.f32 %v1953, %v2067
    %v2069 = vpop.f32.mrb[0].mxu0
    %2070 = vmatprep.mubr.f32.mxu0 0.0
    %v2071 = vand.u32 %v1315, 4294901760
    %2072 = vmatmul.mubr.f32.gmra.mrb[0].mxu0 %v2071
    %v2073 = vpop.f32.mrb[0].mxu0
    %v2074 = vadd.f32 %v1959, %v2073
    %v2075 = vpop.f32.mrb[0].mxu0
    %2076 = vdwg.mxu0
    %v2077 = vlaneseq
    %v2078 = vshrl.u32 %v2077, 7
    %v2079 = vsub.s32 2, %v2078
    %v2080 = vrot.slane %v41, %v2079
    %v2082 = vsel %vm1292, %v1283, 0
    %v2085 = vsel %vm1292, %v1284, 0
    %v2088 = vsel %vm1292, %v1285, 0
    %v2091 = vsel %vm1292, %v1286, 0
    %v2094 = vsel %vm1292, %v1287, 0
    %2096 = vmatprep.subr.mxu0 0.0
    %v2097 = vand.u32 %v1149, 4294901760
    %2098 = vmatpush1.msra.mxu0 %v2097
    %2099 = vmatprep.subr.mxu0 0.0
    %v2100 = vand.u32 %v1155, 4294901760
    %2101 = vmatpush1.msra.mxu0 %v2100
    %2102 = vmatprep.subr.mxu0 0.0
    %2103 = vmatpush1.msra.mxu0 0.0
    %2104 = vmatprep.subr.mxu0 0.0
    %2105 = vmatpush1.msra.mxu0 0.0
    %2106 = vmatprep.subr.mxu0 0.0
    %2107 = vmatpush1.msra.mxu0 0.0
    %2108 = vmatprep.subr.mxu0 0.0
    %2109 = vmatpush1.msra.mxu0 0.0
    %2110 = vmatprep.subr.mxu0 0.0
    %2111 = vmatpush1.msra.mxu0 0.0
    %2112 = vmatprep.subr.mxu0 0.0
    %2113 = vmatpush1.msra.mxu0 0.0
    %2114 = vmatprep.subr.mxu0 0.0
    %2115 = vmatpush1.msra.mxu0 0.0
    %2116 = vmatprep.subr.mxu0 0.0
    %2117 = vmatpush1.msra.mxu0 0.0
    %2118 = vmatprep.subr.mxu0 0.0
    %2119 = vmatpush1.msra.mxu0 0.0
    %2120 = vmatprep.subr.mxu0 0.0
    %2121 = vmatpush1.msra.mxu0 0.0
    %2122 = vmatprep.subr.mxu0 0.0
    %2123 = vmatpush1.msra.mxu0 0.0
    %2124 = vmatprep.subr.mxu0 0.0
    %2125 = vmatpush1.msra.mxu0 0.0
    %2126 = vmatprep.subr.mxu0 0.0
    %2127 = vmatpush1.msra.mxu0 0.0
    %2128 = vmatprep.subr.mxu0 0.0
    %2129 = vmatpush1.msra.mxu0 0.0
    %2130 = vmatprep.subr.mxu0 0.0
    %2131 = vmatpush1.msra.mxu0 0.0
    %2132 = vmatprep.subr.mxu0 0.0
    %2133 = vmatpush1.msra.mxu0 0.0
    %2134 = vmatprep.subr.mxu0 0.0
    %2135 = vmatpush1.msra.mxu0 0.0
    %2136 = vmatprep.subr.mxu0 0.0
    %2137 = vmatpush1.msra.mxu0 0.0
    %2138 = vmatprep.subr.mxu0 0.0
    %2139 = vmatpush1.msra.mxu0 0.0
    %2140 = vmatprep.subr.mxu0 0.0
    %2141 = vmatpush1.msra.mxu0 0.0
    %2142 = vmatprep.subr.mxu0 0.0
    %2143 = vmatpush1.msra.mxu0 0.0
    %2144 = vmatprep.subr.mxu0 0.0
    %2145 = vmatpush1.msra.mxu0 0.0
    %2146 = vmatprep.subr.mxu0 0.0
    %2147 = vmatpush1.msra.mxu0 0.0
    %2148 = vmatprep.subr.mxu0 0.0
    %2149 = vmatpush1.msra.mxu0 0.0
    %2150 = vmatprep.subr.mxu0 0.0
    %2151 = vmatpush1.msra.mxu0 0.0
    %2152 = vmatprep.subr.mxu0 0.0
    %2153 = vmatpush1.msra.mxu0 0.0
    %2154 = vmatprep.subr.mxu0 0.0
    %2155 = vmatpush1.msra.mxu0 0.0
    %2156 = vmatprep.subr.mxu0 0.0
    %2157 = vmatpush1.msra.mxu0 0.0
    %2158 = vmatprep.subr.mxu0 0.0
    %2159 = vmatpush1.msra.mxu0 0.0
    %2160 = vmatprep.subr.mxu0 0.0
    %2161 = vmatpush1.msra.mxu0 0.0
    %2162 = vmatprep.mubr.f32.mxu0 0.0
    %v2163 = vand.u32 %v2082, 4294901760
    %v2164 = vsub.f32 %v2082, %v2163
    %v2165 = vand.u32 %v2164, 4294901760
    %v2166 = vsub.f32 %v2164, %v2165
    %v2167 = vand.u32 %v2166, 4294901760
    %2168 = vmatmul.mubr.f32.gmra.mrb[0].mxu0 %v2167
    %v2169 = vpop.f32.mrb[0].mxu0
    %v2170 = vadd.f32 %v2080, %v2169
    %v2171 = vpop.f32.mrb[0].mxu0
    %2172 = vmatprep.mubr.f32.mxu0 0.0
    %v2173 = vand.u32 %v2085, 4294901760
    %v2174 = vsub.f32 %v2085, %v2173
    %v2175 = vand.u32 %v2174, 4294901760
    %v2176 = vsub.f32 %v2174, %v2175
    %v2177 = vand.u32 %v2176, 4294901760
    %2178 = vmatmul.mubr.f32.gmra.mrb[0].mxu0 %v2177
    %v2179 = vpop.f32.mrb[0].mxu0
    %v2180 = vadd.f32 %v2080, %v2179
    %v2181 = vpop.f32.mrb[0].mxu0
    %2182 = vmatprep.mubr.f32.mxu0 0.0
    %v2183 = vand.u32 %v2088, 4294901760
    %v2184 = vsub.f32 %v2088, %v2183
    %v2185 = vand.u32 %v2184, 4294901760
    %v2186 = vsub.f32 %v2184, %v2185
    %v2187 = vand.u32 %v2186, 4294901760
    %2188 = vmatmul.mubr.f32.gmra.mrb[0].mxu0 %v2187
    %v2189 = vpop.f32.mrb[0].mxu0
    %v2190 = vadd.f32 %v2080, %v2189
    %v2191 = vpop.f32.mrb[0].mxu0
    %2192 = vmatprep.mubr.f32.mxu0 0.0
    %v2193 = vand.u32 %v2091, 4294901760
    %v2194 = vsub.f32 %v2091, %v2193
    %v2195 = vand.u32 %v2194, 4294901760
    %v2196 = vsub.f32 %v2194, %v2195
    %v2197 = vand.u32 %v2196, 4294901760
    %2198 = vmatmul.mubr.f32.gmra.mrb[0].mxu0 %v2197
    %v2199 = vpop.f32.mrb[0].mxu0
    %v2200 = vadd.f32 %v2080, %v2199
    %v2201 = vpop.f32.mrb[0].mxu0
    %2202 = vmatprep.mubr.f32.mxu0 0.0
    %v2203 = vand.u32 %v2094, 4294901760
    %v2204 = vsub.f32 %v2094, %v2203
    %v2205 = vand.u32 %v2204, 4294901760
    %v2206 = vsub.f32 %v2204, %v2205
    %v2207 = vand.u32 %v2206, 4294901760
    %2208 = vmatmul.mubr.f32.gmra.mrb[0].mxu0 %v2207
    %v2209 = vpop.f32.mrb[0].mxu0
    %v2210 = vadd.f32 %v2080, %v2209
    %v2211 = vpop.f32.mrb[0].mxu0
    %2212 = vdwg.mxu0
    %2213 = vmatprep.subr.mxu0 0.0
    %v2214 = vand.u32 %v1149, 4294901760
    %v2215 = vsub.f32 %v1149, %v2214
    %v2216 = vand.u32 %v2215, 4294901760
    %v2217 = vsub.f32 %v2215, %v2216
    %v2218 = vand.u32 %v2217, 4294901760
    %2219 = vmatpush1.msra.mxu0 %v2218
    %2220 = vmatprep.subr.mxu0 0.0
    %v2221 = vand.u32 %v1155, 4294901760
    %v2222 = vsub.f32 %v1155, %v2221
    %v2223 = vand.u32 %v2222, 4294901760
    %v2224 = vsub.f32 %v2222, %v2223
    %v2225 = vand.u32 %v2224, 4294901760
    %2226 = vmatpush1.msra.mxu0 %v2225
    %2227 = vmatprep.subr.mxu0 0.0
    %2228 = vmatpush1.msra.mxu0 0.0
    %2229 = vmatprep.subr.mxu0 0.0
    %2230 = vmatpush1.msra.mxu0 0.0
    %2231 = vmatprep.subr.mxu0 0.0
    %2232 = vmatpush1.msra.mxu0 0.0
    %2233 = vmatprep.subr.mxu0 0.0
    %2234 = vmatpush1.msra.mxu0 0.0
    %2235 = vmatprep.subr.mxu0 0.0
    %2236 = vmatpush1.msra.mxu0 0.0
    %2237 = vmatprep.subr.mxu0 0.0
    %2238 = vmatpush1.msra.mxu0 0.0
    %2239 = vmatprep.subr.mxu0 0.0
    %2240 = vmatpush1.msra.mxu0 0.0
    %2241 = vmatprep.subr.mxu0 0.0
    %2242 = vmatpush1.msra.mxu0 0.0
    %2243 = vmatprep.subr.mxu0 0.0
    %2244 = vmatpush1.msra.mxu0 0.0
    %2245 = vmatprep.subr.mxu0 0.0
    %2246 = vmatpush1.msra.mxu0 0.0
    %2247 = vmatprep.subr.mxu0 0.0
    %2248 = vmatpush1.msra.mxu0 0.0
    %2249 = vmatprep.subr.mxu0 0.0
    %2250 = vmatpush1.msra.mxu0 0.0
    %2251 = vmatprep.subr.mxu0 0.0
    %2252 = vmatpush1.msra.mxu0 0.0
    %2253 = vmatprep.subr.mxu0 0.0
    %2254 = vmatpush1.msra.mxu0 0.0
    %2255 = vmatprep.subr.mxu0 0.0
    %2256 = vmatpush1.msra.mxu0 0.0
    %2257 = vmatprep.subr.mxu0 0.0
    %2258 = vmatpush1.msra.mxu0 0.0
    %2259 = vmatprep.subr.mxu0 0.0
    %2260 = vmatpush1.msra.mxu0 0.0
    %2261 = vmatprep.subr.mxu0 0.0
    %2262 = vmatpush1.msra.mxu0 0.0
    %2263 = vmatprep.subr.mxu0 0.0
    %2264 = vmatpush1.msra.mxu0 0.0
    %2265 = vmatprep.subr.mxu0 0.0
    %2266 = vmatpush1.msra.mxu0 0.0
    %2267 = vmatprep.subr.mxu0 0.0
    %2268 = vmatpush1.msra.mxu0 0.0
    %2269 = vmatprep.subr.mxu0 0.0
    %2270 = vmatpush1.msra.mxu0 0.0
    %2271 = vmatprep.subr.mxu0 0.0
    %2272 = vmatpush1.msra.mxu0 0.0
    %2273 = vmatprep.subr.mxu0 0.0
    %2274 = vmatpush1.msra.mxu0 0.0
    %2275 = vmatprep.subr.mxu0 0.0
    %2276 = vmatpush1.msra.mxu0 0.0
    %2277 = vmatprep.subr.mxu0 0.0
    %2278 = vmatpush1.msra.mxu0 0.0
    %2279 = vmatprep.subr.mxu0 0.0
    %2280 = vmatpush1.msra.mxu0 0.0
    %2281 = vmatprep.subr.mxu0 0.0
    %2282 = vmatpush1.msra.mxu0 0.0
    %2283 = vmatprep.subr.mxu0 0.0
    %2284 = vmatpush1.msra.mxu0 0.0
    %2285 = vmatprep.subr.mxu0 0.0
    %2286 = vmatpush1.msra.mxu0 0.0
    %2287 = vmatprep.mubr.f32.mxu0 0.0
    %v2288 = vand.u32 %v2082, 4294901760
    %2289 = vmatmul.mubr.f32.gmra.mrb[0].mxu0 %v2288
    %v2290 = vpop.f32.mrb[0].mxu0
    %v2291 = vadd.f32 %v2170, %v2290
    %v2292 = vpop.f32.mrb[0].mxu0
    %2293 = vmatprep.mubr.f32.mxu0 0.0
    %v2294 = vand.u32 %v2085, 4294901760
    %2295 = vmatmul.mubr.f32.gmra.mrb[0].mxu0 %v2294
    %v2296 = vpop.f32.mrb[0].mxu0
    %v2297 = vadd.f32 %v2180, %v2296
    %v2298 = vpop.f32.mrb[0].mxu0
    %2299 = vmatprep.mubr.f32.mxu0 0.0
    %v2300 = vand.u32 %v2088, 4294901760
    %2301 = vmatmul.mubr.f32.gmra.mrb[0].mxu0 %v2300
    %v2302 = vpop.f32.mrb[0].mxu0
    %v2303 = vadd.f32 %v2190, %v2302
    %v2304 = vpop.f32.mrb[0].mxu0
    %2305 = vmatprep.mubr.f32.mxu0 0.0
    %v2306 = vand.u32 %v2091, 4294901760
    %2307 = vmatmul.mubr.f32.gmra.mrb[0].mxu0 %v2306
    %v2308 = vpop.f32.mrb[0].mxu0
    %v2309 = vadd.f32 %v2200, %v2308
    %v2310 = vpop.f32.mrb[0].mxu0
    %2311 = vmatprep.mubr.f32.mxu0 0.0
    %v2312 = vand.u32 %v2094, 4294901760
    %2313 = vmatmul.mubr.f32.gmra.mrb[0].mxu0 %v2312
    %v2314 = vpop.f32.mrb[0].mxu0
    %v2315 = vadd.f32 %v2210, %v2314
    %v2316 = vpop.f32.mrb[0].mxu0
    %2317 = vdwg.mxu0
    %2318 = vmatprep.subr.mxu0 0.0
    %v2319 = vand.u32 %v1149, 4294901760
    %v2320 = vsub.f32 %v1149, %v2319
    %2321 = vmatpush1.msra.mxu0 %v2320
    %2322 = vmatprep.subr.mxu0 0.0
    %v2323 = vand.u32 %v1155, 4294901760
    %v2324 = vsub.f32 %v1155, %v2323
    %2325 = vmatpush1.msra.mxu0 %v2324
    %2326 = vmatprep.subr.mxu0 0.0
    %2327 = vmatpush1.msra.mxu0 0.0
    %2328 = vmatprep.subr.mxu0 0.0
    %2329 = vmatpush1.msra.mxu0 0.0
    %2330 = vmatprep.subr.mxu0 0.0
    %2331 = vmatpush1.msra.mxu0 0.0
    %2332 = vmatprep.subr.mxu0 0.0
    %2333 = vmatpush1.msra.mxu0 0.0
    %2334 = vmatprep.subr.mxu0 0.0
    %2335 = vmatpush1.msra.mxu0 0.0
    %2336 = vmatprep.subr.mxu0 0.0
    %2337 = vmatpush1.msra.mxu0 0.0
    %2338 = vmatprep.subr.mxu0 0.0
    %2339 = vmatpush1.msra.mxu0 0.0
    %2340 = vmatprep.subr.mxu0 0.0
    %2341 = vmatpush1.msra.mxu0 0.0
    %2342 = vmatprep.subr.mxu0 0.0
    %2343 = vmatpush1.msra.mxu0 0.0
    %2344 = vmatprep.subr.mxu0 0.0
    %2345 = vmatpush1.msra.mxu0 0.0
    %2346 = vmatprep.subr.mxu0 0.0
    %2347 = vmatpush1.msra.mxu0 0.0
    %2348 = vmatprep.subr.mxu0 0.0
    %2349 = vmatpush1.msra.mxu0 0.0
    %2350 = vmatprep.subr.mxu0 0.0
    %2351 = vmatpush1.msra.mxu0 0.0
    %2352 = vmatprep.subr.mxu0 0.0
    %2353 = vmatpush1.msra.mxu0 0.0
    %2354 = vmatprep.subr.mxu0 0.0
    %2355 = vmatpush1.msra.mxu0 0.0
    %2356 = vmatprep.subr.mxu0 0.0
    %2357 = vmatpush1.msra.mxu0 0.0
    %2358 = vmatprep.subr.mxu0 0.0
    %2359 = vmatpush1.msra.mxu0 0.0
    %2360 = vmatprep.subr.mxu0 0.0
    %2361 = vmatpush1.msra.mxu0 0.0
    %2362 = vmatprep.subr.mxu0 0.0
    %2363 = vmatpush1.msra.mxu0 0.0
    %2364 = vmatprep.subr.mxu0 0.0
    %2365 = vmatpush1.msra.mxu0 0.0
    %2366 = vmatprep.subr.mxu0 0.0
    %2367 = vmatpush1.msra.mxu0 0.0
    %2368 = vmatprep.subr.mxu0 0.0
    %2369 = vmatpush1.msra.mxu0 0.0
    %2370 = vmatprep.subr.mxu0 0.0
    %2371 = vmatpush1.msra.mxu0 0.0
    %2372 = vmatprep.subr.mxu0 0.0
    %2373 = vmatpush1.msra.mxu0 0.0
    %2374 = vmatprep.subr.mxu0 0.0
    %2375 = vmatpush1.msra.mxu0 0.0
    %2376 = vmatprep.subr.mxu0 0.0
    %2377 = vmatpush1.msra.mxu0 0.0
    %2378 = vmatprep.subr.mxu0 0.0
    %2379 = vmatpush1.msra.mxu0 0.0
    %2380 = vmatprep.subr.mxu0 0.0
    %2381 = vmatpush1.msra.mxu0 0.0
    %2382 = vmatprep.subr.mxu0 0.0
    %2383 = vmatpush1.msra.mxu0 0.0
    %2384 = vmatprep.subr.mxu0 0.0
    %2385 = vmatpush1.msra.mxu0 0.0
    %2386 = vmatprep.mubr.f32.mxu0 0.0
    %v2387 = vand.u32 %v2082, 4294901760
    %v2388 = vsub.f32 %v2082, %v2387
    %2389 = vmatmul.mubr.f32.gmra.mrb[0].mxu0 %v2388
    %v2390 = vpop.f32.mrb[0].mxu0
    %v2391 = vadd.f32 %v2291, %v2390
    %v2392 = vpop.f32.mrb[0].mxu0
    %2393 = vmatprep.mubr.f32.mxu0 0.0
    %v2394 = vand.u32 %v2085, 4294901760
    %v2395 = vsub.f32 %v2085, %v2394
    %2396 = vmatmul.mubr.f32.gmra.mrb[0].mxu0 %v2395
    %v2397 = vpop.f32.mrb[0].mxu0
    %v2398 = vadd.f32 %v2297, %v2397
    %v2399 = vpop.f32.mrb[0].mxu0
    %2400 = vmatprep.mubr.f32.mxu0 0.0
    %v2401 = vand.u32 %v2088, 4294901760
    %v2402 = vsub.f32 %v2088, %v2401
    %2403 = vmatmul.mubr.f32.gmra.mrb[0].mxu0 %v2402
    %v2404 = vpop.f32.mrb[0].mxu0
    %v2405 = vadd.f32 %v2303, %v2404
    %v2406 = vpop.f32.mrb[0].mxu0
    %2407 = vmatprep.mubr.f32.mxu0 0.0
    %v2408 = vand.u32 %v2091, 4294901760
    %v2409 = vsub.f32 %v2091, %v2408
    %2410 = vmatmul.mubr.f32.gmra.mrb[0].mxu0 %v2409
    %v2411 = vpop.f32.mrb[0].mxu0
    %v2412 = vadd.f32 %v2309, %v2411
    %v2413 = vpop.f32.mrb[0].mxu0
    %2414 = vmatprep.mubr.f32.mxu0 0.0
    %v2415 = vand.u32 %v2094, 4294901760
    %v2416 = vsub.f32 %v2094, %v2415
    %2417 = vmatmul.mubr.f32.gmra.mrb[0].mxu0 %v2416
    %v2418 = vpop.f32.mrb[0].mxu0
    %v2419 = vadd.f32 %v2315, %v2418
    %v2420 = vpop.f32.mrb[0].mxu0
    %2421 = vdwg.mxu0
    %2422 = vmatprep.subr.mxu0 0.0
    %v2423 = vand.u32 %v1149, 4294901760
    %2424 = vmatpush1.msra.mxu0 %v2423
    %2425 = vmatprep.subr.mxu0 0.0
    %v2426 = vand.u32 %v1155, 4294901760
    %2427 = vmatpush1.msra.mxu0 %v2426
    %2428 = vmatprep.subr.mxu0 0.0
    %2429 = vmatpush1.msra.mxu0 0.0
    %2430 = vmatprep.subr.mxu0 0.0
    %2431 = vmatpush1.msra.mxu0 0.0
    %2432 = vmatprep.subr.mxu0 0.0
    %2433 = vmatpush1.msra.mxu0 0.0
    %2434 = vmatprep.subr.mxu0 0.0
    %2435 = vmatpush1.msra.mxu0 0.0
    %2436 = vmatprep.subr.mxu0 0.0
    %2437 = vmatpush1.msra.mxu0 0.0
    %2438 = vmatprep.subr.mxu0 0.0
    %2439 = vmatpush1.msra.mxu0 0.0
    %2440 = vmatprep.subr.mxu0 0.0
    %2441 = vmatpush1.msra.mxu0 0.0
    %2442 = vmatprep.subr.mxu0 0.0
    %2443 = vmatpush1.msra.mxu0 0.0
    %2444 = vmatprep.subr.mxu0 0.0
    %2445 = vmatpush1.msra.mxu0 0.0
    %2446 = vmatprep.subr.mxu0 0.0
    %2447 = vmatpush1.msra.mxu0 0.0
    %2448 = vmatprep.subr.mxu0 0.0
    %2449 = vmatpush1.msra.mxu0 0.0
    %2450 = vmatprep.subr.mxu0 0.0
    %2451 = vmatpush1.msra.mxu0 0.0
    %2452 = vmatprep.subr.mxu0 0.0
    %2453 = vmatpush1.msra.mxu0 0.0
    %2454 = vmatprep.subr.mxu0 0.0
    %2455 = vmatpush1.msra.mxu0 0.0
    %2456 = vmatprep.subr.mxu0 0.0
    %2457 = vmatpush1.msra.mxu0 0.0
    %2458 = vmatprep.subr.mxu0 0.0
    %2459 = vmatpush1.msra.mxu0 0.0
    %2460 = vmatprep.subr.mxu0 0.0
    %2461 = vmatpush1.msra.mxu0 0.0
    %2462 = vmatprep.subr.mxu0 0.0
    %2463 = vmatpush1.msra.mxu0 0.0
    %2464 = vmatprep.subr.mxu0 0.0
    %2465 = vmatpush1.msra.mxu0 0.0
    %2466 = vmatprep.subr.mxu0 0.0
    %2467 = vmatpush1.msra.mxu0 0.0
    %2468 = vmatprep.subr.mxu0 0.0
    %2469 = vmatpush1.msra.mxu0 0.0
    %2470 = vmatprep.subr.mxu0 0.0
    %2471 = vmatpush1.msra.mxu0 0.0
    %2472 = vmatprep.subr.mxu0 0.0
    %2473 = vmatpush1.msra.mxu0 0.0
    %2474 = vmatprep.subr.mxu0 0.0
    %2475 = vmatpush1.msra.mxu0 0.0
    %2476 = vmatprep.subr.mxu0 0.0
    %2477 = vmatpush1.msra.mxu0 0.0
    %2478 = vmatprep.subr.mxu0 0.0
    %2479 = vmatpush1.msra.mxu0 0.0
    %2480 = vmatprep.subr.mxu0 0.0
    %2481 = vmatpush1.msra.mxu0 0.0
    %2482 = vmatprep.subr.mxu0 0.0
    %2483 = vmatpush1.msra.mxu0 0.0
    %2484 = vmatprep.subr.mxu0 0.0
    %2485 = vmatpush1.msra.mxu0 0.0
    %2486 = vmatprep.subr.mxu0 0.0
    %2487 = vmatpush1.msra.mxu0 0.0
    %2488 = vmatprep.mubr.f32.mxu0 0.0
    %v2489 = vand.u32 %v2082, 4294901760
    %v2490 = vsub.f32 %v2082, %v2489
    %v2491 = vand.u32 %v2490, 4294901760
    %2492 = vmatmul.mubr.f32.gmra.mrb[0].mxu0 %v2491
    %v2493 = vpop.f32.mrb[0].mxu0
    %v2494 = vadd.f32 %v2391, %v2493
    %v2495 = vpop.f32.mrb[0].mxu0
    %2496 = vmatprep.mubr.f32.mxu0 0.0
    %v2497 = vand.u32 %v2085, 4294901760
    %v2498 = vsub.f32 %v2085, %v2497
    %v2499 = vand.u32 %v2498, 4294901760
    %2500 = vmatmul.mubr.f32.gmra.mrb[0].mxu0 %v2499
    %v2501 = vpop.f32.mrb[0].mxu0
    %v2502 = vadd.f32 %v2398, %v2501
    %v2503 = vpop.f32.mrb[0].mxu0
    %2504 = vmatprep.mubr.f32.mxu0 0.0
    %v2505 = vand.u32 %v2088, 4294901760
    %v2506 = vsub.f32 %v2088, %v2505
    %v2507 = vand.u32 %v2506, 4294901760
    %2508 = vmatmul.mubr.f32.gmra.mrb[0].mxu0 %v2507
    %v2509 = vpop.f32.mrb[0].mxu0
    %v2510 = vadd.f32 %v2405, %v2509
    %v2511 = vpop.f32.mrb[0].mxu0
    %2512 = vmatprep.mubr.f32.mxu0 0.0
    %v2513 = vand.u32 %v2091, 4294901760
    %v2514 = vsub.f32 %v2091, %v2513
    %v2515 = vand.u32 %v2514, 4294901760
    %2516 = vmatmul.mubr.f32.gmra.mrb[0].mxu0 %v2515
    %v2517 = vpop.f32.mrb[0].mxu0
    %v2518 = vadd.f32 %v2412, %v2517
    %v2519 = vpop.f32.mrb[0].mxu0
    %2520 = vmatprep.mubr.f32.mxu0 0.0
    %v2521 = vand.u32 %v2094, 4294901760
    %v2522 = vsub.f32 %v2094, %v2521
    %v2523 = vand.u32 %v2522, 4294901760
    %2524 = vmatmul.mubr.f32.gmra.mrb[0].mxu0 %v2523
    %v2525 = vpop.f32.mrb[0].mxu0
    %v2526 = vadd.f32 %v2419, %v2525
    %v2527 = vpop.f32.mrb[0].mxu0
    %2528 = vdwg.mxu0
    %2529 = vmatprep.subr.mxu0 0.0
    %v2530 = vand.u32 %v1149, 4294901760
    %v2531 = vsub.f32 %v1149, %v2530
    %v2532 = vand.u32 %v2531, 4294901760
    %2533 = vmatpush1.msra.mxu0 %v2532
    %2534 = vmatprep.subr.mxu0 0.0
    %v2535 = vand.u32 %v1155, 4294901760
    %v2536 = vsub.f32 %v1155, %v2535
    %v2537 = vand.u32 %v2536, 4294901760
    %2538 = vmatpush1.msra.mxu0 %v2537
    %2539 = vmatprep.subr.mxu0 0.0
    %2540 = vmatpush1.msra.mxu0 0.0
    %2541 = vmatprep.subr.mxu0 0.0
    %2542 = vmatpush1.msra.mxu0 0.0
    %2543 = vmatprep.subr.mxu0 0.0
    %2544 = vmatpush1.msra.mxu0 0.0
    %2545 = vmatprep.subr.mxu0 0.0
    %2546 = vmatpush1.msra.mxu0 0.0
    %2547 = vmatprep.subr.mxu0 0.0
    %2548 = vmatpush1.msra.mxu0 0.0
    %2549 = vmatprep.subr.mxu0 0.0
    %2550 = vmatpush1.msra.mxu0 0.0
    %2551 = vmatprep.subr.mxu0 0.0
    %2552 = vmatpush1.msra.mxu0 0.0
    %2553 = vmatprep.subr.mxu0 0.0
    %2554 = vmatpush1.msra.mxu0 0.0
    %2555 = vmatprep.subr.mxu0 0.0
    %2556 = vmatpush1.msra.mxu0 0.0
    %2557 = vmatprep.subr.mxu0 0.0
    %2558 = vmatpush1.msra.mxu0 0.0
    %2559 = vmatprep.subr.mxu0 0.0
    %2560 = vmatpush1.msra.mxu0 0.0
    %2561 = vmatprep.subr.mxu0 0.0
    %2562 = vmatpush1.msra.mxu0 0.0
    %2563 = vmatprep.subr.mxu0 0.0
    %2564 = vmatpush1.msra.mxu0 0.0
    %2565 = vmatprep.subr.mxu0 0.0
    %2566 = vmatpush1.msra.mxu0 0.0
    %2567 = vmatprep.subr.mxu0 0.0
    %2568 = vmatpush1.msra.mxu0 0.0
    %2569 = vmatprep.subr.mxu0 0.0
    %2570 = vmatpush1.msra.mxu0 0.0
    %2571 = vmatprep.subr.mxu0 0.0
    %2572 = vmatpush1.msra.mxu0 0.0
    %2573 = vmatprep.subr.mxu0 0.0
    %2574 = vmatpush1.msra.mxu0 0.0
    %2575 = vmatprep.subr.mxu0 0.0
    %2576 = vmatpush1.msra.mxu0 0.0
    %2577 = vmatprep.subr.mxu0 0.0
    %2578 = vmatpush1.msra.mxu0 0.0
    %2579 = vmatprep.subr.mxu0 0.0
    %2580 = vmatpush1.msra.mxu0 0.0
    %2581 = vmatprep.subr.mxu0 0.0
    %2582 = vmatpush1.msra.mxu0 0.0
    %2583 = vmatprep.subr.mxu0 0.0
    %2584 = vmatpush1.msra.mxu0 0.0
    %2585 = vmatprep.subr.mxu0 0.0
    %2586 = vmatpush1.msra.mxu0 0.0
    %2587 = vmatprep.subr.mxu0 0.0
    %2588 = vmatpush1.msra.mxu0 0.0
    %2589 = vmatprep.subr.mxu0 0.0
    %2590 = vmatpush1.msra.mxu0 0.0
    %2591 = vmatprep.subr.mxu0 0.0
    %2592 = vmatpush1.msra.mxu0 0.0
    %2593 = vmatprep.subr.mxu0 0.0
    %2594 = vmatpush1.msra.mxu0 0.0
    %2595 = vmatprep.subr.mxu0 0.0
    %2596 = vmatpush1.msra.mxu0 0.0
    %2597 = vmatprep.subr.mxu0 0.0
    %2598 = vmatpush1.msra.mxu0 0.0
    %2599 = vmatprep.mubr.f32.mxu0 0.0
    %v2600 = vand.u32 %v2082, 4294901760
    %2601 = vmatmul.mubr.f32.gmra.mrb[0].mxu0 %v2600
    %v2602 = vpop.f32.mrb[0].mxu0
    %v2603 = vadd.f32 %v2494, %v2602
    %v2604 = vpop.f32.mrb[0].mxu0
    %2605 = vmatprep.mubr.f32.mxu0 0.0
    %v2606 = vand.u32 %v2085, 4294901760
    %2607 = vmatmul.mubr.f32.gmra.mrb[0].mxu0 %v2606
    %v2608 = vpop.f32.mrb[0].mxu0
    %v2609 = vadd.f32 %v2502, %v2608
    %v2610 = vpop.f32.mrb[0].mxu0
    %2611 = vmatprep.mubr.f32.mxu0 0.0
    %v2612 = vand.u32 %v2088, 4294901760
    %2613 = vmatmul.mubr.f32.gmra.mrb[0].mxu0 %v2612
    %v2614 = vpop.f32.mrb[0].mxu0
    %v2615 = vadd.f32 %v2510, %v2614
    %v2616 = vpop.f32.mrb[0].mxu0
    %2617 = vmatprep.mubr.f32.mxu0 0.0
    %v2618 = vand.u32 %v2091, 4294901760
    %2619 = vmatmul.mubr.f32.gmra.mrb[0].mxu0 %v2618
    %v2620 = vpop.f32.mrb[0].mxu0
    %v2621 = vadd.f32 %v2518, %v2620
    %v2622 = vpop.f32.mrb[0].mxu0
    %2623 = vmatprep.mubr.f32.mxu0 0.0
    %v2624 = vand.u32 %v2094, 4294901760
    %2625 = vmatmul.mubr.f32.gmra.mrb[0].mxu0 %v2624
    %v2626 = vpop.f32.mrb[0].mxu0
    %v2627 = vadd.f32 %v2526, %v2626
    %v2628 = vpop.f32.mrb[0].mxu0
    %2629 = vdwg.mxu0
    %2630 = vmatprep.subr.mxu0 0.0
    %v2631 = vand.u32 %v1149, 4294901760
    %2632 = vmatpush1.msra.mxu0 %v2631
    %2633 = vmatprep.subr.mxu0 0.0
    %v2634 = vand.u32 %v1155, 4294901760
    %2635 = vmatpush1.msra.mxu0 %v2634
    %2636 = vmatprep.subr.mxu0 0.0
    %2637 = vmatpush1.msra.mxu0 0.0
    %2638 = vmatprep.subr.mxu0 0.0
    %2639 = vmatpush1.msra.mxu0 0.0
    %2640 = vmatprep.subr.mxu0 0.0
    %2641 = vmatpush1.msra.mxu0 0.0
    %2642 = vmatprep.subr.mxu0 0.0
    %2643 = vmatpush1.msra.mxu0 0.0
    %2644 = vmatprep.subr.mxu0 0.0
    %2645 = vmatpush1.msra.mxu0 0.0
    %2646 = vmatprep.subr.mxu0 0.0
    %2647 = vmatpush1.msra.mxu0 0.0
    %2648 = vmatprep.subr.mxu0 0.0
    %2649 = vmatpush1.msra.mxu0 0.0
    %2650 = vmatprep.subr.mxu0 0.0
    %2651 = vmatpush1.msra.mxu0 0.0
    %2652 = vmatprep.subr.mxu0 0.0
    %2653 = vmatpush1.msra.mxu0 0.0
    %2654 = vmatprep.subr.mxu0 0.0
    %2655 = vmatpush1.msra.mxu0 0.0
    %2656 = vmatprep.subr.mxu0 0.0
    %2657 = vmatpush1.msra.mxu0 0.0
    %2658 = vmatprep.subr.mxu0 0.0
    %2659 = vmatpush1.msra.mxu0 0.0
    %2660 = vmatprep.subr.mxu0 0.0
    %2661 = vmatpush1.msra.mxu0 0.0
    %2662 = vmatprep.subr.mxu0 0.0
    %2663 = vmatpush1.msra.mxu0 0.0
    %2664 = vmatprep.subr.mxu0 0.0
    %2665 = vmatpush1.msra.mxu0 0.0
    %2666 = vmatprep.subr.mxu0 0.0
    %2667 = vmatpush1.msra.mxu0 0.0
    %2668 = vmatprep.subr.mxu0 0.0
    %2669 = vmatpush1.msra.mxu0 0.0
    %2670 = vmatprep.subr.mxu0 0.0
    %2671 = vmatpush1.msra.mxu0 0.0
    %2672 = vmatprep.subr.mxu0 0.0
    %2673 = vmatpush1.msra.mxu0 0.0
    %2674 = vmatprep.subr.mxu0 0.0
    %2675 = vmatpush1.msra.mxu0 0.0
    %2676 = vmatprep.subr.mxu0 0.0
    %2677 = vmatpush1.msra.mxu0 0.0
    %2678 = vmatprep.subr.mxu0 0.0
    %2679 = vmatpush1.msra.mxu0 0.0
    %2680 = vmatprep.subr.mxu0 0.0
    %2681 = vmatpush1.msra.mxu0 0.0
    %2682 = vmatprep.subr.mxu0 0.0
    %2683 = vmatpush1.msra.mxu0 0.0
    %2684 = vmatprep.subr.mxu0 0.0
    %2685 = vmatpush1.msra.mxu0 0.0
    %2686 = vmatprep.subr.mxu0 0.0
    %2687 = vmatpush1.msra.mxu0 0.0
    %2688 = vmatprep.subr.mxu0 0.0
    %2689 = vmatpush1.msra.mxu0 0.0
    %2690 = vmatprep.subr.mxu0 0.0
    %2691 = vmatpush1.msra.mxu0 0.0
    %2692 = vmatprep.subr.mxu0 0.0
    %2693 = vmatpush1.msra.mxu0 0.0
    %2694 = vmatprep.subr.mxu0 0.0
    %2695 = vmatpush1.msra.mxu0 0.0
    %2696 = vmatprep.mubr.f32.mxu0 0.0
    %v2697 = vand.u32 %v2082, 4294901760
    %2698 = vmatmul.mubr.f32.gmra.mrb[0].mxu0 %v2697
    %v2699 = vpop.f32.mrb[0].mxu0
    %v2700 = vadd.f32 %v2603, %v2699
    %v2701 = vpop.f32.mrb[0].mxu0
    %2702 = vmatprep.mubr.f32.mxu0 0.0
    %v2703 = vand.u32 %v2085, 4294901760
    %2704 = vmatmul.mubr.f32.gmra.mrb[0].mxu0 %v2703
    %v2705 = vpop.f32.mrb[0].mxu0
    %v2706 = vadd.f32 %v2609, %v2705
    %v2707 = vpop.f32.mrb[0].mxu0
    %2708 = vmatprep.mubr.f32.mxu0 0.0
    %v2709 = vand.u32 %v2088, 4294901760
    %2710 = vmatmul.mubr.f32.gmra.mrb[0].mxu0 %v2709
    %v2711 = vpop.f32.mrb[0].mxu0
    %v2712 = vadd.f32 %v2615, %v2711
    %v2713 = vpop.f32.mrb[0].mxu0
    %2714 = vmatprep.mubr.f32.mxu0 0.0
    %v2715 = vand.u32 %v2091, 4294901760
    %2716 = vmatmul.mubr.f32.gmra.mrb[0].mxu0 %v2715
    %v2717 = vpop.f32.mrb[0].mxu0
    %v2718 = vadd.f32 %v2621, %v2717
    %v2719 = vpop.f32.mrb[0].mxu0
    %2720 = vmatprep.mubr.f32.mxu0 0.0
    %v2721 = vand.u32 %v2094, 4294901760
    %2722 = vmatmul.mubr.f32.gmra.mrb[0].mxu0 %v2721
    %v2723 = vpop.f32.mrb[0].mxu0
    %v2724 = vadd.f32 %v2627, %v2723
    %v2725 = vpop.f32.mrb[0].mxu0
    %2726 = vdwg.mxu0
    %v2728 = vsel %vm95, 0.0, 0
    %2730 = vmatprep.subr.mxu0 0.0
    %v2731 = vand.u32 %v29, 4294901760
    %2732 = vmatpush1.msra.mxu0 %v2731
    %2733 = vmatprep.subr.mxu0 0.0
    %v2734 = vand.u32 %v30, 4294901760
    %2735 = vmatpush1.msra.mxu0 %v2734
    %2736 = vmatprep.subr.mxu0 0.0
    %v2737 = vand.u32 %v31, 4294901760
    %2738 = vmatpush1.msra.mxu0 %v2737
    %2739 = vmatprep.subr.mxu0 0.0
    %v2740 = vand.u32 %v32, 4294901760
    %2741 = vmatpush1.msra.mxu0 %v2740
    %2742 = vmatprep.subr.mxu0 0.0
    %2743 = vmatpush1.msra.mxu0 0.0
    %2744 = vmatprep.subr.mxu0 0.0
    %2745 = vmatpush1.msra.mxu0 0.0
    %2746 = vmatprep.subr.mxu0 0.0
    %2747 = vmatpush1.msra.mxu0 0.0
    %2748 = vmatprep.subr.mxu0 0.0
    %2749 = vmatpush1.msra.mxu0 0.0
    %2750 = vmatprep.subr.mxu0 0.0
    %2751 = vmatpush1.msra.mxu0 0.0
    %2752 = vmatprep.subr.mxu0 0.0
    %2753 = vmatpush1.msra.mxu0 0.0
    %2754 = vmatprep.subr.mxu0 0.0
    %2755 = vmatpush1.msra.mxu0 0.0
    %2756 = vmatprep.subr.mxu0 0.0
    %2757 = vmatpush1.msra.mxu0 0.0
    %2758 = vmatprep.subr.mxu0 0.0
    %2759 = vmatpush1.msra.mxu0 0.0
    %2760 = vmatprep.subr.mxu0 0.0
    %2761 = vmatpush1.msra.mxu0 0.0
    %2762 = vmatprep.subr.mxu0 0.0
    %2763 = vmatpush1.msra.mxu0 0.0
    %2764 = vmatprep.subr.mxu0 0.0
    %2765 = vmatpush1.msra.mxu0 0.0
    %2766 = vmatprep.subr.mxu0 0.0
    %2767 = vmatpush1.msra.mxu0 0.0
    %2768 = vmatprep.subr.mxu0 0.0
    %2769 = vmatpush1.msra.mxu0 0.0
    %2770 = vmatprep.subr.mxu0 0.0
    %2771 = vmatpush1.msra.mxu0 0.0
    %2772 = vmatprep.subr.mxu0 0.0
    %2773 = vmatpush1.msra.mxu0 0.0
    %2774 = vmatprep.subr.mxu0 0.0
    %2775 = vmatpush1.msra.mxu0 0.0
    %2776 = vmatprep.subr.mxu0 0.0
    %2777 = vmatpush1.msra.mxu0 0.0
    %2778 = vmatprep.subr.mxu0 0.0
    %2779 = vmatpush1.msra.mxu0 0.0
    %2780 = vmatprep.subr.mxu0 0.0
    %2781 = vmatpush1.msra.mxu0 0.0
    %2782 = vmatprep.subr.mxu0 0.0
    %2783 = vmatpush1.msra.mxu0 0.0
    %2784 = vmatprep.subr.mxu0 0.0
    %2785 = vmatpush1.msra.mxu0 0.0
    %2786 = vmatprep.subr.mxu0 0.0
    %2787 = vmatpush1.msra.mxu0 0.0
    %2788 = vmatprep.subr.mxu0 0.0
    %2789 = vmatpush1.msra.mxu0 0.0
    %2790 = vmatprep.subr.mxu0 0.0
    %2791 = vmatpush1.msra.mxu0 0.0
    %2792 = vmatprep.subr.mxu0 0.0
    %2793 = vmatpush1.msra.mxu0 0.0
    %2794 = vmatprep.subr.mxu0 0.0
    %2795 = vmatpush1.msra.mxu0 0.0
    %2796 = vmatprep.subr.mxu0 0.0
    %2797 = vmatpush1.msra.mxu0 0.0
    %2798 = vmatprep.mubr.f32.mxu0 0.0
    %v2799 = vand.u32 %v2728, 4294901760
    %v2800 = vsub.f32 %v2728, %v2799
    %v2801 = vand.u32 %v2800, 4294901760
    %v2802 = vsub.f32 %v2800, %v2801
    %v2803 = vand.u32 %v2802, 4294901760
    %2804 = vmatmul.mubr.f32.gmra.mrb[0].mxu0 %v2803
    %v2805 = vpop.f32.mrb[0].mxu0
    %v2806 = vadd.f32 %v59, %v2805
    %v2807 = vpop.f32.mrb[0].mxu0
    %2808 = vdwg.mxu0
    %2809 = vmatprep.subr.mxu0 0.0
    %v2810 = vand.u32 %v29, 4294901760
    %v2811 = vsub.f32 %v29, %v2810
    %v2812 = vand.u32 %v2811, 4294901760
    %v2813 = vsub.f32 %v2811, %v2812
    %v2814 = vand.u32 %v2813, 4294901760
    %2815 = vmatpush1.msra.mxu0 %v2814
    %2816 = vmatprep.subr.mxu0 0.0
    %v2817 = vand.u32 %v30, 4294901760
    %v2818 = vsub.f32 %v30, %v2817
    %v2819 = vand.u32 %v2818, 4294901760
    %v2820 = vsub.f32 %v2818, %v2819
    %v2821 = vand.u32 %v2820, 4294901760
    %2822 = vmatpush1.msra.mxu0 %v2821
    %2823 = vmatprep.subr.mxu0 0.0
    %v2824 = vand.u32 %v31, 4294901760
    %v2825 = vsub.f32 %v31, %v2824
    %v2826 = vand.u32 %v2825, 4294901760
    %v2827 = vsub.f32 %v2825, %v2826
    %v2828 = vand.u32 %v2827, 4294901760
    %2829 = vmatpush1.msra.mxu0 %v2828
    %2830 = vmatprep.subr.mxu0 0.0
    %v2831 = vand.u32 %v32, 4294901760
    %v2832 = vsub.f32 %v32, %v2831
    %v2833 = vand.u32 %v2832, 4294901760
    %v2834 = vsub.f32 %v2832, %v2833
    %v2835 = vand.u32 %v2834, 4294901760
    %2836 = vmatpush1.msra.mxu0 %v2835
    %2837 = vmatprep.subr.mxu0 0.0
    %2838 = vmatpush1.msra.mxu0 0.0
    %2839 = vmatprep.subr.mxu0 0.0
    %2840 = vmatpush1.msra.mxu0 0.0
    %2841 = vmatprep.subr.mxu0 0.0
    %2842 = vmatpush1.msra.mxu0 0.0
    %2843 = vmatprep.subr.mxu0 0.0
    %2844 = vmatpush1.msra.mxu0 0.0
    %2845 = vmatprep.subr.mxu0 0.0
    %2846 = vmatpush1.msra.mxu0 0.0
    %2847 = vmatprep.subr.mxu0 0.0
    %2848 = vmatpush1.msra.mxu0 0.0
    %2849 = vmatprep.subr.mxu0 0.0
    %2850 = vmatpush1.msra.mxu0 0.0
    %2851 = vmatprep.subr.mxu0 0.0
    %2852 = vmatpush1.msra.mxu0 0.0
    %2853 = vmatprep.subr.mxu0 0.0
    %2854 = vmatpush1.msra.mxu0 0.0
    %2855 = vmatprep.subr.mxu0 0.0
    %2856 = vmatpush1.msra.mxu0 0.0
    %2857 = vmatprep.subr.mxu0 0.0
    %2858 = vmatpush1.msra.mxu0 0.0
    %2859 = vmatprep.subr.mxu0 0.0
    %2860 = vmatpush1.msra.mxu0 0.0
    %2861 = vmatprep.subr.mxu0 0.0
    %2862 = vmatpush1.msra.mxu0 0.0
    %2863 = vmatprep.subr.mxu0 0.0
    %2864 = vmatpush1.msra.mxu0 0.0
    %2865 = vmatprep.subr.mxu0 0.0
    %2866 = vmatpush1.msra.mxu0 0.0
    %2867 = vmatprep.subr.mxu0 0.0
    %2868 = vmatpush1.msra.mxu0 0.0
    %2869 = vmatprep.subr.mxu0 0.0
    %2870 = vmatpush1.msra.mxu0 0.0
    %2871 = vmatprep.subr.mxu0 0.0
    %2872 = vmatpush1.msra.mxu0 0.0
    %2873 = vmatprep.subr.mxu0 0.0
    %2874 = vmatpush1.msra.mxu0 0.0
    %2875 = vmatprep.subr.mxu0 0.0
    %2876 = vmatpush1.msra.mxu0 0.0
    %2877 = vmatprep.subr.mxu0 0.0
    %2878 = vmatpush1.msra.mxu0 0.0
    %2879 = vmatprep.subr.mxu0 0.0
    %2880 = vmatpush1.msra.mxu0 0.0
    %2881 = vmatprep.subr.mxu0 0.0
    %2882 = vmatpush1.msra.mxu0 0.0
    %2883 = vmatprep.subr.mxu0 0.0
    %2884 = vmatpush1.msra.mxu0 0.0
    %2885 = vmatprep.subr.mxu0 0.0
    %2886 = vmatpush1.msra.mxu0 0.0
    %2887 = vmatprep.subr.mxu0 0.0
    %2888 = vmatpush1.msra.mxu0 0.0
    %2889 = vmatprep.subr.mxu0 0.0
    %2890 = vmatpush1.msra.mxu0 0.0
    %2891 = vmatprep.subr.mxu0 0.0
    %2892 = vmatpush1.msra.mxu0 0.0
    %2893 = vmatprep.mubr.f32.mxu0 0.0
    %v2894 = vand.u32 %v2728, 4294901760
    %2895 = vmatmul.mubr.f32.gmra.mrb[0].mxu0 %v2894
    %v2896 = vpop.f32.mrb[0].mxu0
    %v2897 = vadd.f32 %v2806, %v2896
    %v2898 = vpop.f32.mrb[0].mxu0
    %2899 = vdwg.mxu0
    %2900 = vmatprep.subr.mxu0 0.0
    %v2901 = vand.u32 %v29, 4294901760
    %v2902 = vsub.f32 %v29, %v2901
    %2903 = vmatpush1.msra.mxu0 %v2902
    %2904 = vmatprep.subr.mxu0 0.0
    %v2905 = vand.u32 %v30, 4294901760
    %v2906 = vsub.f32 %v30, %v2905
    %2907 = vmatpush1.msra.mxu0 %v2906
    %2908 = vmatprep.subr.mxu0 0.0
    %v2909 = vand.u32 %v31, 4294901760
    %v2910 = vsub.f32 %v31, %v2909
    %2911 = vmatpush1.msra.mxu0 %v2910
    %2912 = vmatprep.subr.mxu0 0.0
    %v2913 = vand.u32 %v32, 4294901760
    %v2914 = vsub.f32 %v32, %v2913
    %2915 = vmatpush1.msra.mxu0 %v2914
    %2916 = vmatprep.subr.mxu0 0.0
    %2917 = vmatpush1.msra.mxu0 0.0
    %2918 = vmatprep.subr.mxu0 0.0
    %2919 = vmatpush1.msra.mxu0 0.0
    %2920 = vmatprep.subr.mxu0 0.0
    %2921 = vmatpush1.msra.mxu0 0.0
    %2922 = vmatprep.subr.mxu0 0.0
    %2923 = vmatpush1.msra.mxu0 0.0
    %2924 = vmatprep.subr.mxu0 0.0
    %2925 = vmatpush1.msra.mxu0 0.0
    %2926 = vmatprep.subr.mxu0 0.0
    %2927 = vmatpush1.msra.mxu0 0.0
    %2928 = vmatprep.subr.mxu0 0.0
    %2929 = vmatpush1.msra.mxu0 0.0
    %2930 = vmatprep.subr.mxu0 0.0
    %2931 = vmatpush1.msra.mxu0 0.0
    %2932 = vmatprep.subr.mxu0 0.0
    %2933 = vmatpush1.msra.mxu0 0.0
    %2934 = vmatprep.subr.mxu0 0.0
    %2935 = vmatpush1.msra.mxu0 0.0
    %2936 = vmatprep.subr.mxu0 0.0
    %2937 = vmatpush1.msra.mxu0 0.0
    %2938 = vmatprep.subr.mxu0 0.0
    %2939 = vmatpush1.msra.mxu0 0.0
    %2940 = vmatprep.subr.mxu0 0.0
    %2941 = vmatpush1.msra.mxu0 0.0
    %2942 = vmatprep.subr.mxu0 0.0
    %2943 = vmatpush1.msra.mxu0 0.0
    %2944 = vmatprep.subr.mxu0 0.0
    %2945 = vmatpush1.msra.mxu0 0.0
    %2946 = vmatprep.subr.mxu0 0.0
    %2947 = vmatpush1.msra.mxu0 0.0
    %2948 = vmatprep.subr.mxu0 0.0
    %2949 = vmatpush1.msra.mxu0 0.0
    %2950 = vmatprep.subr.mxu0 0.0
    %2951 = vmatpush1.msra.mxu0 0.0
    %2952 = vmatprep.subr.mxu0 0.0
    %2953 = vmatpush1.msra.mxu0 0.0
    %2954 = vmatprep.subr.mxu0 0.0
    %2955 = vmatpush1.msra.mxu0 0.0
    %2956 = vmatprep.subr.mxu0 0.0
    %2957 = vmatpush1.msra.mxu0 0.0
    %2958 = vmatprep.subr.mxu0 0.0
    %2959 = vmatpush1.msra.mxu0 0.0
    %2960 = vmatprep.subr.mxu0 0.0
    %2961 = vmatpush1.msra.mxu0 0.0
    %2962 = vmatprep.subr.mxu0 0.0
    %2963 = vmatpush1.msra.mxu0 0.0
    %2964 = vmatprep.subr.mxu0 0.0
    %2965 = vmatpush1.msra.mxu0 0.0
    %2966 = vmatprep.subr.mxu0 0.0
    %2967 = vmatpush1.msra.mxu0 0.0
    %2968 = vmatprep.subr.mxu0 0.0
    %2969 = vmatpush1.msra.mxu0 0.0
    %2970 = vmatprep.subr.mxu0 0.0
    %2971 = vmatpush1.msra.mxu0 0.0
    %2972 = vmatprep.mubr.f32.mxu0 0.0
    %v2973 = vand.u32 %v2728, 4294901760
    %v2974 = vsub.f32 %v2728, %v2973
    %2975 = vmatmul.mubr.f32.gmra.mrb[0].mxu0 %v2974
    %v2976 = vpop.f32.mrb[0].mxu0
    %v2977 = vadd.f32 %v2897, %v2976
    %v2978 = vpop.f32.mrb[0].mxu0
    %2979 = vdwg.mxu0
    %2980 = vmatprep.subr.mxu0 0.0
    %v2981 = vand.u32 %v29, 4294901760
    %2982 = vmatpush1.msra.mxu0 %v2981
    %2983 = vmatprep.subr.mxu0 0.0
    %v2984 = vand.u32 %v30, 4294901760
    %2985 = vmatpush1.msra.mxu0 %v2984
    %2986 = vmatprep.subr.mxu0 0.0
    %v2987 = vand.u32 %v31, 4294901760
    %2988 = vmatpush1.msra.mxu0 %v2987
    %2989 = vmatprep.subr.mxu0 0.0
    %v2990 = vand.u32 %v32, 4294901760
    %2991 = vmatpush1.msra.mxu0 %v2990
    %2992 = vmatprep.subr.mxu0 0.0
    %2993 = vmatpush1.msra.mxu0 0.0
    %2994 = vmatprep.subr.mxu0 0.0
    %2995 = vmatpush1.msra.mxu0 0.0
    %2996 = vmatprep.subr.mxu0 0.0
    %2997 = vmatpush1.msra.mxu0 0.0
    %2998 = vmatprep.subr.mxu0 0.0
    %2999 = vmatpush1.msra.mxu0 0.0
    %3000 = vmatprep.subr.mxu0 0.0
    %3001 = vmatpush1.msra.mxu0 0.0
    %3002 = vmatprep.subr.mxu0 0.0
    %3003 = vmatpush1.msra.mxu0 0.0
    %3004 = vmatprep.subr.mxu0 0.0
    %3005 = vmatpush1.msra.mxu0 0.0
    %3006 = vmatprep.subr.mxu0 0.0
    %3007 = vmatpush1.msra.mxu0 0.0
    %3008 = vmatprep.subr.mxu0 0.0
    %3009 = vmatpush1.msra.mxu0 0.0
    %3010 = vmatprep.subr.mxu0 0.0
    %3011 = vmatpush1.msra.mxu0 0.0
    %3012 = vmatprep.subr.mxu0 0.0
    %3013 = vmatpush1.msra.mxu0 0.0
    %3014 = vmatprep.subr.mxu0 0.0
    %3015 = vmatpush1.msra.mxu0 0.0
    %3016 = vmatprep.subr.mxu0 0.0
    %3017 = vmatpush1.msra.mxu0 0.0
    %3018 = vmatprep.subr.mxu0 0.0
    %3019 = vmatpush1.msra.mxu0 0.0
    %3020 = vmatprep.subr.mxu0 0.0
    %3021 = vmatpush1.msra.mxu0 0.0
    %3022 = vmatprep.subr.mxu0 0.0
    %3023 = vmatpush1.msra.mxu0 0.0
    %3024 = vmatprep.subr.mxu0 0.0
    %3025 = vmatpush1.msra.mxu0 0.0
    %3026 = vmatprep.subr.mxu0 0.0
    %3027 = vmatpush1.msra.mxu0 0.0
    %3028 = vmatprep.subr.mxu0 0.0
    %3029 = vmatpush1.msra.mxu0 0.0
    %3030 = vmatprep.subr.mxu0 0.0
    %3031 = vmatpush1.msra.mxu0 0.0
    %3032 = vmatprep.subr.mxu0 0.0
    %3033 = vmatpush1.msra.mxu0 0.0
    %3034 = vmatprep.subr.mxu0 0.0
    %3035 = vmatpush1.msra.mxu0 0.0
    %3036 = vmatprep.subr.mxu0 0.0
    %3037 = vmatpush1.msra.mxu0 0.0
    %3038 = vmatprep.subr.mxu0 0.0
    %3039 = vmatpush1.msra.mxu0 0.0
    %3040 = vmatprep.subr.mxu0 0.0
    %3041 = vmatpush1.msra.mxu0 0.0
    %3042 = vmatprep.subr.mxu0 0.0
    %3043 = vmatpush1.msra.mxu0 0.0
    %3044 = vmatprep.subr.mxu0 0.0
    %3045 = vmatpush1.msra.mxu0 0.0
    %3046 = vmatprep.subr.mxu0 0.0
    %3047 = vmatpush1.msra.mxu0 0.0
    %3048 = vmatprep.mubr.f32.mxu0 0.0
    %v3049 = vand.u32 %v2728, 4294901760
    %v3050 = vsub.f32 %v2728, %v3049
    %v3051 = vand.u32 %v3050, 4294901760
    %3052 = vmatmul.mubr.f32.gmra.mrb[0].mxu0 %v3051
    %v3053 = vpop.f32.mrb[0].mxu0
    %v3054 = vadd.f32 %v2977, %v3053
    %v3055 = vpop.f32.mrb[0].mxu0
    %3056 = vdwg.mxu0
    %3057 = vmatprep.subr.mxu0 0.0
    %v3058 = vand.u32 %v29, 4294901760
    %v3059 = vsub.f32 %v29, %v3058
    %v3060 = vand.u32 %v3059, 4294901760
    %3061 = vmatpush1.msra.mxu0 %v3060
    %3062 = vmatprep.subr.mxu0 0.0
    %v3063 = vand.u32 %v30, 4294901760
    %v3064 = vsub.f32 %v30, %v3063
    %v3065 = vand.u32 %v3064, 4294901760
    %3066 = vmatpush1.msra.mxu0 %v3065
    %3067 = vmatprep.subr.mxu0 0.0
    %v3068 = vand.u32 %v31, 4294901760
    %v3069 = vsub.f32 %v31, %v3068
    %v3070 = vand.u32 %v3069, 4294901760
    %3071 = vmatpush1.msra.mxu0 %v3070
    %3072 = vmatprep.subr.mxu0 0.0
    %v3073 = vand.u32 %v32, 4294901760
    %v3074 = vsub.f32 %v32, %v3073
    %v3075 = vand.u32 %v3074, 4294901760
    %3076 = vmatpush1.msra.mxu0 %v3075
    %3077 = vmatprep.subr.mxu0 0.0
    %3078 = vmatpush1.msra.mxu0 0.0
    %3079 = vmatprep.subr.mxu0 0.0
    %3080 = vmatpush1.msra.mxu0 0.0
    %3081 = vmatprep.subr.mxu0 0.0
    %3082 = vmatpush1.msra.mxu0 0.0
    %3083 = vmatprep.subr.mxu0 0.0
    %3084 = vmatpush1.msra.mxu0 0.0
    %3085 = vmatprep.subr.mxu0 0.0
    %3086 = vmatpush1.msra.mxu0 0.0
    %3087 = vmatprep.subr.mxu0 0.0
    %3088 = vmatpush1.msra.mxu0 0.0
    %3089 = vmatprep.subr.mxu0 0.0
    %3090 = vmatpush1.msra.mxu0 0.0
    %3091 = vmatprep.subr.mxu0 0.0
    %3092 = vmatpush1.msra.mxu0 0.0
    %3093 = vmatprep.subr.mxu0 0.0
    %3094 = vmatpush1.msra.mxu0 0.0
    %3095 = vmatprep.subr.mxu0 0.0
    %3096 = vmatpush1.msra.mxu0 0.0
    %3097 = vmatprep.subr.mxu0 0.0
    %3098 = vmatpush1.msra.mxu0 0.0
    %3099 = vmatprep.subr.mxu0 0.0
    %3100 = vmatpush1.msra.mxu0 0.0
    %3101 = vmatprep.subr.mxu0 0.0
    %3102 = vmatpush1.msra.mxu0 0.0
    %3103 = vmatprep.subr.mxu0 0.0
    %3104 = vmatpush1.msra.mxu0 0.0
    %3105 = vmatprep.subr.mxu0 0.0
    %3106 = vmatpush1.msra.mxu0 0.0
    %3107 = vmatprep.subr.mxu0 0.0
    %3108 = vmatpush1.msra.mxu0 0.0
    %3109 = vmatprep.subr.mxu0 0.0
    %3110 = vmatpush1.msra.mxu0 0.0
    %3111 = vmatprep.subr.mxu0 0.0
    %3112 = vmatpush1.msra.mxu0 0.0
    %3113 = vmatprep.subr.mxu0 0.0
    %3114 = vmatpush1.msra.mxu0 0.0
    %3115 = vmatprep.subr.mxu0 0.0
    %3116 = vmatpush1.msra.mxu0 0.0
    %3117 = vmatprep.subr.mxu0 0.0
    %3118 = vmatpush1.msra.mxu0 0.0
    %3119 = vmatprep.subr.mxu0 0.0
    %3120 = vmatpush1.msra.mxu0 0.0
    %3121 = vmatprep.subr.mxu0 0.0
    %3122 = vmatpush1.msra.mxu0 0.0
    %3123 = vmatprep.subr.mxu0 0.0
    %3124 = vmatpush1.msra.mxu0 0.0
    %3125 = vmatprep.subr.mxu0 0.0
    %3126 = vmatpush1.msra.mxu0 0.0
    %3127 = vmatprep.subr.mxu0 0.0
    %3128 = vmatpush1.msra.mxu0 0.0
    %3129 = vmatprep.subr.mxu0 0.0
    %3130 = vmatpush1.msra.mxu0 0.0
    %3131 = vmatprep.subr.mxu0 0.0
    %3132 = vmatpush1.msra.mxu0 0.0
    %3133 = vmatprep.mubr.f32.mxu0 0.0
    %v3134 = vand.u32 %v2728, 4294901760
    %3135 = vmatmul.mubr.f32.gmra.mrb[0].mxu0 %v3134
    %v3136 = vpop.f32.mrb[0].mxu0
    %v3137 = vadd.f32 %v3054, %v3136
    %v3138 = vpop.f32.mrb[0].mxu0
    %3139 = vdwg.mxu0
    %3140 = vmatprep.subr.mxu0 0.0
    %v3141 = vand.u32 %v29, 4294901760
    %3142 = vmatpush1.msra.mxu0 %v3141
    %3143 = vmatprep.subr.mxu0 0.0
    %v3144 = vand.u32 %v30, 4294901760
    %3145 = vmatpush1.msra.mxu0 %v3144
    %3146 = vmatprep.subr.mxu0 0.0
    %v3147 = vand.u32 %v31, 4294901760
    %3148 = vmatpush1.msra.mxu0 %v3147
    %3149 = vmatprep.subr.mxu0 0.0
    %v3150 = vand.u32 %v32, 4294901760
    %3151 = vmatpush1.msra.mxu0 %v3150
    %3152 = vmatprep.subr.mxu0 0.0
    %3153 = vmatpush1.msra.mxu0 0.0
    %3154 = vmatprep.subr.mxu0 0.0
    %3155 = vmatpush1.msra.mxu0 0.0
    %3156 = vmatprep.subr.mxu0 0.0
    %3157 = vmatpush1.msra.mxu0 0.0
    %3158 = vmatprep.subr.mxu0 0.0
    %3159 = vmatpush1.msra.mxu0 0.0
    %3160 = vmatprep.subr.mxu0 0.0
    %3161 = vmatpush1.msra.mxu0 0.0
    %3162 = vmatprep.subr.mxu0 0.0
    %3163 = vmatpush1.msra.mxu0 0.0
    %3164 = vmatprep.subr.mxu0 0.0
    %3165 = vmatpush1.msra.mxu0 0.0
    %3166 = vmatprep.subr.mxu0 0.0
    %3167 = vmatpush1.msra.mxu0 0.0
    %3168 = vmatprep.subr.mxu0 0.0
    %3169 = vmatpush1.msra.mxu0 0.0
    %3170 = vmatprep.subr.mxu0 0.0
    %3171 = vmatpush1.msra.mxu0 0.0
    %3172 = vmatprep.subr.mxu0 0.0
    %3173 = vmatpush1.msra.mxu0 0.0
    %3174 = vmatprep.subr.mxu0 0.0
    %3175 = vmatpush1.msra.mxu0 0.0
    %3176 = vmatprep.subr.mxu0 0.0
    %3177 = vmatpush1.msra.mxu0 0.0
    %3178 = vmatprep.subr.mxu0 0.0
    %3179 = vmatpush1.msra.mxu0 0.0
    %3180 = vmatprep.subr.mxu0 0.0
    %3181 = vmatpush1.msra.mxu0 0.0
    %3182 = vmatprep.subr.mxu0 0.0
    %3183 = vmatpush1.msra.mxu0 0.0
    %3184 = vmatprep.subr.mxu0 0.0
    %3185 = vmatpush1.msra.mxu0 0.0
    %3186 = vmatprep.subr.mxu0 0.0
    %3187 = vmatpush1.msra.mxu0 0.0
    %3188 = vmatprep.subr.mxu0 0.0
    %3189 = vmatpush1.msra.mxu0 0.0
    %3190 = vmatprep.subr.mxu0 0.0
    %3191 = vmatpush1.msra.mxu0 0.0
    %3192 = vmatprep.subr.mxu0 0.0
    %3193 = vmatpush1.msra.mxu0 0.0
    %3194 = vmatprep.subr.mxu0 0.0
    %3195 = vmatpush1.msra.mxu0 0.0
    %3196 = vmatprep.subr.mxu0 0.0
    %3197 = vmatpush1.msra.mxu0 0.0
    %3198 = vmatprep.subr.mxu0 0.0
    %3199 = vmatpush1.msra.mxu0 0.0
    %3200 = vmatprep.subr.mxu0 0.0
    %3201 = vmatpush1.msra.mxu0 0.0
    %3202 = vmatprep.subr.mxu0 0.0
    %3203 = vmatpush1.msra.mxu0 0.0
    %3204 = vmatprep.subr.mxu0 0.0
    %3205 = vmatpush1.msra.mxu0 0.0
    %3206 = vmatprep.subr.mxu0 0.0
    %3207 = vmatpush1.msra.mxu0 0.0
    %3208 = vmatprep.mubr.f32.mxu0 0.0
    %v3209 = vand.u32 %v2728, 4294901760
    %3210 = vmatmul.mubr.f32.gmra.mrb[0].mxu0 %v3209
    %v3211 = vpop.f32.mrb[0].mxu0
    %v3212 = vadd.f32 %v3137, %v3211
    %v3213 = vpop.f32.mrb[0].mxu0
    %3214 = vdwg.mxu0
    %v3215 = vadd.f32 %v2032, %v3212
    %v3216 = vxor.u32 %v3215, 2147483648
    %v3217 = vmul.f32 %v3216, 1.442695
    %v3218 = vpow.pop %v3217
    %v3219 = vadd.f32 %v3218, 1.0
    %v3220 = vrcp.pop %v3219
    %v3221 = vmul.f32 1.0, %v3220
    %3223 = vrot.lane.b32.xlu0 %v3212, 64
    %v3224 = vpop.permute.xlu0 %3223
    %v3226 = vmul.f32 %v3221, %v3224
    %3228 = vrot.lane.b32.xlu0 %v3226, 64
    %v3229 = vpop.permute.xlu0 %3228
    %v3231 = vadd.f32 %v2032, %v3229
    %v3232 = vtanh.pop %v3231
    %v3233 = vsub.f32 1.0, %v3221
    %3235 = vrot.lane.b32.xlu0 %v3232, 96
    %v3236 = vpop.permute.xlu0 %3235
    %v3238 = vmul.f32 %v3233, %v3236
    %v3239 = vmul.f32 %v3221, 0.0
    %v3240 = vadd.f32 %v3238, %v3239
    %3242 = vset.pattern.permute.xlu0 0
    %3243 = vperm.xlu0 %3242, %v94
    %v3244 = vpop.permute.xlu0 %3243
    %v3246 = vmul.f32 %v3240, %v3244
    %v3247 = vsub.f32 1.0, %v94
    %3249 = vset.pattern.permute.xlu0 0
    %3250 = vperm.xlu0 %3249, %v3247
    %v3251 = vpop.permute.xlu0 %3250
    %v3253 = vmul.f32 %v3251, 0.0
    %v3254 = vadd.f32 %v3246, %v3253
    %3256 = vrot.lane.b32.xlu0 %v3254, 96
    %v3257 = vpop.permute.xlu0 %3256
    %v3258 = vsel %vm95, %v3257, 0
    %3260 = vmatprep.subr.mxu0 0.0
    %v3261 = vand.u32 %v29, 4294901760
    %3262 = vmatpush1.msra.mxu0 %v3261
    %3263 = vmatprep.subr.mxu0 0.0
    %v3264 = vand.u32 %v30, 4294901760
    %3265 = vmatpush1.msra.mxu0 %v3264
    %3266 = vmatprep.subr.mxu0 0.0
    %v3267 = vand.u32 %v31, 4294901760
    %3268 = vmatpush1.msra.mxu0 %v3267
    %3269 = vmatprep.subr.mxu0 0.0
    %v3270 = vand.u32 %v32, 4294901760
    %3271 = vmatpush1.msra.mxu0 %v3270
    %3272 = vmatprep.subr.mxu0 0.0
    %3273 = vmatpush1.msra.mxu0 0.0
    %3274 = vmatprep.subr.mxu0 0.0
    %3275 = vmatpush1.msra.mxu0 0.0
    %3276 = vmatprep.subr.mxu0 0.0
    %3277 = vmatpush1.msra.mxu0 0.0
    %3278 = vmatprep.subr.mxu0 0.0
    %3279 = vmatpush1.msra.mxu0 0.0
    %3280 = vmatprep.subr.mxu0 0.0
    %3281 = vmatpush1.msra.mxu0 0.0
    %3282 = vmatprep.subr.mxu0 0.0
    %3283 = vmatpush1.msra.mxu0 0.0
    %3284 = vmatprep.subr.mxu0 0.0
    %3285 = vmatpush1.msra.mxu0 0.0
    %3286 = vmatprep.subr.mxu0 0.0
    %3287 = vmatpush1.msra.mxu0 0.0
    %3288 = vmatprep.subr.mxu0 0.0
    %3289 = vmatpush1.msra.mxu0 0.0
    %3290 = vmatprep.subr.mxu0 0.0
    %3291 = vmatpush1.msra.mxu0 0.0
    %3292 = vmatprep.subr.mxu0 0.0
    %3293 = vmatpush1.msra.mxu0 0.0
    %3294 = vmatprep.subr.mxu0 0.0
    %3295 = vmatpush1.msra.mxu0 0.0
    %3296 = vmatprep.subr.mxu0 0.0
    %3297 = vmatpush1.msra.mxu0 0.0
    %3298 = vmatprep.subr.mxu0 0.0
    %3299 = vmatpush1.msra.mxu0 0.0
    %3300 = vmatprep.subr.mxu0 0.0
    %3301 = vmatpush1.msra.mxu0 0.0
    %3302 = vmatprep.subr.mxu0 0.0
    %3303 = vmatpush1.msra.mxu0 0.0
    %3304 = vmatprep.subr.mxu0 0.0
    %3305 = vmatpush1.msra.mxu0 0.0
    %3306 = vmatprep.subr.mxu0 0.0
    %3307 = vmatpush1.msra.mxu0 0.0
    %3308 = vmatprep.subr.mxu0 0.0
    %3309 = vmatpush1.msra.mxu0 0.0
    %3310 = vmatprep.subr.mxu0 0.0
    %3311 = vmatpush1.msra.mxu0 0.0
    %3312 = vmatprep.subr.mxu0 0.0
    %3313 = vmatpush1.msra.mxu0 0.0
    %3314 = vmatprep.subr.mxu0 0.0
    %3315 = vmatpush1.msra.mxu0 0.0
    %3316 = vmatprep.subr.mxu0 0.0
    %3317 = vmatpush1.msra.mxu0 0.0
    %3318 = vmatprep.subr.mxu0 0.0
    %3319 = vmatpush1.msra.mxu0 0.0
    %3320 = vmatprep.subr.mxu0 0.0
    %3321 = vmatpush1.msra.mxu0 0.0
    %3322 = vmatprep.subr.mxu0 0.0
    %3323 = vmatpush1.msra.mxu0 0.0
    %3324 = vmatprep.subr.mxu0 0.0
    %3325 = vmatpush1.msra.mxu0 0.0
    %3326 = vmatprep.subr.mxu0 0.0
    %3327 = vmatpush1.msra.mxu0 0.0
    %3328 = vmatprep.mubr.f32.mxu0 0.0
    %v3329 = vand.u32 %v3258, 4294901760
    %v3330 = vsub.f32 %v3258, %v3329
    %v3331 = vand.u32 %v3330, 4294901760
    %v3332 = vsub.f32 %v3330, %v3331
    %v3333 = vand.u32 %v3332, 4294901760
    %3334 = vmatmul.mubr.f32.gmra.mrb[0].mxu0 %v3333
    %v3335 = vpop.f32.mrb[0].mxu0
    %v3336 = vadd.f32 %v59, %v3335
    %v3337 = vpop.f32.mrb[0].mxu0
    %3338 = vdwg.mxu0
    %3339 = vmatprep.subr.mxu0 0.0
    %v3340 = vand.u32 %v29, 4294901760
    %v3341 = vsub.f32 %v29, %v3340
    %v3342 = vand.u32 %v3341, 4294901760
    %v3343 = vsub.f32 %v3341, %v3342
    %v3344 = vand.u32 %v3343, 4294901760
    %3345 = vmatpush1.msra.mxu0 %v3344
    %3346 = vmatprep.subr.mxu0 0.0
    %v3347 = vand.u32 %v30, 4294901760
    %v3348 = vsub.f32 %v30, %v3347
    %v3349 = vand.u32 %v3348, 4294901760
    %v3350 = vsub.f32 %v3348, %v3349
    %v3351 = vand.u32 %v3350, 4294901760
    %3352 = vmatpush1.msra.mxu0 %v3351
    %3353 = vmatprep.subr.mxu0 0.0
    %v3354 = vand.u32 %v31, 4294901760
    %v3355 = vsub.f32 %v31, %v3354
    %v3356 = vand.u32 %v3355, 4294901760
    %v3357 = vsub.f32 %v3355, %v3356
    %v3358 = vand.u32 %v3357, 4294901760
    %3359 = vmatpush1.msra.mxu0 %v3358
    %3360 = vmatprep.subr.mxu0 0.0
    %v3361 = vand.u32 %v32, 4294901760
    %v3362 = vsub.f32 %v32, %v3361
    %v3363 = vand.u32 %v3362, 4294901760
    %v3364 = vsub.f32 %v3362, %v3363
    %v3365 = vand.u32 %v3364, 4294901760
    %3366 = vmatpush1.msra.mxu0 %v3365
    %3367 = vmatprep.subr.mxu0 0.0
    %3368 = vmatpush1.msra.mxu0 0.0
    %3369 = vmatprep.subr.mxu0 0.0
    %3370 = vmatpush1.msra.mxu0 0.0
    %3371 = vmatprep.subr.mxu0 0.0
    %3372 = vmatpush1.msra.mxu0 0.0
    %3373 = vmatprep.subr.mxu0 0.0
    %3374 = vmatpush1.msra.mxu0 0.0
    %3375 = vmatprep.subr.mxu0 0.0
    %3376 = vmatpush1.msra.mxu0 0.0
    %3377 = vmatprep.subr.mxu0 0.0
    %3378 = vmatpush1.msra.mxu0 0.0
    %3379 = vmatprep.subr.mxu0 0.0
    %3380 = vmatpush1.msra.mxu0 0.0
    %3381 = vmatprep.subr.mxu0 0.0
    %3382 = vmatpush1.msra.mxu0 0.0
    %3383 = vmatprep.subr.mxu0 0.0
    %3384 = vmatpush1.msra.mxu0 0.0
    %3385 = vmatprep.subr.mxu0 0.0
    %3386 = vmatpush1.msra.mxu0 0.0
    %3387 = vmatprep.subr.mxu0 0.0
    %3388 = vmatpush1.msra.mxu0 0.0
    %3389 = vmatprep.subr.mxu0 0.0
    %3390 = vmatpush1.msra.mxu0 0.0
    %3391 = vmatprep.subr.mxu0 0.0
    %3392 = vmatpush1.msra.mxu0 0.0
    %3393 = vmatprep.subr.mxu0 0.0
    %3394 = vmatpush1.msra.mxu0 0.0
    %3395 = vmatprep.subr.mxu0 0.0
    %3396 = vmatpush1.msra.mxu0 0.0
    %3397 = vmatprep.subr.mxu0 0.0
    %3398 = vmatpush1.msra.mxu0 0.0
    %3399 = vmatprep.subr.mxu0 0.0
    %3400 = vmatpush1.msra.mxu0 0.0
    %3401 = vmatprep.subr.mxu0 0.0
    %3402 = vmatpush1.msra.mxu0 0.0
    %3403 = vmatprep.subr.mxu0 0.0
    %3404 = vmatpush1.msra.mxu0 0.0
    %3405 = vmatprep.subr.mxu0 0.0
    %3406 = vmatpush1.msra.mxu0 0.0
    %3407 = vmatprep.subr.mxu0 0.0
    %3408 = vmatpush1.msra.mxu0 0.0
    %3409 = vmatprep.subr.mxu0 0.0
    %3410 = vmatpush1.msra.mxu0 0.0
    %3411 = vmatprep.subr.mxu0 0.0
    %3412 = vmatpush1.msra.mxu0 0.0
    %3413 = vmatprep.subr.mxu0 0.0
    %3414 = vmatpush1.msra.mxu0 0.0
    %3415 = vmatprep.subr.mxu0 0.0
    %3416 = vmatpush1.msra.mxu0 0.0
    %3417 = vmatprep.subr.mxu0 0.0
    %3418 = vmatpush1.msra.mxu0 0.0
    %3419 = vmatprep.subr.mxu0 0.0
    %3420 = vmatpush1.msra.mxu0 0.0
    %3421 = vmatprep.subr.mxu0 0.0
    %3422 = vmatpush1.msra.mxu0 0.0
    %3423 = vmatprep.mubr.f32.mxu0 0.0
    %v3424 = vand.u32 %v3258, 4294901760
    %3425 = vmatmul.mubr.f32.gmra.mrb[0].mxu0 %v3424
    %v3426 = vpop.f32.mrb[0].mxu0
    %v3427 = vadd.f32 %v3336, %v3426
    %v3428 = vpop.f32.mrb[0].mxu0
    %3429 = vdwg.mxu0
    %3430 = vmatprep.subr.mxu0 0.0
    %v3431 = vand.u32 %v29, 4294901760
    %v3432 = vsub.f32 %v29, %v3431
    %3433 = vmatpush1.msra.mxu0 %v3432
    %3434 = vmatprep.subr.mxu0 0.0
    %v3435 = vand.u32 %v30, 4294901760
    %v3436 = vsub.f32 %v30, %v3435
    %3437 = vmatpush1.msra.mxu0 %v3436
    %3438 = vmatprep.subr.mxu0 0.0
    %v3439 = vand.u32 %v31, 4294901760
    %v3440 = vsub.f32 %v31, %v3439
    %3441 = vmatpush1.msra.mxu0 %v3440
    %3442 = vmatprep.subr.mxu0 0.0
    %v3443 = vand.u32 %v32, 4294901760
    %v3444 = vsub.f32 %v32, %v3443
    %3445 = vmatpush1.msra.mxu0 %v3444
    %3446 = vmatprep.subr.mxu0 0.0
    %3447 = vmatpush1.msra.mxu0 0.0
    %3448 = vmatprep.subr.mxu0 0.0
    %3449 = vmatpush1.msra.mxu0 0.0
    %3450 = vmatprep.subr.mxu0 0.0
    %3451 = vmatpush1.msra.mxu0 0.0
    %3452 = vmatprep.subr.mxu0 0.0
    %3453 = vmatpush1.msra.mxu0 0.0
    %3454 = vmatprep.subr.mxu0 0.0
    %3455 = vmatpush1.msra.mxu0 0.0
    %3456 = vmatprep.subr.mxu0 0.0
    %3457 = vmatpush1.msra.mxu0 0.0
    %3458 = vmatprep.subr.mxu0 0.0
    %3459 = vmatpush1.msra.mxu0 0.0
    %3460 = vmatprep.subr.mxu0 0.0
    %3461 = vmatpush1.msra.mxu0 0.0
    %3462 = vmatprep.subr.mxu0 0.0
    %3463 = vmatpush1.msra.mxu0 0.0
    %3464 = vmatprep.subr.mxu0 0.0
    %3465 = vmatpush1.msra.mxu0 0.0
    %3466 = vmatprep.subr.mxu0 0.0
    %3467 = vmatpush1.msra.mxu0 0.0
    %3468 = vmatprep.subr.mxu0 0.0
    %3469 = vmatpush1.msra.mxu0 0.0
    %3470 = vmatprep.subr.mxu0 0.0
    %3471 = vmatpush1.msra.mxu0 0.0
    %3472 = vmatprep.subr.mxu0 0.0
    %3473 = vmatpush1.msra.mxu0 0.0
    %3474 = vmatprep.subr.mxu0 0.0
    %3475 = vmatpush1.msra.mxu0 0.0
    %3476 = vmatprep.subr.mxu0 0.0
    %3477 = vmatpush1.msra.mxu0 0.0
    %3478 = vmatprep.subr.mxu0 0.0
    %3479 = vmatpush1.msra.mxu0 0.0
    %3480 = vmatprep.subr.mxu0 0.0
    %3481 = vmatpush1.msra.mxu0 0.0
    %3482 = vmatprep.subr.mxu0 0.0
    %3483 = vmatpush1.msra.mxu0 0.0
    %3484 = vmatprep.subr.mxu0 0.0
    %3485 = vmatpush1.msra.mxu0 0.0
    %3486 = vmatprep.subr.mxu0 0.0
    %3487 = vmatpush1.msra.mxu0 0.0
    %3488 = vmatprep.subr.mxu0 0.0
    %3489 = vmatpush1.msra.mxu0 0.0
    %3490 = vmatprep.subr.mxu0 0.0
    %3491 = vmatpush1.msra.mxu0 0.0
    %3492 = vmatprep.subr.mxu0 0.0
    %3493 = vmatpush1.msra.mxu0 0.0
    %3494 = vmatprep.subr.mxu0 0.0
    %3495 = vmatpush1.msra.mxu0 0.0
    %3496 = vmatprep.subr.mxu0 0.0
    %3497 = vmatpush1.msra.mxu0 0.0
    %3498 = vmatprep.subr.mxu0 0.0
    %3499 = vmatpush1.msra.mxu0 0.0
    %3500 = vmatprep.subr.mxu0 0.0
    %3501 = vmatpush1.msra.mxu0 0.0
    %3502 = vmatprep.mubr.f32.mxu0 0.0
    %v3503 = vand.u32 %v3258, 4294901760
    %v3504 = vsub.f32 %v3258, %v3503
    %3505 = vmatmul.mubr.f32.gmra.mrb[0].mxu0 %v3504
    %v3506 = vpop.f32.mrb[0].mxu0
    %v3507 = vadd.f32 %v3427, %v3506
    %v3508 = vpop.f32.mrb[0].mxu0
    %3509 = vdwg.mxu0
    %3510 = vmatprep.subr.mxu0 0.0
    %v3511 = vand.u32 %v29, 4294901760
    %3512 = vmatpush1.msra.mxu0 %v3511
    %3513 = vmatprep.subr.mxu0 0.0
    %v3514 = vand.u32 %v30, 4294901760
    %3515 = vmatpush1.msra.mxu0 %v3514
    %3516 = vmatprep.subr.mxu0 0.0
    %v3517 = vand.u32 %v31, 4294901760
    %3518 = vmatpush1.msra.mxu0 %v3517
    %3519 = vmatprep.subr.mxu0 0.0
    %v3520 = vand.u32 %v32, 4294901760
    %3521 = vmatpush1.msra.mxu0 %v3520
    %3522 = vmatprep.subr.mxu0 0.0
    %3523 = vmatpush1.msra.mxu0 0.0
    %3524 = vmatprep.subr.mxu0 0.0
    %3525 = vmatpush1.msra.mxu0 0.0
    %3526 = vmatprep.subr.mxu0 0.0
    %3527 = vmatpush1.msra.mxu0 0.0
    %3528 = vmatprep.subr.mxu0 0.0
    %3529 = vmatpush1.msra.mxu0 0.0
    %3530 = vmatprep.subr.mxu0 0.0
    %3531 = vmatpush1.msra.mxu0 0.0
    %3532 = vmatprep.subr.mxu0 0.0
    %3533 = vmatpush1.msra.mxu0 0.0
    %3534 = vmatprep.subr.mxu0 0.0
    %3535 = vmatpush1.msra.mxu0 0.0
    %3536 = vmatprep.subr.mxu0 0.0
    %3537 = vmatpush1.msra.mxu0 0.0
    %3538 = vmatprep.subr.mxu0 0.0
    %3539 = vmatpush1.msra.mxu0 0.0
    %3540 = vmatprep.subr.mxu0 0.0
    %3541 = vmatpush1.msra.mxu0 0.0
    %3542 = vmatprep.subr.mxu0 0.0
    %3543 = vmatpush1.msra.mxu0 0.0
    %3544 = vmatprep.subr.mxu0 0.0
    %3545 = vmatpush1.msra.mxu0 0.0
    %3546 = vmatprep.subr.mxu0 0.0
    %3547 = vmatpush1.msra.mxu0 0.0
    %3548 = vmatprep.subr.mxu0 0.0
    %3549 = vmatpush1.msra.mxu0 0.0
    %3550 = vmatprep.subr.mxu0 0.0
    %3551 = vmatpush1.msra.mxu0 0.0
    %3552 = vmatprep.subr.mxu0 0.0
    %3553 = vmatpush1.msra.mxu0 0.0
    %3554 = vmatprep.subr.mxu0 0.0
    %3555 = vmatpush1.msra.mxu0 0.0
    %3556 = vmatprep.subr.mxu0 0.0
    %3557 = vmatpush1.msra.mxu0 0.0
    %3558 = vmatprep.subr.mxu0 0.0
    %3559 = vmatpush1.msra.mxu0 0.0
    %3560 = vmatprep.subr.mxu0 0.0
    %3561 = vmatpush1.msra.mxu0 0.0
    %3562 = vmatprep.subr.mxu0 0.0
    %3563 = vmatpush1.msra.mxu0 0.0
    %3564 = vmatprep.subr.mxu0 0.0
    %3565 = vmatpush1.msra.mxu0 0.0
    %3566 = vmatprep.subr.mxu0 0.0
    %3567 = vmatpush1.msra.mxu0 0.0
    %3568 = vmatprep.subr.mxu0 0.0
    %3569 = vmatpush1.msra.mxu0 0.0
    %3570 = vmatprep.subr.mxu0 0.0
    %3571 = vmatpush1.msra.mxu0 0.0
    %3572 = vmatprep.subr.mxu0 0.0
    %3573 = vmatpush1.msra.mxu0 0.0
    %3574 = vmatprep.subr.mxu0 0.0
    %3575 = vmatpush1.msra.mxu0 0.0
    %3576 = vmatprep.subr.mxu0 0.0
    %3577 = vmatpush1.msra.mxu0 0.0
    %3578 = vmatprep.mubr.f32.mxu0 0.0
    %v3579 = vand.u32 %v3258, 4294901760
    %v3580 = vsub.f32 %v3258, %v3579
    %v3581 = vand.u32 %v3580, 4294901760
    %3582 = vmatmul.mubr.f32.gmra.mrb[0].mxu0 %v3581
    %v3583 = vpop.f32.mrb[0].mxu0
    %v3584 = vadd.f32 %v3507, %v3583
    %v3585 = vpop.f32.mrb[0].mxu0
    %3586 = vdwg.mxu0
    %3587 = vmatprep.subr.mxu0 0.0
    %v3588 = vand.u32 %v29, 4294901760
    %v3589 = vsub.f32 %v29, %v3588
    %v3590 = vand.u32 %v3589, 4294901760
    %3591 = vmatpush1.msra.mxu0 %v3590
    %3592 = vmatprep.subr.mxu0 0.0
    %v3593 = vand.u32 %v30, 4294901760
    %v3594 = vsub.f32 %v30, %v3593
    %v3595 = vand.u32 %v3594, 4294901760
    %3596 = vmatpush1.msra.mxu0 %v3595
    %3597 = vmatprep.subr.mxu0 0.0
    %v3598 = vand.u32 %v31, 4294901760
    %v3599 = vsub.f32 %v31, %v3598
    %v3600 = vand.u32 %v3599, 4294901760
    %3601 = vmatpush1.msra.mxu0 %v3600
    %3602 = vmatprep.subr.mxu0 0.0
    %v3603 = vand.u32 %v32, 4294901760
    %v3604 = vsub.f32 %v32, %v3603
    %v3605 = vand.u32 %v3604, 4294901760
    %3606 = vmatpush1.msra.mxu0 %v3605
    %3607 = vmatprep.subr.mxu0 0.0
    %3608 = vmatpush1.msra.mxu0 0.0
    %3609 = vmatprep.subr.mxu0 0.0
    %3610 = vmatpush1.msra.mxu0 0.0
    %3611 = vmatprep.subr.mxu0 0.0
    %3612 = vmatpush1.msra.mxu0 0.0
    %3613 = vmatprep.subr.mxu0 0.0
    %3614 = vmatpush1.msra.mxu0 0.0
    %3615 = vmatprep.subr.mxu0 0.0
    %3616 = vmatpush1.msra.mxu0 0.0
    %3617 = vmatprep.subr.mxu0 0.0
    %3618 = vmatpush1.msra.mxu0 0.0
    %3619 = vmatprep.subr.mxu0 0.0
    %3620 = vmatpush1.msra.mxu0 0.0
    %3621 = vmatprep.subr.mxu0 0.0
    %3622 = vmatpush1.msra.mxu0 0.0
    %3623 = vmatprep.subr.mxu0 0.0
    %3624 = vmatpush1.msra.mxu0 0.0
    %3625 = vmatprep.subr.mxu0 0.0
    %3626 = vmatpush1.msra.mxu0 0.0
    %3627 = vmatprep.subr.mxu0 0.0
    %3628 = vmatpush1.msra.mxu0 0.0
    %3629 = vmatprep.subr.mxu0 0.0
    %3630 = vmatpush1.msra.mxu0 0.0
    %3631 = vmatprep.subr.mxu0 0.0
    %3632 = vmatpush1.msra.mxu0 0.0
    %3633 = vmatprep.subr.mxu0 0.0
    %3634 = vmatpush1.msra.mxu0 0.0
    %3635 = vmatprep.subr.mxu0 0.0
    %3636 = vmatpush1.msra.mxu0 0.0
    %3637 = vmatprep.subr.mxu0 0.0
    %3638 = vmatpush1.msra.mxu0 0.0
    %3639 = vmatprep.subr.mxu0 0.0
    %3640 = vmatpush1.msra.mxu0 0.0
    %3641 = vmatprep.subr.mxu0 0.0
    %3642 = vmatpush1.msra.mxu0 0.0
    %3643 = vmatprep.subr.mxu0 0.0
    %3644 = vmatpush1.msra.mxu0 0.0
    %3645 = vmatprep.subr.mxu0 0.0
    %3646 = vmatpush1.msra.mxu0 0.0
    %3647 = vmatprep.subr.mxu0 0.0
    %3648 = vmatpush1.msra.mxu0 0.0
    %3649 = vmatprep.subr.mxu0 0.0
    %3650 = vmatpush1.msra.mxu0 0.0
    %3651 = vmatprep.subr.mxu0 0.0
    %3652 = vmatpush1.msra.mxu0 0.0
    %3653 = vmatprep.subr.mxu0 0.0
    %3654 = vmatpush1.msra.mxu0 0.0
    %3655 = vmatprep.subr.mxu0 0.0
    %3656 = vmatpush1.msra.mxu0 0.0
    %3657 = vmatprep.subr.mxu0 0.0
    %3658 = vmatpush1.msra.mxu0 0.0
    %3659 = vmatprep.subr.mxu0 0.0
    %3660 = vmatpush1.msra.mxu0 0.0
    %3661 = vmatprep.subr.mxu0 0.0
    %3662 = vmatpush1.msra.mxu0 0.0
    %3663 = vmatprep.mubr.f32.mxu0 0.0
    %v3664 = vand.u32 %v3258, 4294901760
    %3665 = vmatmul.mubr.f32.gmra.mrb[0].mxu0 %v3664
    %v3666 = vpop.f32.mrb[0].mxu0
    %v3667 = vadd.f32 %v3584, %v3666
    %v3668 = vpop.f32.mrb[0].mxu0
    %3669 = vdwg.mxu0
    %3670 = vmatprep.subr.mxu0 0.0
    %v3671 = vand.u32 %v29, 4294901760
    %3672 = vmatpush1.msra.mxu0 %v3671
    %3673 = vmatprep.subr.mxu0 0.0
    %v3674 = vand.u32 %v30, 4294901760
    %3675 = vmatpush1.msra.mxu0 %v3674
    %3676 = vmatprep.subr.mxu0 0.0
    %v3677 = vand.u32 %v31, 4294901760
    %3678 = vmatpush1.msra.mxu0 %v3677
    %3679 = vmatprep.subr.mxu0 0.0
    %v3680 = vand.u32 %v32, 4294901760
    %3681 = vmatpush1.msra.mxu0 %v3680
    %3682 = vmatprep.subr.mxu0 0.0
    %3683 = vmatpush1.msra.mxu0 0.0
    %3684 = vmatprep.subr.mxu0 0.0
    %3685 = vmatpush1.msra.mxu0 0.0
    %3686 = vmatprep.subr.mxu0 0.0
    %3687 = vmatpush1.msra.mxu0 0.0
    %3688 = vmatprep.subr.mxu0 0.0
    %3689 = vmatpush1.msra.mxu0 0.0
    %3690 = vmatprep.subr.mxu0 0.0
    %3691 = vmatpush1.msra.mxu0 0.0
    %3692 = vmatprep.subr.mxu0 0.0
    %3693 = vmatpush1.msra.mxu0 0.0
    %3694 = vmatprep.subr.mxu0 0.0
    %3695 = vmatpush1.msra.mxu0 0.0
    %3696 = vmatprep.subr.mxu0 0.0
    %3697 = vmatpush1.msra.mxu0 0.0
    %3698 = vmatprep.subr.mxu0 0.0
    %3699 = vmatpush1.msra.mxu0 0.0
    %3700 = vmatprep.subr.mxu0 0.0
    %3701 = vmatpush1.msra.mxu0 0.0
    %3702 = vmatprep.subr.mxu0 0.0
    %3703 = vmatpush1.msra.mxu0 0.0
    %3704 = vmatprep.subr.mxu0 0.0
    %3705 = vmatpush1.msra.mxu0 0.0
    %3706 = vmatprep.subr.mxu0 0.0
    %3707 = vmatpush1.msra.mxu0 0.0
    %3708 = vmatprep.subr.mxu0 0.0
    %3709 = vmatpush1.msra.mxu0 0.0
    %3710 = vmatprep.subr.mxu0 0.0
    %3711 = vmatpush1.msra.mxu0 0.0
    %3712 = vmatprep.subr.mxu0 0.0
    %3713 = vmatpush1.msra.mxu0 0.0
    %3714 = vmatprep.subr.mxu0 0.0
    %3715 = vmatpush1.msra.mxu0 0.0
    %3716 = vmatprep.subr.mxu0 0.0
    %3717 = vmatpush1.msra.mxu0 0.0
    %3718 = vmatprep.subr.mxu0 0.0
    %3719 = vmatpush1.msra.mxu0 0.0
    %3720 = vmatprep.subr.mxu0 0.0
    %3721 = vmatpush1.msra.mxu0 0.0
    %3722 = vmatprep.subr.mxu0 0.0
    %3723 = vmatpush1.msra.mxu0 0.0
    %3724 = vmatprep.subr.mxu0 0.0
    %3725 = vmatpush1.msra.mxu0 0.0
    %3726 = vmatprep.subr.mxu0 0.0
    %3727 = vmatpush1.msra.mxu0 0.0
    %3728 = vmatprep.subr.mxu0 0.0
    %3729 = vmatpush1.msra.mxu0 0.0
    %3730 = vmatprep.subr.mxu0 0.0
    %3731 = vmatpush1.msra.mxu0 0.0
    %3732 = vmatprep.subr.mxu0 0.0
    %3733 = vmatpush1.msra.mxu0 0.0
    %3734 = vmatprep.subr.mxu0 0.0
    %3735 = vmatpush1.msra.mxu0 0.0
    %3736 = vmatprep.subr.mxu0 0.0
    %3737 = vmatpush1.msra.mxu0 0.0
    %3738 = vmatprep.mubr.f32.mxu0 0.0
    %v3739 = vand.u32 %v3258, 4294901760
    %3740 = vmatmul.mubr.f32.gmra.mrb[0].mxu0 %v3739
    %v3741 = vpop.f32.mrb[0].mxu0
    %v3742 = vadd.f32 %v3667, %v3741
    %v3743 = vpop.f32.mrb[0].mxu0
    %3744 = vdwg.mxu0
    %v3745 = vadd.f32 %v2038, %v3742
    %v3746 = vxor.u32 %v3745, 2147483648
    %v3747 = vmul.f32 %v3746, 1.442695
    %v3748 = vpow.pop %v3747
    %v3749 = vadd.f32 %v3748, 1.0
    %v3750 = vrcp.pop %v3749
    %v3751 = vmul.f32 1.0, %v3750
    %3753 = vrot.lane.b32.xlu0 %v3742, 64
    %v3754 = vpop.permute.xlu0 %3753
    %v3756 = vmul.f32 %v3751, %v3754
    %3758 = vrot.lane.b32.xlu0 %v3756, 64
    %v3759 = vpop.permute.xlu0 %3758
    %v3761 = vadd.f32 %v2038, %v3759
    %v3762 = vtanh.pop %v3761
    %v3763 = vsub.f32 1.0, %v3751
    %3765 = vrot.lane.b32.xlu0 %v3762, 96
    %v3766 = vpop.permute.xlu0 %3765
    %v3768 = vmul.f32 %v3763, %v3766
    %v3769 = vmul.f32 %v3751, %v3254
    %v3770 = vadd.f32 %v3768, %v3769
    %3771 = vset.pattern.permute.xlu0 1
    %3772 = vperm.xlu0 %3771, %v94
    %v3773 = vpop.permute.xlu0 %3772
    %v3775 = vmul.f32 %v3770, %v3773
    %3776 = vset.pattern.permute.xlu0 1
    %3777 = vperm.xlu0 %3776, %v3247
    %v3778 = vpop.permute.xlu0 %3777
    %v3780 = vmul.f32 %v3778, %v3254
    %v3781 = vadd.f32 %v3775, %v3780
    %3783 = vrot.lane.b32.xlu0 %v3781, 96
    %v3784 = vpop.permute.xlu0 %3783
    %v3785 = vsel %vm95, %v3784, 0
    %3787 = vmatprep.subr.mxu0 0.0
    %v3788 = vand.u32 %v29, 4294901760
    %3789 = vmatpush1.msra.mxu0 %v3788
    %3790 = vmatprep.subr.mxu0 0.0
    %v3791 = vand.u32 %v30, 4294901760
    %3792 = vmatpush1.msra.mxu0 %v3791
    %3793 = vmatprep.subr.mxu0 0.0
    %v3794 = vand.u32 %v31, 4294901760
    %3795 = vmatpush1.msra.mxu0 %v3794
    %3796 = vmatprep.subr.mxu0 0.0
    %v3797 = vand.u32 %v32, 4294901760
    %3798 = vmatpush1.msra.mxu0 %v3797
    %3799 = vmatprep.subr.mxu0 0.0
    %3800 = vmatpush1.msra.mxu0 0.0
    %3801 = vmatprep.subr.mxu0 0.0
    %3802 = vmatpush1.msra.mxu0 0.0
    %3803 = vmatprep.subr.mxu0 0.0
    %3804 = vmatpush1.msra.mxu0 0.0
    %3805 = vmatprep.subr.mxu0 0.0
    %3806 = vmatpush1.msra.mxu0 0.0
    %3807 = vmatprep.subr.mxu0 0.0
    %3808 = vmatpush1.msra.mxu0 0.0
    %3809 = vmatprep.subr.mxu0 0.0
    %3810 = vmatpush1.msra.mxu0 0.0
    %3811 = vmatprep.subr.mxu0 0.0
    %3812 = vmatpush1.msra.mxu0 0.0
    %3813 = vmatprep.subr.mxu0 0.0
    %3814 = vmatpush1.msra.mxu0 0.0
    %3815 = vmatprep.subr.mxu0 0.0
    %3816 = vmatpush1.msra.mxu0 0.0
    %3817 = vmatprep.subr.mxu0 0.0
    %3818 = vmatpush1.msra.mxu0 0.0
    %3819 = vmatprep.subr.mxu0 0.0
    %3820 = vmatpush1.msra.mxu0 0.0
    %3821 = vmatprep.subr.mxu0 0.0
    %3822 = vmatpush1.msra.mxu0 0.0
    %3823 = vmatprep.subr.mxu0 0.0
    %3824 = vmatpush1.msra.mxu0 0.0
    %3825 = vmatprep.subr.mxu0 0.0
    %3826 = vmatpush1.msra.mxu0 0.0
    %3827 = vmatprep.subr.mxu0 0.0
    %3828 = vmatpush1.msra.mxu0 0.0
    %3829 = vmatprep.subr.mxu0 0.0
    %3830 = vmatpush1.msra.mxu0 0.0
    %3831 = vmatprep.subr.mxu0 0.0
    %3832 = vmatpush1.msra.mxu0 0.0
    %3833 = vmatprep.subr.mxu0 0.0
    %3834 = vmatpush1.msra.mxu0 0.0
    %3835 = vmatprep.subr.mxu0 0.0
    %3836 = vmatpush1.msra.mxu0 0.0
    %3837 = vmatprep.subr.mxu0 0.0
    %3838 = vmatpush1.msra.mxu0 0.0
    %3839 = vmatprep.subr.mxu0 0.0
    %3840 = vmatpush1.msra.mxu0 0.0
    %3841 = vmatprep.subr.mxu0 0.0
    %3842 = vmatpush1.msra.mxu0 0.0
    %3843 = vmatprep.subr.mxu0 0.0
    %3844 = vmatpush1.msra.mxu0 0.0
    %3845 = vmatprep.subr.mxu0 0.0
    %3846 = vmatpush1.msra.mxu0 0.0
    %3847 = vmatprep.subr.mxu0 0.0
    %3848 = vmatpush1.msra.mxu0 0.0
    %3849 = vmatprep.subr.mxu0 0.0
    %3850 = vmatpush1.msra.mxu0 0.0
    %3851 = vmatprep.subr.mxu0 0.0
    %3852 = vmatpush1.msra.mxu0 0.0
    %3853 = vmatprep.subr.mxu0 0.0
    %3854 = vmatpush1.msra.mxu0 0.0
    %3855 = vmatprep.mubr.f32.mxu0 0.0
    %v3856 = vand.u32 %v3785, 4294901760
    %v3857 = vsub.f32 %v3785, %v3856
    %v3858 = vand.u32 %v3857, 4294901760
    %v3859 = vsub.f32 %v3857, %v3858
    %v3860 = vand.u32 %v3859, 4294901760
    %3861 = vmatmul.mubr.f32.gmra.mrb[0].mxu0 %v3860
    %v3862 = vpop.f32.mrb[0].mxu0
    %v3863 = vadd.f32 %v59, %v3862
    %v3864 = vpop.f32.mrb[0].mxu0
    %3865 = vdwg.mxu0
    %3866 = vmatprep.subr.mxu0 0.0
    %v3867 = vand.u32 %v29, 4294901760
    %v3868 = vsub.f32 %v29, %v3867
    %v3869 = vand.u32 %v3868, 4294901760
    %v3870 = vsub.f32 %v3868, %v3869
    %v3871 = vand.u32 %v3870, 4294901760
    %3872 = vmatpush1.msra.mxu0 %v3871
    %3873 = vmatprep.subr.mxu0 0.0
    %v3874 = vand.u32 %v30, 4294901760
    %v3875 = vsub.f32 %v30, %v3874
    %v3876 = vand.u32 %v3875, 4294901760
    %v3877 = vsub.f32 %v3875, %v3876
    %v3878 = vand.u32 %v3877, 4294901760
    %3879 = vmatpush1.msra.mxu0 %v3878
    %3880 = vmatprep.subr.mxu0 0.0
    %v3881 = vand.u32 %v31, 4294901760
    %v3882 = vsub.f32 %v31, %v3881
    %v3883 = vand.u32 %v3882, 4294901760
    %v3884 = vsub.f32 %v3882, %v3883
    %v3885 = vand.u32 %v3884, 4294901760
    %3886 = vmatpush1.msra.mxu0 %v3885
    %3887 = vmatprep.subr.mxu0 0.0
    %v3888 = vand.u32 %v32, 4294901760
    %v3889 = vsub.f32 %v32, %v3888
    %v3890 = vand.u32 %v3889, 4294901760
    %v3891 = vsub.f32 %v3889, %v3890
    %v3892 = vand.u32 %v3891, 4294901760
    %3893 = vmatpush1.msra.mxu0 %v3892
    %3894 = vmatprep.subr.mxu0 0.0
    %3895 = vmatpush1.msra.mxu0 0.0
    %3896 = vmatprep.subr.mxu0 0.0
    %3897 = vmatpush1.msra.mxu0 0.0
    %3898 = vmatprep.subr.mxu0 0.0
    %3899 = vmatpush1.msra.mxu0 0.0
    %3900 = vmatprep.subr.mxu0 0.0
    %3901 = vmatpush1.msra.mxu0 0.0
    %3902 = vmatprep.subr.mxu0 0.0
    %3903 = vmatpush1.msra.mxu0 0.0
    %3904 = vmatprep.subr.mxu0 0.0
    %3905 = vmatpush1.msra.mxu0 0.0
    %3906 = vmatprep.subr.mxu0 0.0
    %3907 = vmatpush1.msra.mxu0 0.0
    %3908 = vmatprep.subr.mxu0 0.0
    %3909 = vmatpush1.msra.mxu0 0.0
    %3910 = vmatprep.subr.mxu0 0.0
    %3911 = vmatpush1.msra.mxu0 0.0
    %3912 = vmatprep.subr.mxu0 0.0
    %3913 = vmatpush1.msra.mxu0 0.0
    %3914 = vmatprep.subr.mxu0 0.0
    %3915 = vmatpush1.msra.mxu0 0.0
    %3916 = vmatprep.subr.mxu0 0.0
    %3917 = vmatpush1.msra.mxu0 0.0
    %3918 = vmatprep.subr.mxu0 0.0
    %3919 = vmatpush1.msra.mxu0 0.0
    %3920 = vmatprep.subr.mxu0 0.0
    %3921 = vmatpush1.msra.mxu0 0.0
    %3922 = vmatprep.subr.mxu0 0.0
    %3923 = vmatpush1.msra.mxu0 0.0
    %3924 = vmatprep.subr.mxu0 0.0
    %3925 = vmatpush1.msra.mxu0 0.0
    %3926 = vmatprep.subr.mxu0 0.0
    %3927 = vmatpush1.msra.mxu0 0.0
    %3928 = vmatprep.subr.mxu0 0.0
    %3929 = vmatpush1.msra.mxu0 0.0
    %3930 = vmatprep.subr.mxu0 0.0
    %3931 = vmatpush1.msra.mxu0 0.0
    %3932 = vmatprep.subr.mxu0 0.0
    %3933 = vmatpush1.msra.mxu0 0.0
    %3934 = vmatprep.subr.mxu0 0.0
    %3935 = vmatpush1.msra.mxu0 0.0
    %3936 = vmatprep.subr.mxu0 0.0
    %3937 = vmatpush1.msra.mxu0 0.0
    %3938 = vmatprep.subr.mxu0 0.0
    %3939 = vmatpush1.msra.mxu0 0.0
    %3940 = vmatprep.subr.mxu0 0.0
    %3941 = vmatpush1.msra.mxu0 0.0
    %3942 = vmatprep.subr.mxu0 0.0
    %3943 = vmatpush1.msra.mxu0 0.0
    %3944 = vmatprep.subr.mxu0 0.0
    %3945 = vmatpush1.msra.mxu0 0.0
    %3946 = vmatprep.subr.mxu0 0.0
    %3947 = vmatpush1.msra.mxu0 0.0
    %3948 = vmatprep.subr.mxu0 0.0
    %3949 = vmatpush1.msra.mxu0 0.0
    %3950 = vmatprep.mubr.f32.mxu0 0.0
    %v3951 = vand.u32 %v3785, 4294901760
    %3952 = vmatmul.mubr.f32.gmra.mrb[0].mxu0 %v3951
    %v3953 = vpop.f32.mrb[0].mxu0
    %v3954 = vadd.f32 %v3863, %v3953
    %v3955 = vpop.f32.mrb[0].mxu0
    %3956 = vdwg.mxu0
    %3957 = vmatprep.subr.mxu0 0.0
    %v3958 = vand.u32 %v29, 4294901760
    %v3959 = vsub.f32 %v29, %v3958
    %3960 = vmatpush1.msra.mxu0 %v3959
    %3961 = vmatprep.subr.mxu0 0.0
    %v3962 = vand.u32 %v30, 4294901760
    %v3963 = vsub.f32 %v30, %v3962
    %3964 = vmatpush1.msra.mxu0 %v3963
    %3965 = vmatprep.subr.mxu0 0.0
    %v3966 = vand.u32 %v31, 4294901760
    %v3967 = vsub.f32 %v31, %v3966
    %3968 = vmatpush1.msra.mxu0 %v3967
    %3969 = vmatprep.subr.mxu0 0.0
    %v3970 = vand.u32 %v32, 4294901760
    %v3971 = vsub.f32 %v32, %v3970
    %3972 = vmatpush1.msra.mxu0 %v3971
    %3973 = vmatprep.subr.mxu0 0.0
    %3974 = vmatpush1.msra.mxu0 0.0
    %3975 = vmatprep.subr.mxu0 0.0
    %3976 = vmatpush1.msra.mxu0 0.0
    %3977 = vmatprep.subr.mxu0 0.0
    %3978 = vmatpush1.msra.mxu0 0.0
    %3979 = vmatprep.subr.mxu0 0.0
    %3980 = vmatpush1.msra.mxu0 0.0
    %3981 = vmatprep.subr.mxu0 0.0
    %3982 = vmatpush1.msra.mxu0 0.0
    %3983 = vmatprep.subr.mxu0 0.0
    %3984 = vmatpush1.msra.mxu0 0.0
    %3985 = vmatprep.subr.mxu0 0.0
    %3986 = vmatpush1.msra.mxu0 0.0
    %3987 = vmatprep.subr.mxu0 0.0
    %3988 = vmatpush1.msra.mxu0 0.0
    %3989 = vmatprep.subr.mxu0 0.0
    %3990 = vmatpush1.msra.mxu0 0.0
    %3991 = vmatprep.subr.mxu0 0.0
    %3992 = vmatpush1.msra.mxu0 0.0
    %3993 = vmatprep.subr.mxu0 0.0
    %3994 = vmatpush1.msra.mxu0 0.0
    %3995 = vmatprep.subr.mxu0 0.0
    %3996 = vmatpush1.msra.mxu0 0.0
    %3997 = vmatprep.subr.mxu0 0.0
    %3998 = vmatpush1.msra.mxu0 0.0
    %3999 = vmatprep.subr.mxu0 0.0
    %4000 = vmatpush1.msra.mxu0 0.0
    %4001 = vmatprep.subr.mxu0 0.0
    %4002 = vmatpush1.msra.mxu0 0.0
    %4003 = vmatprep.subr.mxu0 0.0
    %4004 = vmatpush1.msra.mxu0 0.0
    %4005 = vmatprep.subr.mxu0 0.0
    %4006 = vmatpush1.msra.mxu0 0.0
    %4007 = vmatprep.subr.mxu0 0.0
    %4008 = vmatpush1.msra.mxu0 0.0
    %4009 = vmatprep.subr.mxu0 0.0
    %4010 = vmatpush1.msra.mxu0 0.0
    %4011 = vmatprep.subr.mxu0 0.0
    %4012 = vmatpush1.msra.mxu0 0.0
    %4013 = vmatprep.subr.mxu0 0.0
    %4014 = vmatpush1.msra.mxu0 0.0
    %4015 = vmatprep.subr.mxu0 0.0
    %4016 = vmatpush1.msra.mxu0 0.0
    %4017 = vmatprep.subr.mxu0 0.0
    %4018 = vmatpush1.msra.mxu0 0.0
    %4019 = vmatprep.subr.mxu0 0.0
    %4020 = vmatpush1.msra.mxu0 0.0
    %4021 = vmatprep.subr.mxu0 0.0
    %4022 = vmatpush1.msra.mxu0 0.0
    %4023 = vmatprep.subr.mxu0 0.0
    %4024 = vmatpush1.msra.mxu0 0.0
    %4025 = vmatprep.subr.mxu0 0.0
    %4026 = vmatpush1.msra.mxu0 0.0
    %4027 = vmatprep.subr.mxu0 0.0
    %4028 = vmatpush1.msra.mxu0 0.0
    %4029 = vmatprep.mubr.f32.mxu0 0.0
    %v4030 = vand.u32 %v3785, 4294901760
    %v4031 = vsub.f32 %v3785, %v4030
    %4032 = vmatmul.mubr.f32.gmra.mrb[0].mxu0 %v4031
    %v4033 = vpop.f32.mrb[0].mxu0
    %v4034 = vadd.f32 %v3954, %v4033
    %v4035 = vpop.f32.mrb[0].mxu0
    %4036 = vdwg.mxu0
    %4037 = vmatprep.subr.mxu0 0.0
    %v4038 = vand.u32 %v29, 4294901760
    %4039 = vmatpush1.msra.mxu0 %v4038
    %4040 = vmatprep.subr.mxu0 0.0
    %v4041 = vand.u32 %v30, 4294901760
    %4042 = vmatpush1.msra.mxu0 %v4041
    %4043 = vmatprep.subr.mxu0 0.0
    %v4044 = vand.u32 %v31, 4294901760
    %4045 = vmatpush1.msra.mxu0 %v4044
    %4046 = vmatprep.subr.mxu0 0.0
    %v4047 = vand.u32 %v32, 4294901760
    %4048 = vmatpush1.msra.mxu0 %v4047
    %4049 = vmatprep.subr.mxu0 0.0
    %4050 = vmatpush1.msra.mxu0 0.0
    %4051 = vmatprep.subr.mxu0 0.0
    %4052 = vmatpush1.msra.mxu0 0.0
    %4053 = vmatprep.subr.mxu0 0.0
    %4054 = vmatpush1.msra.mxu0 0.0
    %4055 = vmatprep.subr.mxu0 0.0
    %4056 = vmatpush1.msra.mxu0 0.0
    %4057 = vmatprep.subr.mxu0 0.0
    %4058 = vmatpush1.msra.mxu0 0.0
    %4059 = vmatprep.subr.mxu0 0.0
    %4060 = vmatpush1.msra.mxu0 0.0
    %4061 = vmatprep.subr.mxu0 0.0
    %4062 = vmatpush1.msra.mxu0 0.0
    %4063 = vmatprep.subr.mxu0 0.0
    %4064 = vmatpush1.msra.mxu0 0.0
    %4065 = vmatprep.subr.mxu0 0.0
    %4066 = vmatpush1.msra.mxu0 0.0
    %4067 = vmatprep.subr.mxu0 0.0
    %4068 = vmatpush1.msra.mxu0 0.0
    %4069 = vmatprep.subr.mxu0 0.0
    %4070 = vmatpush1.msra.mxu0 0.0
    %4071 = vmatprep.subr.mxu0 0.0
    %4072 = vmatpush1.msra.mxu0 0.0
    %4073 = vmatprep.subr.mxu0 0.0
    %4074 = vmatpush1.msra.mxu0 0.0
    %4075 = vmatprep.subr.mxu0 0.0
    %4076 = vmatpush1.msra.mxu0 0.0
    %4077 = vmatprep.subr.mxu0 0.0
    %4078 = vmatpush1.msra.mxu0 0.0
    %4079 = vmatprep.subr.mxu0 0.0
    %4080 = vmatpush1.msra.mxu0 0.0
    %4081 = vmatprep.subr.mxu0 0.0
    %4082 = vmatpush1.msra.mxu0 0.0
    %4083 = vmatprep.subr.mxu0 0.0
    %4084 = vmatpush1.msra.mxu0 0.0
    %4085 = vmatprep.subr.mxu0 0.0
    %4086 = vmatpush1.msra.mxu0 0.0
    %4087 = vmatprep.subr.mxu0 0.0
    %4088 = vmatpush1.msra.mxu0 0.0
    %4089 = vmatprep.subr.mxu0 0.0
    %4090 = vmatpush1.msra.mxu0 0.0
    %4091 = vmatprep.subr.mxu0 0.0
    %4092 = vmatpush1.msra.mxu0 0.0
    %4093 = vmatprep.subr.mxu0 0.0
    %4094 = vmatpush1.msra.mxu0 0.0
    %4095 = vmatprep.subr.mxu0 0.0
    %4096 = vmatpush1.msra.mxu0 0.0
    %4097 = vmatprep.subr.mxu0 0.0
    %4098 = vmatpush1.msra.mxu0 0.0
    %4099 = vmatprep.subr.mxu0 0.0
    %4100 = vmatpush1.msra.mxu0 0.0
    %4101 = vmatprep.subr.mxu0 0.0
    %4102 = vmatpush1.msra.mxu0 0.0
    %4103 = vmatprep.subr.mxu0 0.0
    %4104 = vmatpush1.msra.mxu0 0.0
    %4105 = vmatprep.mubr.f32.mxu0 0.0
    %v4106 = vand.u32 %v3785, 4294901760
    %v4107 = vsub.f32 %v3785, %v4106
    %v4108 = vand.u32 %v4107, 4294901760
    %4109 = vmatmul.mubr.f32.gmra.mrb[0].mxu0 %v4108
    %v4110 = vpop.f32.mrb[0].mxu0
    %v4111 = vadd.f32 %v4034, %v4110
    %v4112 = vpop.f32.mrb[0].mxu0
    %4113 = vdwg.mxu0
    %4114 = vmatprep.subr.mxu0 0.0
    %v4115 = vand.u32 %v29, 4294901760
    %v4116 = vsub.f32 %v29, %v4115
    %v4117 = vand.u32 %v4116, 4294901760
    %4118 = vmatpush1.msra.mxu0 %v4117
    %4119 = vmatprep.subr.mxu0 0.0
    %v4120 = vand.u32 %v30, 4294901760
    %v4121 = vsub.f32 %v30, %v4120
    %v4122 = vand.u32 %v4121, 4294901760
    %4123 = vmatpush1.msra.mxu0 %v4122
    %4124 = vmatprep.subr.mxu0 0.0
    %v4125 = vand.u32 %v31, 4294901760
    %v4126 = vsub.f32 %v31, %v4125
    %v4127 = vand.u32 %v4126, 4294901760
    %4128 = vmatpush1.msra.mxu0 %v4127
    %4129 = vmatprep.subr.mxu0 0.0
    %v4130 = vand.u32 %v32, 4294901760
    %v4131 = vsub.f32 %v32, %v4130
    %v4132 = vand.u32 %v4131, 4294901760
    %4133 = vmatpush1.msra.mxu0 %v4132
    %4134 = vmatprep.subr.mxu0 0.0
    %4135 = vmatpush1.msra.mxu0 0.0
    %4136 = vmatprep.subr.mxu0 0.0
    %4137 = vmatpush1.msra.mxu0 0.0
    %4138 = vmatprep.subr.mxu0 0.0
    %4139 = vmatpush1.msra.mxu0 0.0
    %4140 = vmatprep.subr.mxu0 0.0
    %4141 = vmatpush1.msra.mxu0 0.0
    %4142 = vmatprep.subr.mxu0 0.0
    %4143 = vmatpush1.msra.mxu0 0.0
    %4144 = vmatprep.subr.mxu0 0.0
    %4145 = vmatpush1.msra.mxu0 0.0
    %4146 = vmatprep.subr.mxu0 0.0
    %4147 = vmatpush1.msra.mxu0 0.0
    %4148 = vmatprep.subr.mxu0 0.0
    %4149 = vmatpush1.msra.mxu0 0.0
    %4150 = vmatprep.subr.mxu0 0.0
    %4151 = vmatpush1.msra.mxu0 0.0
    %4152 = vmatprep.subr.mxu0 0.0
    %4153 = vmatpush1.msra.mxu0 0.0
    %4154 = vmatprep.subr.mxu0 0.0
    %4155 = vmatpush1.msra.mxu0 0.0
    %4156 = vmatprep.subr.mxu0 0.0
    %4157 = vmatpush1.msra.mxu0 0.0
    %4158 = vmatprep.subr.mxu0 0.0
    %4159 = vmatpush1.msra.mxu0 0.0
    %4160 = vmatprep.subr.mxu0 0.0
    %4161 = vmatpush1.msra.mxu0 0.0
    %4162 = vmatprep.subr.mxu0 0.0
    %4163 = vmatpush1.msra.mxu0 0.0
    %4164 = vmatprep.subr.mxu0 0.0
    %4165 = vmatpush1.msra.mxu0 0.0
    %4166 = vmatprep.subr.mxu0 0.0
    %4167 = vmatpush1.msra.mxu0 0.0
    %4168 = vmatprep.subr.mxu0 0.0
    %4169 = vmatpush1.msra.mxu0 0.0
    %4170 = vmatprep.subr.mxu0 0.0
    %4171 = vmatpush1.msra.mxu0 0.0
    %4172 = vmatprep.subr.mxu0 0.0
    %4173 = vmatpush1.msra.mxu0 0.0
    %4174 = vmatprep.subr.mxu0 0.0
    %4175 = vmatpush1.msra.mxu0 0.0
    %4176 = vmatprep.subr.mxu0 0.0
    %4177 = vmatpush1.msra.mxu0 0.0
    %4178 = vmatprep.subr.mxu0 0.0
    %4179 = vmatpush1.msra.mxu0 0.0
    %4180 = vmatprep.subr.mxu0 0.0
    %4181 = vmatpush1.msra.mxu0 0.0
    %4182 = vmatprep.subr.mxu0 0.0
    %4183 = vmatpush1.msra.mxu0 0.0
    %4184 = vmatprep.subr.mxu0 0.0
    %4185 = vmatpush1.msra.mxu0 0.0
    %4186 = vmatprep.subr.mxu0 0.0
    %4187 = vmatpush1.msra.mxu0 0.0
    %4188 = vmatprep.subr.mxu0 0.0
    %4189 = vmatpush1.msra.mxu0 0.0
    %4190 = vmatprep.mubr.f32.mxu0 0.0
    %v4191 = vand.u32 %v3785, 4294901760
    %4192 = vmatmul.mubr.f32.gmra.mrb[0].mxu0 %v4191
    %v4193 = vpop.f32.mrb[0].mxu0
    %v4194 = vadd.f32 %v4111, %v4193
    %v4195 = vpop.f32.mrb[0].mxu0
    %4196 = vdwg.mxu0
    %4197 = vmatprep.subr.mxu0 0.0
    %v4198 = vand.u32 %v29, 4294901760
    %4199 = vmatpush1.msra.mxu0 %v4198
    %4200 = vmatprep.subr.mxu0 0.0
    %v4201 = vand.u32 %v30, 4294901760
    %4202 = vmatpush1.msra.mxu0 %v4201
    %4203 = vmatprep.subr.mxu0 0.0
    %v4204 = vand.u32 %v31, 4294901760
    %4205 = vmatpush1.msra.mxu0 %v4204
    %4206 = vmatprep.subr.mxu0 0.0
    %v4207 = vand.u32 %v32, 4294901760
    %4208 = vmatpush1.msra.mxu0 %v4207
    %4209 = vmatprep.subr.mxu0 0.0
    %4210 = vmatpush1.msra.mxu0 0.0
    %4211 = vmatprep.subr.mxu0 0.0
    %4212 = vmatpush1.msra.mxu0 0.0
    %4213 = vmatprep.subr.mxu0 0.0
    %4214 = vmatpush1.msra.mxu0 0.0
    %4215 = vmatprep.subr.mxu0 0.0
    %4216 = vmatpush1.msra.mxu0 0.0
    %4217 = vmatprep.subr.mxu0 0.0
    %4218 = vmatpush1.msra.mxu0 0.0
    %4219 = vmatprep.subr.mxu0 0.0
    %4220 = vmatpush1.msra.mxu0 0.0
    %4221 = vmatprep.subr.mxu0 0.0
    %4222 = vmatpush1.msra.mxu0 0.0
    %4223 = vmatprep.subr.mxu0 0.0
    %4224 = vmatpush1.msra.mxu0 0.0
    %4225 = vmatprep.subr.mxu0 0.0
    %4226 = vmatpush1.msra.mxu0 0.0
    %4227 = vmatprep.subr.mxu0 0.0
    %4228 = vmatpush1.msra.mxu0 0.0
    %4229 = vmatprep.subr.mxu0 0.0
    %4230 = vmatpush1.msra.mxu0 0.0
    %4231 = vmatprep.subr.mxu0 0.0
    %4232 = vmatpush1.msra.mxu0 0.0
    %4233 = vmatprep.subr.mxu0 0.0
    %4234 = vmatpush1.msra.mxu0 0.0
    %4235 = vmatprep.subr.mxu0 0.0
    %4236 = vmatpush1.msra.mxu0 0.0
    %4237 = vmatprep.subr.mxu0 0.0
    %4238 = vmatpush1.msra.mxu0 0.0
    %4239 = vmatprep.subr.mxu0 0.0
    %4240 = vmatpush1.msra.mxu0 0.0
    %4241 = vmatprep.subr.mxu0 0.0
    %4242 = vmatpush1.msra.mxu0 0.0
    %4243 = vmatprep.subr.mxu0 0.0
    %4244 = vmatpush1.msra.mxu0 0.0
    %4245 = vmatprep.subr.mxu0 0.0
    %4246 = vmatpush1.msra.mxu0 0.0
    %4247 = vmatprep.subr.mxu0 0.0
    %4248 = vmatpush1.msra.mxu0 0.0
    %4249 = vmatprep.subr.mxu0 0.0
    %4250 = vmatpush1.msra.mxu0 0.0
    %4251 = vmatprep.subr.mxu0 0.0
    %4252 = vmatpush1.msra.mxu0 0.0
    %4253 = vmatprep.subr.mxu0 0.0
    %4254 = vmatpush1.msra.mxu0 0.0
    %4255 = vmatprep.subr.mxu0 0.0
    %4256 = vmatpush1.msra.mxu0 0.0
    %4257 = vmatprep.subr.mxu0 0.0
    %4258 = vmatpush1.msra.mxu0 0.0
    %4259 = vmatprep.subr.mxu0 0.0
    %4260 = vmatpush1.msra.mxu0 0.0
    %4261 = vmatprep.subr.mxu0 0.0
    %4262 = vmatpush1.msra.mxu0 0.0
    %4263 = vmatprep.subr.mxu0 0.0
    %4264 = vmatpush1.msra.mxu0 0.0
    %4265 = vmatprep.mubr.f32.mxu0 0.0
    %v4266 = vand.u32 %v3785, 4294901760
    %4267 = vmatmul.mubr.f32.gmra.mrb[0].mxu0 %v4266
    %v4268 = vpop.f32.mrb[0].mxu0
    %v4269 = vadd.f32 %v4194, %v4268
    %v4270 = vpop.f32.mrb[0].mxu0
    %4271 = vdwg.mxu0
    %v4272 = vadd.f32 %v2044, %v4269
    %v4273 = vxor.u32 %v4272, 2147483648
    %v4274 = vmul.f32 %v4273, 1.442695
    %v4275 = vpow.pop %v4274
    %v4276 = vadd.f32 %v4275, 1.0
    %v4277 = vrcp.pop %v4276
    %v4278 = vmul.f32 1.0, %v4277
    %4280 = vrot.lane.b32.xlu0 %v4269, 64
    %v4281 = vpop.permute.xlu0 %4280
    %v4283 = vmul.f32 %v4278, %v4281
    %4285 = vrot.lane.b32.xlu0 %v4283, 64
    %v4286 = vpop.permute.xlu0 %4285
    %v4288 = vadd.f32 %v2044, %v4286
    %v4289 = vtanh.pop %v4288
    %v4290 = vsub.f32 1.0, %v4278
    %4292 = vrot.lane.b32.xlu0 %v4289, 96
    %v4293 = vpop.permute.xlu0 %4292
    %v4295 = vmul.f32 %v4290, %v4293
    %v4296 = vmul.f32 %v4278, %v3781
    %v4297 = vadd.f32 %v4295, %v4296
    %4298 = vset.pattern.permute.xlu0 2
    %4299 = vperm.xlu0 %4298, %v94
    %v4300 = vpop.permute.xlu0 %4299
    %v4302 = vmul.f32 %v4297, %v4300
    %4303 = vset.pattern.permute.xlu0 2
    %4304 = vperm.xlu0 %4303, %v3247
    %v4305 = vpop.permute.xlu0 %4304
    %v4307 = vmul.f32 %v4305, %v3781
    %v4308 = vadd.f32 %v4302, %v4307
    %4310 = vrot.lane.b32.xlu0 %v4308, 96
    %v4311 = vpop.permute.xlu0 %4310
    %v4312 = vsel %vm95, %v4311, 0
    %4314 = vmatprep.subr.mxu0 0.0
    %v4315 = vand.u32 %v29, 4294901760
    %4316 = vmatpush1.msra.mxu0 %v4315
    %4317 = vmatprep.subr.mxu0 0.0
    %v4318 = vand.u32 %v30, 4294901760
    %4319 = vmatpush1.msra.mxu0 %v4318
    %4320 = vmatprep.subr.mxu0 0.0
    %v4321 = vand.u32 %v31, 4294901760
    %4322 = vmatpush1.msra.mxu0 %v4321
    %4323 = vmatprep.subr.mxu0 0.0
    %v4324 = vand.u32 %v32, 4294901760
    %4325 = vmatpush1.msra.mxu0 %v4324
    %4326 = vmatprep.subr.mxu0 0.0
    %4327 = vmatpush1.msra.mxu0 0.0
    %4328 = vmatprep.subr.mxu0 0.0
    %4329 = vmatpush1.msra.mxu0 0.0
    %4330 = vmatprep.subr.mxu0 0.0
    %4331 = vmatpush1.msra.mxu0 0.0
    %4332 = vmatprep.subr.mxu0 0.0
    %4333 = vmatpush1.msra.mxu0 0.0
    %4334 = vmatprep.subr.mxu0 0.0
    %4335 = vmatpush1.msra.mxu0 0.0
    %4336 = vmatprep.subr.mxu0 0.0
    %4337 = vmatpush1.msra.mxu0 0.0
    %4338 = vmatprep.subr.mxu0 0.0
    %4339 = vmatpush1.msra.mxu0 0.0
    %4340 = vmatprep.subr.mxu0 0.0
    %4341 = vmatpush1.msra.mxu0 0.0
    %4342 = vmatprep.subr.mxu0 0.0
    %4343 = vmatpush1.msra.mxu0 0.0
    %4344 = vmatprep.subr.mxu0 0.0
    %4345 = vmatpush1.msra.mxu0 0.0
    %4346 = vmatprep.subr.mxu0 0.0
    %4347 = vmatpush1.msra.mxu0 0.0
    %4348 = vmatprep.subr.mxu0 0.0
    %4349 = vmatpush1.msra.mxu0 0.0
    %4350 = vmatprep.subr.mxu0 0.0
    %4351 = vmatpush1.msra.mxu0 0.0
    %4352 = vmatprep.subr.mxu0 0.0
    %4353 = vmatpush1.msra.mxu0 0.0
    %4354 = vmatprep.subr.mxu0 0.0
    %4355 = vmatpush1.msra.mxu0 0.0
    %4356 = vmatprep.subr.mxu0 0.0
    %4357 = vmatpush1.msra.mxu0 0.0
    %4358 = vmatprep.subr.mxu0 0.0
    %4359 = vmatpush1.msra.mxu0 0.0
    %4360 = vmatprep.subr.mxu0 0.0
    %4361 = vmatpush1.msra.mxu0 0.0
    %4362 = vmatprep.subr.mxu0 0.0
    %4363 = vmatpush1.msra.mxu0 0.0
    %4364 = vmatprep.subr.mxu0 0.0
    %4365 = vmatpush1.msra.mxu0 0.0
    %4366 = vmatprep.subr.mxu0 0.0
    %4367 = vmatpush1.msra.mxu0 0.0
    %4368 = vmatprep.subr.mxu0 0.0
    %4369 = vmatpush1.msra.mxu0 0.0
    %4370 = vmatprep.subr.mxu0 0.0
    %4371 = vmatpush1.msra.mxu0 0.0
    %4372 = vmatprep.subr.mxu0 0.0
    %4373 = vmatpush1.msra.mxu0 0.0
    %4374 = vmatprep.subr.mxu0 0.0
    %4375 = vmatpush1.msra.mxu0 0.0
    %4376 = vmatprep.subr.mxu0 0.0
    %4377 = vmatpush1.msra.mxu0 0.0
    %4378 = vmatprep.subr.mxu0 0.0
    %4379 = vmatpush1.msra.mxu0 0.0
    %4380 = vmatprep.subr.mxu0 0.0
    %4381 = vmatpush1.msra.mxu0 0.0
    %4382 = vmatprep.mubr.f32.mxu0 0.0
    %v4383 = vand.u32 %v4312, 4294901760
    %v4384 = vsub.f32 %v4312, %v4383
    %v4385 = vand.u32 %v4384, 4294901760
    %v4386 = vsub.f32 %v4384, %v4385
    %v4387 = vand.u32 %v4386, 4294901760
    %4388 = vmatmul.mubr.f32.gmra.mrb[0].mxu0 %v4387
    %v4389 = vpop.f32.mrb[0].mxu0
    %v4390 = vadd.f32 %v59, %v4389
    %v4391 = vpop.f32.mrb[0].mxu0
    %4392 = vdwg.mxu0
    %4393 = vmatprep.subr.mxu0 0.0
    %v4394 = vand.u32 %v29, 4294901760
    %v4395 = vsub.f32 %v29, %v4394
    %v4396 = vand.u32 %v4395, 4294901760
    %v4397 = vsub.f32 %v4395, %v4396
    %v4398 = vand.u32 %v4397, 4294901760
    %4399 = vmatpush1.msra.mxu0 %v4398
    %4400 = vmatprep.subr.mxu0 0.0
    %v4401 = vand.u32 %v30, 4294901760
    %v4402 = vsub.f32 %v30, %v4401
    %v4403 = vand.u32 %v4402, 4294901760
    %v4404 = vsub.f32 %v4402, %v4403
    %v4405 = vand.u32 %v4404, 4294901760
    %4406 = vmatpush1.msra.mxu0 %v4405
    %4407 = vmatprep.subr.mxu0 0.0
    %v4408 = vand.u32 %v31, 4294901760
    %v4409 = vsub.f32 %v31, %v4408
    %v4410 = vand.u32 %v4409, 4294901760
    %v4411 = vsub.f32 %v4409, %v4410
    %v4412 = vand.u32 %v4411, 4294901760
    %4413 = vmatpush1.msra.mxu0 %v4412
    %4414 = vmatprep.subr.mxu0 0.0
    %v4415 = vand.u32 %v32, 4294901760
    %v4416 = vsub.f32 %v32, %v4415
    %v4417 = vand.u32 %v4416, 4294901760
    %v4418 = vsub.f32 %v4416, %v4417
    %v4419 = vand.u32 %v4418, 4294901760
    %4420 = vmatpush1.msra.mxu0 %v4419
    %4421 = vmatprep.subr.mxu0 0.0
    %4422 = vmatpush1.msra.mxu0 0.0
    %4423 = vmatprep.subr.mxu0 0.0
    %4424 = vmatpush1.msra.mxu0 0.0
    %4425 = vmatprep.subr.mxu0 0.0
    %4426 = vmatpush1.msra.mxu0 0.0
    %4427 = vmatprep.subr.mxu0 0.0
    %4428 = vmatpush1.msra.mxu0 0.0
    %4429 = vmatprep.subr.mxu0 0.0
    %4430 = vmatpush1.msra.mxu0 0.0
    %4431 = vmatprep.subr.mxu0 0.0
    %4432 = vmatpush1.msra.mxu0 0.0
    %4433 = vmatprep.subr.mxu0 0.0
    %4434 = vmatpush1.msra.mxu0 0.0
    %4435 = vmatprep.subr.mxu0 0.0
    %4436 = vmatpush1.msra.mxu0 0.0
    %4437 = vmatprep.subr.mxu0 0.0
    %4438 = vmatpush1.msra.mxu0 0.0
    %4439 = vmatprep.subr.mxu0 0.0
    %4440 = vmatpush1.msra.mxu0 0.0
    %4441 = vmatprep.subr.mxu0 0.0
    %4442 = vmatpush1.msra.mxu0 0.0
    %4443 = vmatprep.subr.mxu0 0.0
    %4444 = vmatpush1.msra.mxu0 0.0
    %4445 = vmatprep.subr.mxu0 0.0
    %4446 = vmatpush1.msra.mxu0 0.0
    %4447 = vmatprep.subr.mxu0 0.0
    %4448 = vmatpush1.msra.mxu0 0.0
    %4449 = vmatprep.subr.mxu0 0.0
    %4450 = vmatpush1.msra.mxu0 0.0
    %4451 = vmatprep.subr.mxu0 0.0
    %4452 = vmatpush1.msra.mxu0 0.0
    %4453 = vmatprep.subr.mxu0 0.0
    %4454 = vmatpush1.msra.mxu0 0.0
    %4455 = vmatprep.subr.mxu0 0.0
    %4456 = vmatpush1.msra.mxu0 0.0
    %4457 = vmatprep.subr.mxu0 0.0
    %4458 = vmatpush1.msra.mxu0 0.0
    %4459 = vmatprep.subr.mxu0 0.0
    %4460 = vmatpush1.msra.mxu0 0.0
    %4461 = vmatprep.subr.mxu0 0.0
    %4462 = vmatpush1.msra.mxu0 0.0
    %4463 = vmatprep.subr.mxu0 0.0
    %4464 = vmatpush1.msra.mxu0 0.0
    %4465 = vmatprep.subr.mxu0 0.0
    %4466 = vmatpush1.msra.mxu0 0.0
    %4467 = vmatprep.subr.mxu0 0.0
    %4468 = vmatpush1.msra.mxu0 0.0
    %4469 = vmatprep.subr.mxu0 0.0
    %4470 = vmatpush1.msra.mxu0 0.0
    %4471 = vmatprep.subr.mxu0 0.0
    %4472 = vmatpush1.msra.mxu0 0.0
    %4473 = vmatprep.subr.mxu0 0.0
    %4474 = vmatpush1.msra.mxu0 0.0
    %4475 = vmatprep.subr.mxu0 0.0
    %4476 = vmatpush1.msra.mxu0 0.0
    %4477 = vmatprep.mubr.f32.mxu0 0.0
    %v4478 = vand.u32 %v4312, 4294901760
    %4479 = vmatmul.mubr.f32.gmra.mrb[0].mxu0 %v4478
    %v4480 = vpop.f32.mrb[0].mxu0
    %v4481 = vadd.f32 %v4390, %v4480
    %v4482 = vpop.f32.mrb[0].mxu0
    %4483 = vdwg.mxu0
    %4484 = vmatprep.subr.mxu0 0.0
    %v4485 = vand.u32 %v29, 4294901760
    %v4486 = vsub.f32 %v29, %v4485
    %4487 = vmatpush1.msra.mxu0 %v4486
    %4488 = vmatprep.subr.mxu0 0.0
    %v4489 = vand.u32 %v30, 4294901760
    %v4490 = vsub.f32 %v30, %v4489
    %4491 = vmatpush1.msra.mxu0 %v4490
    %4492 = vmatprep.subr.mxu0 0.0
    %v4493 = vand.u32 %v31, 4294901760
    %v4494 = vsub.f32 %v31, %v4493
    %4495 = vmatpush1.msra.mxu0 %v4494
    %4496 = vmatprep.subr.mxu0 0.0
    %v4497 = vand.u32 %v32, 4294901760
    %v4498 = vsub.f32 %v32, %v4497
    %4499 = vmatpush1.msra.mxu0 %v4498
    %4500 = vmatprep.subr.mxu0 0.0
    %4501 = vmatpush1.msra.mxu0 0.0
    %4502 = vmatprep.subr.mxu0 0.0
    %4503 = vmatpush1.msra.mxu0 0.0
    %4504 = vmatprep.subr.mxu0 0.0
    %4505 = vmatpush1.msra.mxu0 0.0
    %4506 = vmatprep.subr.mxu0 0.0
    %4507 = vmatpush1.msra.mxu0 0.0
    %4508 = vmatprep.subr.mxu0 0.0
    %4509 = vmatpush1.msra.mxu0 0.0
    %4510 = vmatprep.subr.mxu0 0.0
    %4511 = vmatpush1.msra.mxu0 0.0
    %4512 = vmatprep.subr.mxu0 0.0
    %4513 = vmatpush1.msra.mxu0 0.0
    %4514 = vmatprep.subr.mxu0 0.0
    %4515 = vmatpush1.msra.mxu0 0.0
    %4516 = vmatprep.subr.mxu0 0.0
    %4517 = vmatpush1.msra.mxu0 0.0
    %4518 = vmatprep.subr.mxu0 0.0
    %4519 = vmatpush1.msra.mxu0 0.0
    %4520 = vmatprep.subr.mxu0 0.0
    %4521 = vmatpush1.msra.mxu0 0.0
    %4522 = vmatprep.subr.mxu0 0.0
    %4523 = vmatpush1.msra.mxu0 0.0
    %4524 = vmatprep.subr.mxu0 0.0
    %4525 = vmatpush1.msra.mxu0 0.0
    %4526 = vmatprep.subr.mxu0 0.0
    %4527 = vmatpush1.msra.mxu0 0.0
    %4528 = vmatprep.subr.mxu0 0.0
    %4529 = vmatpush1.msra.mxu0 0.0
    %4530 = vmatprep.subr.mxu0 0.0
    %4531 = vmatpush1.msra.mxu0 0.0
    %4532 = vmatprep.subr.mxu0 0.0
    %4533 = vmatpush1.msra.mxu0 0.0
    %4534 = vmatprep.subr.mxu0 0.0
    %4535 = vmatpush1.msra.mxu0 0.0
    %4536 = vmatprep.subr.mxu0 0.0
    %4537 = vmatpush1.msra.mxu0 0.0
    %4538 = vmatprep.subr.mxu0 0.0
    %4539 = vmatpush1.msra.mxu0 0.0
    %4540 = vmatprep.subr.mxu0 0.0
    %4541 = vmatpush1.msra.mxu0 0.0
    %4542 = vmatprep.subr.mxu0 0.0
    %4543 = vmatpush1.msra.mxu0 0.0
    %4544 = vmatprep.subr.mxu0 0.0
    %4545 = vmatpush1.msra.mxu0 0.0
    %4546 = vmatprep.subr.mxu0 0.0
    %4547 = vmatpush1.msra.mxu0 0.0
    %4548 = vmatprep.subr.mxu0 0.0
    %4549 = vmatpush1.msra.mxu0 0.0
    %4550 = vmatprep.subr.mxu0 0.0
    %4551 = vmatpush1.msra.mxu0 0.0
    %4552 = vmatprep.subr.mxu0 0.0
    %4553 = vmatpush1.msra.mxu0 0.0
    %4554 = vmatprep.subr.mxu0 0.0
    %4555 = vmatpush1.msra.mxu0 0.0
    %4556 = vmatprep.mubr.f32.mxu0 0.0
    %v4557 = vand.u32 %v4312, 4294901760
    %v4558 = vsub.f32 %v4312, %v4557
    %4559 = vmatmul.mubr.f32.gmra.mrb[0].mxu0 %v4558
    %v4560 = vpop.f32.mrb[0].mxu0
    %v4561 = vadd.f32 %v4481, %v4560
    %v4562 = vpop.f32.mrb[0].mxu0
    %4563 = vdwg.mxu0
    %4564 = vmatprep.subr.mxu0 0.0
    %v4565 = vand.u32 %v29, 4294901760
    %4566 = vmatpush1.msra.mxu0 %v4565
    %4567 = vmatprep.subr.mxu0 0.0
    %v4568 = vand.u32 %v30, 4294901760
    %4569 = vmatpush1.msra.mxu0 %v4568
    %4570 = vmatprep.subr.mxu0 0.0
    %v4571 = vand.u32 %v31, 4294901760
    %4572 = vmatpush1.msra.mxu0 %v4571
    %4573 = vmatprep.subr.mxu0 0.0
    %v4574 = vand.u32 %v32, 4294901760
    %4575 = vmatpush1.msra.mxu0 %v4574
    %4576 = vmatprep.subr.mxu0 0.0
    %4577 = vmatpush1.msra.mxu0 0.0
    %4578 = vmatprep.subr.mxu0 0.0
    %4579 = vmatpush1.msra.mxu0 0.0
    %4580 = vmatprep.subr.mxu0 0.0
    %4581 = vmatpush1.msra.mxu0 0.0
    %4582 = vmatprep.subr.mxu0 0.0
    %4583 = vmatpush1.msra.mxu0 0.0
    %4584 = vmatprep.subr.mxu0 0.0
    %4585 = vmatpush1.msra.mxu0 0.0
    %4586 = vmatprep.subr.mxu0 0.0
    %4587 = vmatpush1.msra.mxu0 0.0
    %4588 = vmatprep.subr.mxu0 0.0
    %4589 = vmatpush1.msra.mxu0 0.0
    %4590 = vmatprep.subr.mxu0 0.0
    %4591 = vmatpush1.msra.mxu0 0.0
    %4592 = vmatprep.subr.mxu0 0.0
    %4593 = vmatpush1.msra.mxu0 0.0
    %4594 = vmatprep.subr.mxu0 0.0
    %4595 = vmatpush1.msra.mxu0 0.0
    %4596 = vmatprep.subr.mxu0 0.0
    %4597 = vmatpush1.msra.mxu0 0.0
    %4598 = vmatprep.subr.mxu0 0.0
    %4599 = vmatpush1.msra.mxu0 0.0
    %4600 = vmatprep.subr.mxu0 0.0
    %4601 = vmatpush1.msra.mxu0 0.0
    %4602 = vmatprep.subr.mxu0 0.0
    %4603 = vmatpush1.msra.mxu0 0.0
    %4604 = vmatprep.subr.mxu0 0.0
    %4605 = vmatpush1.msra.mxu0 0.0
    %4606 = vmatprep.subr.mxu0 0.0
    %4607 = vmatpush1.msra.mxu0 0.0
    %4608 = vmatprep.subr.mxu0 0.0
    %4609 = vmatpush1.msra.mxu0 0.0
    %4610 = vmatprep.subr.mxu0 0.0
    %4611 = vmatpush1.msra.mxu0 0.0
    %4612 = vmatprep.subr.mxu0 0.0
    %4613 = vmatpush1.msra.mxu0 0.0
    %4614 = vmatprep.subr.mxu0 0.0
    %4615 = vmatpush1.msra.mxu0 0.0
    %4616 = vmatprep.subr.mxu0 0.0
    %4617 = vmatpush1.msra.mxu0 0.0
    %4618 = vmatprep.subr.mxu0 0.0
    %4619 = vmatpush1.msra.mxu0 0.0
    %4620 = vmatprep.subr.mxu0 0.0
    %4621 = vmatpush1.msra.mxu0 0.0
    %4622 = vmatprep.subr.mxu0 0.0
    %4623 = vmatpush1.msra.mxu0 0.0
    %4624 = vmatprep.subr.mxu0 0.0
    %4625 = vmatpush1.msra.mxu0 0.0
    %4626 = vmatprep.subr.mxu0 0.0
    %4627 = vmatpush1.msra.mxu0 0.0
    %4628 = vmatprep.subr.mxu0 0.0
    %4629 = vmatpush1.msra.mxu0 0.0
    %4630 = vmatprep.subr.mxu0 0.0
    %4631 = vmatpush1.msra.mxu0 0.0
    %4632 = vmatprep.mubr.f32.mxu0 0.0
    %v4633 = vand.u32 %v4312, 4294901760
    %v4634 = vsub.f32 %v4312, %v4633
    %v4635 = vand.u32 %v4634, 4294901760
    %4636 = vmatmul.mubr.f32.gmra.mrb[0].mxu0 %v4635
    %v4637 = vpop.f32.mrb[0].mxu0
    %v4638 = vadd.f32 %v4561, %v4637
    %v4639 = vpop.f32.mrb[0].mxu0
    %4640 = vdwg.mxu0
    %4641 = vmatprep.subr.mxu0 0.0
    %v4642 = vand.u32 %v29, 4294901760
    %v4643 = vsub.f32 %v29, %v4642
    %v4644 = vand.u32 %v4643, 4294901760
    %4645 = vmatpush1.msra.mxu0 %v4644
    %4646 = vmatprep.subr.mxu0 0.0
    %v4647 = vand.u32 %v30, 4294901760
    %v4648 = vsub.f32 %v30, %v4647
    %v4649 = vand.u32 %v4648, 4294901760
    %4650 = vmatpush1.msra.mxu0 %v4649
    %4651 = vmatprep.subr.mxu0 0.0
    %v4652 = vand.u32 %v31, 4294901760
    %v4653 = vsub.f32 %v31, %v4652
    %v4654 = vand.u32 %v4653, 4294901760
    %4655 = vmatpush1.msra.mxu0 %v4654
    %4656 = vmatprep.subr.mxu0 0.0
    %v4657 = vand.u32 %v32, 4294901760
    %v4658 = vsub.f32 %v32, %v4657
    %v4659 = vand.u32 %v4658, 4294901760
    %4660 = vmatpush1.msra.mxu0 %v4659
    %4661 = vmatprep.subr.mxu0 0.0
    %4662 = vmatpush1.msra.mxu0 0.0
    %4663 = vmatprep.subr.mxu0 0.0
    %4664 = vmatpush1.msra.mxu0 0.0
    %4665 = vmatprep.subr.mxu0 0.0
    %4666 = vmatpush1.msra.mxu0 0.0
    %4667 = vmatprep.subr.mxu0 0.0
    %4668 = vmatpush1.msra.mxu0 0.0
    %4669 = vmatprep.subr.mxu0 0.0
    %4670 = vmatpush1.msra.mxu0 0.0
    %4671 = vmatprep.subr.mxu0 0.0
    %4672 = vmatpush1.msra.mxu0 0.0
    %4673 = vmatprep.subr.mxu0 0.0
    %4674 = vmatpush1.msra.mxu0 0.0
    %4675 = vmatprep.subr.mxu0 0.0
    %4676 = vmatpush1.msra.mxu0 0.0
    %4677 = vmatprep.subr.mxu0 0.0
    %4678 = vmatpush1.msra.mxu0 0.0
    %4679 = vmatprep.subr.mxu0 0.0
    %4680 = vmatpush1.msra.mxu0 0.0
    %4681 = vmatprep.subr.mxu0 0.0
    %4682 = vmatpush1.msra.mxu0 0.0
    %4683 = vmatprep.subr.mxu0 0.0
    %4684 = vmatpush1.msra.mxu0 0.0
    %4685 = vmatprep.subr.mxu0 0.0
    %4686 = vmatpush1.msra.mxu0 0.0
    %4687 = vmatprep.subr.mxu0 0.0
    %4688 = vmatpush1.msra.mxu0 0.0
    %4689 = vmatprep.subr.mxu0 0.0
    %4690 = vmatpush1.msra.mxu0 0.0
    %4691 = vmatprep.subr.mxu0 0.0
    %4692 = vmatpush1.msra.mxu0 0.0
    %4693 = vmatprep.subr.mxu0 0.0
    %4694 = vmatpush1.msra.mxu0 0.0
    %4695 = vmatprep.subr.mxu0 0.0
    %4696 = vmatpush1.msra.mxu0 0.0
    %4697 = vmatprep.subr.mxu0 0.0
    %4698 = vmatpush1.msra.mxu0 0.0
    %4699 = vmatprep.subr.mxu0 0.0
    %4700 = vmatpush1.msra.mxu0 0.0
    %4701 = vmatprep.subr.mxu0 0.0
    %4702 = vmatpush1.msra.mxu0 0.0
    %4703 = vmatprep.subr.mxu0 0.0
    %4704 = vmatpush1.msra.mxu0 0.0
    %4705 = vmatprep.subr.mxu0 0.0
    %4706 = vmatpush1.msra.mxu0 0.0
    %4707 = vmatprep.subr.mxu0 0.0
    %4708 = vmatpush1.msra.mxu0 0.0
    %4709 = vmatprep.subr.mxu0 0.0
    %4710 = vmatpush1.msra.mxu0 0.0
    %4711 = vmatprep.subr.mxu0 0.0
    %4712 = vmatpush1.msra.mxu0 0.0
    %4713 = vmatprep.subr.mxu0 0.0
    %4714 = vmatpush1.msra.mxu0 0.0
    %4715 = vmatprep.subr.mxu0 0.0
    %4716 = vmatpush1.msra.mxu0 0.0
    %4717 = vmatprep.mubr.f32.mxu0 0.0
    %v4718 = vand.u32 %v4312, 4294901760
    %4719 = vmatmul.mubr.f32.gmra.mrb[0].mxu0 %v4718
    %v4720 = vpop.f32.mrb[0].mxu0
    %v4721 = vadd.f32 %v4638, %v4720
    %v4722 = vpop.f32.mrb[0].mxu0
    %4723 = vdwg.mxu0
    %4724 = vmatprep.subr.mxu0 0.0
    %v4725 = vand.u32 %v29, 4294901760
    %4726 = vmatpush1.msra.mxu0 %v4725
    %4727 = vmatprep.subr.mxu0 0.0
    %v4728 = vand.u32 %v30, 4294901760
    %4729 = vmatpush1.msra.mxu0 %v4728
    %4730 = vmatprep.subr.mxu0 0.0
    %v4731 = vand.u32 %v31, 4294901760
    %4732 = vmatpush1.msra.mxu0 %v4731
    %4733 = vmatprep.subr.mxu0 0.0
    %v4734 = vand.u32 %v32, 4294901760
    %4735 = vmatpush1.msra.mxu0 %v4734
    %4736 = vmatprep.subr.mxu0 0.0
    %4737 = vmatpush1.msra.mxu0 0.0
    %4738 = vmatprep.subr.mxu0 0.0
    %4739 = vmatpush1.msra.mxu0 0.0
    %4740 = vmatprep.subr.mxu0 0.0
    %4741 = vmatpush1.msra.mxu0 0.0
    %4742 = vmatprep.subr.mxu0 0.0
    %4743 = vmatpush1.msra.mxu0 0.0
    %4744 = vmatprep.subr.mxu0 0.0
    %4745 = vmatpush1.msra.mxu0 0.0
    %4746 = vmatprep.subr.mxu0 0.0
    %4747 = vmatpush1.msra.mxu0 0.0
    %4748 = vmatprep.subr.mxu0 0.0
    %4749 = vmatpush1.msra.mxu0 0.0
    %4750 = vmatprep.subr.mxu0 0.0
    %4751 = vmatpush1.msra.mxu0 0.0
    %4752 = vmatprep.subr.mxu0 0.0
    %4753 = vmatpush1.msra.mxu0 0.0
    %4754 = vmatprep.subr.mxu0 0.0
    %4755 = vmatpush1.msra.mxu0 0.0
    %4756 = vmatprep.subr.mxu0 0.0
    %4757 = vmatpush1.msra.mxu0 0.0
    %4758 = vmatprep.subr.mxu0 0.0
    %4759 = vmatpush1.msra.mxu0 0.0
    %4760 = vmatprep.subr.mxu0 0.0
    %4761 = vmatpush1.msra.mxu0 0.0
    %4762 = vmatprep.subr.mxu0 0.0
    %4763 = vmatpush1.msra.mxu0 0.0
    %4764 = vmatprep.subr.mxu0 0.0
    %4765 = vmatpush1.msra.mxu0 0.0
    %4766 = vmatprep.subr.mxu0 0.0
    %4767 = vmatpush1.msra.mxu0 0.0
    %4768 = vmatprep.subr.mxu0 0.0
    %4769 = vmatpush1.msra.mxu0 0.0
    %4770 = vmatprep.subr.mxu0 0.0
    %4771 = vmatpush1.msra.mxu0 0.0
    %4772 = vmatprep.subr.mxu0 0.0
    %4773 = vmatpush1.msra.mxu0 0.0
    %4774 = vmatprep.subr.mxu0 0.0
    %4775 = vmatpush1.msra.mxu0 0.0
    %4776 = vmatprep.subr.mxu0 0.0
    %4777 = vmatpush1.msra.mxu0 0.0
    %4778 = vmatprep.subr.mxu0 0.0
    %4779 = vmatpush1.msra.mxu0 0.0
    %4780 = vmatprep.subr.mxu0 0.0
    %4781 = vmatpush1.msra.mxu0 0.0
    %4782 = vmatprep.subr.mxu0 0.0
    %4783 = vmatpush1.msra.mxu0 0.0
    %4784 = vmatprep.subr.mxu0 0.0
    %4785 = vmatpush1.msra.mxu0 0.0
    %4786 = vmatprep.subr.mxu0 0.0
    %4787 = vmatpush1.msra.mxu0 0.0
    %4788 = vmatprep.subr.mxu0 0.0
    %4789 = vmatpush1.msra.mxu0 0.0
    %4790 = vmatprep.subr.mxu0 0.0
    %4791 = vmatpush1.msra.mxu0 0.0
    %4792 = vmatprep.mubr.f32.mxu0 0.0
    %v4793 = vand.u32 %v4312, 4294901760
    %4794 = vmatmul.mubr.f32.gmra.mrb[0].mxu0 %v4793
    %v4795 = vpop.f32.mrb[0].mxu0
    %v4796 = vadd.f32 %v4721, %v4795
    %v4797 = vpop.f32.mrb[0].mxu0
    %4798 = vdwg.mxu0
    %v4799 = vadd.f32 %v2050, %v4796
    %v4800 = vxor.u32 %v4799, 2147483648
    %v4801 = vmul.f32 %v4800, 1.442695
    %v4802 = vpow.pop %v4801
    %v4803 = vadd.f32 %v4802, 1.0
    %v4804 = vrcp.pop %v4803
    %v4805 = vmul.f32 1.0, %v4804
    %4807 = vrot.lane.b32.xlu0 %v4796, 64
    %v4808 = vpop.permute.xlu0 %4807
    %v4810 = vmul.f32 %v4805, %v4808
    %4812 = vrot.lane.b32.xlu0 %v4810, 64
    %v4813 = vpop.permute.xlu0 %4812
    %v4815 = vadd.f32 %v2050, %v4813
    %v4816 = vtanh.pop %v4815
    %v4817 = vsub.f32 1.0, %v4805
    %4819 = vrot.lane.b32.xlu0 %v4816, 96
    %v4820 = vpop.permute.xlu0 %4819
    %v4822 = vmul.f32 %v4817, %v4820
    %v4823 = vmul.f32 %v4805, %v4308
    %v4824 = vadd.f32 %v4822, %v4823
    %4825 = vset.pattern.permute.xlu0 3
    %4826 = vperm.xlu0 %4825, %v94
    %v4827 = vpop.permute.xlu0 %4826
    %v4829 = vmul.f32 %v4824, %v4827
    %4830 = vset.pattern.permute.xlu0 3
    %4831 = vperm.xlu0 %4830, %v3247
    %v4832 = vpop.permute.xlu0 %4831
    %v4834 = vmul.f32 %v4832, %v4308
    %v4835 = vadd.f32 %v4829, %v4834
    %4837 = vrot.lane.b32.xlu0 %v4835, 96
    %v4838 = vpop.permute.xlu0 %4837
    %v4839 = vsel %vm95, %v4838, 0
    %4841 = vmatprep.subr.mxu0 0.0
    %v4842 = vand.u32 %v29, 4294901760
    %4843 = vmatpush1.msra.mxu0 %v4842
    %4844 = vmatprep.subr.mxu0 0.0
    %v4845 = vand.u32 %v30, 4294901760
    %4846 = vmatpush1.msra.mxu0 %v4845
    %4847 = vmatprep.subr.mxu0 0.0
    %v4848 = vand.u32 %v31, 4294901760
    %4849 = vmatpush1.msra.mxu0 %v4848
    %4850 = vmatprep.subr.mxu0 0.0
    %v4851 = vand.u32 %v32, 4294901760
    %4852 = vmatpush1.msra.mxu0 %v4851
    %4853 = vmatprep.subr.mxu0 0.0
    %4854 = vmatpush1.msra.mxu0 0.0
    %4855 = vmatprep.subr.mxu0 0.0
    %4856 = vmatpush1.msra.mxu0 0.0
    %4857 = vmatprep.subr.mxu0 0.0
    %4858 = vmatpush1.msra.mxu0 0.0
    %4859 = vmatprep.subr.mxu0 0.0
    %4860 = vmatpush1.msra.mxu0 0.0
    %4861 = vmatprep.subr.mxu0 0.0
    %4862 = vmatpush1.msra.mxu0 0.0
    %4863 = vmatprep.subr.mxu0 0.0
    %4864 = vmatpush1.msra.mxu0 0.0
    %4865 = vmatprep.subr.mxu0 0.0
    %4866 = vmatpush1.msra.mxu0 0.0
    %4867 = vmatprep.subr.mxu0 0.0
    %4868 = vmatpush1.msra.mxu0 0.0
    %4869 = vmatprep.subr.mxu0 0.0
    %4870 = vmatpush1.msra.mxu0 0.0
    %4871 = vmatprep.subr.mxu0 0.0
    %4872 = vmatpush1.msra.mxu0 0.0
    %4873 = vmatprep.subr.mxu0 0.0
    %4874 = vmatpush1.msra.mxu0 0.0
    %4875 = vmatprep.subr.mxu0 0.0
    %4876 = vmatpush1.msra.mxu0 0.0
    %4877 = vmatprep.subr.mxu0 0.0
    %4878 = vmatpush1.msra.mxu0 0.0
    %4879 = vmatprep.subr.mxu0 0.0
    %4880 = vmatpush1.msra.mxu0 0.0
    %4881 = vmatprep.subr.mxu0 0.0
    %4882 = vmatpush1.msra.mxu0 0.0
    %4883 = vmatprep.subr.mxu0 0.0
    %4884 = vmatpush1.msra.mxu0 0.0
    %4885 = vmatprep.subr.mxu0 0.0
    %4886 = vmatpush1.msra.mxu0 0.0
    %4887 = vmatprep.subr.mxu0 0.0
    %4888 = vmatpush1.msra.mxu0 0.0
    %4889 = vmatprep.subr.mxu0 0.0
    %4890 = vmatpush1.msra.mxu0 0.0
    %4891 = vmatprep.subr.mxu0 0.0
    %4892 = vmatpush1.msra.mxu0 0.0
    %4893 = vmatprep.subr.mxu0 0.0
    %4894 = vmatpush1.msra.mxu0 0.0
    %4895 = vmatprep.subr.mxu0 0.0
    %4896 = vmatpush1.msra.mxu0 0.0
    %4897 = vmatprep.subr.mxu0 0.0
    %4898 = vmatpush1.msra.mxu0 0.0
    %4899 = vmatprep.subr.mxu0 0.0
    %4900 = vmatpush1.msra.mxu0 0.0
    %4901 = vmatprep.subr.mxu0 0.0
    %4902 = vmatpush1.msra.mxu0 0.0
    %4903 = vmatprep.subr.mxu0 0.0
    %4904 = vmatpush1.msra.mxu0 0.0
    %4905 = vmatprep.subr.mxu0 0.0
    %4906 = vmatpush1.msra.mxu0 0.0
    %4907 = vmatprep.subr.mxu0 0.0
    %4908 = vmatpush1.msra.mxu0 0.0
    %4909 = vmatprep.mubr.f32.mxu0 0.0
    %v4910 = vand.u32 %v4839, 4294901760
    %v4911 = vsub.f32 %v4839, %v4910
    %v4912 = vand.u32 %v4911, 4294901760
    %v4913 = vsub.f32 %v4911, %v4912
    %v4914 = vand.u32 %v4913, 4294901760
    %4915 = vmatmul.mubr.f32.gmra.mrb[0].mxu0 %v4914
    %v4916 = vpop.f32.mrb[0].mxu0
    %v4917 = vadd.f32 %v59, %v4916
    %v4918 = vpop.f32.mrb[0].mxu0
    %4919 = vdwg.mxu0
    %4920 = vmatprep.subr.mxu0 0.0
    %v4921 = vand.u32 %v29, 4294901760
    %v4922 = vsub.f32 %v29, %v4921
    %v4923 = vand.u32 %v4922, 4294901760
    %v4924 = vsub.f32 %v4922, %v4923
    %v4925 = vand.u32 %v4924, 4294901760
    %4926 = vmatpush1.msra.mxu0 %v4925
    %4927 = vmatprep.subr.mxu0 0.0
    %v4928 = vand.u32 %v30, 4294901760
    %v4929 = vsub.f32 %v30, %v4928
    %v4930 = vand.u32 %v4929, 4294901760
    %v4931 = vsub.f32 %v4929, %v4930
    %v4932 = vand.u32 %v4931, 4294901760
    %4933 = vmatpush1.msra.mxu0 %v4932
    %4934 = vmatprep.subr.mxu0 0.0
    %v4935 = vand.u32 %v31, 4294901760
    %v4936 = vsub.f32 %v31, %v4935
    %v4937 = vand.u32 %v4936, 4294901760
    %v4938 = vsub.f32 %v4936, %v4937
    %v4939 = vand.u32 %v4938, 4294901760
    %4940 = vmatpush1.msra.mxu0 %v4939
    %4941 = vmatprep.subr.mxu0 0.0
    %v4942 = vand.u32 %v32, 4294901760
    %v4943 = vsub.f32 %v32, %v4942
    %v4944 = vand.u32 %v4943, 4294901760
    %v4945 = vsub.f32 %v4943, %v4944
    %v4946 = vand.u32 %v4945, 4294901760
    %4947 = vmatpush1.msra.mxu0 %v4946
    %4948 = vmatprep.subr.mxu0 0.0
    %4949 = vmatpush1.msra.mxu0 0.0
    %4950 = vmatprep.subr.mxu0 0.0
    %4951 = vmatpush1.msra.mxu0 0.0
    %4952 = vmatprep.subr.mxu0 0.0
    %4953 = vmatpush1.msra.mxu0 0.0
    %4954 = vmatprep.subr.mxu0 0.0
    %4955 = vmatpush1.msra.mxu0 0.0
    %4956 = vmatprep.subr.mxu0 0.0
    %4957 = vmatpush1.msra.mxu0 0.0
    %4958 = vmatprep.subr.mxu0 0.0
    %4959 = vmatpush1.msra.mxu0 0.0
    %4960 = vmatprep.subr.mxu0 0.0
    %4961 = vmatpush1.msra.mxu0 0.0
    %4962 = vmatprep.subr.mxu0 0.0
    %4963 = vmatpush1.msra.mxu0 0.0
    %4964 = vmatprep.subr.mxu0 0.0
    %4965 = vmatpush1.msra.mxu0 0.0
    %4966 = vmatprep.subr.mxu0 0.0
    %4967 = vmatpush1.msra.mxu0 0.0
    %4968 = vmatprep.subr.mxu0 0.0
    %4969 = vmatpush1.msra.mxu0 0.0
    %4970 = vmatprep.subr.mxu0 0.0
    %4971 = vmatpush1.msra.mxu0 0.0
    %4972 = vmatprep.subr.mxu0 0.0
    %4973 = vmatpush1.msra.mxu0 0.0
    %4974 = vmatprep.subr.mxu0 0.0
    %4975 = vmatpush1.msra.mxu0 0.0
    %4976 = vmatprep.subr.mxu0 0.0
    %4977 = vmatpush1.msra.mxu0 0.0
    %4978 = vmatprep.subr.mxu0 0.0
    %4979 = vmatpush1.msra.mxu0 0.0
    %4980 = vmatprep.subr.mxu0 0.0
    %4981 = vmatpush1.msra.mxu0 0.0
    %4982 = vmatprep.subr.mxu0 0.0
    %4983 = vmatpush1.msra.mxu0 0.0
    %4984 = vmatprep.subr.mxu0 0.0
    %4985 = vmatpush1.msra.mxu0 0.0
    %4986 = vmatprep.subr.mxu0 0.0
    %4987 = vmatpush1.msra.mxu0 0.0
    %4988 = vmatprep.subr.mxu0 0.0
    %4989 = vmatpush1.msra.mxu0 0.0
    %4990 = vmatprep.subr.mxu0 0.0
    %4991 = vmatpush1.msra.mxu0 0.0
    %4992 = vmatprep.subr.mxu0 0.0
    %4993 = vmatpush1.msra.mxu0 0.0
    %4994 = vmatprep.subr.mxu0 0.0
    %4995 = vmatpush1.msra.mxu0 0.0
    %4996 = vmatprep.subr.mxu0 0.0
    %4997 = vmatpush1.msra.mxu0 0.0
    %4998 = vmatprep.subr.mxu0 0.0
    %4999 = vmatpush1.msra.mxu0 0.0
    %5000 = vmatprep.subr.mxu0 0.0
    %5001 = vmatpush1.msra.mxu0 0.0
    %5002 = vmatprep.subr.mxu0 0.0
    %5003 = vmatpush1.msra.mxu0 0.0
    %5004 = vmatprep.mubr.f32.mxu0 0.0
    %v5005 = vand.u32 %v4839, 4294901760
    %5006 = vmatmul.mubr.f32.gmra.mrb[0].mxu0 %v5005
    %v5007 = vpop.f32.mrb[0].mxu0
    %v5008 = vadd.f32 %v4917, %v5007
    %v5009 = vpop.f32.mrb[0].mxu0
    %5010 = vdwg.mxu0
    %5011 = vmatprep.subr.mxu0 0.0
    %v5012 = vand.u32 %v29, 4294901760
    %v5013 = vsub.f32 %v29, %v5012
    %5014 = vmatpush1.msra.mxu0 %v5013
    %5015 = vmatprep.subr.mxu0 0.0
    %v5016 = vand.u32 %v30, 4294901760
    %v5017 = vsub.f32 %v30, %v5016
    %5018 = vmatpush1.msra.mxu0 %v5017
    %5019 = vmatprep.subr.mxu0 0.0
    %v5020 = vand.u32 %v31, 4294901760
    %v5021 = vsub.f32 %v31, %v5020
    %5022 = vmatpush1.msra.mxu0 %v5021
    %5023 = vmatprep.subr.mxu0 0.0
    %v5024 = vand.u32 %v32, 4294901760
    %v5025 = vsub.f32 %v32, %v5024
    %5026 = vmatpush1.msra.mxu0 %v5025
    %5027 = vmatprep.subr.mxu0 0.0
    %5028 = vmatpush1.msra.mxu0 0.0
    %5029 = vmatprep.subr.mxu0 0.0
    %5030 = vmatpush1.msra.mxu0 0.0
    %5031 = vmatprep.subr.mxu0 0.0
    %5032 = vmatpush1.msra.mxu0 0.0
    %5033 = vmatprep.subr.mxu0 0.0
    %5034 = vmatpush1.msra.mxu0 0.0
    %5035 = vmatprep.subr.mxu0 0.0
    %5036 = vmatpush1.msra.mxu0 0.0
    %5037 = vmatprep.subr.mxu0 0.0
    %5038 = vmatpush1.msra.mxu0 0.0
    %5039 = vmatprep.subr.mxu0 0.0
    %5040 = vmatpush1.msra.mxu0 0.0
    %5041 = vmatprep.subr.mxu0 0.0
    %5042 = vmatpush1.msra.mxu0 0.0
    %5043 = vmatprep.subr.mxu0 0.0
    %5044 = vmatpush1.msra.mxu0 0.0
    %5045 = vmatprep.subr.mxu0 0.0
    %5046 = vmatpush1.msra.mxu0 0.0
    %5047 = vmatprep.subr.mxu0 0.0
    %5048 = vmatpush1.msra.mxu0 0.0
    %5049 = vmatprep.subr.mxu0 0.0
    %5050 = vmatpush1.msra.mxu0 0.0
    %5051 = vmatprep.subr.mxu0 0.0
    %5052 = vmatpush1.msra.mxu0 0.0
    %5053 = vmatprep.subr.mxu0 0.0
    %5054 = vmatpush1.msra.mxu0 0.0
    %5055 = vmatprep.subr.mxu0 0.0
    %5056 = vmatpush1.msra.mxu0 0.0
    %5057 = vmatprep.subr.mxu0 0.0
    %5058 = vmatpush1.msra.mxu0 0.0
    %5059 = vmatprep.subr.mxu0 0.0
    %5060 = vmatpush1.msra.mxu0 0.0
    %5061 = vmatprep.subr.mxu0 0.0
    %5062 = vmatpush1.msra.mxu0 0.0
    %5063 = vmatprep.subr.mxu0 0.0
    %5064 = vmatpush1.msra.mxu0 0.0
    %5065 = vmatprep.subr.mxu0 0.0
    %5066 = vmatpush1.msra.mxu0 0.0
    %5067 = vmatprep.subr.mxu0 0.0
    %5068 = vmatpush1.msra.mxu0 0.0
    %5069 = vmatprep.subr.mxu0 0.0
    %5070 = vmatpush1.msra.mxu0 0.0
    %5071 = vmatprep.subr.mxu0 0.0
    %5072 = vmatpush1.msra.mxu0 0.0
    %5073 = vmatprep.subr.mxu0 0.0
    %5074 = vmatpush1.msra.mxu0 0.0
    %5075 = vmatprep.subr.mxu0 0.0
    %5076 = vmatpush1.msra.mxu0 0.0
    %5077 = vmatprep.subr.mxu0 0.0
    %5078 = vmatpush1.msra.mxu0 0.0
    %5079 = vmatprep.subr.mxu0 0.0
    %5080 = vmatpush1.msra.mxu0 0.0
    %5081 = vmatprep.subr.mxu0 0.0
    %5082 = vmatpush1.msra.mxu0 0.0
    %5083 = vmatprep.mubr.f32.mxu0 0.0
    %v5084 = vand.u32 %v4839, 4294901760
    %v5085 = vsub.f32 %v4839, %v5084
    %5086 = vmatmul.mubr.f32.gmra.mrb[0].mxu0 %v5085
    %v5087 = vpop.f32.mrb[0].mxu0
    %v5088 = vadd.f32 %v5008, %v5087
    %v5089 = vpop.f32.mrb[0].mxu0
    %5090 = vdwg.mxu0
    %5091 = vmatprep.subr.mxu0 0.0
    %v5092 = vand.u32 %v29, 4294901760
    %5093 = vmatpush1.msra.mxu0 %v5092
    %5094 = vmatprep.subr.mxu0 0.0
    %v5095 = vand.u32 %v30, 4294901760
    %5096 = vmatpush1.msra.mxu0 %v5095
    %5097 = vmatprep.subr.mxu0 0.0
    %v5098 = vand.u32 %v31, 4294901760
    %5099 = vmatpush1.msra.mxu0 %v5098
    %5100 = vmatprep.subr.mxu0 0.0
    %v5101 = vand.u32 %v32, 4294901760
    %5102 = vmatpush1.msra.mxu0 %v5101
    %5103 = vmatprep.subr.mxu0 0.0
    %5104 = vmatpush1.msra.mxu0 0.0
    %5105 = vmatprep.subr.mxu0 0.0
    %5106 = vmatpush1.msra.mxu0 0.0
    %5107 = vmatprep.subr.mxu0 0.0
    %5108 = vmatpush1.msra.mxu0 0.0
    %5109 = vmatprep.subr.mxu0 0.0
    %5110 = vmatpush1.msra.mxu0 0.0
    %5111 = vmatprep.subr.mxu0 0.0
    %5112 = vmatpush1.msra.mxu0 0.0
    %5113 = vmatprep.subr.mxu0 0.0
    %5114 = vmatpush1.msra.mxu0 0.0
    %5115 = vmatprep.subr.mxu0 0.0
    %5116 = vmatpush1.msra.mxu0 0.0
    %5117 = vmatprep.subr.mxu0 0.0
    %5118 = vmatpush1.msra.mxu0 0.0
    %5119 = vmatprep.subr.mxu0 0.0
    %5120 = vmatpush1.msra.mxu0 0.0
    %5121 = vmatprep.subr.mxu0 0.0
    %5122 = vmatpush1.msra.mxu0 0.0
    %5123 = vmatprep.subr.mxu0 0.0
    %5124 = vmatpush1.msra.mxu0 0.0
    %5125 = vmatprep.subr.mxu0 0.0
    %5126 = vmatpush1.msra.mxu0 0.0
    %5127 = vmatprep.subr.mxu0 0.0
    %5128 = vmatpush1.msra.mxu0 0.0
    %5129 = vmatprep.subr.mxu0 0.0
    %5130 = vmatpush1.msra.mxu0 0.0
    %5131 = vmatprep.subr.mxu0 0.0
    %5132 = vmatpush1.msra.mxu0 0.0
    %5133 = vmatprep.subr.mxu0 0.0
    %5134 = vmatpush1.msra.mxu0 0.0
    %5135 = vmatprep.subr.mxu0 0.0
    %5136 = vmatpush1.msra.mxu0 0.0
    %5137 = vmatprep.subr.mxu0 0.0
    %5138 = vmatpush1.msra.mxu0 0.0
    %5139 = vmatprep.subr.mxu0 0.0
    %5140 = vmatpush1.msra.mxu0 0.0
    %5141 = vmatprep.subr.mxu0 0.0
    %5142 = vmatpush1.msra.mxu0 0.0
    %5143 = vmatprep.subr.mxu0 0.0
    %5144 = vmatpush1.msra.mxu0 0.0
    %5145 = vmatprep.subr.mxu0 0.0
    %5146 = vmatpush1.msra.mxu0 0.0
    %5147 = vmatprep.subr.mxu0 0.0
    %5148 = vmatpush1.msra.mxu0 0.0
    %5149 = vmatprep.subr.mxu0 0.0
    %5150 = vmatpush1.msra.mxu0 0.0
    %5151 = vmatprep.subr.mxu0 0.0
    %5152 = vmatpush1.msra.mxu0 0.0
    %5153 = vmatprep.subr.mxu0 0.0
    %5154 = vmatpush1.msra.mxu0 0.0
    %5155 = vmatprep.subr.mxu0 0.0
    %5156 = vmatpush1.msra.mxu0 0.0
    %5157 = vmatprep.subr.mxu0 0.0
    %5158 = vmatpush1.msra.mxu0 0.0
    %5159 = vmatprep.mubr.f32.mxu0 0.0
    %v5160 = vand.u32 %v4839, 4294901760
    %v5161 = vsub.f32 %v4839, %v5160
    %v5162 = vand.u32 %v5161, 4294901760
    %5163 = vmatmul.mubr.f32.gmra.mrb[0].mxu0 %v5162
    %v5164 = vpop.f32.mrb[0].mxu0
    %v5165 = vadd.f32 %v5088, %v5164
    %v5166 = vpop.f32.mrb[0].mxu0
    %5167 = vdwg.mxu0
    %5168 = vmatprep.subr.mxu0 0.0
    %v5169 = vand.u32 %v29, 4294901760
    %v5170 = vsub.f32 %v29, %v5169
    %v5171 = vand.u32 %v5170, 4294901760
    %5172 = vmatpush1.msra.mxu0 %v5171
    %5173 = vmatprep.subr.mxu0 0.0
    %v5174 = vand.u32 %v30, 4294901760
    %v5175 = vsub.f32 %v30, %v5174
    %v5176 = vand.u32 %v5175, 4294901760
    %5177 = vmatpush1.msra.mxu0 %v5176
    %5178 = vmatprep.subr.mxu0 0.0
    %v5179 = vand.u32 %v31, 4294901760
    %v5180 = vsub.f32 %v31, %v5179
    %v5181 = vand.u32 %v5180, 4294901760
    %5182 = vmatpush1.msra.mxu0 %v5181
    %5183 = vmatprep.subr.mxu0 0.0
    %v5184 = vand.u32 %v32, 4294901760
    %v5185 = vsub.f32 %v32, %v5184
    %v5186 = vand.u32 %v5185, 4294901760
    %5187 = vmatpush1.msra.mxu0 %v5186
    %5188 = vmatprep.subr.mxu0 0.0
    %5189 = vmatpush1.msra.mxu0 0.0
    %5190 = vmatprep.subr.mxu0 0.0
    %5191 = vmatpush1.msra.mxu0 0.0
    %5192 = vmatprep.subr.mxu0 0.0
    %5193 = vmatpush1.msra.mxu0 0.0
    %5194 = vmatprep.subr.mxu0 0.0
    %5195 = vmatpush1.msra.mxu0 0.0
    %5196 = vmatprep.subr.mxu0 0.0
    %5197 = vmatpush1.msra.mxu0 0.0
    %5198 = vmatprep.subr.mxu0 0.0
    %5199 = vmatpush1.msra.mxu0 0.0
    %5200 = vmatprep.subr.mxu0 0.0
    %5201 = vmatpush1.msra.mxu0 0.0
    %5202 = vmatprep.subr.mxu0 0.0
    %5203 = vmatpush1.msra.mxu0 0.0
    %5204 = vmatprep.subr.mxu0 0.0
    %5205 = vmatpush1.msra.mxu0 0.0
    %5206 = vmatprep.subr.mxu0 0.0
    %5207 = vmatpush1.msra.mxu0 0.0
    %5208 = vmatprep.subr.mxu0 0.0
    %5209 = vmatpush1.msra.mxu0 0.0
    %5210 = vmatprep.subr.mxu0 0.0
    %5211 = vmatpush1.msra.mxu0 0.0
    %5212 = vmatprep.subr.mxu0 0.0
    %5213 = vmatpush1.msra.mxu0 0.0
    %5214 = vmatprep.subr.mxu0 0.0
    %5215 = vmatpush1.msra.mxu0 0.0
    %5216 = vmatprep.subr.mxu0 0.0
    %5217 = vmatpush1.msra.mxu0 0.0
    %5218 = vmatprep.subr.mxu0 0.0
    %5219 = vmatpush1.msra.mxu0 0.0
    %5220 = vmatprep.subr.mxu0 0.0
    %5221 = vmatpush1.msra.mxu0 0.0
    %5222 = vmatprep.subr.mxu0 0.0
    %5223 = vmatpush1.msra.mxu0 0.0
    %5224 = vmatprep.subr.mxu0 0.0
    %5225 = vmatpush1.msra.mxu0 0.0
    %5226 = vmatprep.subr.mxu0 0.0
    %5227 = vmatpush1.msra.mxu0 0.0
    %5228 = vmatprep.subr.mxu0 0.0
    %5229 = vmatpush1.msra.mxu0 0.0
    %5230 = vmatprep.subr.mxu0 0.0
    %5231 = vmatpush1.msra.mxu0 0.0
    %5232 = vmatprep.subr.mxu0 0.0
    %5233 = vmatpush1.msra.mxu0 0.0
    %5234 = vmatprep.subr.mxu0 0.0
    %5235 = vmatpush1.msra.mxu0 0.0
    %5236 = vmatprep.subr.mxu0 0.0
    %5237 = vmatpush1.msra.mxu0 0.0
    %5238 = vmatprep.subr.mxu0 0.0
    %5239 = vmatpush1.msra.mxu0 0.0
    %5240 = vmatprep.subr.mxu0 0.0
    %5241 = vmatpush1.msra.mxu0 0.0
    %5242 = vmatprep.subr.mxu0 0.0
    %5243 = vmatpush1.msra.mxu0 0.0
    %5244 = vmatprep.mubr.f32.mxu0 0.0
    %v5245 = vand.u32 %v4839, 4294901760
    %5246 = vmatmul.mubr.f32.gmra.mrb[0].mxu0 %v5245
    %v5247 = vpop.f32.mrb[0].mxu0
    %v5248 = vadd.f32 %v5165, %v5247
    %v5249 = vpop.f32.mrb[0].mxu0
    %5250 = vdwg.mxu0
    %5251 = vmatprep.subr.mxu0 0.0
    %v5252 = vand.u32 %v29, 4294901760
    %5253 = vmatpush1.msra.mxu0 %v5252
    %5254 = vmatprep.subr.mxu0 0.0
    %v5255 = vand.u32 %v30, 4294901760
    %5256 = vmatpush1.msra.mxu0 %v5255
    %5257 = vmatprep.subr.mxu0 0.0
    %v5258 = vand.u32 %v31, 4294901760
    %5259 = vmatpush1.msra.mxu0 %v5258
    %5260 = vmatprep.subr.mxu0 0.0
    %v5261 = vand.u32 %v32, 4294901760
    %5262 = vmatpush1.msra.mxu0 %v5261
    %5263 = vmatprep.subr.mxu0 0.0
    %5264 = vmatpush1.msra.mxu0 0.0
    %5265 = vmatprep.subr.mxu0 0.0
    %5266 = vmatpush1.msra.mxu0 0.0
    %5267 = vmatprep.subr.mxu0 0.0
    %5268 = vmatpush1.msra.mxu0 0.0
    %5269 = vmatprep.subr.mxu0 0.0
    %5270 = vmatpush1.msra.mxu0 0.0
    %5271 = vmatprep.subr.mxu0 0.0
    %5272 = vmatpush1.msra.mxu0 0.0
    %5273 = vmatprep.subr.mxu0 0.0
    %5274 = vmatpush1.msra.mxu0 0.0
    %5275 = vmatprep.subr.mxu0 0.0
    %5276 = vmatpush1.msra.mxu0 0.0
    %5277 = vmatprep.subr.mxu0 0.0
    %5278 = vmatpush1.msra.mxu0 0.0
    %5279 = vmatprep.subr.mxu0 0.0
    %5280 = vmatpush1.msra.mxu0 0.0
    %5281 = vmatprep.subr.mxu0 0.0
    %5282 = vmatpush1.msra.mxu0 0.0
    %5283 = vmatprep.subr.mxu0 0.0
    %5284 = vmatpush1.msra.mxu0 0.0
    %5285 = vmatprep.subr.mxu0 0.0
    %5286 = vmatpush1.msra.mxu0 0.0
    %5287 = vmatprep.subr.mxu0 0.0
    %5288 = vmatpush1.msra.mxu0 0.0
    %5289 = vmatprep.subr.mxu0 0.0
    %5290 = vmatpush1.msra.mxu0 0.0
    %5291 = vmatprep.subr.mxu0 0.0
    %5292 = vmatpush1.msra.mxu0 0.0
    %5293 = vmatprep.subr.mxu0 0.0
    %5294 = vmatpush1.msra.mxu0 0.0
    %5295 = vmatprep.subr.mxu0 0.0
    %5296 = vmatpush1.msra.mxu0 0.0
    %5297 = vmatprep.subr.mxu0 0.0
    %5298 = vmatpush1.msra.mxu0 0.0
    %5299 = vmatprep.subr.mxu0 0.0
    %5300 = vmatpush1.msra.mxu0 0.0
    %5301 = vmatprep.subr.mxu0 0.0
    %5302 = vmatpush1.msra.mxu0 0.0
    %5303 = vmatprep.subr.mxu0 0.0
    %5304 = vmatpush1.msra.mxu0 0.0
    %5305 = vmatprep.subr.mxu0 0.0
    %5306 = vmatpush1.msra.mxu0 0.0
    %5307 = vmatprep.subr.mxu0 0.0
    %5308 = vmatpush1.msra.mxu0 0.0
    %5309 = vmatprep.subr.mxu0 0.0
    %5310 = vmatpush1.msra.mxu0 0.0
    %5311 = vmatprep.subr.mxu0 0.0
    %5312 = vmatpush1.msra.mxu0 0.0
    %5313 = vmatprep.subr.mxu0 0.0
    %5314 = vmatpush1.msra.mxu0 0.0
    %5315 = vmatprep.subr.mxu0 0.0
    %5316 = vmatpush1.msra.mxu0 0.0
    %5317 = vmatprep.subr.mxu0 0.0
    %5318 = vmatpush1.msra.mxu0 0.0
    %5319 = vmatprep.mubr.f32.mxu0 0.0
    %v5320 = vand.u32 %v4839, 4294901760
    %5321 = vmatmul.mubr.f32.gmra.mrb[0].mxu0 %v5320
    %v5322 = vpop.f32.mrb[0].mxu0
    %v5323 = vadd.f32 %v5248, %v5322
    %v5324 = vpop.f32.mrb[0].mxu0
    %5325 = vdwg.mxu0
    %v5326 = vadd.f32 %v2056, %v5323
    %v5327 = vxor.u32 %v5326, 2147483648
    %v5328 = vmul.f32 %v5327, 1.442695
    %v5329 = vpow.pop %v5328
    %v5330 = vadd.f32 %v5329, 1.0
    %v5331 = vrcp.pop %v5330
    %v5332 = vmul.f32 1.0, %v5331
    %5334 = vrot.lane.b32.xlu0 %v5323, 64
    %v5335 = vpop.permute.xlu0 %5334
    %v5337 = vmul.f32 %v5332, %v5335
    %5339 = vrot.lane.b32.xlu0 %v5337, 64
    %v5340 = vpop.permute.xlu0 %5339
    %v5342 = vadd.f32 %v2056, %v5340
    %v5343 = vtanh.pop %v5342
    %v5344 = vsub.f32 1.0, %v5332
    %5346 = vrot.lane.b32.xlu0 %v5343, 96
    %v5347 = vpop.permute.xlu0 %5346
    %v5349 = vmul.f32 %v5344, %v5347
    %v5350 = vmul.f32 %v5332, %v4835
    %v5351 = vadd.f32 %v5349, %v5350
    %5352 = vset.pattern.permute.xlu0 4
    %5353 = vperm.xlu0 %5352, %v94
    %v5354 = vpop.permute.xlu0 %5353
    %v5356 = vmul.f32 %v5351, %v5354
    %5357 = vset.pattern.permute.xlu0 4
    %5358 = vperm.xlu0 %5357, %v3247
    %v5359 = vpop.permute.xlu0 %5358
    %v5361 = vmul.f32 %v5359, %v4835
    %v5362 = vadd.f32 %v5356, %v5361
    %5364 = vrot.lane.b32.xlu0 %v5362, 96
    %v5365 = vpop.permute.xlu0 %5364
    %v5366 = vsel %vm95, %v5365, 0
    %5368 = vmatprep.subr.mxu0 0.0
    %v5369 = vand.u32 %v29, 4294901760
    %5370 = vmatpush1.msra.mxu0 %v5369
    %5371 = vmatprep.subr.mxu0 0.0
    %v5372 = vand.u32 %v30, 4294901760
    %5373 = vmatpush1.msra.mxu0 %v5372
    %5374 = vmatprep.subr.mxu0 0.0
    %v5375 = vand.u32 %v31, 4294901760
    %5376 = vmatpush1.msra.mxu0 %v5375
    %5377 = vmatprep.subr.mxu0 0.0
    %v5378 = vand.u32 %v32, 4294901760
    %5379 = vmatpush1.msra.mxu0 %v5378
    %5380 = vmatprep.subr.mxu0 0.0
    %5381 = vmatpush1.msra.mxu0 0.0
    %5382 = vmatprep.subr.mxu0 0.0
    %5383 = vmatpush1.msra.mxu0 0.0
    %5384 = vmatprep.subr.mxu0 0.0
    %5385 = vmatpush1.msra.mxu0 0.0
    %5386 = vmatprep.subr.mxu0 0.0
    %5387 = vmatpush1.msra.mxu0 0.0
    %5388 = vmatprep.subr.mxu0 0.0
    %5389 = vmatpush1.msra.mxu0 0.0
    %5390 = vmatprep.subr.mxu0 0.0
    %5391 = vmatpush1.msra.mxu0 0.0
    %5392 = vmatprep.subr.mxu0 0.0
    %5393 = vmatpush1.msra.mxu0 0.0
    %5394 = vmatprep.subr.mxu0 0.0
    %5395 = vmatpush1.msra.mxu0 0.0
    %5396 = vmatprep.subr.mxu0 0.0
    %5397 = vmatpush1.msra.mxu0 0.0
    %5398 = vmatprep.subr.mxu0 0.0
    %5399 = vmatpush1.msra.mxu0 0.0
    %5400 = vmatprep.subr.mxu0 0.0
    %5401 = vmatpush1.msra.mxu0 0.0
    %5402 = vmatprep.subr.mxu0 0.0
    %5403 = vmatpush1.msra.mxu0 0.0
    %5404 = vmatprep.subr.mxu0 0.0
    %5405 = vmatpush1.msra.mxu0 0.0
    %5406 = vmatprep.subr.mxu0 0.0
    %5407 = vmatpush1.msra.mxu0 0.0
    %5408 = vmatprep.subr.mxu0 0.0
    %5409 = vmatpush1.msra.mxu0 0.0
    %5410 = vmatprep.subr.mxu0 0.0
    %5411 = vmatpush1.msra.mxu0 0.0
    %5412 = vmatprep.subr.mxu0 0.0
    %5413 = vmatpush1.msra.mxu0 0.0
    %5414 = vmatprep.subr.mxu0 0.0
    %5415 = vmatpush1.msra.mxu0 0.0
    %5416 = vmatprep.subr.mxu0 0.0
    %5417 = vmatpush1.msra.mxu0 0.0
    %5418 = vmatprep.subr.mxu0 0.0
    %5419 = vmatpush1.msra.mxu0 0.0
    %5420 = vmatprep.subr.mxu0 0.0
    %5421 = vmatpush1.msra.mxu0 0.0
    %5422 = vmatprep.subr.mxu0 0.0
    %5423 = vmatpush1.msra.mxu0 0.0
    %5424 = vmatprep.subr.mxu0 0.0
    %5425 = vmatpush1.msra.mxu0 0.0
    %5426 = vmatprep.subr.mxu0 0.0
    %5427 = vmatpush1.msra.mxu0 0.0
    %5428 = vmatprep.subr.mxu0 0.0
    %5429 = vmatpush1.msra.mxu0 0.0
    %5430 = vmatprep.subr.mxu0 0.0
    %5431 = vmatpush1.msra.mxu0 0.0
    %5432 = vmatprep.subr.mxu0 0.0
    %5433 = vmatpush1.msra.mxu0 0.0
    %5434 = vmatprep.subr.mxu0 0.0
    %5435 = vmatpush1.msra.mxu0 0.0
    %5436 = vmatprep.mubr.f32.mxu0 0.0
    %v5437 = vand.u32 %v5366, 4294901760
    %v5438 = vsub.f32 %v5366, %v5437
    %v5439 = vand.u32 %v5438, 4294901760
    %v5440 = vsub.f32 %v5438, %v5439
    %v5441 = vand.u32 %v5440, 4294901760
    %5442 = vmatmul.mubr.f32.gmra.mrb[0].mxu0 %v5441
    %v5443 = vpop.f32.mrb[0].mxu0
    %v5444 = vadd.f32 %v59, %v5443
    %v5445 = vpop.f32.mrb[0].mxu0
    %5446 = vdwg.mxu0
    %5447 = vmatprep.subr.mxu0 0.0
    %v5448 = vand.u32 %v29, 4294901760
    %v5449 = vsub.f32 %v29, %v5448
    %v5450 = vand.u32 %v5449, 4294901760
    %v5451 = vsub.f32 %v5449, %v5450
    %v5452 = vand.u32 %v5451, 4294901760
    %5453 = vmatpush1.msra.mxu0 %v5452
    %5454 = vmatprep.subr.mxu0 0.0
    %v5455 = vand.u32 %v30, 4294901760
    %v5456 = vsub.f32 %v30, %v5455
    %v5457 = vand.u32 %v5456, 4294901760
    %v5458 = vsub.f32 %v5456, %v5457
    %v5459 = vand.u32 %v5458, 4294901760
    %5460 = vmatpush1.msra.mxu0 %v5459
    %5461 = vmatprep.subr.mxu0 0.0
    %v5462 = vand.u32 %v31, 4294901760
    %v5463 = vsub.f32 %v31, %v5462
    %v5464 = vand.u32 %v5463, 4294901760
    %v5465 = vsub.f32 %v5463, %v5464
    %v5466 = vand.u32 %v5465, 4294901760
    %5467 = vmatpush1.msra.mxu0 %v5466
    %5468 = vmatprep.subr.mxu0 0.0
    %v5469 = vand.u32 %v32, 4294901760
    %v5470 = vsub.f32 %v32, %v5469
    %v5471 = vand.u32 %v5470, 4294901760
    %v5472 = vsub.f32 %v5470, %v5471
    %v5473 = vand.u32 %v5472, 4294901760
    %5474 = vmatpush1.msra.mxu0 %v5473
    %5475 = vmatprep.subr.mxu0 0.0
    %5476 = vmatpush1.msra.mxu0 0.0
    %5477 = vmatprep.subr.mxu0 0.0
    %5478 = vmatpush1.msra.mxu0 0.0
    %5479 = vmatprep.subr.mxu0 0.0
    %5480 = vmatpush1.msra.mxu0 0.0
    %5481 = vmatprep.subr.mxu0 0.0
    %5482 = vmatpush1.msra.mxu0 0.0
    %5483 = vmatprep.subr.mxu0 0.0
    %5484 = vmatpush1.msra.mxu0 0.0
    %5485 = vmatprep.subr.mxu0 0.0
    %5486 = vmatpush1.msra.mxu0 0.0
    %5487 = vmatprep.subr.mxu0 0.0
    %5488 = vmatpush1.msra.mxu0 0.0
    %5489 = vmatprep.subr.mxu0 0.0
    %5490 = vmatpush1.msra.mxu0 0.0
    %5491 = vmatprep.subr.mxu0 0.0
    %5492 = vmatpush1.msra.mxu0 0.0
    %5493 = vmatprep.subr.mxu0 0.0
    %5494 = vmatpush1.msra.mxu0 0.0
    %5495 = vmatprep.subr.mxu0 0.0
    %5496 = vmatpush1.msra.mxu0 0.0
    %5497 = vmatprep.subr.mxu0 0.0
    %5498 = vmatpush1.msra.mxu0 0.0
    %5499 = vmatprep.subr.mxu0 0.0
    %5500 = vmatpush1.msra.mxu0 0.0
    %5501 = vmatprep.subr.mxu0 0.0
    %5502 = vmatpush1.msra.mxu0 0.0
    %5503 = vmatprep.subr.mxu0 0.0
    %5504 = vmatpush1.msra.mxu0 0.0
    %5505 = vmatprep.subr.mxu0 0.0
    %5506 = vmatpush1.msra.mxu0 0.0
    %5507 = vmatprep.subr.mxu0 0.0
    %5508 = vmatpush1.msra.mxu0 0.0
    %5509 = vmatprep.subr.mxu0 0.0
    %5510 = vmatpush1.msra.mxu0 0.0
    %5511 = vmatprep.subr.mxu0 0.0
    %5512 = vmatpush1.msra.mxu0 0.0
    %5513 = vmatprep.subr.mxu0 0.0
    %5514 = vmatpush1.msra.mxu0 0.0
    %5515 = vmatprep.subr.mxu0 0.0
    %5516 = vmatpush1.msra.mxu0 0.0
    %5517 = vmatprep.subr.mxu0 0.0
    %5518 = vmatpush1.msra.mxu0 0.0
    %5519 = vmatprep.subr.mxu0 0.0
    %5520 = vmatpush1.msra.mxu0 0.0
    %5521 = vmatprep.subr.mxu0 0.0
    %5522 = vmatpush1.msra.mxu0 0.0
    %5523 = vmatprep.subr.mxu0 0.0
    %5524 = vmatpush1.msra.mxu0 0.0
    %5525 = vmatprep.subr.mxu0 0.0
    %5526 = vmatpush1.msra.mxu0 0.0
    %5527 = vmatprep.subr.mxu0 0.0
    %5528 = vmatpush1.msra.mxu0 0.0
    %5529 = vmatprep.subr.mxu0 0.0
    %5530 = vmatpush1.msra.mxu0 0.0
    %5531 = vmatprep.mubr.f32.mxu0 0.0
    %v5532 = vand.u32 %v5366, 4294901760
    %5533 = vmatmul.mubr.f32.gmra.mrb[0].mxu0 %v5532
    %v5534 = vpop.f32.mrb[0].mxu0
    %v5535 = vadd.f32 %v5444, %v5534
    %v5536 = vpop.f32.mrb[0].mxu0
    %5537 = vdwg.mxu0
    %5538 = vmatprep.subr.mxu0 0.0
    %v5539 = vand.u32 %v29, 4294901760
    %v5540 = vsub.f32 %v29, %v5539
    %5541 = vmatpush1.msra.mxu0 %v5540
    %5542 = vmatprep.subr.mxu0 0.0
    %v5543 = vand.u32 %v30, 4294901760
    %v5544 = vsub.f32 %v30, %v5543
    %5545 = vmatpush1.msra.mxu0 %v5544
    %5546 = vmatprep.subr.mxu0 0.0
    %v5547 = vand.u32 %v31, 4294901760
    %v5548 = vsub.f32 %v31, %v5547
    %5549 = vmatpush1.msra.mxu0 %v5548
    %5550 = vmatprep.subr.mxu0 0.0
    %v5551 = vand.u32 %v32, 4294901760
    %v5552 = vsub.f32 %v32, %v5551
    %5553 = vmatpush1.msra.mxu0 %v5552
    %5554 = vmatprep.subr.mxu0 0.0
    %5555 = vmatpush1.msra.mxu0 0.0
    %5556 = vmatprep.subr.mxu0 0.0
    %5557 = vmatpush1.msra.mxu0 0.0
    %5558 = vmatprep.subr.mxu0 0.0
    %5559 = vmatpush1.msra.mxu0 0.0
    %5560 = vmatprep.subr.mxu0 0.0
    %5561 = vmatpush1.msra.mxu0 0.0
    %5562 = vmatprep.subr.mxu0 0.0
    %5563 = vmatpush1.msra.mxu0 0.0
    %5564 = vmatprep.subr.mxu0 0.0
    %5565 = vmatpush1.msra.mxu0 0.0
    %5566 = vmatprep.subr.mxu0 0.0
    %5567 = vmatpush1.msra.mxu0 0.0
    %5568 = vmatprep.subr.mxu0 0.0
    %5569 = vmatpush1.msra.mxu0 0.0
    %5570 = vmatprep.subr.mxu0 0.0
    %5571 = vmatpush1.msra.mxu0 0.0
    %5572 = vmatprep.subr.mxu0 0.0
    %5573 = vmatpush1.msra.mxu0 0.0
    %5574 = vmatprep.subr.mxu0 0.0
    %5575 = vmatpush1.msra.mxu0 0.0
    %5576 = vmatprep.subr.mxu0 0.0
    %5577 = vmatpush1.msra.mxu0 0.0
    %5578 = vmatprep.subr.mxu0 0.0
    %5579 = vmatpush1.msra.mxu0 0.0
    %5580 = vmatprep.subr.mxu0 0.0
    %5581 = vmatpush1.msra.mxu0 0.0
    %5582 = vmatprep.subr.mxu0 0.0
    %5583 = vmatpush1.msra.mxu0 0.0
    %5584 = vmatprep.subr.mxu0 0.0
    %5585 = vmatpush1.msra.mxu0 0.0
    %5586 = vmatprep.subr.mxu0 0.0
    %5587 = vmatpush1.msra.mxu0 0.0
    %5588 = vmatprep.subr.mxu0 0.0
    %5589 = vmatpush1.msra.mxu0 0.0
    %5590 = vmatprep.subr.mxu0 0.0
    %5591 = vmatpush1.msra.mxu0 0.0
    %5592 = vmatprep.subr.mxu0 0.0
    %5593 = vmatpush1.msra.mxu0 0.0
    %5594 = vmatprep.subr.mxu0 0.0
    %5595 = vmatpush1.msra.mxu0 0.0
    %5596 = vmatprep.subr.mxu0 0.0
    %5597 = vmatpush1.msra.mxu0 0.0
    %5598 = vmatprep.subr.mxu0 0.0
    %5599 = vmatpush1.msra.mxu0 0.0
    %5600 = vmatprep.subr.mxu0 0.0
    %5601 = vmatpush1.msra.mxu0 0.0
    %5602 = vmatprep.subr.mxu0 0.0
    %5603 = vmatpush1.msra.mxu0 0.0
    %5604 = vmatprep.subr.mxu0 0.0
    %5605 = vmatpush1.msra.mxu0 0.0
    %5606 = vmatprep.subr.mxu0 0.0
    %5607 = vmatpush1.msra.mxu0 0.0
    %5608 = vmatprep.subr.mxu0 0.0
    %5609 = vmatpush1.msra.mxu0 0.0
    %5610 = vmatprep.mubr.f32.mxu0 0.0
    %v5611 = vand.u32 %v5366, 4294901760
    %v5612 = vsub.f32 %v5366, %v5611
    %5613 = vmatmul.mubr.f32.gmra.mrb[0].mxu0 %v5612
    %v5614 = vpop.f32.mrb[0].mxu0
    %v5615 = vadd.f32 %v5535, %v5614
    %v5616 = vpop.f32.mrb[0].mxu0
    %5617 = vdwg.mxu0
    %5618 = vmatprep.subr.mxu0 0.0
    %v5619 = vand.u32 %v29, 4294901760
    %5620 = vmatpush1.msra.mxu0 %v5619
    %5621 = vmatprep.subr.mxu0 0.0
    %v5622 = vand.u32 %v30, 4294901760
    %5623 = vmatpush1.msra.mxu0 %v5622
    %5624 = vmatprep.subr.mxu0 0.0
    %v5625 = vand.u32 %v31, 4294901760
    %5626 = vmatpush1.msra.mxu0 %v5625
    %5627 = vmatprep.subr.mxu0 0.0
    %v5628 = vand.u32 %v32, 4294901760
    %5629 = vmatpush1.msra.mxu0 %v5628
    %5630 = vmatprep.subr.mxu0 0.0
    %5631 = vmatpush1.msra.mxu0 0.0
    %5632 = vmatprep.subr.mxu0 0.0
    %5633 = vmatpush1.msra.mxu0 0.0
    %5634 = vmatprep.subr.mxu0 0.0
    %5635 = vmatpush1.msra.mxu0 0.0
    %5636 = vmatprep.subr.mxu0 0.0
    %5637 = vmatpush1.msra.mxu0 0.0
    %5638 = vmatprep.subr.mxu0 0.0
    %5639 = vmatpush1.msra.mxu0 0.0
    %5640 = vmatprep.subr.mxu0 0.0
    %5641 = vmatpush1.msra.mxu0 0.0
    %5642 = vmatprep.subr.mxu0 0.0
    %5643 = vmatpush1.msra.mxu0 0.0
    %5644 = vmatprep.subr.mxu0 0.0
    %5645 = vmatpush1.msra.mxu0 0.0
    %5646 = vmatprep.subr.mxu0 0.0
    %5647 = vmatpush1.msra.mxu0 0.0
    %5648 = vmatprep.subr.mxu0 0.0
    %5649 = vmatpush1.msra.mxu0 0.0
    %5650 = vmatprep.subr.mxu0 0.0
    %5651 = vmatpush1.msra.mxu0 0.0
    %5652 = vmatprep.subr.mxu0 0.0
    %5653 = vmatpush1.msra.mxu0 0.0
    %5654 = vmatprep.subr.mxu0 0.0
    %5655 = vmatpush1.msra.mxu0 0.0
    %5656 = vmatprep.subr.mxu0 0.0
    %5657 = vmatpush1.msra.mxu0 0.0
    %5658 = vmatprep.subr.mxu0 0.0
    %5659 = vmatpush1.msra.mxu0 0.0
    %5660 = vmatprep.subr.mxu0 0.0
    %5661 = vmatpush1.msra.mxu0 0.0
    %5662 = vmatprep.subr.mxu0 0.0
    %5663 = vmatpush1.msra.mxu0 0.0
    %5664 = vmatprep.subr.mxu0 0.0
    %5665 = vmatpush1.msra.mxu0 0.0
    %5666 = vmatprep.subr.mxu0 0.0
    %5667 = vmatpush1.msra.mxu0 0.0
    %5668 = vmatprep.subr.mxu0 0.0
    %5669 = vmatpush1.msra.mxu0 0.0
    %5670 = vmatprep.subr.mxu0 0.0
    %5671 = vmatpush1.msra.mxu0 0.0
    %5672 = vmatprep.subr.mxu0 0.0
    %5673 = vmatpush1.msra.mxu0 0.0
    %5674 = vmatprep.subr.mxu0 0.0
    %5675 = vmatpush1.msra.mxu0 0.0
    %5676 = vmatprep.subr.mxu0 0.0
    %5677 = vmatpush1.msra.mxu0 0.0
    %5678 = vmatprep.subr.mxu0 0.0
    %5679 = vmatpush1.msra.mxu0 0.0
    %5680 = vmatprep.subr.mxu0 0.0
    %5681 = vmatpush1.msra.mxu0 0.0
    %5682 = vmatprep.subr.mxu0 0.0
    %5683 = vmatpush1.msra.mxu0 0.0
    %5684 = vmatprep.subr.mxu0 0.0
    %5685 = vmatpush1.msra.mxu0 0.0
    %5686 = vmatprep.mubr.f32.mxu0 0.0
    %v5687 = vand.u32 %v5366, 4294901760
    %v5688 = vsub.f32 %v5366, %v5687
    %v5689 = vand.u32 %v5688, 4294901760
    %5690 = vmatmul.mubr.f32.gmra.mrb[0].mxu0 %v5689
    %v5691 = vpop.f32.mrb[0].mxu0
    %v5692 = vadd.f32 %v5615, %v5691
    %v5693 = vpop.f32.mrb[0].mxu0
    %5694 = vdwg.mxu0
    %5695 = vmatprep.subr.mxu0 0.0
    %v5696 = vand.u32 %v29, 4294901760
    %v5697 = vsub.f32 %v29, %v5696
    %v5698 = vand.u32 %v5697, 4294901760
    %5699 = vmatpush1.msra.mxu0 %v5698
    %5700 = vmatprep.subr.mxu0 0.0
    %v5701 = vand.u32 %v30, 4294901760
    %v5702 = vsub.f32 %v30, %v5701
    %v5703 = vand.u32 %v5702, 4294901760
    %5704 = vmatpush1.msra.mxu0 %v5703
    %5705 = vmatprep.subr.mxu0 0.0
    %v5706 = vand.u32 %v31, 4294901760
    %v5707 = vsub.f32 %v31, %v5706
    %v5708 = vand.u32 %v5707, 4294901760
    %5709 = vmatpush1.msra.mxu0 %v5708
    %5710 = vmatprep.subr.mxu0 0.0
    %v5711 = vand.u32 %v32, 4294901760
    %v5712 = vsub.f32 %v32, %v5711
    %v5713 = vand.u32 %v5712, 4294901760
    %5714 = vmatpush1.msra.mxu0 %v5713
    %5715 = vmatprep.subr.mxu0 0.0
    %5716 = vmatpush1.msra.mxu0 0.0
    %5717 = vmatprep.subr.mxu0 0.0
    %5718 = vmatpush1.msra.mxu0 0.0
    %5719 = vmatprep.subr.mxu0 0.0
    %5720 = vmatpush1.msra.mxu0 0.0
    %5721 = vmatprep.subr.mxu0 0.0
    %5722 = vmatpush1.msra.mxu0 0.0
    %5723 = vmatprep.subr.mxu0 0.0
    %5724 = vmatpush1.msra.mxu0 0.0
    %5725 = vmatprep.subr.mxu0 0.0
    %5726 = vmatpush1.msra.mxu0 0.0
    %5727 = vmatprep.subr.mxu0 0.0
    %5728 = vmatpush1.msra.mxu0 0.0
    %5729 = vmatprep.subr.mxu0 0.0
    %5730 = vmatpush1.msra.mxu0 0.0
    %5731 = vmatprep.subr.mxu0 0.0
    %5732 = vmatpush1.msra.mxu0 0.0
    %5733 = vmatprep.subr.mxu0 0.0
    %5734 = vmatpush1.msra.mxu0 0.0
    %5735 = vmatprep.subr.mxu0 0.0
    %5736 = vmatpush1.msra.mxu0 0.0
    %5737 = vmatprep.subr.mxu0 0.0
    %5738 = vmatpush1.msra.mxu0 0.0
    %5739 = vmatprep.subr.mxu0 0.0
    %5740 = vmatpush1.msra.mxu0 0.0
    %5741 = vmatprep.subr.mxu0 0.0
    %5742 = vmatpush1.msra.mxu0 0.0
    %5743 = vmatprep.subr.mxu0 0.0
    %5744 = vmatpush1.msra.mxu0 0.0
    %5745 = vmatprep.subr.mxu0 0.0
    %5746 = vmatpush1.msra.mxu0 0.0
    %5747 = vmatprep.subr.mxu0 0.0
    %5748 = vmatpush1.msra.mxu0 0.0
    %5749 = vmatprep.subr.mxu0 0.0
    %5750 = vmatpush1.msra.mxu0 0.0
    %5751 = vmatprep.subr.mxu0 0.0
    %5752 = vmatpush1.msra.mxu0 0.0
    %5753 = vmatprep.subr.mxu0 0.0
    %5754 = vmatpush1.msra.mxu0 0.0
    %5755 = vmatprep.subr.mxu0 0.0
    %5756 = vmatpush1.msra.mxu0 0.0
    %5757 = vmatprep.subr.mxu0 0.0
    %5758 = vmatpush1.msra.mxu0 0.0
    %5759 = vmatprep.subr.mxu0 0.0
    %5760 = vmatpush1.msra.mxu0 0.0
    %5761 = vmatprep.subr.mxu0 0.0
    %5762 = vmatpush1.msra.mxu0 0.0
    %5763 = vmatprep.subr.mxu0 0.0
    %5764 = vmatpush1.msra.mxu0 0.0
    %5765 = vmatprep.subr.mxu0 0.0
    %5766 = vmatpush1.msra.mxu0 0.0
    %5767 = vmatprep.subr.mxu0 0.0
    %5768 = vmatpush1.msra.mxu0 0.0
    %5769 = vmatprep.subr.mxu0 0.0
    %5770 = vmatpush1.msra.mxu0 0.0
    %5771 = vmatprep.mubr.f32.mxu0 0.0
    %v5772 = vand.u32 %v5366, 4294901760
    %5773 = vmatmul.mubr.f32.gmra.mrb[0].mxu0 %v5772
    %v5774 = vpop.f32.mrb[0].mxu0
    %v5775 = vadd.f32 %v5692, %v5774
    %v5776 = vpop.f32.mrb[0].mxu0
    %5777 = vdwg.mxu0
    %5778 = vmatprep.subr.mxu0 0.0
    %v5779 = vand.u32 %v29, 4294901760
    %5780 = vmatpush1.msra.mxu0 %v5779
    %5781 = vmatprep.subr.mxu0 0.0
    %v5782 = vand.u32 %v30, 4294901760
    %5783 = vmatpush1.msra.mxu0 %v5782
    %5784 = vmatprep.subr.mxu0 0.0
    %v5785 = vand.u32 %v31, 4294901760
    %5786 = vmatpush1.msra.mxu0 %v5785
    %5787 = vmatprep.subr.mxu0 0.0
    %v5788 = vand.u32 %v32, 4294901760
    %5789 = vmatpush1.msra.mxu0 %v5788
    %5790 = vmatprep.subr.mxu0 0.0
    %5791 = vmatpush1.msra.mxu0 0.0
    %5792 = vmatprep.subr.mxu0 0.0
    %5793 = vmatpush1.msra.mxu0 0.0
    %5794 = vmatprep.subr.mxu0 0.0
    %5795 = vmatpush1.msra.mxu0 0.0
    %5796 = vmatprep.subr.mxu0 0.0
    %5797 = vmatpush1.msra.mxu0 0.0
    %5798 = vmatprep.subr.mxu0 0.0
    %5799 = vmatpush1.msra.mxu0 0.0
    %5800 = vmatprep.subr.mxu0 0.0
    %5801 = vmatpush1.msra.mxu0 0.0
    %5802 = vmatprep.subr.mxu0 0.0
    %5803 = vmatpush1.msra.mxu0 0.0
    %5804 = vmatprep.subr.mxu0 0.0
    %5805 = vmatpush1.msra.mxu0 0.0
    %5806 = vmatprep.subr.mxu0 0.0
    %5807 = vmatpush1.msra.mxu0 0.0
    %5808 = vmatprep.subr.mxu0 0.0
    %5809 = vmatpush1.msra.mxu0 0.0
    %5810 = vmatprep.subr.mxu0 0.0
    %5811 = vmatpush1.msra.mxu0 0.0
    %5812 = vmatprep.subr.mxu0 0.0
    %5813 = vmatpush1.msra.mxu0 0.0
    %5814 = vmatprep.subr.mxu0 0.0
    %5815 = vmatpush1.msra.mxu0 0.0
    %5816 = vmatprep.subr.mxu0 0.0
    %5817 = vmatpush1.msra.mxu0 0.0
    %5818 = vmatprep.subr.mxu0 0.0
    %5819 = vmatpush1.msra.mxu0 0.0
    %5820 = vmatprep.subr.mxu0 0.0
    %5821 = vmatpush1.msra.mxu0 0.0
    %5822 = vmatprep.subr.mxu0 0.0
    %5823 = vmatpush1.msra.mxu0 0.0
    %5824 = vmatprep.subr.mxu0 0.0
    %5825 = vmatpush1.msra.mxu0 0.0
    %5826 = vmatprep.subr.mxu0 0.0
    %5827 = vmatpush1.msra.mxu0 0.0
    %5828 = vmatprep.subr.mxu0 0.0
    %5829 = vmatpush1.msra.mxu0 0.0
    %5830 = vmatprep.subr.mxu0 0.0
    %5831 = vmatpush1.msra.mxu0 0.0
    %5832 = vmatprep.subr.mxu0 0.0
    %5833 = vmatpush1.msra.mxu0 0.0
    %5834 = vmatprep.subr.mxu0 0.0
    %5835 = vmatpush1.msra.mxu0 0.0
    %5836 = vmatprep.subr.mxu0 0.0
    %5837 = vmatpush1.msra.mxu0 0.0
    %5838 = vmatprep.subr.mxu0 0.0
    %5839 = vmatpush1.msra.mxu0 0.0
    %5840 = vmatprep.subr.mxu0 0.0
    %5841 = vmatpush1.msra.mxu0 0.0
    %5842 = vmatprep.subr.mxu0 0.0
    %5843 = vmatpush1.msra.mxu0 0.0
    %5844 = vmatprep.subr.mxu0 0.0
    %5845 = vmatpush1.msra.mxu0 0.0
    %5846 = vmatprep.mubr.f32.mxu0 0.0
    %v5847 = vand.u32 %v5366, 4294901760
    %5848 = vmatmul.mubr.f32.gmra.mrb[0].mxu0 %v5847
    %v5849 = vpop.f32.mrb[0].mxu0
    %v5850 = vadd.f32 %v5775, %v5849
    %v5851 = vpop.f32.mrb[0].mxu0
    %5852 = vdwg.mxu0
    %v5853 = vadd.f32 %v2062, %v5850
    %v5854 = vxor.u32 %v5853, 2147483648
    %v5855 = vmul.f32 %v5854, 1.442695
    %v5856 = vpow.pop %v5855
    %v5857 = vadd.f32 %v5856, 1.0
    %v5858 = vrcp.pop %v5857
    %v5859 = vmul.f32 1.0, %v5858
    %5861 = vrot.lane.b32.xlu0 %v5850, 64
    %v5862 = vpop.permute.xlu0 %5861
    %v5864 = vmul.f32 %v5859, %v5862
    %5866 = vrot.lane.b32.xlu0 %v5864, 64
    %v5867 = vpop.permute.xlu0 %5866
    %v5869 = vadd.f32 %v2062, %v5867
    %v5870 = vtanh.pop %v5869
    %v5871 = vsub.f32 1.0, %v5859
    %5873 = vrot.lane.b32.xlu0 %v5870, 96
    %v5874 = vpop.permute.xlu0 %5873
    %v5876 = vmul.f32 %v5871, %v5874
    %v5877 = vmul.f32 %v5859, %v5362
    %v5878 = vadd.f32 %v5876, %v5877
    %5879 = vset.pattern.permute.xlu0 5
    %5880 = vperm.xlu0 %5879, %v94
    %v5881 = vpop.permute.xlu0 %5880
    %v5883 = vmul.f32 %v5878, %v5881
    %5884 = vset.pattern.permute.xlu0 5
    %5885 = vperm.xlu0 %5884, %v3247
    %v5886 = vpop.permute.xlu0 %5885
    %v5888 = vmul.f32 %v5886, %v5362
    %v5889 = vadd.f32 %v5883, %v5888
    %5891 = vrot.lane.b32.xlu0 %v5889, 96
    %v5892 = vpop.permute.xlu0 %5891
    %v5893 = vsel %vm95, %v5892, 0
    %5895 = vmatprep.subr.mxu0 0.0
    %v5896 = vand.u32 %v29, 4294901760
    %5897 = vmatpush1.msra.mxu0 %v5896
    %5898 = vmatprep.subr.mxu0 0.0
    %v5899 = vand.u32 %v30, 4294901760
    %5900 = vmatpush1.msra.mxu0 %v5899
    %5901 = vmatprep.subr.mxu0 0.0
    %v5902 = vand.u32 %v31, 4294901760
    %5903 = vmatpush1.msra.mxu0 %v5902
    %5904 = vmatprep.subr.mxu0 0.0
    %v5905 = vand.u32 %v32, 4294901760
    %5906 = vmatpush1.msra.mxu0 %v5905
    %5907 = vmatprep.subr.mxu0 0.0
    %5908 = vmatpush1.msra.mxu0 0.0
    %5909 = vmatprep.subr.mxu0 0.0
    %5910 = vmatpush1.msra.mxu0 0.0
    %5911 = vmatprep.subr.mxu0 0.0
    %5912 = vmatpush1.msra.mxu0 0.0
    %5913 = vmatprep.subr.mxu0 0.0
    %5914 = vmatpush1.msra.mxu0 0.0
    %5915 = vmatprep.subr.mxu0 0.0
    %5916 = vmatpush1.msra.mxu0 0.0
    %5917 = vmatprep.subr.mxu0 0.0
    %5918 = vmatpush1.msra.mxu0 0.0
    %5919 = vmatprep.subr.mxu0 0.0
    %5920 = vmatpush1.msra.mxu0 0.0
    %5921 = vmatprep.subr.mxu0 0.0
    %5922 = vmatpush1.msra.mxu0 0.0
    %5923 = vmatprep.subr.mxu0 0.0
    %5924 = vmatpush1.msra.mxu0 0.0
    %5925 = vmatprep.subr.mxu0 0.0
    %5926 = vmatpush1.msra.mxu0 0.0
    %5927 = vmatprep.subr.mxu0 0.0
    %5928 = vmatpush1.msra.mxu0 0.0
    %5929 = vmatprep.subr.mxu0 0.0
    %5930 = vmatpush1.msra.mxu0 0.0
    %5931 = vmatprep.subr.mxu0 0.0
    %5932 = vmatpush1.msra.mxu0 0.0
    %5933 = vmatprep.subr.mxu0 0.0
    %5934 = vmatpush1.msra.mxu0 0.0
    %5935 = vmatprep.subr.mxu0 0.0
    %5936 = vmatpush1.msra.mxu0 0.0
    %5937 = vmatprep.subr.mxu0 0.0
    %5938 = vmatpush1.msra.mxu0 0.0
    %5939 = vmatprep.subr.mxu0 0.0
    %5940 = vmatpush1.msra.mxu0 0.0
    %5941 = vmatprep.subr.mxu0 0.0
    %5942 = vmatpush1.msra.mxu0 0.0
    %5943 = vmatprep.subr.mxu0 0.0
    %5944 = vmatpush1.msra.mxu0 0.0
    %5945 = vmatprep.subr.mxu0 0.0
    %5946 = vmatpush1.msra.mxu0 0.0
    %5947 = vmatprep.subr.mxu0 0.0
    %5948 = vmatpush1.msra.mxu0 0.0
    %5949 = vmatprep.subr.mxu0 0.0
    %5950 = vmatpush1.msra.mxu0 0.0
    %5951 = vmatprep.subr.mxu0 0.0
    %5952 = vmatpush1.msra.mxu0 0.0
    %5953 = vmatprep.subr.mxu0 0.0
    %5954 = vmatpush1.msra.mxu0 0.0
    %5955 = vmatprep.subr.mxu0 0.0
    %5956 = vmatpush1.msra.mxu0 0.0
    %5957 = vmatprep.subr.mxu0 0.0
    %5958 = vmatpush1.msra.mxu0 0.0
    %5959 = vmatprep.subr.mxu0 0.0
    %5960 = vmatpush1.msra.mxu0 0.0
    %5961 = vmatprep.subr.mxu0 0.0
    %5962 = vmatpush1.msra.mxu0 0.0
    %5963 = vmatprep.mubr.f32.mxu0 0.0
    %v5964 = vand.u32 %v5893, 4294901760
    %v5965 = vsub.f32 %v5893, %v5964
    %v5966 = vand.u32 %v5965, 4294901760
    %v5967 = vsub.f32 %v5965, %v5966
    %v5968 = vand.u32 %v5967, 4294901760
    %5969 = vmatmul.mubr.f32.gmra.mrb[0].mxu0 %v5968
    %v5970 = vpop.f32.mrb[0].mxu0
    %v5971 = vadd.f32 %v59, %v5970
    %v5972 = vpop.f32.mrb[0].mxu0
    %5973 = vdwg.mxu0
    %5974 = vmatprep.subr.mxu0 0.0
    %v5975 = vand.u32 %v29, 4294901760
    %v5976 = vsub.f32 %v29, %v5975
    %v5977 = vand.u32 %v5976, 4294901760
    %v5978 = vsub.f32 %v5976, %v5977
    %v5979 = vand.u32 %v5978, 4294901760
    %5980 = vmatpush1.msra.mxu0 %v5979
    %5981 = vmatprep.subr.mxu0 0.0
    %v5982 = vand.u32 %v30, 4294901760
    %v5983 = vsub.f32 %v30, %v5982
    %v5984 = vand.u32 %v5983, 4294901760
    %v5985 = vsub.f32 %v5983, %v5984
    %v5986 = vand.u32 %v5985, 4294901760
    %5987 = vmatpush1.msra.mxu0 %v5986
    %5988 = vmatprep.subr.mxu0 0.0
    %v5989 = vand.u32 %v31, 4294901760
    %v5990 = vsub.f32 %v31, %v5989
    %v5991 = vand.u32 %v5990, 4294901760
    %v5992 = vsub.f32 %v5990, %v5991
    %v5993 = vand.u32 %v5992, 4294901760
    %5994 = vmatpush1.msra.mxu0 %v5993
    %5995 = vmatprep.subr.mxu0 0.0
    %v5996 = vand.u32 %v32, 4294901760
    %v5997 = vsub.f32 %v32, %v5996
    %v5998 = vand.u32 %v5997, 4294901760
    %v5999 = vsub.f32 %v5997, %v5998
    %v6000 = vand.u32 %v5999, 4294901760
    %6001 = vmatpush1.msra.mxu0 %v6000
    %6002 = vmatprep.subr.mxu0 0.0
    %6003 = vmatpush1.msra.mxu0 0.0
    %6004 = vmatprep.subr.mxu0 0.0
    %6005 = vmatpush1.msra.mxu0 0.0
    %6006 = vmatprep.subr.mxu0 0.0
    %6007 = vmatpush1.msra.mxu0 0.0
    %6008 = vmatprep.subr.mxu0 0.0
    %6009 = vmatpush1.msra.mxu0 0.0
    %6010 = vmatprep.subr.mxu0 0.0
    %6011 = vmatpush1.msra.mxu0 0.0
    %6012 = vmatprep.subr.mxu0 0.0
    %6013 = vmatpush1.msra.mxu0 0.0
    %6014 = vmatprep.subr.mxu0 0.0
    %6015 = vmatpush1.msra.mxu0 0.0
    %6016 = vmatprep.subr.mxu0 0.0
    %6017 = vmatpush1.msra.mxu0 0.0
    %6018 = vmatprep.subr.mxu0 0.0
    %6019 = vmatpush1.msra.mxu0 0.0
    %6020 = vmatprep.subr.mxu0 0.0
    %6021 = vmatpush1.msra.mxu0 0.0
    %6022 = vmatprep.subr.mxu0 0.0
    %6023 = vmatpush1.msra.mxu0 0.0
    %6024 = vmatprep.subr.mxu0 0.0
    %6025 = vmatpush1.msra.mxu0 0.0
    %6026 = vmatprep.subr.mxu0 0.0
    %6027 = vmatpush1.msra.mxu0 0.0
    %6028 = vmatprep.subr.mxu0 0.0
    %6029 = vmatpush1.msra.mxu0 0.0
    %6030 = vmatprep.subr.mxu0 0.0
    %6031 = vmatpush1.msra.mxu0 0.0
    %6032 = vmatprep.subr.mxu0 0.0
    %6033 = vmatpush1.msra.mxu0 0.0
    %6034 = vmatprep.subr.mxu0 0.0
    %6035 = vmatpush1.msra.mxu0 0.0
    %6036 = vmatprep.subr.mxu0 0.0
    %6037 = vmatpush1.msra.mxu0 0.0
    %6038 = vmatprep.subr.mxu0 0.0
    %6039 = vmatpush1.msra.mxu0 0.0
    %6040 = vmatprep.subr.mxu0 0.0
    %6041 = vmatpush1.msra.mxu0 0.0
    %6042 = vmatprep.subr.mxu0 0.0
    %6043 = vmatpush1.msra.mxu0 0.0
    %6044 = vmatprep.subr.mxu0 0.0
    %6045 = vmatpush1.msra.mxu0 0.0
    %6046 = vmatprep.subr.mxu0 0.0
    %6047 = vmatpush1.msra.mxu0 0.0
    %6048 = vmatprep.subr.mxu0 0.0
    %6049 = vmatpush1.msra.mxu0 0.0
    %6050 = vmatprep.subr.mxu0 0.0
    %6051 = vmatpush1.msra.mxu0 0.0
    %6052 = vmatprep.subr.mxu0 0.0
    %6053 = vmatpush1.msra.mxu0 0.0
    %6054 = vmatprep.subr.mxu0 0.0
    %6055 = vmatpush1.msra.mxu0 0.0
    %6056 = vmatprep.subr.mxu0 0.0
    %6057 = vmatpush1.msra.mxu0 0.0
    %6058 = vmatprep.mubr.f32.mxu0 0.0
    %v6059 = vand.u32 %v5893, 4294901760
    %6060 = vmatmul.mubr.f32.gmra.mrb[0].mxu0 %v6059
    %v6061 = vpop.f32.mrb[0].mxu0
    %v6062 = vadd.f32 %v5971, %v6061
    %v6063 = vpop.f32.mrb[0].mxu0
    %6064 = vdwg.mxu0
    %6065 = vmatprep.subr.mxu0 0.0
    %v6066 = vand.u32 %v29, 4294901760
    %v6067 = vsub.f32 %v29, %v6066
    %6068 = vmatpush1.msra.mxu0 %v6067
    %6069 = vmatprep.subr.mxu0 0.0
    %v6070 = vand.u32 %v30, 4294901760
    %v6071 = vsub.f32 %v30, %v6070
    %6072 = vmatpush1.msra.mxu0 %v6071
    %6073 = vmatprep.subr.mxu0 0.0
    %v6074 = vand.u32 %v31, 4294901760
    %v6075 = vsub.f32 %v31, %v6074
    %6076 = vmatpush1.msra.mxu0 %v6075
    %6077 = vmatprep.subr.mxu0 0.0
    %v6078 = vand.u32 %v32, 4294901760
    %v6079 = vsub.f32 %v32, %v6078
    %6080 = vmatpush1.msra.mxu0 %v6079
    %6081 = vmatprep.subr.mxu0 0.0
    %6082 = vmatpush1.msra.mxu0 0.0
    %6083 = vmatprep.subr.mxu0 0.0
    %6084 = vmatpush1.msra.mxu0 0.0
    %6085 = vmatprep.subr.mxu0 0.0
    %6086 = vmatpush1.msra.mxu0 0.0
    %6087 = vmatprep.subr.mxu0 0.0
    %6088 = vmatpush1.msra.mxu0 0.0
    %6089 = vmatprep.subr.mxu0 0.0
    %6090 = vmatpush1.msra.mxu0 0.0
    %6091 = vmatprep.subr.mxu0 0.0
    %6092 = vmatpush1.msra.mxu0 0.0
    %6093 = vmatprep.subr.mxu0 0.0
    %6094 = vmatpush1.msra.mxu0 0.0
    %6095 = vmatprep.subr.mxu0 0.0
    %6096 = vmatpush1.msra.mxu0 0.0
    %6097 = vmatprep.subr.mxu0 0.0
    %6098 = vmatpush1.msra.mxu0 0.0
    %6099 = vmatprep.subr.mxu0 0.0
    %6100 = vmatpush1.msra.mxu0 0.0
    %6101 = vmatprep.subr.mxu0 0.0
    %6102 = vmatpush1.msra.mxu0 0.0
    %6103 = vmatprep.subr.mxu0 0.0
    %6104 = vmatpush1.msra.mxu0 0.0
    %6105 = vmatprep.subr.mxu0 0.0
    %6106 = vmatpush1.msra.mxu0 0.0
    %6107 = vmatprep.subr.mxu0 0.0
    %6108 = vmatpush1.msra.mxu0 0.0
    %6109 = vmatprep.subr.mxu0 0.0
    %6110 = vmatpush1.msra.mxu0 0.0
    %6111 = vmatprep.subr.mxu0 0.0
    %6112 = vmatpush1.msra.mxu0 0.0
    %6113 = vmatprep.subr.mxu0 0.0
    %6114 = vmatpush1.msra.mxu0 0.0
    %6115 = vmatprep.subr.mxu0 0.0
    %6116 = vmatpush1.msra.mxu0 0.0
    %6117 = vmatprep.subr.mxu0 0.0
    %6118 = vmatpush1.msra.mxu0 0.0
    %6119 = vmatprep.subr.mxu0 0.0
    %6120 = vmatpush1.msra.mxu0 0.0
    %6121 = vmatprep.subr.mxu0 0.0
    %6122 = vmatpush1.msra.mxu0 0.0
    %6123 = vmatprep.subr.mxu0 0.0
    %6124 = vmatpush1.msra.mxu0 0.0
    %6125 = vmatprep.subr.mxu0 0.0
    %6126 = vmatpush1.msra.mxu0 0.0
    %6127 = vmatprep.subr.mxu0 0.0
    %6128 = vmatpush1.msra.mxu0 0.0
    %6129 = vmatprep.subr.mxu0 0.0
    %6130 = vmatpush1.msra.mxu0 0.0
    %6131 = vmatprep.subr.mxu0 0.0
    %6132 = vmatpush1.msra.mxu0 0.0
    %6133 = vmatprep.subr.mxu0 0.0
    %6134 = vmatpush1.msra.mxu0 0.0
    %6135 = vmatprep.subr.mxu0 0.0
    %6136 = vmatpush1.msra.mxu0 0.0
    %6137 = vmatprep.mubr.f32.mxu0 0.0
    %v6138 = vand.u32 %v5893, 4294901760
    %v6139 = vsub.f32 %v5893, %v6138
    %6140 = vmatmul.mubr.f32.gmra.mrb[0].mxu0 %v6139
    %v6141 = vpop.f32.mrb[0].mxu0
    %v6142 = vadd.f32 %v6062, %v6141
    %v6143 = vpop.f32.mrb[0].mxu0
    %6144 = vdwg.mxu0
    %6145 = vmatprep.subr.mxu0 0.0
    %v6146 = vand.u32 %v29, 4294901760
    %6147 = vmatpush1.msra.mxu0 %v6146
    %6148 = vmatprep.subr.mxu0 0.0
    %v6149 = vand.u32 %v30, 4294901760
    %6150 = vmatpush1.msra.mxu0 %v6149
    %6151 = vmatprep.subr.mxu0 0.0
    %v6152 = vand.u32 %v31, 4294901760
    %6153 = vmatpush1.msra.mxu0 %v6152
    %6154 = vmatprep.subr.mxu0 0.0
    %v6155 = vand.u32 %v32, 4294901760
    %6156 = vmatpush1.msra.mxu0 %v6155
    %6157 = vmatprep.subr.mxu0 0.0
    %6158 = vmatpush1.msra.mxu0 0.0
    %6159 = vmatprep.subr.mxu0 0.0
    %6160 = vmatpush1.msra.mxu0 0.0
    %6161 = vmatprep.subr.mxu0 0.0
    %6162 = vmatpush1.msra.mxu0 0.0
    %6163 = vmatprep.subr.mxu0 0.0
    %6164 = vmatpush1.msra.mxu0 0.0
    %6165 = vmatprep.subr.mxu0 0.0
    %6166 = vmatpush1.msra.mxu0 0.0
    %6167 = vmatprep.subr.mxu0 0.0
    %6168 = vmatpush1.msra.mxu0 0.0
    %6169 = vmatprep.subr.mxu0 0.0
    %6170 = vmatpush1.msra.mxu0 0.0
    %6171 = vmatprep.subr.mxu0 0.0
    %6172 = vmatpush1.msra.mxu0 0.0
    %6173 = vmatprep.subr.mxu0 0.0
    %6174 = vmatpush1.msra.mxu0 0.0
    %6175 = vmatprep.subr.mxu0 0.0
    %6176 = vmatpush1.msra.mxu0 0.0
    %6177 = vmatprep.subr.mxu0 0.0
    %6178 = vmatpush1.msra.mxu0 0.0
    %6179 = vmatprep.subr.mxu0 0.0
    %6180 = vmatpush1.msra.mxu0 0.0
    %6181 = vmatprep.subr.mxu0 0.0
    %6182 = vmatpush1.msra.mxu0 0.0
    %6183 = vmatprep.subr.mxu0 0.0
    %6184 = vmatpush1.msra.mxu0 0.0
    %6185 = vmatprep.subr.mxu0 0.0
    %6186 = vmatpush1.msra.mxu0 0.0
    %6187 = vmatprep.subr.mxu0 0.0
    %6188 = vmatpush1.msra.mxu0 0.0
    %6189 = vmatprep.subr.mxu0 0.0
    %6190 = vmatpush1.msra.mxu0 0.0
    %6191 = vmatprep.subr.mxu0 0.0
    %6192 = vmatpush1.msra.mxu0 0.0
    %6193 = vmatprep.subr.mxu0 0.0
    %6194 = vmatpush1.msra.mxu0 0.0
    %6195 = vmatprep.subr.mxu0 0.0
    %6196 = vmatpush1.msra.mxu0 0.0
    %6197 = vmatprep.subr.mxu0 0.0
    %6198 = vmatpush1.msra.mxu0 0.0
    %6199 = vmatprep.subr.mxu0 0.0
    %6200 = vmatpush1.msra.mxu0 0.0
    %6201 = vmatprep.subr.mxu0 0.0
    %6202 = vmatpush1.msra.mxu0 0.0
    %6203 = vmatprep.subr.mxu0 0.0
    %6204 = vmatpush1.msra.mxu0 0.0
    %6205 = vmatprep.subr.mxu0 0.0
    %6206 = vmatpush1.msra.mxu0 0.0
    %6207 = vmatprep.subr.mxu0 0.0
    %6208 = vmatpush1.msra.mxu0 0.0
    %6209 = vmatprep.subr.mxu0 0.0
    %6210 = vmatpush1.msra.mxu0 0.0
    %6211 = vmatprep.subr.mxu0 0.0
    %6212 = vmatpush1.msra.mxu0 0.0
    %6213 = vmatprep.mubr.f32.mxu0 0.0
    %v6214 = vand.u32 %v5893, 4294901760
    %v6215 = vsub.f32 %v5893, %v6214
    %v6216 = vand.u32 %v6215, 4294901760
    %6217 = vmatmul.mubr.f32.gmra.mrb[0].mxu0 %v6216
    %v6218 = vpop.f32.mrb[0].mxu0
    %v6219 = vadd.f32 %v6142, %v6218
    %v6220 = vpop.f32.mrb[0].mxu0
    %6221 = vdwg.mxu0
    %6222 = vmatprep.subr.mxu0 0.0
    %v6223 = vand.u32 %v29, 4294901760
    %v6224 = vsub.f32 %v29, %v6223
    %v6225 = vand.u32 %v6224, 4294901760
    %6226 = vmatpush1.msra.mxu0 %v6225
    %6227 = vmatprep.subr.mxu0 0.0
    %v6228 = vand.u32 %v30, 4294901760
    %v6229 = vsub.f32 %v30, %v6228
    %v6230 = vand.u32 %v6229, 4294901760
    %6231 = vmatpush1.msra.mxu0 %v6230
    %6232 = vmatprep.subr.mxu0 0.0
    %v6233 = vand.u32 %v31, 4294901760
    %v6234 = vsub.f32 %v31, %v6233
    %v6235 = vand.u32 %v6234, 4294901760
    %6236 = vmatpush1.msra.mxu0 %v6235
    %6237 = vmatprep.subr.mxu0 0.0
    %v6238 = vand.u32 %v32, 4294901760
    %v6239 = vsub.f32 %v32, %v6238
    %v6240 = vand.u32 %v6239, 4294901760
    %6241 = vmatpush1.msra.mxu0 %v6240
    %6242 = vmatprep.subr.mxu0 0.0
    %6243 = vmatpush1.msra.mxu0 0.0
    %6244 = vmatprep.subr.mxu0 0.0
    %6245 = vmatpush1.msra.mxu0 0.0
    %6246 = vmatprep.subr.mxu0 0.0
    %6247 = vmatpush1.msra.mxu0 0.0
    %6248 = vmatprep.subr.mxu0 0.0
    %6249 = vmatpush1.msra.mxu0 0.0
    %6250 = vmatprep.subr.mxu0 0.0
    %6251 = vmatpush1.msra.mxu0 0.0
    %6252 = vmatprep.subr.mxu0 0.0
    %6253 = vmatpush1.msra.mxu0 0.0
    %6254 = vmatprep.subr.mxu0 0.0
    %6255 = vmatpush1.msra.mxu0 0.0
    %6256 = vmatprep.subr.mxu0 0.0
    %6257 = vmatpush1.msra.mxu0 0.0
    %6258 = vmatprep.subr.mxu0 0.0
    %6259 = vmatpush1.msra.mxu0 0.0
    %6260 = vmatprep.subr.mxu0 0.0
    %6261 = vmatpush1.msra.mxu0 0.0
    %6262 = vmatprep.subr.mxu0 0.0
    %6263 = vmatpush1.msra.mxu0 0.0
    %6264 = vmatprep.subr.mxu0 0.0
    %6265 = vmatpush1.msra.mxu0 0.0
    %6266 = vmatprep.subr.mxu0 0.0
    %6267 = vmatpush1.msra.mxu0 0.0
    %6268 = vmatprep.subr.mxu0 0.0
    %6269 = vmatpush1.msra.mxu0 0.0
    %6270 = vmatprep.subr.mxu0 0.0
    %6271 = vmatpush1.msra.mxu0 0.0
    %6272 = vmatprep.subr.mxu0 0.0
    %6273 = vmatpush1.msra.mxu0 0.0
    %6274 = vmatprep.subr.mxu0 0.0
    %6275 = vmatpush1.msra.mxu0 0.0
    %6276 = vmatprep.subr.mxu0 0.0
    %6277 = vmatpush1.msra.mxu0 0.0
    %6278 = vmatprep.subr.mxu0 0.0
    %6279 = vmatpush1.msra.mxu0 0.0
    %6280 = vmatprep.subr.mxu0 0.0
    %6281 = vmatpush1.msra.mxu0 0.0
    %6282 = vmatprep.subr.mxu0 0.0
    %6283 = vmatpush1.msra.mxu0 0.0
    %6284 = vmatprep.subr.mxu0 0.0
    %6285 = vmatpush1.msra.mxu0 0.0
    %6286 = vmatprep.subr.mxu0 0.0
    %6287 = vmatpush1.msra.mxu0 0.0
    %6288 = vmatprep.subr.mxu0 0.0
    %6289 = vmatpush1.msra.mxu0 0.0
    %6290 = vmatprep.subr.mxu0 0.0
    %6291 = vmatpush1.msra.mxu0 0.0
    %6292 = vmatprep.subr.mxu0 0.0
    %6293 = vmatpush1.msra.mxu0 0.0
    %6294 = vmatprep.subr.mxu0 0.0
    %6295 = vmatpush1.msra.mxu0 0.0
    %6296 = vmatprep.subr.mxu0 0.0
    %6297 = vmatpush1.msra.mxu0 0.0
    %6298 = vmatprep.mubr.f32.mxu0 0.0
    %v6299 = vand.u32 %v5893, 4294901760
    %6300 = vmatmul.mubr.f32.gmra.mrb[0].mxu0 %v6299
    %v6301 = vpop.f32.mrb[0].mxu0
    %v6302 = vadd.f32 %v6219, %v6301
    %v6303 = vpop.f32.mrb[0].mxu0
    %6304 = vdwg.mxu0
    %6305 = vmatprep.subr.mxu0 0.0
    %v6306 = vand.u32 %v29, 4294901760
    %6307 = vmatpush1.msra.mxu0 %v6306
    %6308 = vmatprep.subr.mxu0 0.0
    %v6309 = vand.u32 %v30, 4294901760
    %6310 = vmatpush1.msra.mxu0 %v6309
    %6311 = vmatprep.subr.mxu0 0.0
    %v6312 = vand.u32 %v31, 4294901760
    %6313 = vmatpush1.msra.mxu0 %v6312
    %6314 = vmatprep.subr.mxu0 0.0
    %v6315 = vand.u32 %v32, 4294901760
    %6316 = vmatpush1.msra.mxu0 %v6315
    %6317 = vmatprep.subr.mxu0 0.0
    %6318 = vmatpush1.msra.mxu0 0.0
    %6319 = vmatprep.subr.mxu0 0.0
    %6320 = vmatpush1.msra.mxu0 0.0
    %6321 = vmatprep.subr.mxu0 0.0
    %6322 = vmatpush1.msra.mxu0 0.0
    %6323 = vmatprep.subr.mxu0 0.0
    %6324 = vmatpush1.msra.mxu0 0.0
    %6325 = vmatprep.subr.mxu0 0.0
    %6326 = vmatpush1.msra.mxu0 0.0
    %6327 = vmatprep.subr.mxu0 0.0
    %6328 = vmatpush1.msra.mxu0 0.0
    %6329 = vmatprep.subr.mxu0 0.0
    %6330 = vmatpush1.msra.mxu0 0.0
    %6331 = vmatprep.subr.mxu0 0.0
    %6332 = vmatpush1.msra.mxu0 0.0
    %6333 = vmatprep.subr.mxu0 0.0
    %6334 = vmatpush1.msra.mxu0 0.0
    %6335 = vmatprep.subr.mxu0 0.0
    %6336 = vmatpush1.msra.mxu0 0.0
    %6337 = vmatprep.subr.mxu0 0.0
    %6338 = vmatpush1.msra.mxu0 0.0
    %6339 = vmatprep.subr.mxu0 0.0
    %6340 = vmatpush1.msra.mxu0 0.0
    %6341 = vmatprep.subr.mxu0 0.0
    %6342 = vmatpush1.msra.mxu0 0.0
    %6343 = vmatprep.subr.mxu0 0.0
    %6344 = vmatpush1.msra.mxu0 0.0
    %6345 = vmatprep.subr.mxu0 0.0
    %6346 = vmatpush1.msra.mxu0 0.0
    %6347 = vmatprep.subr.mxu0 0.0
    %6348 = vmatpush1.msra.mxu0 0.0
    %6349 = vmatprep.subr.mxu0 0.0
    %6350 = vmatpush1.msra.mxu0 0.0
    %6351 = vmatprep.subr.mxu0 0.0
    %6352 = vmatpush1.msra.mxu0 0.0
    %6353 = vmatprep.subr.mxu0 0.0
    %6354 = vmatpush1.msra.mxu0 0.0
    %6355 = vmatprep.subr.mxu0 0.0
    %6356 = vmatpush1.msra.mxu0 0.0
    %6357 = vmatprep.subr.mxu0 0.0
    %6358 = vmatpush1.msra.mxu0 0.0
    %6359 = vmatprep.subr.mxu0 0.0
    %6360 = vmatpush1.msra.mxu0 0.0
    %6361 = vmatprep.subr.mxu0 0.0
    %6362 = vmatpush1.msra.mxu0 0.0
    %6363 = vmatprep.subr.mxu0 0.0
    %6364 = vmatpush1.msra.mxu0 0.0
    %6365 = vmatprep.subr.mxu0 0.0
    %6366 = vmatpush1.msra.mxu0 0.0
    %6367 = vmatprep.subr.mxu0 0.0
    %6368 = vmatpush1.msra.mxu0 0.0
    %6369 = vmatprep.subr.mxu0 0.0
    %6370 = vmatpush1.msra.mxu0 0.0
    %6371 = vmatprep.subr.mxu0 0.0
    %6372 = vmatpush1.msra.mxu0 0.0
    %6373 = vmatprep.mubr.f32.mxu0 0.0
    %v6374 = vand.u32 %v5893, 4294901760
    %6375 = vmatmul.mubr.f32.gmra.mrb[0].mxu0 %v6374
    %v6376 = vpop.f32.mrb[0].mxu0
    %v6377 = vadd.f32 %v6302, %v6376
    %v6378 = vpop.f32.mrb[0].mxu0
    %6379 = vdwg.mxu0
    %v6380 = vadd.f32 %v2068, %v6377
    %v6381 = vxor.u32 %v6380, 2147483648
    %v6382 = vmul.f32 %v6381, 1.442695
    %v6383 = vpow.pop %v6382
    %v6384 = vadd.f32 %v6383, 1.0
    %v6385 = vrcp.pop %v6384
    %v6386 = vmul.f32 1.0, %v6385
    %6388 = vrot.lane.b32.xlu0 %v6377, 64
    %v6389 = vpop.permute.xlu0 %6388
    %v6391 = vmul.f32 %v6386, %v6389
    %6393 = vrot.lane.b32.xlu0 %v6391, 64
    %v6394 = vpop.permute.xlu0 %6393
    %v6396 = vadd.f32 %v2068, %v6394
    %v6397 = vtanh.pop %v6396
    %v6398 = vsub.f32 1.0, %v6386
    %6400 = vrot.lane.b32.xlu0 %v6397, 96
    %v6401 = vpop.permute.xlu0 %6400
    %v6403 = vmul.f32 %v6398, %v6401
    %v6404 = vmul.f32 %v6386, %v5889
    %v6405 = vadd.f32 %v6403, %v6404
    %6406 = vset.pattern.permute.xlu0 6
    %6407 = vperm.xlu0 %6406, %v94
    %v6408 = vpop.permute.xlu0 %6407
    %v6410 = vmul.f32 %v6405, %v6408
    %6411 = vset.pattern.permute.xlu0 6
    %6412 = vperm.xlu0 %6411, %v3247
    %v6413 = vpop.permute.xlu0 %6412
    %v6415 = vmul.f32 %v6413, %v5889
    %v6416 = vadd.f32 %v6410, %v6415
    %6418 = vrot.lane.b32.xlu0 %v6416, 96
    %v6419 = vpop.permute.xlu0 %6418
    %v6420 = vsel %vm95, %v6419, 0
    %6422 = vmatprep.subr.mxu0 0.0
    %v6423 = vand.u32 %v29, 4294901760
    %6424 = vmatpush1.msra.mxu0 %v6423
    %6425 = vmatprep.subr.mxu0 0.0
    %v6426 = vand.u32 %v30, 4294901760
    %6427 = vmatpush1.msra.mxu0 %v6426
    %6428 = vmatprep.subr.mxu0 0.0
    %v6429 = vand.u32 %v31, 4294901760
    %6430 = vmatpush1.msra.mxu0 %v6429
    %6431 = vmatprep.subr.mxu0 0.0
    %v6432 = vand.u32 %v32, 4294901760
    %6433 = vmatpush1.msra.mxu0 %v6432
    %6434 = vmatprep.subr.mxu0 0.0
    %6435 = vmatpush1.msra.mxu0 0.0
    %6436 = vmatprep.subr.mxu0 0.0
    %6437 = vmatpush1.msra.mxu0 0.0
    %6438 = vmatprep.subr.mxu0 0.0
    %6439 = vmatpush1.msra.mxu0 0.0
    %6440 = vmatprep.subr.mxu0 0.0
    %6441 = vmatpush1.msra.mxu0 0.0
    %6442 = vmatprep.subr.mxu0 0.0
    %6443 = vmatpush1.msra.mxu0 0.0
    %6444 = vmatprep.subr.mxu0 0.0
    %6445 = vmatpush1.msra.mxu0 0.0
    %6446 = vmatprep.subr.mxu0 0.0
    %6447 = vmatpush1.msra.mxu0 0.0
    %6448 = vmatprep.subr.mxu0 0.0
    %6449 = vmatpush1.msra.mxu0 0.0
    %6450 = vmatprep.subr.mxu0 0.0
    %6451 = vmatpush1.msra.mxu0 0.0
    %6452 = vmatprep.subr.mxu0 0.0
    %6453 = vmatpush1.msra.mxu0 0.0
    %6454 = vmatprep.subr.mxu0 0.0
    %6455 = vmatpush1.msra.mxu0 0.0
    %6456 = vmatprep.subr.mxu0 0.0
    %6457 = vmatpush1.msra.mxu0 0.0
    %6458 = vmatprep.subr.mxu0 0.0
    %6459 = vmatpush1.msra.mxu0 0.0
    %6460 = vmatprep.subr.mxu0 0.0
    %6461 = vmatpush1.msra.mxu0 0.0
    %6462 = vmatprep.subr.mxu0 0.0
    %6463 = vmatpush1.msra.mxu0 0.0
    %6464 = vmatprep.subr.mxu0 0.0
    %6465 = vmatpush1.msra.mxu0 0.0
    %6466 = vmatprep.subr.mxu0 0.0
    %6467 = vmatpush1.msra.mxu0 0.0
    %6468 = vmatprep.subr.mxu0 0.0
    %6469 = vmatpush1.msra.mxu0 0.0
    %6470 = vmatprep.subr.mxu0 0.0
    %6471 = vmatpush1.msra.mxu0 0.0
    %6472 = vmatprep.subr.mxu0 0.0
    %6473 = vmatpush1.msra.mxu0 0.0
    %6474 = vmatprep.subr.mxu0 0.0
    %6475 = vmatpush1.msra.mxu0 0.0
    %6476 = vmatprep.subr.mxu0 0.0
    %6477 = vmatpush1.msra.mxu0 0.0
    %6478 = vmatprep.subr.mxu0 0.0
    %6479 = vmatpush1.msra.mxu0 0.0
    %6480 = vmatprep.subr.mxu0 0.0
    %6481 = vmatpush1.msra.mxu0 0.0
    %6482 = vmatprep.subr.mxu0 0.0
    %6483 = vmatpush1.msra.mxu0 0.0
    %6484 = vmatprep.subr.mxu0 0.0
    %6485 = vmatpush1.msra.mxu0 0.0
    %6486 = vmatprep.subr.mxu0 0.0
    %6487 = vmatpush1.msra.mxu0 0.0
    %6488 = vmatprep.subr.mxu0 0.0
    %6489 = vmatpush1.msra.mxu0 0.0
    %6490 = vmatprep.mubr.f32.mxu0 0.0
    %v6491 = vand.u32 %v6420, 4294901760
    %v6492 = vsub.f32 %v6420, %v6491
    %v6493 = vand.u32 %v6492, 4294901760
    %v6494 = vsub.f32 %v6492, %v6493
    %v6495 = vand.u32 %v6494, 4294901760
    %6496 = vmatmul.mubr.f32.gmra.mrb[0].mxu0 %v6495
    %v6497 = vpop.f32.mrb[0].mxu0
    %v6498 = vadd.f32 %v59, %v6497
    %v6499 = vpop.f32.mrb[0].mxu0
    %6500 = vdwg.mxu0
    %6501 = vmatprep.subr.mxu0 0.0
    %v6502 = vand.u32 %v29, 4294901760
    %v6503 = vsub.f32 %v29, %v6502
    %v6504 = vand.u32 %v6503, 4294901760
    %v6505 = vsub.f32 %v6503, %v6504
    %v6506 = vand.u32 %v6505, 4294901760
    %6507 = vmatpush1.msra.mxu0 %v6506
    %6508 = vmatprep.subr.mxu0 0.0
    %v6509 = vand.u32 %v30, 4294901760
    %v6510 = vsub.f32 %v30, %v6509
    %v6511 = vand.u32 %v6510, 4294901760
    %v6512 = vsub.f32 %v6510, %v6511
    %v6513 = vand.u32 %v6512, 4294901760
    %6514 = vmatpush1.msra.mxu0 %v6513
    %6515 = vmatprep.subr.mxu0 0.0
    %v6516 = vand.u32 %v31, 4294901760
    %v6517 = vsub.f32 %v31, %v6516
    %v6518 = vand.u32 %v6517, 4294901760
    %v6519 = vsub.f32 %v6517, %v6518
    %v6520 = vand.u32 %v6519, 4294901760
    %6521 = vmatpush1.msra.mxu0 %v6520
    %6522 = vmatprep.subr.mxu0 0.0
    %v6523 = vand.u32 %v32, 4294901760
    %v6524 = vsub.f32 %v32, %v6523
    %v6525 = vand.u32 %v6524, 4294901760
    %v6526 = vsub.f32 %v6524, %v6525
    %v6527 = vand.u32 %v6526, 4294901760
    %6528 = vmatpush1.msra.mxu0 %v6527
    %6529 = vmatprep.subr.mxu0 0.0
    %6530 = vmatpush1.msra.mxu0 0.0
    %6531 = vmatprep.subr.mxu0 0.0
    %6532 = vmatpush1.msra.mxu0 0.0
    %6533 = vmatprep.subr.mxu0 0.0
    %6534 = vmatpush1.msra.mxu0 0.0
    %6535 = vmatprep.subr.mxu0 0.0
    %6536 = vmatpush1.msra.mxu0 0.0
    %6537 = vmatprep.subr.mxu0 0.0
    %6538 = vmatpush1.msra.mxu0 0.0
    %6539 = vmatprep.subr.mxu0 0.0
    %6540 = vmatpush1.msra.mxu0 0.0
    %6541 = vmatprep.subr.mxu0 0.0
    %6542 = vmatpush1.msra.mxu0 0.0
    %6543 = vmatprep.subr.mxu0 0.0
    %6544 = vmatpush1.msra.mxu0 0.0
    %6545 = vmatprep.subr.mxu0 0.0
    %6546 = vmatpush1.msra.mxu0 0.0
    %6547 = vmatprep.subr.mxu0 0.0
    %6548 = vmatpush1.msra.mxu0 0.0
    %6549 = vmatprep.subr.mxu0 0.0
    %6550 = vmatpush1.msra.mxu0 0.0
    %6551 = vmatprep.subr.mxu0 0.0
    %6552 = vmatpush1.msra.mxu0 0.0
    %6553 = vmatprep.subr.mxu0 0.0
    %6554 = vmatpush1.msra.mxu0 0.0
    %6555 = vmatprep.subr.mxu0 0.0
    %6556 = vmatpush1.msra.mxu0 0.0
    %6557 = vmatprep.subr.mxu0 0.0
    %6558 = vmatpush1.msra.mxu0 0.0
    %6559 = vmatprep.subr.mxu0 0.0
    %6560 = vmatpush1.msra.mxu0 0.0
    %6561 = vmatprep.subr.mxu0 0.0
    %6562 = vmatpush1.msra.mxu0 0.0
    %6563 = vmatprep.subr.mxu0 0.0
    %6564 = vmatpush1.msra.mxu0 0.0
    %6565 = vmatprep.subr.mxu0 0.0
    %6566 = vmatpush1.msra.mxu0 0.0
    %6567 = vmatprep.subr.mxu0 0.0
    %6568 = vmatpush1.msra.mxu0 0.0
    %6569 = vmatprep.subr.mxu0 0.0
    %6570 = vmatpush1.msra.mxu0 0.0
    %6571 = vmatprep.subr.mxu0 0.0
    %6572 = vmatpush1.msra.mxu0 0.0
    %6573 = vmatprep.subr.mxu0 0.0
    %6574 = vmatpush1.msra.mxu0 0.0
    %6575 = vmatprep.subr.mxu0 0.0
    %6576 = vmatpush1.msra.mxu0 0.0
    %6577 = vmatprep.subr.mxu0 0.0
    %6578 = vmatpush1.msra.mxu0 0.0
    %6579 = vmatprep.subr.mxu0 0.0
    %6580 = vmatpush1.msra.mxu0 0.0
    %6581 = vmatprep.subr.mxu0 0.0
    %6582 = vmatpush1.msra.mxu0 0.0
    %6583 = vmatprep.subr.mxu0 0.0
    %6584 = vmatpush1.msra.mxu0 0.0
    %6585 = vmatprep.mubr.f32.mxu0 0.0
    %v6586 = vand.u32 %v6420, 4294901760
    %6587 = vmatmul.mubr.f32.gmra.mrb[0].mxu0 %v6586
    %v6588 = vpop.f32.mrb[0].mxu0
    %v6589 = vadd.f32 %v6498, %v6588
    %v6590 = vpop.f32.mrb[0].mxu0
    %6591 = vdwg.mxu0
    %6592 = vmatprep.subr.mxu0 0.0
    %v6593 = vand.u32 %v29, 4294901760
    %v6594 = vsub.f32 %v29, %v6593
    %6595 = vmatpush1.msra.mxu0 %v6594
    %6596 = vmatprep.subr.mxu0 0.0
    %v6597 = vand.u32 %v30, 4294901760
    %v6598 = vsub.f32 %v30, %v6597
    %6599 = vmatpush1.msra.mxu0 %v6598
    %6600 = vmatprep.subr.mxu0 0.0
    %v6601 = vand.u32 %v31, 4294901760
    %v6602 = vsub.f32 %v31, %v6601
    %6603 = vmatpush1.msra.mxu0 %v6602
    %6604 = vmatprep.subr.mxu0 0.0
    %v6605 = vand.u32 %v32, 4294901760
    %v6606 = vsub.f32 %v32, %v6605
    %6607 = vmatpush1.msra.mxu0 %v6606
    %6608 = vmatprep.subr.mxu0 0.0
    %6609 = vmatpush1.msra.mxu0 0.0
    %6610 = vmatprep.subr.mxu0 0.0
    %6611 = vmatpush1.msra.mxu0 0.0
    %6612 = vmatprep.subr.mxu0 0.0
    %6613 = vmatpush1.msra.mxu0 0.0
    %6614 = vmatprep.subr.mxu0 0.0
    %6615 = vmatpush1.msra.mxu0 0.0
    %6616 = vmatprep.subr.mxu0 0.0
    %6617 = vmatpush1.msra.mxu0 0.0
    %6618 = vmatprep.subr.mxu0 0.0
    %6619 = vmatpush1.msra.mxu0 0.0
    %6620 = vmatprep.subr.mxu0 0.0
    %6621 = vmatpush1.msra.mxu0 0.0
    %6622 = vmatprep.subr.mxu0 0.0
    %6623 = vmatpush1.msra.mxu0 0.0
    %6624 = vmatprep.subr.mxu0 0.0
    %6625 = vmatpush1.msra.mxu0 0.0
    %6626 = vmatprep.subr.mxu0 0.0
    %6627 = vmatpush1.msra.mxu0 0.0
    %6628 = vmatprep.subr.mxu0 0.0
    %6629 = vmatpush1.msra.mxu0 0.0
    %6630 = vmatprep.subr.mxu0 0.0
    %6631 = vmatpush1.msra.mxu0 0.0
    %6632 = vmatprep.subr.mxu0 0.0
    %6633 = vmatpush1.msra.mxu0 0.0
    %6634 = vmatprep.subr.mxu0 0.0
    %6635 = vmatpush1.msra.mxu0 0.0
    %6636 = vmatprep.subr.mxu0 0.0
    %6637 = vmatpush1.msra.mxu0 0.0
    %6638 = vmatprep.subr.mxu0 0.0
    %6639 = vmatpush1.msra.mxu0 0.0
    %6640 = vmatprep.subr.mxu0 0.0
    %6641 = vmatpush1.msra.mxu0 0.0
    %6642 = vmatprep.subr.mxu0 0.0
    %6643 = vmatpush1.msra.mxu0 0.0
    %6644 = vmatprep.subr.mxu0 0.0
    %6645 = vmatpush1.msra.mxu0 0.0
    %6646 = vmatprep.subr.mxu0 0.0
    %6647 = vmatpush1.msra.mxu0 0.0
    %6648 = vmatprep.subr.mxu0 0.0
    %6649 = vmatpush1.msra.mxu0 0.0
    %6650 = vmatprep.subr.mxu0 0.0
    %6651 = vmatpush1.msra.mxu0 0.0
    %6652 = vmatprep.subr.mxu0 0.0
    %6653 = vmatpush1.msra.mxu0 0.0
    %6654 = vmatprep.subr.mxu0 0.0
    %6655 = vmatpush1.msra.mxu0 0.0
    %6656 = vmatprep.subr.mxu0 0.0
    %6657 = vmatpush1.msra.mxu0 0.0
    %6658 = vmatprep.subr.mxu0 0.0
    %6659 = vmatpush1.msra.mxu0 0.0
    %6660 = vmatprep.subr.mxu0 0.0
    %6661 = vmatpush1.msra.mxu0 0.0
    %6662 = vmatprep.subr.mxu0 0.0
    %6663 = vmatpush1.msra.mxu0 0.0
    %6664 = vmatprep.mubr.f32.mxu0 0.0
    %v6665 = vand.u32 %v6420, 4294901760
    %v6666 = vsub.f32 %v6420, %v6665
    %6667 = vmatmul.mubr.f32.gmra.mrb[0].mxu0 %v6666
    %v6668 = vpop.f32.mrb[0].mxu0
    %v6669 = vadd.f32 %v6589, %v6668
    %v6670 = vpop.f32.mrb[0].mxu0
    %6671 = vdwg.mxu0
    %6672 = vmatprep.subr.mxu0 0.0
    %v6673 = vand.u32 %v29, 4294901760
    %6674 = vmatpush1.msra.mxu0 %v6673
    %6675 = vmatprep.subr.mxu0 0.0
    %v6676 = vand.u32 %v30, 4294901760
    %6677 = vmatpush1.msra.mxu0 %v6676
    %6678 = vmatprep.subr.mxu0 0.0
    %v6679 = vand.u32 %v31, 4294901760
    %6680 = vmatpush1.msra.mxu0 %v6679
    %6681 = vmatprep.subr.mxu0 0.0
    %v6682 = vand.u32 %v32, 4294901760
    %6683 = vmatpush1.msra.mxu0 %v6682
    %6684 = vmatprep.subr.mxu0 0.0
    %6685 = vmatpush1.msra.mxu0 0.0
    %6686 = vmatprep.subr.mxu0 0.0
    %6687 = vmatpush1.msra.mxu0 0.0
    %6688 = vmatprep.subr.mxu0 0.0
    %6689 = vmatpush1.msra.mxu0 0.0
    %6690 = vmatprep.subr.mxu0 0.0
    %6691 = vmatpush1.msra.mxu0 0.0
    %6692 = vmatprep.subr.mxu0 0.0
    %6693 = vmatpush1.msra.mxu0 0.0
    %6694 = vmatprep.subr.mxu0 0.0
    %6695 = vmatpush1.msra.mxu0 0.0
    %6696 = vmatprep.subr.mxu0 0.0
    %6697 = vmatpush1.msra.mxu0 0.0
    %6698 = vmatprep.subr.mxu0 0.0
    %6699 = vmatpush1.msra.mxu0 0.0
    %6700 = vmatprep.subr.mxu0 0.0
    %6701 = vmatpush1.msra.mxu0 0.0
    %6702 = vmatprep.subr.mxu0 0.0
    %6703 = vmatpush1.msra.mxu0 0.0
    %6704 = vmatprep.subr.mxu0 0.0
    %6705 = vmatpush1.msra.mxu0 0.0
    %6706 = vmatprep.subr.mxu0 0.0
    %6707 = vmatpush1.msra.mxu0 0.0
    %6708 = vmatprep.subr.mxu0 0.0
    %6709 = vmatpush1.msra.mxu0 0.0
    %6710 = vmatprep.subr.mxu0 0.0
    %6711 = vmatpush1.msra.mxu0 0.0
    %6712 = vmatprep.subr.mxu0 0.0
    %6713 = vmatpush1.msra.mxu0 0.0
    %6714 = vmatprep.subr.mxu0 0.0
    %6715 = vmatpush1.msra.mxu0 0.0
    %6716 = vmatprep.subr.mxu0 0.0
    %6717 = vmatpush1.msra.mxu0 0.0
    %6718 = vmatprep.subr.mxu0 0.0
    %6719 = vmatpush1.msra.mxu0 0.0
    %6720 = vmatprep.subr.mxu0 0.0
    %6721 = vmatpush1.msra.mxu0 0.0
    %6722 = vmatprep.subr.mxu0 0.0
    %6723 = vmatpush1.msra.mxu0 0.0
    %6724 = vmatprep.subr.mxu0 0.0
    %6725 = vmatpush1.msra.mxu0 0.0
    %6726 = vmatprep.subr.mxu0 0.0
    %6727 = vmatpush1.msra.mxu0 0.0
    %6728 = vmatprep.subr.mxu0 0.0
    %6729 = vmatpush1.msra.mxu0 0.0
    %6730 = vmatprep.subr.mxu0 0.0
    %6731 = vmatpush1.msra.mxu0 0.0
    %6732 = vmatprep.subr.mxu0 0.0
    %6733 = vmatpush1.msra.mxu0 0.0
    %6734 = vmatprep.subr.mxu0 0.0
    %6735 = vmatpush1.msra.mxu0 0.0
    %6736 = vmatprep.subr.mxu0 0.0
    %6737 = vmatpush1.msra.mxu0 0.0
    %6738 = vmatprep.subr.mxu0 0.0
    %6739 = vmatpush1.msra.mxu0 0.0
    %6740 = vmatprep.mubr.f32.mxu0 0.0
    %v6741 = vand.u32 %v6420, 4294901760
    %v6742 = vsub.f32 %v6420, %v6741
    %v6743 = vand.u32 %v6742, 4294901760
    %6744 = vmatmul.mubr.f32.gmra.mrb[0].mxu0 %v6743
    %v6745 = vpop.f32.mrb[0].mxu0
    %v6746 = vadd.f32 %v6669, %v6745
    %v6747 = vpop.f32.mrb[0].mxu0
    %6748 = vdwg.mxu0
    %6749 = vmatprep.subr.mxu0 0.0
    %v6750 = vand.u32 %v29, 4294901760
    %v6751 = vsub.f32 %v29, %v6750
    %v6752 = vand.u32 %v6751, 4294901760
    %6753 = vmatpush1.msra.mxu0 %v6752
    %6754 = vmatprep.subr.mxu0 0.0
    %v6755 = vand.u32 %v30, 4294901760
    %v6756 = vsub.f32 %v30, %v6755
    %v6757 = vand.u32 %v6756, 4294901760
    %6758 = vmatpush1.msra.mxu0 %v6757
    %6759 = vmatprep.subr.mxu0 0.0
    %v6760 = vand.u32 %v31, 4294901760
    %v6761 = vsub.f32 %v31, %v6760
    %v6762 = vand.u32 %v6761, 4294901760
    %6763 = vmatpush1.msra.mxu0 %v6762
    %6764 = vmatprep.subr.mxu0 0.0
    %v6765 = vand.u32 %v32, 4294901760
    %v6766 = vsub.f32 %v32, %v6765
    %v6767 = vand.u32 %v6766, 4294901760
    %6768 = vmatpush1.msra.mxu0 %v6767
    %6769 = vmatprep.subr.mxu0 0.0
    %6770 = vmatpush1.msra.mxu0 0.0
    %6771 = vmatprep.subr.mxu0 0.0
    %6772 = vmatpush1.msra.mxu0 0.0
    %6773 = vmatprep.subr.mxu0 0.0
    %6774 = vmatpush1.msra.mxu0 0.0
    %6775 = vmatprep.subr.mxu0 0.0
    %6776 = vmatpush1.msra.mxu0 0.0
    %6777 = vmatprep.subr.mxu0 0.0
    %6778 = vmatpush1.msra.mxu0 0.0
    %6779 = vmatprep.subr.mxu0 0.0
    %6780 = vmatpush1.msra.mxu0 0.0
    %6781 = vmatprep.subr.mxu0 0.0
    %6782 = vmatpush1.msra.mxu0 0.0
    %6783 = vmatprep.subr.mxu0 0.0
    %6784 = vmatpush1.msra.mxu0 0.0
    %6785 = vmatprep.subr.mxu0 0.0
    %6786 = vmatpush1.msra.mxu0 0.0
    %6787 = vmatprep.subr.mxu0 0.0
    %6788 = vmatpush1.msra.mxu0 0.0
    %6789 = vmatprep.subr.mxu0 0.0
    %6790 = vmatpush1.msra.mxu0 0.0
    %6791 = vmatprep.subr.mxu0 0.0
    %6792 = vmatpush1.msra.mxu0 0.0
    %6793 = vmatprep.subr.mxu0 0.0
    %6794 = vmatpush1.msra.mxu0 0.0
    %6795 = vmatprep.subr.mxu0 0.0
    %6796 = vmatpush1.msra.mxu0 0.0
    %6797 = vmatprep.subr.mxu0 0.0
    %6798 = vmatpush1.msra.mxu0 0.0
    %6799 = vmatprep.subr.mxu0 0.0
    %6800 = vmatpush1.msra.mxu0 0.0
    %6801 = vmatprep.subr.mxu0 0.0
    %6802 = vmatpush1.msra.mxu0 0.0
    %6803 = vmatprep.subr.mxu0 0.0
    %6804 = vmatpush1.msra.mxu0 0.0
    %6805 = vmatprep.subr.mxu0 0.0
    %6806 = vmatpush1.msra.mxu0 0.0
    %6807 = vmatprep.subr.mxu0 0.0
    %6808 = vmatpush1.msra.mxu0 0.0
    %6809 = vmatprep.subr.mxu0 0.0
    %6810 = vmatpush1.msra.mxu0 0.0
    %6811 = vmatprep.subr.mxu0 0.0
    %6812 = vmatpush1.msra.mxu0 0.0
    %6813 = vmatprep.subr.mxu0 0.0
    %6814 = vmatpush1.msra.mxu0 0.0
    %6815 = vmatprep.subr.mxu0 0.0
    %6816 = vmatpush1.msra.mxu0 0.0
    %6817 = vmatprep.subr.mxu0 0.0
    %6818 = vmatpush1.msra.mxu0 0.0
    %6819 = vmatprep.subr.mxu0 0.0
    %6820 = vmatpush1.msra.mxu0 0.0
    %6821 = vmatprep.subr.mxu0 0.0
    %6822 = vmatpush1.msra.mxu0 0.0
    %6823 = vmatprep.subr.mxu0 0.0
    %6824 = vmatpush1.msra.mxu0 0.0
    %6825 = vmatprep.mubr.f32.mxu0 0.0
    %v6826 = vand.u32 %v6420, 4294901760
    %6827 = vmatmul.mubr.f32.gmra.mrb[0].mxu0 %v6826
    %v6828 = vpop.f32.mrb[0].mxu0
    %v6829 = vadd.f32 %v6746, %v6828
    %v6830 = vpop.f32.mrb[0].mxu0
    %6831 = vdwg.mxu0
    %6832 = vmatprep.subr.mxu0 0.0
    %v6833 = vand.u32 %v29, 4294901760
    %6834 = vmatpush1.msra.mxu0 %v6833
    %6835 = vmatprep.subr.mxu0 0.0
    %v6836 = vand.u32 %v30, 4294901760
    %6837 = vmatpush1.msra.mxu0 %v6836
    %6838 = vmatprep.subr.mxu0 0.0
    %v6839 = vand.u32 %v31, 4294901760
    %6840 = vmatpush1.msra.mxu0 %v6839
    %6841 = vmatprep.subr.mxu0 0.0
    %v6842 = vand.u32 %v32, 4294901760
    %6843 = vmatpush1.msra.mxu0 %v6842
    %6844 = vmatprep.subr.mxu0 0.0
    %6845 = vmatpush1.msra.mxu0 0.0
    %6846 = vmatprep.subr.mxu0 0.0
    %6847 = vmatpush1.msra.mxu0 0.0
    %6848 = vmatprep.subr.mxu0 0.0
    %6849 = vmatpush1.msra.mxu0 0.0
    %6850 = vmatprep.subr.mxu0 0.0
    %6851 = vmatpush1.msra.mxu0 0.0
    %6852 = vmatprep.subr.mxu0 0.0
    %6853 = vmatpush1.msra.mxu0 0.0
    %6854 = vmatprep.subr.mxu0 0.0
    %6855 = vmatpush1.msra.mxu0 0.0
    %6856 = vmatprep.subr.mxu0 0.0
    %6857 = vmatpush1.msra.mxu0 0.0
    %6858 = vmatprep.subr.mxu0 0.0
    %6859 = vmatpush1.msra.mxu0 0.0
    %6860 = vmatprep.subr.mxu0 0.0
    %6861 = vmatpush1.msra.mxu0 0.0
    %6862 = vmatprep.subr.mxu0 0.0
    %6863 = vmatpush1.msra.mxu0 0.0
    %6864 = vmatprep.subr.mxu0 0.0
    %6865 = vmatpush1.msra.mxu0 0.0
    %6866 = vmatprep.subr.mxu0 0.0
    %6867 = vmatpush1.msra.mxu0 0.0
    %6868 = vmatprep.subr.mxu0 0.0
    %6869 = vmatpush1.msra.mxu0 0.0
    %6870 = vmatprep.subr.mxu0 0.0
    %6871 = vmatpush1.msra.mxu0 0.0
    %6872 = vmatprep.subr.mxu0 0.0
    %6873 = vmatpush1.msra.mxu0 0.0
    %6874 = vmatprep.subr.mxu0 0.0
    %6875 = vmatpush1.msra.mxu0 0.0
    %6876 = vmatprep.subr.mxu0 0.0
    %6877 = vmatpush1.msra.mxu0 0.0
    %6878 = vmatprep.subr.mxu0 0.0
    %6879 = vmatpush1.msra.mxu0 0.0
    %6880 = vmatprep.subr.mxu0 0.0
    %6881 = vmatpush1.msra.mxu0 0.0
    %6882 = vmatprep.subr.mxu0 0.0
    %6883 = vmatpush1.msra.mxu0 0.0
    %6884 = vmatprep.subr.mxu0 0.0
    %6885 = vmatpush1.msra.mxu0 0.0
    %6886 = vmatprep.subr.mxu0 0.0
    %6887 = vmatpush1.msra.mxu0 0.0
    %6888 = vmatprep.subr.mxu0 0.0
    %6889 = vmatpush1.msra.mxu0 0.0
    %6890 = vmatprep.subr.mxu0 0.0
    %6891 = vmatpush1.msra.mxu0 0.0
    %6892 = vmatprep.subr.mxu0 0.0
    %6893 = vmatpush1.msra.mxu0 0.0
    %6894 = vmatprep.subr.mxu0 0.0
    %6895 = vmatpush1.msra.mxu0 0.0
    %6896 = vmatprep.subr.mxu0 0.0
    %6897 = vmatpush1.msra.mxu0 0.0
    %6898 = vmatprep.subr.mxu0 0.0
    %6899 = vmatpush1.msra.mxu0 0.0
    %6900 = vmatprep.mubr.f32.mxu0 0.0
    %v6901 = vand.u32 %v6420, 4294901760
    %6902 = vmatmul.mubr.f32.gmra.mrb[0].mxu0 %v6901
    %v6903 = vpop.f32.mrb[0].mxu0
    %v6904 = vadd.f32 %v6829, %v6903
    %v6905 = vpop.f32.mrb[0].mxu0
    %6906 = vdwg.mxu0
    %v6907 = vadd.f32 %v2074, %v6904
    %v6908 = vxor.u32 %v6907, 2147483648
    %v6909 = vmul.f32 %v6908, 1.442695
    %v6910 = vpow.pop %v6909
    %v6911 = vadd.f32 %v6910, 1.0
    %v6912 = vrcp.pop %v6911
    %v6913 = vmul.f32 1.0, %v6912
    %6915 = vrot.lane.b32.xlu0 %v6904, 64
    %v6916 = vpop.permute.xlu0 %6915
    %v6918 = vmul.f32 %v6913, %v6916
    %6920 = vrot.lane.b32.xlu0 %v6918, 64
    %v6921 = vpop.permute.xlu0 %6920
    %v6923 = vadd.f32 %v2074, %v6921
    %v6924 = vtanh.pop %v6923
    %v6925 = vsub.f32 1.0, %v6913
    %6927 = vrot.lane.b32.xlu0 %v6924, 96
    %v6928 = vpop.permute.xlu0 %6927
    %v6930 = vmul.f32 %v6925, %v6928
    %v6931 = vmul.f32 %v6913, %v6416
    %v6932 = vadd.f32 %v6930, %v6931
    %6933 = vset.pattern.permute.xlu0 7
    %6934 = vperm.xlu0 %6933, %v94
    %v6935 = vpop.permute.xlu0 %6934
    %v6937 = vmul.f32 %v6932, %v6935
    %6938 = vset.pattern.permute.xlu0 7
    %6939 = vperm.xlu0 %6938, %v3247
    %v6940 = vpop.permute.xlu0 %6939
    %v6942 = vmul.f32 %v6940, %v6416
    %v6943 = vadd.f32 %v6937, %v6942
    %6945 = vrot.lane.b32.xlu0 %v6943, 96
    %v6946 = vpop.permute.xlu0 %6945
    %v6947 = vsel %vm95, %v6946, 0
    %6949 = vmatprep.subr.mxu0 0.0
    %v6950 = vand.u32 %v37, 4294901760
    %6951 = vmatpush1.msra.mxu0 %v6950
    %6952 = vmatprep.subr.mxu0 0.0
    %v6953 = vand.u32 %v38, 4294901760
    %6954 = vmatpush1.msra.mxu0 %v6953
    %6955 = vmatprep.subr.mxu0 0.0
    %v6956 = vand.u32 %v39, 4294901760
    %6957 = vmatpush1.msra.mxu0 %v6956
    %6958 = vmatprep.subr.mxu0 0.0
    %v6959 = vand.u32 %v40, 4294901760
    %6960 = vmatpush1.msra.mxu0 %v6959
    %6961 = vmatprep.subr.mxu0 0.0
    %6962 = vmatpush1.msra.mxu0 0.0
    %6963 = vmatprep.subr.mxu0 0.0
    %6964 = vmatpush1.msra.mxu0 0.0
    %6965 = vmatprep.subr.mxu0 0.0
    %6966 = vmatpush1.msra.mxu0 0.0
    %6967 = vmatprep.subr.mxu0 0.0
    %6968 = vmatpush1.msra.mxu0 0.0
    %6969 = vmatprep.subr.mxu0 0.0
    %6970 = vmatpush1.msra.mxu0 0.0
    %6971 = vmatprep.subr.mxu0 0.0
    %6972 = vmatpush1.msra.mxu0 0.0
    %6973 = vmatprep.subr.mxu0 0.0
    %6974 = vmatpush1.msra.mxu0 0.0
    %6975 = vmatprep.subr.mxu0 0.0
    %6976 = vmatpush1.msra.mxu0 0.0
    %6977 = vmatprep.subr.mxu0 0.0
    %6978 = vmatpush1.msra.mxu0 0.0
    %6979 = vmatprep.subr.mxu0 0.0
    %6980 = vmatpush1.msra.mxu0 0.0
    %6981 = vmatprep.subr.mxu0 0.0
    %6982 = vmatpush1.msra.mxu0 0.0
    %6983 = vmatprep.subr.mxu0 0.0
    %6984 = vmatpush1.msra.mxu0 0.0
    %6985 = vmatprep.subr.mxu0 0.0
    %6986 = vmatpush1.msra.mxu0 0.0
    %6987 = vmatprep.subr.mxu0 0.0
    %6988 = vmatpush1.msra.mxu0 0.0
    %6989 = vmatprep.subr.mxu0 0.0
    %6990 = vmatpush1.msra.mxu0 0.0
    %6991 = vmatprep.subr.mxu0 0.0
    %6992 = vmatpush1.msra.mxu0 0.0
    %6993 = vmatprep.subr.mxu0 0.0
    %6994 = vmatpush1.msra.mxu0 0.0
    %6995 = vmatprep.subr.mxu0 0.0
    %6996 = vmatpush1.msra.mxu0 0.0
    %6997 = vmatprep.subr.mxu0 0.0
    %6998 = vmatpush1.msra.mxu0 0.0
    %6999 = vmatprep.subr.mxu0 0.0
    %7000 = vmatpush1.msra.mxu0 0.0
    %7001 = vmatprep.subr.mxu0 0.0
    %7002 = vmatpush1.msra.mxu0 0.0
    %7003 = vmatprep.subr.mxu0 0.0
    %7004 = vmatpush1.msra.mxu0 0.0
    %7005 = vmatprep.subr.mxu0 0.0
    %7006 = vmatpush1.msra.mxu0 0.0
    %7007 = vmatprep.subr.mxu0 0.0
    %7008 = vmatpush1.msra.mxu0 0.0
    %7009 = vmatprep.subr.mxu0 0.0
    %7010 = vmatpush1.msra.mxu0 0.0
    %7011 = vmatprep.subr.mxu0 0.0
    %7012 = vmatpush1.msra.mxu0 0.0
    %7013 = vmatprep.subr.mxu0 0.0
    %7014 = vmatpush1.msra.mxu0 0.0
    %7015 = vmatprep.subr.mxu0 0.0
    %7016 = vmatpush1.msra.mxu0 0.0
    %7017 = vmatprep.mubr.f32.mxu0 0.0
    %v7018 = vand.u32 %v6947, 4294901760
    %v7019 = vsub.f32 %v6947, %v7018
    %v7020 = vand.u32 %v7019, 4294901760
    %v7021 = vsub.f32 %v7019, %v7020
    %v7022 = vand.u32 %v7021, 4294901760
    %7023 = vmatmul.mubr.f32.gmra.mrb[0].mxu0 %v7022
    %v7024 = vpop.f32.mrb[0].mxu0
    %v7025 = vadd.f32 %v63, %v7024
    %v7026 = vpop.f32.mrb[0].mxu0
    %7027 = vdwg.mxu0
    %7028 = vmatprep.subr.mxu0 0.0
    %v7029 = vand.u32 %v37, 4294901760
    %v7030 = vsub.f32 %v37, %v7029
    %v7031 = vand.u32 %v7030, 4294901760
    %v7032 = vsub.f32 %v7030, %v7031
    %v7033 = vand.u32 %v7032, 4294901760
    %7034 = vmatpush1.msra.mxu0 %v7033
    %7035 = vmatprep.subr.mxu0 0.0
    %v7036 = vand.u32 %v38, 4294901760
    %v7037 = vsub.f32 %v38, %v7036
    %v7038 = vand.u32 %v7037, 4294901760
    %v7039 = vsub.f32 %v7037, %v7038
    %v7040 = vand.u32 %v7039, 4294901760
    %7041 = vmatpush1.msra.mxu0 %v7040
    %7042 = vmatprep.subr.mxu0 0.0
    %v7043 = vand.u32 %v39, 4294901760
    %v7044 = vsub.f32 %v39, %v7043
    %v7045 = vand.u32 %v7044, 4294901760
    %v7046 = vsub.f32 %v7044, %v7045
    %v7047 = vand.u32 %v7046, 4294901760
    %7048 = vmatpush1.msra.mxu0 %v7047
    %7049 = vmatprep.subr.mxu0 0.0
    %v7050 = vand.u32 %v40, 4294901760
    %v7051 = vsub.f32 %v40, %v7050
    %v7052 = vand.u32 %v7051, 4294901760
    %v7053 = vsub.f32 %v7051, %v7052
    %v7054 = vand.u32 %v7053, 4294901760
    %7055 = vmatpush1.msra.mxu0 %v7054
    %7056 = vmatprep.subr.mxu0 0.0
    %7057 = vmatpush1.msra.mxu0 0.0
    %7058 = vmatprep.subr.mxu0 0.0
    %7059 = vmatpush1.msra.mxu0 0.0
    %7060 = vmatprep.subr.mxu0 0.0
    %7061 = vmatpush1.msra.mxu0 0.0
    %7062 = vmatprep.subr.mxu0 0.0
    %7063 = vmatpush1.msra.mxu0 0.0
    %7064 = vmatprep.subr.mxu0 0.0
    %7065 = vmatpush1.msra.mxu0 0.0
    %7066 = vmatprep.subr.mxu0 0.0
    %7067 = vmatpush1.msra.mxu0 0.0
    %7068 = vmatprep.subr.mxu0 0.0
    %7069 = vmatpush1.msra.mxu0 0.0
    %7070 = vmatprep.subr.mxu0 0.0
    %7071 = vmatpush1.msra.mxu0 0.0
    %7072 = vmatprep.subr.mxu0 0.0
    %7073 = vmatpush1.msra.mxu0 0.0
    %7074 = vmatprep.subr.mxu0 0.0
    %7075 = vmatpush1.msra.mxu0 0.0
    %7076 = vmatprep.subr.mxu0 0.0
    %7077 = vmatpush1.msra.mxu0 0.0
    %7078 = vmatprep.subr.mxu0 0.0
    %7079 = vmatpush1.msra.mxu0 0.0
    %7080 = vmatprep.subr.mxu0 0.0
    %7081 = vmatpush1.msra.mxu0 0.0
    %7082 = vmatprep.subr.mxu0 0.0
    %7083 = vmatpush1.msra.mxu0 0.0
    %7084 = vmatprep.subr.mxu0 0.0
    %7085 = vmatpush1.msra.mxu0 0.0
    %7086 = vmatprep.subr.mxu0 0.0
    %7087 = vmatpush1.msra.mxu0 0.0
    %7088 = vmatprep.subr.mxu0 0.0
    %7089 = vmatpush1.msra.mxu0 0.0
    %7090 = vmatprep.subr.mxu0 0.0
    %7091 = vmatpush1.msra.mxu0 0.0
    %7092 = vmatprep.subr.mxu0 0.0
    %7093 = vmatpush1.msra.mxu0 0.0
    %7094 = vmatprep.subr.mxu0 0.0
    %7095 = vmatpush1.msra.mxu0 0.0
    %7096 = vmatprep.subr.mxu0 0.0
    %7097 = vmatpush1.msra.mxu0 0.0
    %7098 = vmatprep.subr.mxu0 0.0
    %7099 = vmatpush1.msra.mxu0 0.0
    %7100 = vmatprep.subr.mxu0 0.0
    %7101 = vmatpush1.msra.mxu0 0.0
    %7102 = vmatprep.subr.mxu0 0.0
    %7103 = vmatpush1.msra.mxu0 0.0
    %7104 = vmatprep.subr.mxu0 0.0
    %7105 = vmatpush1.msra.mxu0 0.0
    %7106 = vmatprep.subr.mxu0 0.0
    %7107 = vmatpush1.msra.mxu0 0.0
    %7108 = vmatprep.subr.mxu0 0.0
    %7109 = vmatpush1.msra.mxu0 0.0
    %7110 = vmatprep.subr.mxu0 0.0
    %7111 = vmatpush1.msra.mxu0 0.0
    %7112 = vmatprep.mubr.f32.mxu0 0.0
    %v7113 = vand.u32 %v6947, 4294901760
    %7114 = vmatmul.mubr.f32.gmra.mrb[0].mxu0 %v7113
    %v7115 = vpop.f32.mrb[0].mxu0
    %v7116 = vadd.f32 %v7025, %v7115
    %v7117 = vpop.f32.mrb[0].mxu0
    %7118 = vdwg.mxu0
    %7119 = vmatprep.subr.mxu0 0.0
    %v7120 = vand.u32 %v37, 4294901760
    %v7121 = vsub.f32 %v37, %v7120
    %7122 = vmatpush1.msra.mxu0 %v7121
    %7123 = vmatprep.subr.mxu0 0.0
    %v7124 = vand.u32 %v38, 4294901760
    %v7125 = vsub.f32 %v38, %v7124
    %7126 = vmatpush1.msra.mxu0 %v7125
    %7127 = vmatprep.subr.mxu0 0.0
    %v7128 = vand.u32 %v39, 4294901760
    %v7129 = vsub.f32 %v39, %v7128
    %7130 = vmatpush1.msra.mxu0 %v7129
    %7131 = vmatprep.subr.mxu0 0.0
    %v7132 = vand.u32 %v40, 4294901760
    %v7133 = vsub.f32 %v40, %v7132
    %7134 = vmatpush1.msra.mxu0 %v7133
    %7135 = vmatprep.subr.mxu0 0.0
    %7136 = vmatpush1.msra.mxu0 0.0
    %7137 = vmatprep.subr.mxu0 0.0
    %7138 = vmatpush1.msra.mxu0 0.0
    %7139 = vmatprep.subr.mxu0 0.0
    %7140 = vmatpush1.msra.mxu0 0.0
    %7141 = vmatprep.subr.mxu0 0.0
    %7142 = vmatpush1.msra.mxu0 0.0
    %7143 = vmatprep.subr.mxu0 0.0
    %7144 = vmatpush1.msra.mxu0 0.0
    %7145 = vmatprep.subr.mxu0 0.0
    %7146 = vmatpush1.msra.mxu0 0.0
    %7147 = vmatprep.subr.mxu0 0.0
    %7148 = vmatpush1.msra.mxu0 0.0
    %7149 = vmatprep.subr.mxu0 0.0
    %7150 = vmatpush1.msra.mxu0 0.0
    %7151 = vmatprep.subr.mxu0 0.0
    %7152 = vmatpush1.msra.mxu0 0.0
    %7153 = vmatprep.subr.mxu0 0.0
    %7154 = vmatpush1.msra.mxu0 0.0
    %7155 = vmatprep.subr.mxu0 0.0
    %7156 = vmatpush1.msra.mxu0 0.0
    %7157 = vmatprep.subr.mxu0 0.0
    %7158 = vmatpush1.msra.mxu0 0.0
    %7159 = vmatprep.subr.mxu0 0.0
    %7160 = vmatpush1.msra.mxu0 0.0
    %7161 = vmatprep.subr.mxu0 0.0
    %7162 = vmatpush1.msra.mxu0 0.0
    %7163 = vmatprep.subr.mxu0 0.0
    %7164 = vmatpush1.msra.mxu0 0.0
    %7165 = vmatprep.subr.mxu0 0.0
    %7166 = vmatpush1.msra.mxu0 0.0
    %7167 = vmatprep.subr.mxu0 0.0
    %7168 = vmatpush1.msra.mxu0 0.0
    %7169 = vmatprep.subr.mxu0 0.0
    %7170 = vmatpush1.msra.mxu0 0.0
    %7171 = vmatprep.subr.mxu0 0.0
    %7172 = vmatpush1.msra.mxu0 0.0
    %7173 = vmatprep.subr.mxu0 0.0
    %7174 = vmatpush1.msra.mxu0 0.0
    %7175 = vmatprep.subr.mxu0 0.0
    %7176 = vmatpush1.msra.mxu0 0.0
    %7177 = vmatprep.subr.mxu0 0.0
    %7178 = vmatpush1.msra.mxu0 0.0
    %7179 = vmatprep.subr.mxu0 0.0
    %7180 = vmatpush1.msra.mxu0 0.0
    %7181 = vmatprep.subr.mxu0 0.0
    %7182 = vmatpush1.msra.mxu0 0.0
    %7183 = vmatprep.subr.mxu0 0.0
    %7184 = vmatpush1.msra.mxu0 0.0
    %7185 = vmatprep.subr.mxu0 0.0
    %7186 = vmatpush1.msra.mxu0 0.0
    %7187 = vmatprep.subr.mxu0 0.0
    %7188 = vmatpush1.msra.mxu0 0.0
    %7189 = vmatprep.subr.mxu0 0.0
    %7190 = vmatpush1.msra.mxu0 0.0
    %7191 = vmatprep.mubr.f32.mxu0 0.0
    %v7192 = vand.u32 %v6947, 4294901760
    %v7193 = vsub.f32 %v6947, %v7192
    %7194 = vmatmul.mubr.f32.gmra.mrb[0].mxu0 %v7193
    %v7195 = vpop.f32.mrb[0].mxu0
    %v7196 = vadd.f32 %v7116, %v7195
    %v7197 = vpop.f32.mrb[0].mxu0
    %7198 = vdwg.mxu0
    %7199 = vmatprep.subr.mxu0 0.0
    %v7200 = vand.u32 %v37, 4294901760
    %7201 = vmatpush1.msra.mxu0 %v7200
    %7202 = vmatprep.subr.mxu0 0.0
    %v7203 = vand.u32 %v38, 4294901760
    %7204 = vmatpush1.msra.mxu0 %v7203
    %7205 = vmatprep.subr.mxu0 0.0
    %v7206 = vand.u32 %v39, 4294901760
    %7207 = vmatpush1.msra.mxu0 %v7206
    %7208 = vmatprep.subr.mxu0 0.0
    %v7209 = vand.u32 %v40, 4294901760
    %7210 = vmatpush1.msra.mxu0 %v7209
    %7211 = vmatprep.subr.mxu0 0.0
    %7212 = vmatpush1.msra.mxu0 0.0
    %7213 = vmatprep.subr.mxu0 0.0
    %7214 = vmatpush1.msra.mxu0 0.0
    %7215 = vmatprep.subr.mxu0 0.0
    %7216 = vmatpush1.msra.mxu0 0.0
    %7217 = vmatprep.subr.mxu0 0.0
    %7218 = vmatpush1.msra.mxu0 0.0
    %7219 = vmatprep.subr.mxu0 0.0
    %7220 = vmatpush1.msra.mxu0 0.0
    %7221 = vmatprep.subr.mxu0 0.0
    %7222 = vmatpush1.msra.mxu0 0.0
    %7223 = vmatprep.subr.mxu0 0.0
    %7224 = vmatpush1.msra.mxu0 0.0
    %7225 = vmatprep.subr.mxu0 0.0
    %7226 = vmatpush1.msra.mxu0 0.0
    %7227 = vmatprep.subr.mxu0 0.0
    %7228 = vmatpush1.msra.mxu0 0.0
    %7229 = vmatprep.subr.mxu0 0.0
    %7230 = vmatpush1.msra.mxu0 0.0
    %7231 = vmatprep.subr.mxu0 0.0
    %7232 = vmatpush1.msra.mxu0 0.0
    %7233 = vmatprep.subr.mxu0 0.0
    %7234 = vmatpush1.msra.mxu0 0.0
    %7235 = vmatprep.subr.mxu0 0.0
    %7236 = vmatpush1.msra.mxu0 0.0
    %7237 = vmatprep.subr.mxu0 0.0
    %7238 = vmatpush1.msra.mxu0 0.0
    %7239 = vmatprep.subr.mxu0 0.0
    %7240 = vmatpush1.msra.mxu0 0.0
    %7241 = vmatprep.subr.mxu0 0.0
    %7242 = vmatpush1.msra.mxu0 0.0
    %7243 = vmatprep.subr.mxu0 0.0
    %7244 = vmatpush1.msra.mxu0 0.0
    %7245 = vmatprep.subr.mxu0 0.0
    %7246 = vmatpush1.msra.mxu0 0.0
    %7247 = vmatprep.subr.mxu0 0.0
    %7248 = vmatpush1.msra.mxu0 0.0
    %7249 = vmatprep.subr.mxu0 0.0
    %7250 = vmatpush1.msra.mxu0 0.0
    %7251 = vmatprep.subr.mxu0 0.0
    %7252 = vmatpush1.msra.mxu0 0.0
    %7253 = vmatprep.subr.mxu0 0.0
    %7254 = vmatpush1.msra.mxu0 0.0
    %7255 = vmatprep.subr.mxu0 0.0
    %7256 = vmatpush1.msra.mxu0 0.0
    %7257 = vmatprep.subr.mxu0 0.0
    %7258 = vmatpush1.msra.mxu0 0.0
    %7259 = vmatprep.subr.mxu0 0.0
    %7260 = vmatpush1.msra.mxu0 0.0
    %7261 = vmatprep.subr.mxu0 0.0
    %7262 = vmatpush1.msra.mxu0 0.0
    %7263 = vmatprep.subr.mxu0 0.0
    %7264 = vmatpush1.msra.mxu0 0.0
    %7265 = vmatprep.subr.mxu0 0.0
    %7266 = vmatpush1.msra.mxu0 0.0
    %7267 = vmatprep.mubr.f32.mxu0 0.0
    %v7268 = vand.u32 %v6947, 4294901760
    %v7269 = vsub.f32 %v6947, %v7268
    %v7270 = vand.u32 %v7269, 4294901760
    %7271 = vmatmul.mubr.f32.gmra.mrb[0].mxu0 %v7270
    %v7272 = vpop.f32.mrb[0].mxu0
    %v7273 = vadd.f32 %v7196, %v7272
    %v7274 = vpop.f32.mrb[0].mxu0
    %7275 = vdwg.mxu0
    %7276 = vmatprep.subr.mxu0 0.0
    %v7277 = vand.u32 %v37, 4294901760
    %v7278 = vsub.f32 %v37, %v7277
    %v7279 = vand.u32 %v7278, 4294901760
    %7280 = vmatpush1.msra.mxu0 %v7279
    %7281 = vmatprep.subr.mxu0 0.0
    %v7282 = vand.u32 %v38, 4294901760
    %v7283 = vsub.f32 %v38, %v7282
    %v7284 = vand.u32 %v7283, 4294901760
    %7285 = vmatpush1.msra.mxu0 %v7284
    %7286 = vmatprep.subr.mxu0 0.0
    %v7287 = vand.u32 %v39, 4294901760
    %v7288 = vsub.f32 %v39, %v7287
    %v7289 = vand.u32 %v7288, 4294901760
    %7290 = vmatpush1.msra.mxu0 %v7289
    %7291 = vmatprep.subr.mxu0 0.0
    %v7292 = vand.u32 %v40, 4294901760
    %v7293 = vsub.f32 %v40, %v7292
    %v7294 = vand.u32 %v7293, 4294901760
    %7295 = vmatpush1.msra.mxu0 %v7294
    %7296 = vmatprep.subr.mxu0 0.0
    %7297 = vmatpush1.msra.mxu0 0.0
    %7298 = vmatprep.subr.mxu0 0.0
    %7299 = vmatpush1.msra.mxu0 0.0
    %7300 = vmatprep.subr.mxu0 0.0
    %7301 = vmatpush1.msra.mxu0 0.0
    %7302 = vmatprep.subr.mxu0 0.0
    %7303 = vmatpush1.msra.mxu0 0.0
    %7304 = vmatprep.subr.mxu0 0.0
    %7305 = vmatpush1.msra.mxu0 0.0
    %7306 = vmatprep.subr.mxu0 0.0
    %7307 = vmatpush1.msra.mxu0 0.0
    %7308 = vmatprep.subr.mxu0 0.0
    %7309 = vmatpush1.msra.mxu0 0.0
    %7310 = vmatprep.subr.mxu0 0.0
    %7311 = vmatpush1.msra.mxu0 0.0
    %7312 = vmatprep.subr.mxu0 0.0
    %7313 = vmatpush1.msra.mxu0 0.0
    %7314 = vmatprep.subr.mxu0 0.0
    %7315 = vmatpush1.msra.mxu0 0.0
    %7316 = vmatprep.subr.mxu0 0.0
    %7317 = vmatpush1.msra.mxu0 0.0
    %7318 = vmatprep.subr.mxu0 0.0
    %7319 = vmatpush1.msra.mxu0 0.0
    %7320 = vmatprep.subr.mxu0 0.0
    %7321 = vmatpush1.msra.mxu0 0.0
    %7322 = vmatprep.subr.mxu0 0.0
    %7323 = vmatpush1.msra.mxu0 0.0
    %7324 = vmatprep.subr.mxu0 0.0
    %7325 = vmatpush1.msra.mxu0 0.0
    %7326 = vmatprep.subr.mxu0 0.0
    %7327 = vmatpush1.msra.mxu0 0.0
    %7328 = vmatprep.subr.mxu0 0.0
    %7329 = vmatpush1.msra.mxu0 0.0
    %7330 = vmatprep.subr.mxu0 0.0
    %7331 = vmatpush1.msra.mxu0 0.0
    %7332 = vmatprep.subr.mxu0 0.0
    %7333 = vmatpush1.msra.mxu0 0.0
    %7334 = vmatprep.subr.mxu0 0.0
    %7335 = vmatpush1.msra.mxu0 0.0
    %7336 = vmatprep.subr.mxu0 0.0
    %7337 = vmatpush1.msra.mxu0 0.0
    %7338 = vmatprep.subr.mxu0 0.0
    %7339 = vmatpush1.msra.mxu0 0.0
    %7340 = vmatprep.subr.mxu0 0.0
    %7341 = vmatpush1.msra.mxu0 0.0
    %7342 = vmatprep.subr.mxu0 0.0
    %7343 = vmatpush1.msra.mxu0 0.0
    %7344 = vmatprep.subr.mxu0 0.0
    %7345 = vmatpush1.msra.mxu0 0.0
    %7346 = vmatprep.subr.mxu0 0.0
    %7347 = vmatpush1.msra.mxu0 0.0
    %7348 = vmatprep.subr.mxu0 0.0
    %7349 = vmatpush1.msra.mxu0 0.0
    %7350 = vmatprep.subr.mxu0 0.0
    %7351 = vmatpush1.msra.mxu0 0.0
    %7352 = vmatprep.mubr.f32.mxu0 0.0
    %v7353 = vand.u32 %v6947, 4294901760
    %7354 = vmatmul.mubr.f32.gmra.mrb[0].mxu0 %v7353
    %v7355 = vpop.f32.mrb[0].mxu0
    %v7356 = vadd.f32 %v7273, %v7355
    %v7357 = vpop.f32.mrb[0].mxu0
    %7358 = vdwg.mxu0
    %7359 = vmatprep.subr.mxu0 0.0
    %v7360 = vand.u32 %v37, 4294901760
    %7361 = vmatpush1.msra.mxu0 %v7360
    %7362 = vmatprep.subr.mxu0 0.0
    %v7363 = vand.u32 %v38, 4294901760
    %7364 = vmatpush1.msra.mxu0 %v7363
    %7365 = vmatprep.subr.mxu0 0.0
    %v7366 = vand.u32 %v39, 4294901760
    %7367 = vmatpush1.msra.mxu0 %v7366
    %7368 = vmatprep.subr.mxu0 0.0
    %v7369 = vand.u32 %v40, 4294901760
    %7370 = vmatpush1.msra.mxu0 %v7369
    %7371 = vmatprep.subr.mxu0 0.0
    %7372 = vmatpush1.msra.mxu0 0.0
    %7373 = vmatprep.subr.mxu0 0.0
    %7374 = vmatpush1.msra.mxu0 0.0
    %7375 = vmatprep.subr.mxu0 0.0
    %7376 = vmatpush1.msra.mxu0 0.0
    %7377 = vmatprep.subr.mxu0 0.0
    %7378 = vmatpush1.msra.mxu0 0.0
    %7379 = vmatprep.subr.mxu0 0.0
    %7380 = vmatpush1.msra.mxu0 0.0
    %7381 = vmatprep.subr.mxu0 0.0
    %7382 = vmatpush1.msra.mxu0 0.0
    %7383 = vmatprep.subr.mxu0 0.0
    %7384 = vmatpush1.msra.mxu0 0.0
    %7385 = vmatprep.subr.mxu0 0.0
    %7386 = vmatpush1.msra.mxu0 0.0
    %7387 = vmatprep.subr.mxu0 0.0
    %7388 = vmatpush1.msra.mxu0 0.0
    %7389 = vmatprep.subr.mxu0 0.0
    %7390 = vmatpush1.msra.mxu0 0.0
    %7391 = vmatprep.subr.mxu0 0.0
    %7392 = vmatpush1.msra.mxu0 0.0
    %7393 = vmatprep.subr.mxu0 0.0
    %7394 = vmatpush1.msra.mxu0 0.0
    %7395 = vmatprep.subr.mxu0 0.0
    %7396 = vmatpush1.msra.mxu0 0.0
    %7397 = vmatprep.subr.mxu0 0.0
    %7398 = vmatpush1.msra.mxu0 0.0
    %7399 = vmatprep.subr.mxu0 0.0
    %7400 = vmatpush1.msra.mxu0 0.0
    %7401 = vmatprep.subr.mxu0 0.0
    %7402 = vmatpush1.msra.mxu0 0.0
    %7403 = vmatprep.subr.mxu0 0.0
    %7404 = vmatpush1.msra.mxu0 0.0
    %7405 = vmatprep.subr.mxu0 0.0
    %7406 = vmatpush1.msra.mxu0 0.0
    %7407 = vmatprep.subr.mxu0 0.0
    %7408 = vmatpush1.msra.mxu0 0.0
    %7409 = vmatprep.subr.mxu0 0.0
    %7410 = vmatpush1.msra.mxu0 0.0
    %7411 = vmatprep.subr.mxu0 0.0
    %7412 = vmatpush1.msra.mxu0 0.0
    %7413 = vmatprep.subr.mxu0 0.0
    %7414 = vmatpush1.msra.mxu0 0.0
    %7415 = vmatprep.subr.mxu0 0.0
    %7416 = vmatpush1.msra.mxu0 0.0
    %7417 = vmatprep.subr.mxu0 0.0
    %7418 = vmatpush1.msra.mxu0 0.0
    %7419 = vmatprep.subr.mxu0 0.0
    %7420 = vmatpush1.msra.mxu0 0.0
    %7421 = vmatprep.subr.mxu0 0.0
    %7422 = vmatpush1.msra.mxu0 0.0
    %7423 = vmatprep.subr.mxu0 0.0
    %7424 = vmatpush1.msra.mxu0 0.0
    %7425 = vmatprep.subr.mxu0 0.0
    %7426 = vmatpush1.msra.mxu0 0.0
    %7427 = vmatprep.mubr.f32.mxu0 0.0
    %v7428 = vand.u32 %v6947, 4294901760
    %7429 = vmatmul.mubr.f32.gmra.mrb[0].mxu0 %v7428
    %v7430 = vpop.f32.mrb[0].mxu0
    %v7431 = vadd.f32 %v7356, %v7430
    %v7432 = vpop.f32.mrb[0].mxu0
    %7433 = vdwg.mxu0
    %v7434 = vadd.f32 %v2700, %v7431
    %v7435 = vxor.u32 %v7434, 2147483648
    %v7436 = vmul.f32 %v7435, 1.442695
    %v7437 = vpow.pop %v7436
    %v7438 = vadd.f32 %v7437, 1.0
    %v7439 = vrcp.pop %v7438
    %v7440 = vmul.f32 1.0, %v7439
    %7442 = vrot.lane.b32.xlu0 %v7431, 64
    %v7443 = vpop.permute.xlu0 %7442
    %v7445 = vmul.f32 %v7440, %v7443
    %7447 = vrot.lane.b32.xlu0 %v7445, 64
    %v7448 = vpop.permute.xlu0 %7447
    %v7450 = vadd.f32 %v2700, %v7448
    %v7451 = vtanh.pop %v7450
    %v7452 = vsub.f32 1.0, %v7440
    %7454 = vrot.lane.b32.xlu0 %v7451, 96
    %v7455 = vpop.permute.xlu0 %7454
    %v7457 = vmul.f32 %v7452, %v7455
    %v7458 = vmul.f32 %v7440, %v6943
    %v7459 = vadd.f32 %v7457, %v7458
    %7461 = vrot.lane.b32.xlu0 %v7459, 96
    %v7462 = vpop.permute.xlu0 %7461
    %v7463 = vsel %vm95, %v7462, 0
    %7465 = vmatprep.subr.mxu0 0.0
    %v7466 = vand.u32 %v37, 4294901760
    %7467 = vmatpush1.msra.mxu0 %v7466
    %7468 = vmatprep.subr.mxu0 0.0
    %v7469 = vand.u32 %v38, 4294901760
    %7470 = vmatpush1.msra.mxu0 %v7469
    %7471 = vmatprep.subr.mxu0 0.0
    %v7472 = vand.u32 %v39, 4294901760
    %7473 = vmatpush1.msra.mxu0 %v7472
    %7474 = vmatprep.subr.mxu0 0.0
    %v7475 = vand.u32 %v40, 4294901760
    %7476 = vmatpush1.msra.mxu0 %v7475
    %7477 = vmatprep.subr.mxu0 0.0
    %7478 = vmatpush1.msra.mxu0 0.0
    %7479 = vmatprep.subr.mxu0 0.0
    %7480 = vmatpush1.msra.mxu0 0.0
    %7481 = vmatprep.subr.mxu0 0.0
    %7482 = vmatpush1.msra.mxu0 0.0
    %7483 = vmatprep.subr.mxu0 0.0
    %7484 = vmatpush1.msra.mxu0 0.0
    %7485 = vmatprep.subr.mxu0 0.0
    %7486 = vmatpush1.msra.mxu0 0.0
    %7487 = vmatprep.subr.mxu0 0.0
    %7488 = vmatpush1.msra.mxu0 0.0
    %7489 = vmatprep.subr.mxu0 0.0
    %7490 = vmatpush1.msra.mxu0 0.0
    %7491 = vmatprep.subr.mxu0 0.0
    %7492 = vmatpush1.msra.mxu0 0.0
    %7493 = vmatprep.subr.mxu0 0.0
    %7494 = vmatpush1.msra.mxu0 0.0
    %7495 = vmatprep.subr.mxu0 0.0
    %7496 = vmatpush1.msra.mxu0 0.0
    %7497 = vmatprep.subr.mxu0 0.0
    %7498 = vmatpush1.msra.mxu0 0.0
    %7499 = vmatprep.subr.mxu0 0.0
    %7500 = vmatpush1.msra.mxu0 0.0
    %7501 = vmatprep.subr.mxu0 0.0
    %7502 = vmatpush1.msra.mxu0 0.0
    %7503 = vmatprep.subr.mxu0 0.0
    %7504 = vmatpush1.msra.mxu0 0.0
    %7505 = vmatprep.subr.mxu0 0.0
    %7506 = vmatpush1.msra.mxu0 0.0
    %7507 = vmatprep.subr.mxu0 0.0
    %7508 = vmatpush1.msra.mxu0 0.0
    %7509 = vmatprep.subr.mxu0 0.0
    %7510 = vmatpush1.msra.mxu0 0.0
    %7511 = vmatprep.subr.mxu0 0.0
    %7512 = vmatpush1.msra.mxu0 0.0
    %7513 = vmatprep.subr.mxu0 0.0
    %7514 = vmatpush1.msra.mxu0 0.0
    %7515 = vmatprep.subr.mxu0 0.0
    %7516 = vmatpush1.msra.mxu0 0.0
    %7517 = vmatprep.subr.mxu0 0.0
    %7518 = vmatpush1.msra.mxu0 0.0
    %7519 = vmatprep.subr.mxu0 0.0
    %7520 = vmatpush1.msra.mxu0 0.0
    %7521 = vmatprep.subr.mxu0 0.0
    %7522 = vmatpush1.msra.mxu0 0.0
    %7523 = vmatprep.subr.mxu0 0.0
    %7524 = vmatpush1.msra.mxu0 0.0
    %7525 = vmatprep.subr.mxu0 0.0
    %7526 = vmatpush1.msra.mxu0 0.0
    %7527 = vmatprep.subr.mxu0 0.0
    %7528 = vmatpush1.msra.mxu0 0.0
    %7529 = vmatprep.subr.mxu0 0.0
    %7530 = vmatpush1.msra.mxu0 0.0
    %7531 = vmatprep.subr.mxu0 0.0
    %7532 = vmatpush1.msra.mxu0 0.0
    %7533 = vmatprep.mubr.f32.mxu0 0.0
    %v7534 = vand.u32 %v7463, 4294901760
    %v7535 = vsub.f32 %v7463, %v7534
    %v7536 = vand.u32 %v7535, 4294901760
    %v7537 = vsub.f32 %v7535, %v7536
    %v7538 = vand.u32 %v7537, 4294901760
    %7539 = vmatmul.mubr.f32.gmra.mrb[0].mxu0 %v7538
    %v7540 = vpop.f32.mrb[0].mxu0
    %v7541 = vadd.f32 %v63, %v7540
    %v7542 = vpop.f32.mrb[0].mxu0
    %7543 = vdwg.mxu0
    %7544 = vmatprep.subr.mxu0 0.0
    %v7545 = vand.u32 %v37, 4294901760
    %v7546 = vsub.f32 %v37, %v7545
    %v7547 = vand.u32 %v7546, 4294901760
    %v7548 = vsub.f32 %v7546, %v7547
    %v7549 = vand.u32 %v7548, 4294901760
    %7550 = vmatpush1.msra.mxu0 %v7549
    %7551 = vmatprep.subr.mxu0 0.0
    %v7552 = vand.u32 %v38, 4294901760
    %v7553 = vsub.f32 %v38, %v7552
    %v7554 = vand.u32 %v7553, 4294901760
    %v7555 = vsub.f32 %v7553, %v7554
    %v7556 = vand.u32 %v7555, 4294901760
    %7557 = vmatpush1.msra.mxu0 %v7556
    %7558 = vmatprep.subr.mxu0 0.0
    %v7559 = vand.u32 %v39, 4294901760
    %v7560 = vsub.f32 %v39, %v7559
    %v7561 = vand.u32 %v7560, 4294901760
    %v7562 = vsub.f32 %v7560, %v7561
    %v7563 = vand.u32 %v7562, 4294901760
    %7564 = vmatpush1.msra.mxu0 %v7563
    %7565 = vmatprep.subr.mxu0 0.0
    %v7566 = vand.u32 %v40, 4294901760
    %v7567 = vsub.f32 %v40, %v7566
    %v7568 = vand.u32 %v7567, 4294901760
    %v7569 = vsub.f32 %v7567, %v7568
    %v7570 = vand.u32 %v7569, 4294901760
    %7571 = vmatpush1.msra.mxu0 %v7570
    %7572 = vmatprep.subr.mxu0 0.0
    %7573 = vmatpush1.msra.mxu0 0.0
    %7574 = vmatprep.subr.mxu0 0.0
    %7575 = vmatpush1.msra.mxu0 0.0
    %7576 = vmatprep.subr.mxu0 0.0
    %7577 = vmatpush1.msra.mxu0 0.0
    %7578 = vmatprep.subr.mxu0 0.0
    %7579 = vmatpush1.msra.mxu0 0.0
    %7580 = vmatprep.subr.mxu0 0.0
    %7581 = vmatpush1.msra.mxu0 0.0
    %7582 = vmatprep.subr.mxu0 0.0
    %7583 = vmatpush1.msra.mxu0 0.0
    %7584 = vmatprep.subr.mxu0 0.0
    %7585 = vmatpush1.msra.mxu0 0.0
    %7586 = vmatprep.subr.mxu0 0.0
    %7587 = vmatpush1.msra.mxu0 0.0
    %7588 = vmatprep.subr.mxu0 0.0
    %7589 = vmatpush1.msra.mxu0 0.0
    %7590 = vmatprep.subr.mxu0 0.0
    %7591 = vmatpush1.msra.mxu0 0.0
    %7592 = vmatprep.subr.mxu0 0.0
    %7593 = vmatpush1.msra.mxu0 0.0
    %7594 = vmatprep.subr.mxu0 0.0
    %7595 = vmatpush1.msra.mxu0 0.0
    %7596 = vmatprep.subr.mxu0 0.0
    %7597 = vmatpush1.msra.mxu0 0.0
    %7598 = vmatprep.subr.mxu0 0.0
    %7599 = vmatpush1.msra.mxu0 0.0
    %7600 = vmatprep.subr.mxu0 0.0
    %7601 = vmatpush1.msra.mxu0 0.0
    %7602 = vmatprep.subr.mxu0 0.0
    %7603 = vmatpush1.msra.mxu0 0.0
    %7604 = vmatprep.subr.mxu0 0.0
    %7605 = vmatpush1.msra.mxu0 0.0
    %7606 = vmatprep.subr.mxu0 0.0
    %7607 = vmatpush1.msra.mxu0 0.0
    %7608 = vmatprep.subr.mxu0 0.0
    %7609 = vmatpush1.msra.mxu0 0.0
    %7610 = vmatprep.subr.mxu0 0.0
    %7611 = vmatpush1.msra.mxu0 0.0
    %7612 = vmatprep.subr.mxu0 0.0
    %7613 = vmatpush1.msra.mxu0 0.0
    %7614 = vmatprep.subr.mxu0 0.0
    %7615 = vmatpush1.msra.mxu0 0.0
    %7616 = vmatprep.subr.mxu0 0.0
    %7617 = vmatpush1.msra.mxu0 0.0
    %7618 = vmatprep.subr.mxu0 0.0
    %7619 = vmatpush1.msra.mxu0 0.0
    %7620 = vmatprep.subr.mxu0 0.0
    %7621 = vmatpush1.msra.mxu0 0.0
    %7622 = vmatprep.subr.mxu0 0.0
    %7623 = vmatpush1.msra.mxu0 0.0
    %7624 = vmatprep.subr.mxu0 0.0
    %7625 = vmatpush1.msra.mxu0 0.0
    %7626 = vmatprep.subr.mxu0 0.0
    %7627 = vmatpush1.msra.mxu0 0.0
    %7628 = vmatprep.mubr.f32.mxu0 0.0
    %v7629 = vand.u32 %v7463, 4294901760
    %7630 = vmatmul.mubr.f32.gmra.mrb[0].mxu0 %v7629
    %v7631 = vpop.f32.mrb[0].mxu0
    %v7632 = vadd.f32 %v7541, %v7631
    %v7633 = vpop.f32.mrb[0].mxu0
    %7634 = vdwg.mxu0
    %7635 = vmatprep.subr.mxu0 0.0
    %v7636 = vand.u32 %v37, 4294901760
    %v7637 = vsub.f32 %v37, %v7636
    %7638 = vmatpush1.msra.mxu0 %v7637
    %7639 = vmatprep.subr.mxu0 0.0
    %v7640 = vand.u32 %v38, 4294901760
    %v7641 = vsub.f32 %v38, %v7640
    %7642 = vmatpush1.msra.mxu0 %v7641
    %7643 = vmatprep.subr.mxu0 0.0
    %v7644 = vand.u32 %v39, 4294901760
    %v7645 = vsub.f32 %v39, %v7644
    %7646 = vmatpush1.msra.mxu0 %v7645
    %7647 = vmatprep.subr.mxu0 0.0
    %v7648 = vand.u32 %v40, 4294901760
    %v7649 = vsub.f32 %v40, %v7648
    %7650 = vmatpush1.msra.mxu0 %v7649
    %7651 = vmatprep.subr.mxu0 0.0
    %7652 = vmatpush1.msra.mxu0 0.0
    %7653 = vmatprep.subr.mxu0 0.0
    %7654 = vmatpush1.msra.mxu0 0.0
    %7655 = vmatprep.subr.mxu0 0.0
    %7656 = vmatpush1.msra.mxu0 0.0
    %7657 = vmatprep.subr.mxu0 0.0
    %7658 = vmatpush1.msra.mxu0 0.0
    %7659 = vmatprep.subr.mxu0 0.0
    %7660 = vmatpush1.msra.mxu0 0.0
    %7661 = vmatprep.subr.mxu0 0.0
    %7662 = vmatpush1.msra.mxu0 0.0
    %7663 = vmatprep.subr.mxu0 0.0
    %7664 = vmatpush1.msra.mxu0 0.0
    %7665 = vmatprep.subr.mxu0 0.0
    %7666 = vmatpush1.msra.mxu0 0.0
    %7667 = vmatprep.subr.mxu0 0.0
    %7668 = vmatpush1.msra.mxu0 0.0
    %7669 = vmatprep.subr.mxu0 0.0
    %7670 = vmatpush1.msra.mxu0 0.0
    %7671 = vmatprep.subr.mxu0 0.0
    %7672 = vmatpush1.msra.mxu0 0.0
    %7673 = vmatprep.subr.mxu0 0.0
    %7674 = vmatpush1.msra.mxu0 0.0
    %7675 = vmatprep.subr.mxu0 0.0
    %7676 = vmatpush1.msra.mxu0 0.0
    %7677 = vmatprep.subr.mxu0 0.0
    %7678 = vmatpush1.msra.mxu0 0.0
    %7679 = vmatprep.subr.mxu0 0.0
    %7680 = vmatpush1.msra.mxu0 0.0
    %7681 = vmatprep.subr.mxu0 0.0
    %7682 = vmatpush1.msra.mxu0 0.0
    %7683 = vmatprep.subr.mxu0 0.0
    %7684 = vmatpush1.msra.mxu0 0.0
    %7685 = vmatprep.subr.mxu0 0.0
    %7686 = vmatpush1.msra.mxu0 0.0
    %7687 = vmatprep.subr.mxu0 0.0
    %7688 = vmatpush1.msra.mxu0 0.0
    %7689 = vmatprep.subr.mxu0 0.0
    %7690 = vmatpush1.msra.mxu0 0.0
    %7691 = vmatprep.subr.mxu0 0.0
    %7692 = vmatpush1.msra.mxu0 0.0
    %7693 = vmatprep.subr.mxu0 0.0
    %7694 = vmatpush1.msra.mxu0 0.0
    %7695 = vmatprep.subr.mxu0 0.0
    %7696 = vmatpush1.msra.mxu0 0.0
    %7697 = vmatprep.subr.mxu0 0.0
    %7698 = vmatpush1.msra.mxu0 0.0
    %7699 = vmatprep.subr.mxu0 0.0
    %7700 = vmatpush1.msra.mxu0 0.0
    %7701 = vmatprep.subr.mxu0 0.0
    %7702 = vmatpush1.msra.mxu0 0.0
    %7703 = vmatprep.subr.mxu0 0.0
    %7704 = vmatpush1.msra.mxu0 0.0
    %7705 = vmatprep.subr.mxu0 0.0
    %7706 = vmatpush1.msra.mxu0 0.0
    %7707 = vmatprep.mubr.f32.mxu0 0.0
    %v7708 = vand.u32 %v7463, 4294901760
    %v7709 = vsub.f32 %v7463, %v7708
    %7710 = vmatmul.mubr.f32.gmra.mrb[0].mxu0 %v7709
    %v7711 = vpop.f32.mrb[0].mxu0
    %v7712 = vadd.f32 %v7632, %v7711
    %v7713 = vpop.f32.mrb[0].mxu0
    %7714 = vdwg.mxu0
    %7715 = vmatprep.subr.mxu0 0.0
    %v7716 = vand.u32 %v37, 4294901760
    %7717 = vmatpush1.msra.mxu0 %v7716
    %7718 = vmatprep.subr.mxu0 0.0
    %v7719 = vand.u32 %v38, 4294901760
    %7720 = vmatpush1.msra.mxu0 %v7719
    %7721 = vmatprep.subr.mxu0 0.0
    %v7722 = vand.u32 %v39, 4294901760
    %7723 = vmatpush1.msra.mxu0 %v7722
    %7724 = vmatprep.subr.mxu0 0.0
    %v7725 = vand.u32 %v40, 4294901760
    %7726 = vmatpush1.msra.mxu0 %v7725
    %7727 = vmatprep.subr.mxu0 0.0
    %7728 = vmatpush1.msra.mxu0 0.0
    %7729 = vmatprep.subr.mxu0 0.0
    %7730 = vmatpush1.msra.mxu0 0.0
    %7731 = vmatprep.subr.mxu0 0.0
    %7732 = vmatpush1.msra.mxu0 0.0
    %7733 = vmatprep.subr.mxu0 0.0
    %7734 = vmatpush1.msra.mxu0 0.0
    %7735 = vmatprep.subr.mxu0 0.0
    %7736 = vmatpush1.msra.mxu0 0.0
    %7737 = vmatprep.subr.mxu0 0.0
    %7738 = vmatpush1.msra.mxu0 0.0
    %7739 = vmatprep.subr.mxu0 0.0
    %7740 = vmatpush1.msra.mxu0 0.0
    %7741 = vmatprep.subr.mxu0 0.0
    %7742 = vmatpush1.msra.mxu0 0.0
    %7743 = vmatprep.subr.mxu0 0.0
    %7744 = vmatpush1.msra.mxu0 0.0
    %7745 = vmatprep.subr.mxu0 0.0
    %7746 = vmatpush1.msra.mxu0 0.0
    %7747 = vmatprep.subr.mxu0 0.0
    %7748 = vmatpush1.msra.mxu0 0.0
    %7749 = vmatprep.subr.mxu0 0.0
    %7750 = vmatpush1.msra.mxu0 0.0
    %7751 = vmatprep.subr.mxu0 0.0
    %7752 = vmatpush1.msra.mxu0 0.0
    %7753 = vmatprep.subr.mxu0 0.0
    %7754 = vmatpush1.msra.mxu0 0.0
    %7755 = vmatprep.subr.mxu0 0.0
    %7756 = vmatpush1.msra.mxu0 0.0
    %7757 = vmatprep.subr.mxu0 0.0
    %7758 = vmatpush1.msra.mxu0 0.0
    %7759 = vmatprep.subr.mxu0 0.0
    %7760 = vmatpush1.msra.mxu0 0.0
    %7761 = vmatprep.subr.mxu0 0.0
    %7762 = vmatpush1.msra.mxu0 0.0
    %7763 = vmatprep.subr.mxu0 0.0
    %7764 = vmatpush1.msra.mxu0 0.0
    %7765 = vmatprep.subr.mxu0 0.0
    %7766 = vmatpush1.msra.mxu0 0.0
    %7767 = vmatprep.subr.mxu0 0.0
    %7768 = vmatpush1.msra.mxu0 0.0
    %7769 = vmatprep.subr.mxu0 0.0
    %7770 = vmatpush1.msra.mxu0 0.0
    %7771 = vmatprep.subr.mxu0 0.0
    %7772 = vmatpush1.msra.mxu0 0.0
    %7773 = vmatprep.subr.mxu0 0.0
    %7774 = vmatpush1.msra.mxu0 0.0
    %7775 = vmatprep.subr.mxu0 0.0
    %7776 = vmatpush1.msra.mxu0 0.0
    %7777 = vmatprep.subr.mxu0 0.0
    %7778 = vmatpush1.msra.mxu0 0.0
    %7779 = vmatprep.subr.mxu0 0.0
    %7780 = vmatpush1.msra.mxu0 0.0
    %7781 = vmatprep.subr.mxu0 0.0
    %7782 = vmatpush1.msra.mxu0 0.0
    %7783 = vmatprep.mubr.f32.mxu0 0.0
    %v7784 = vand.u32 %v7463, 4294901760
    %v7785 = vsub.f32 %v7463, %v7784
    %v7786 = vand.u32 %v7785, 4294901760
    %7787 = vmatmul.mubr.f32.gmra.mrb[0].mxu0 %v7786
    %v7788 = vpop.f32.mrb[0].mxu0
    %v7789 = vadd.f32 %v7712, %v7788
    %v7790 = vpop.f32.mrb[0].mxu0
    %7791 = vdwg.mxu0
    %7792 = vmatprep.subr.mxu0 0.0
    %v7793 = vand.u32 %v37, 4294901760
    %v7794 = vsub.f32 %v37, %v7793
    %v7795 = vand.u32 %v7794, 4294901760
    %7796 = vmatpush1.msra.mxu0 %v7795
    %7797 = vmatprep.subr.mxu0 0.0
    %v7798 = vand.u32 %v38, 4294901760
    %v7799 = vsub.f32 %v38, %v7798
    %v7800 = vand.u32 %v7799, 4294901760
    %7801 = vmatpush1.msra.mxu0 %v7800
    %7802 = vmatprep.subr.mxu0 0.0
    %v7803 = vand.u32 %v39, 4294901760
    %v7804 = vsub.f32 %v39, %v7803
    %v7805 = vand.u32 %v7804, 4294901760
    %7806 = vmatpush1.msra.mxu0 %v7805
    %7807 = vmatprep.subr.mxu0 0.0
    %v7808 = vand.u32 %v40, 4294901760
    %v7809 = vsub.f32 %v40, %v7808
    %v7810 = vand.u32 %v7809, 4294901760
    %7811 = vmatpush1.msra.mxu0 %v7810
    %7812 = vmatprep.subr.mxu0 0.0
    %7813 = vmatpush1.msra.mxu0 0.0
    %7814 = vmatprep.subr.mxu0 0.0
    %7815 = vmatpush1.msra.mxu0 0.0
    %7816 = vmatprep.subr.mxu0 0.0
    %7817 = vmatpush1.msra.mxu0 0.0
    %7818 = vmatprep.subr.mxu0 0.0
    %7819 = vmatpush1.msra.mxu0 0.0
    %7820 = vmatprep.subr.mxu0 0.0
    %7821 = vmatpush1.msra.mxu0 0.0
    %7822 = vmatprep.subr.mxu0 0.0
    %7823 = vmatpush1.msra.mxu0 0.0
    %7824 = vmatprep.subr.mxu0 0.0
    %7825 = vmatpush1.msra.mxu0 0.0
    %7826 = vmatprep.subr.mxu0 0.0
    %7827 = vmatpush1.msra.mxu0 0.0
    %7828 = vmatprep.subr.mxu0 0.0
    %7829 = vmatpush1.msra.mxu0 0.0
    %7830 = vmatprep.subr.mxu0 0.0
    %7831 = vmatpush1.msra.mxu0 0.0
    %7832 = vmatprep.subr.mxu0 0.0
    %7833 = vmatpush1.msra.mxu0 0.0
    %7834 = vmatprep.subr.mxu0 0.0
    %7835 = vmatpush1.msra.mxu0 0.0
    %7836 = vmatprep.subr.mxu0 0.0
    %7837 = vmatpush1.msra.mxu0 0.0
    %7838 = vmatprep.subr.mxu0 0.0
    %7839 = vmatpush1.msra.mxu0 0.0
    %7840 = vmatprep.subr.mxu0 0.0
    %7841 = vmatpush1.msra.mxu0 0.0
    %7842 = vmatprep.subr.mxu0 0.0
    %7843 = vmatpush1.msra.mxu0 0.0
    %7844 = vmatprep.subr.mxu0 0.0
    %7845 = vmatpush1.msra.mxu0 0.0
    %7846 = vmatprep.subr.mxu0 0.0
    %7847 = vmatpush1.msra.mxu0 0.0
    %7848 = vmatprep.subr.mxu0 0.0
    %7849 = vmatpush1.msra.mxu0 0.0
    %7850 = vmatprep.subr.mxu0 0.0
    %7851 = vmatpush1.msra.mxu0 0.0
    %7852 = vmatprep.subr.mxu0 0.0
    %7853 = vmatpush1.msra.mxu0 0.0
    %7854 = vmatprep.subr.mxu0 0.0
    %7855 = vmatpush1.msra.mxu0 0.0
    %7856 = vmatprep.subr.mxu0 0.0
    %7857 = vmatpush1.msra.mxu0 0.0
    %7858 = vmatprep.subr.mxu0 0.0
    %7859 = vmatpush1.msra.mxu0 0.0
    %7860 = vmatprep.subr.mxu0 0.0
    %7861 = vmatpush1.msra.mxu0 0.0
    %7862 = vmatprep.subr.mxu0 0.0
    %7863 = vmatpush1.msra.mxu0 0.0
    %7864 = vmatprep.subr.mxu0 0.0
    %7865 = vmatpush1.msra.mxu0 0.0
    %7866 = vmatprep.subr.mxu0 0.0
    %7867 = vmatpush1.msra.mxu0 0.0
    %7868 = vmatprep.mubr.f32.mxu0 0.0
    %v7869 = vand.u32 %v7463, 4294901760
    %7870 = vmatmul.mubr.f32.gmra.mrb[0].mxu0 %v7869
    %v7871 = vpop.f32.mrb[0].mxu0
    %v7872 = vadd.f32 %v7789, %v7871
    %v7873 = vpop.f32.mrb[0].mxu0
    %7874 = vdwg.mxu0
    %7875 = vmatprep.subr.mxu0 0.0
    %v7876 = vand.u32 %v37, 4294901760
    %7877 = vmatpush1.msra.mxu0 %v7876
    %7878 = vmatprep.subr.mxu0 0.0
    %v7879 = vand.u32 %v38, 4294901760
    %7880 = vmatpush1.msra.mxu0 %v7879
    %7881 = vmatprep.subr.mxu0 0.0
    %v7882 = vand.u32 %v39, 4294901760
    %7883 = vmatpush1.msra.mxu0 %v7882
    %7884 = vmatprep.subr.mxu0 0.0
    %v7885 = vand.u32 %v40, 4294901760
    %7886 = vmatpush1.msra.mxu0 %v7885
    %7887 = vmatprep.subr.mxu0 0.0
    %7888 = vmatpush1.msra.mxu0 0.0
    %7889 = vmatprep.subr.mxu0 0.0
    %7890 = vmatpush1.msra.mxu0 0.0
    %7891 = vmatprep.subr.mxu0 0.0
    %7892 = vmatpush1.msra.mxu0 0.0
    %7893 = vmatprep.subr.mxu0 0.0
    %7894 = vmatpush1.msra.mxu0 0.0
    %7895 = vmatprep.subr.mxu0 0.0
    %7896 = vmatpush1.msra.mxu0 0.0
    %7897 = vmatprep.subr.mxu0 0.0
    %7898 = vmatpush1.msra.mxu0 0.0
    %7899 = vmatprep.subr.mxu0 0.0
    %7900 = vmatpush1.msra.mxu0 0.0
    %7901 = vmatprep.subr.mxu0 0.0
    %7902 = vmatpush1.msra.mxu0 0.0
    %7903 = vmatprep.subr.mxu0 0.0
    %7904 = vmatpush1.msra.mxu0 0.0
    %7905 = vmatprep.subr.mxu0 0.0
    %7906 = vmatpush1.msra.mxu0 0.0
    %7907 = vmatprep.subr.mxu0 0.0
    %7908 = vmatpush1.msra.mxu0 0.0
    %7909 = vmatprep.subr.mxu0 0.0
    %7910 = vmatpush1.msra.mxu0 0.0
    %7911 = vmatprep.subr.mxu0 0.0
    %7912 = vmatpush1.msra.mxu0 0.0
    %7913 = vmatprep.subr.mxu0 0.0
    %7914 = vmatpush1.msra.mxu0 0.0
    %7915 = vmatprep.subr.mxu0 0.0
    %7916 = vmatpush1.msra.mxu0 0.0
    %7917 = vmatprep.subr.mxu0 0.0
    %7918 = vmatpush1.msra.mxu0 0.0
    %7919 = vmatprep.subr.mxu0 0.0
    %7920 = vmatpush1.msra.mxu0 0.0
    %7921 = vmatprep.subr.mxu0 0.0
    %7922 = vmatpush1.msra.mxu0 0.0
    %7923 = vmatprep.subr.mxu0 0.0
    %7924 = vmatpush1.msra.mxu0 0.0
    %7925 = vmatprep.subr.mxu0 0.0
    %7926 = vmatpush1.msra.mxu0 0.0
    %7927 = vmatprep.subr.mxu0 0.0
    %7928 = vmatpush1.msra.mxu0 0.0
    %7929 = vmatprep.subr.mxu0 0.0
    %7930 = vmatpush1.msra.mxu0 0.0
    %7931 = vmatprep.subr.mxu0 0.0
    %7932 = vmatpush1.msra.mxu0 0.0
    %7933 = vmatprep.subr.mxu0 0.0
    %7934 = vmatpush1.msra.mxu0 0.0
    %7935 = vmatprep.subr.mxu0 0.0
    %7936 = vmatpush1.msra.mxu0 0.0
    %7937 = vmatprep.subr.mxu0 0.0
    %7938 = vmatpush1.msra.mxu0 0.0
    %7939 = vmatprep.subr.mxu0 0.0
    %7940 = vmatpush1.msra.mxu0 0.0
    %7941 = vmatprep.subr.mxu0 0.0
    %7942 = vmatpush1.msra.mxu0 0.0
    %7943 = vmatprep.mubr.f32.mxu0 0.0
    %v7944 = vand.u32 %v7463, 4294901760
    %7945 = vmatmul.mubr.f32.gmra.mrb[0].mxu0 %v7944
    %v7946 = vpop.f32.mrb[0].mxu0
    %v7947 = vadd.f32 %v7872, %v7946
    %v7948 = vpop.f32.mrb[0].mxu0
    %7949 = vdwg.mxu0
    %v7950 = vadd.f32 %v2706, %v7947
    %v7951 = vxor.u32 %v7950, 2147483648
    %v7952 = vmul.f32 %v7951, 1.442695
    %v7953 = vpow.pop %v7952
    %v7954 = vadd.f32 %v7953, 1.0
    %v7955 = vrcp.pop %v7954
    %v7956 = vmul.f32 1.0, %v7955
    %7958 = vrot.lane.b32.xlu0 %v7947, 64
    %v7959 = vpop.permute.xlu0 %7958
    %v7961 = vmul.f32 %v7956, %v7959
    %7963 = vrot.lane.b32.xlu0 %v7961, 64
    %v7964 = vpop.permute.xlu0 %7963
    %v7966 = vadd.f32 %v2706, %v7964
    %v7967 = vtanh.pop %v7966
    %v7968 = vsub.f32 1.0, %v7956
    %7970 = vrot.lane.b32.xlu0 %v7967, 96
    %v7971 = vpop.permute.xlu0 %7970
    %v7973 = vmul.f32 %v7968, %v7971
    %v7974 = vmul.f32 %v7956, %v7459
    %v7975 = vadd.f32 %v7973, %v7974
    %7977 = vrot.lane.b32.xlu0 %v7975, 96
    %v7978 = vpop.permute.xlu0 %7977
    %v7979 = vsel %vm95, %v7978, 0
    %7981 = vmatprep.subr.mxu0 0.0
    %v7982 = vand.u32 %v37, 4294901760
    %7983 = vmatpush1.msra.mxu0 %v7982
    %7984 = vmatprep.subr.mxu0 0.0
    %v7985 = vand.u32 %v38, 4294901760
    %7986 = vmatpush1.msra.mxu0 %v7985
    %7987 = vmatprep.subr.mxu0 0.0
    %v7988 = vand.u32 %v39, 4294901760
    %7989 = vmatpush1.msra.mxu0 %v7988
    %7990 = vmatprep.subr.mxu0 0.0
    %v7991 = vand.u32 %v40, 4294901760
    %7992 = vmatpush1.msra.mxu0 %v7991
    %7993 = vmatprep.subr.mxu0 0.0
    %7994 = vmatpush1.msra.mxu0 0.0
    %7995 = vmatprep.subr.mxu0 0.0
    %7996 = vmatpush1.msra.mxu0 0.0
    %7997 = vmatprep.subr.mxu0 0.0
    %7998 = vmatpush1.msra.mxu0 0.0
    %7999 = vmatprep.subr.mxu0 0.0
    %8000 = vmatpush1.msra.mxu0 0.0
    %8001 = vmatprep.subr.mxu0 0.0
    %8002 = vmatpush1.msra.mxu0 0.0
    %8003 = vmatprep.subr.mxu0 0.0
    %8004 = vmatpush1.msra.mxu0 0.0
    %8005 = vmatprep.subr.mxu0 0.0
    %8006 = vmatpush1.msra.mxu0 0.0
    %8007 = vmatprep.subr.mxu0 0.0
    %8008 = vmatpush1.msra.mxu0 0.0
    %8009 = vmatprep.subr.mxu0 0.0
    %8010 = vmatpush1.msra.mxu0 0.0
    %8011 = vmatprep.subr.mxu0 0.0
    %8012 = vmatpush1.msra.mxu0 0.0
    %8013 = vmatprep.subr.mxu0 0.0
    %8014 = vmatpush1.msra.mxu0 0.0
    %8015 = vmatprep.subr.mxu0 0.0
    %8016 = vmatpush1.msra.mxu0 0.0
    %8017 = vmatprep.subr.mxu0 0.0
    %8018 = vmatpush1.msra.mxu0 0.0
    %8019 = vmatprep.subr.mxu0 0.0
    %8020 = vmatpush1.msra.mxu0 0.0
    %8021 = vmatprep.subr.mxu0 0.0
    %8022 = vmatpush1.msra.mxu0 0.0
    %8023 = vmatprep.subr.mxu0 0.0
    %8024 = vmatpush1.msra.mxu0 0.0
    %8025 = vmatprep.subr.mxu0 0.0
    %8026 = vmatpush1.msra.mxu0 0.0
    %8027 = vmatprep.subr.mxu0 0.0
    %8028 = vmatpush1.msra.mxu0 0.0
    %8029 = vmatprep.subr.mxu0 0.0
    %8030 = vmatpush1.msra.mxu0 0.0
    %8031 = vmatprep.subr.mxu0 0.0
    %8032 = vmatpush1.msra.mxu0 0.0
    %8033 = vmatprep.subr.mxu0 0.0
    %8034 = vmatpush1.msra.mxu0 0.0
    %8035 = vmatprep.subr.mxu0 0.0
    %8036 = vmatpush1.msra.mxu0 0.0
    %8037 = vmatprep.subr.mxu0 0.0
    %8038 = vmatpush1.msra.mxu0 0.0
    %8039 = vmatprep.subr.mxu0 0.0
    %8040 = vmatpush1.msra.mxu0 0.0
    %8041 = vmatprep.subr.mxu0 0.0
    %8042 = vmatpush1.msra.mxu0 0.0
    %8043 = vmatprep.subr.mxu0 0.0
    %8044 = vmatpush1.msra.mxu0 0.0
    %8045 = vmatprep.subr.mxu0 0.0
    %8046 = vmatpush1.msra.mxu0 0.0
    %8047 = vmatprep.subr.mxu0 0.0
    %8048 = vmatpush1.msra.mxu0 0.0
    %8049 = vmatprep.mubr.f32.mxu0 0.0
    %v8050 = vand.u32 %v7979, 4294901760
    %v8051 = vsub.f32 %v7979, %v8050
    %v8052 = vand.u32 %v8051, 4294901760
    %v8053 = vsub.f32 %v8051, %v8052
    %v8054 = vand.u32 %v8053, 4294901760
    %8055 = vmatmul.mubr.f32.gmra.mrb[0].mxu0 %v8054
    %v8056 = vpop.f32.mrb[0].mxu0
    %v8057 = vadd.f32 %v63, %v8056
    %v8058 = vpop.f32.mrb[0].mxu0
    %8059 = vdwg.mxu0
    %8060 = vmatprep.subr.mxu0 0.0
    %v8061 = vand.u32 %v37, 4294901760
    %v8062 = vsub.f32 %v37, %v8061
    %v8063 = vand.u32 %v8062, 4294901760
    %v8064 = vsub.f32 %v8062, %v8063
    %v8065 = vand.u32 %v8064, 4294901760
    %8066 = vmatpush1.msra.mxu0 %v8065
    %8067 = vmatprep.subr.mxu0 0.0
    %v8068 = vand.u32 %v38, 4294901760
    %v8069 = vsub.f32 %v38, %v8068
    %v8070 = vand.u32 %v8069, 4294901760
    %v8071 = vsub.f32 %v8069, %v8070
    %v8072 = vand.u32 %v8071, 4294901760
    %8073 = vmatpush1.msra.mxu0 %v8072
    %8074 = vmatprep.subr.mxu0 0.0
    %v8075 = vand.u32 %v39, 4294901760
    %v8076 = vsub.f32 %v39, %v8075
    %v8077 = vand.u32 %v8076, 4294901760
    %v8078 = vsub.f32 %v8076, %v8077
    %v8079 = vand.u32 %v8078, 4294901760
    %8080 = vmatpush1.msra.mxu0 %v8079
    %8081 = vmatprep.subr.mxu0 0.0
    %v8082 = vand.u32 %v40, 4294901760
    %v8083 = vsub.f32 %v40, %v8082
    %v8084 = vand.u32 %v8083, 4294901760
    %v8085 = vsub.f32 %v8083, %v8084
    %v8086 = vand.u32 %v8085, 4294901760
    %8087 = vmatpush1.msra.mxu0 %v8086
    %8088 = vmatprep.subr.mxu0 0.0
    %8089 = vmatpush1.msra.mxu0 0.0
    %8090 = vmatprep.subr.mxu0 0.0
    %8091 = vmatpush1.msra.mxu0 0.0
    %8092 = vmatprep.subr.mxu0 0.0
    %8093 = vmatpush1.msra.mxu0 0.0
    %8094 = vmatprep.subr.mxu0 0.0
    %8095 = vmatpush1.msra.mxu0 0.0
    %8096 = vmatprep.subr.mxu0 0.0
    %8097 = vmatpush1.msra.mxu0 0.0
    %8098 = vmatprep.subr.mxu0 0.0
    %8099 = vmatpush1.msra.mxu0 0.0
    %8100 = vmatprep.subr.mxu0 0.0
    %8101 = vmatpush1.msra.mxu0 0.0
    %8102 = vmatprep.subr.mxu0 0.0
    %8103 = vmatpush1.msra.mxu0 0.0
    %8104 = vmatprep.subr.mxu0 0.0
    %8105 = vmatpush1.msra.mxu0 0.0
    %8106 = vmatprep.subr.mxu0 0.0
    %8107 = vmatpush1.msra.mxu0 0.0
    %8108 = vmatprep.subr.mxu0 0.0
    %8109 = vmatpush1.msra.mxu0 0.0
    %8110 = vmatprep.subr.mxu0 0.0
    %8111 = vmatpush1.msra.mxu0 0.0
    %8112 = vmatprep.subr.mxu0 0.0
    %8113 = vmatpush1.msra.mxu0 0.0
    %8114 = vmatprep.subr.mxu0 0.0
    %8115 = vmatpush1.msra.mxu0 0.0
    %8116 = vmatprep.subr.mxu0 0.0
    %8117 = vmatpush1.msra.mxu0 0.0
    %8118 = vmatprep.subr.mxu0 0.0
    %8119 = vmatpush1.msra.mxu0 0.0
    %8120 = vmatprep.subr.mxu0 0.0
    %8121 = vmatpush1.msra.mxu0 0.0
    %8122 = vmatprep.subr.mxu0 0.0
    %8123 = vmatpush1.msra.mxu0 0.0
    %8124 = vmatprep.subr.mxu0 0.0
    %8125 = vmatpush1.msra.mxu0 0.0
    %8126 = vmatprep.subr.mxu0 0.0
    %8127 = vmatpush1.msra.mxu0 0.0
    %8128 = vmatprep.subr.mxu0 0.0
    %8129 = vmatpush1.msra.mxu0 0.0
    %8130 = vmatprep.subr.mxu0 0.0
    %8131 = vmatpush1.msra.mxu0 0.0
    %8132 = vmatprep.subr.mxu0 0.0
    %8133 = vmatpush1.msra.mxu0 0.0
    %8134 = vmatprep.subr.mxu0 0.0
    %8135 = vmatpush1.msra.mxu0 0.0
    %8136 = vmatprep.subr.mxu0 0.0
    %8137 = vmatpush1.msra.mxu0 0.0
    %8138 = vmatprep.subr.mxu0 0.0
    %8139 = vmatpush1.msra.mxu0 0.0
    %8140 = vmatprep.subr.mxu0 0.0
    %8141 = vmatpush1.msra.mxu0 0.0
    %8142 = vmatprep.subr.mxu0 0.0
    %8143 = vmatpush1.msra.mxu0 0.0
    %8144 = vmatprep.mubr.f32.mxu0 0.0
    %v8145 = vand.u32 %v7979, 4294901760
    %8146 = vmatmul.mubr.f32.gmra.mrb[0].mxu0 %v8145
    %v8147 = vpop.f32.mrb[0].mxu0
    %v8148 = vadd.f32 %v8057, %v8147
    %v8149 = vpop.f32.mrb[0].mxu0
    %8150 = vdwg.mxu0
    %8151 = vmatprep.subr.mxu0 0.0
    %v8152 = vand.u32 %v37, 4294901760
    %v8153 = vsub.f32 %v37, %v8152
    %8154 = vmatpush1.msra.mxu0 %v8153
    %8155 = vmatprep.subr.mxu0 0.0
    %v8156 = vand.u32 %v38, 4294901760
    %v8157 = vsub.f32 %v38, %v8156
    %8158 = vmatpush1.msra.mxu0 %v8157
    %8159 = vmatprep.subr.mxu0 0.0
    %v8160 = vand.u32 %v39, 4294901760
    %v8161 = vsub.f32 %v39, %v8160
    %8162 = vmatpush1.msra.mxu0 %v8161
    %8163 = vmatprep.subr.mxu0 0.0
    %v8164 = vand.u32 %v40, 4294901760
    %v8165 = vsub.f32 %v40, %v8164
    %8166 = vmatpush1.msra.mxu0 %v8165
    %8167 = vmatprep.subr.mxu0 0.0
    %8168 = vmatpush1.msra.mxu0 0.0
    %8169 = vmatprep.subr.mxu0 0.0
    %8170 = vmatpush1.msra.mxu0 0.0
    %8171 = vmatprep.subr.mxu0 0.0
    %8172 = vmatpush1.msra.mxu0 0.0
    %8173 = vmatprep.subr.mxu0 0.0
    %8174 = vmatpush1.msra.mxu0 0.0
    %8175 = vmatprep.subr.mxu0 0.0
    %8176 = vmatpush1.msra.mxu0 0.0
    %8177 = vmatprep.subr.mxu0 0.0
    %8178 = vmatpush1.msra.mxu0 0.0
    %8179 = vmatprep.subr.mxu0 0.0
    %8180 = vmatpush1.msra.mxu0 0.0
    %8181 = vmatprep.subr.mxu0 0.0
    %8182 = vmatpush1.msra.mxu0 0.0
    %8183 = vmatprep.subr.mxu0 0.0
    %8184 = vmatpush1.msra.mxu0 0.0
    %8185 = vmatprep.subr.mxu0 0.0
    %8186 = vmatpush1.msra.mxu0 0.0
    %8187 = vmatprep.subr.mxu0 0.0
    %8188 = vmatpush1.msra.mxu0 0.0
    %8189 = vmatprep.subr.mxu0 0.0
    %8190 = vmatpush1.msra.mxu0 0.0
    %8191 = vmatprep.subr.mxu0 0.0
    %8192 = vmatpush1.msra.mxu0 0.0
    %8193 = vmatprep.subr.mxu0 0.0
    %8194 = vmatpush1.msra.mxu0 0.0
    %8195 = vmatprep.subr.mxu0 0.0
    %8196 = vmatpush1.msra.mxu0 0.0
    %8197 = vmatprep.subr.mxu0 0.0
    %8198 = vmatpush1.msra.mxu0 0.0
    %8199 = vmatprep.subr.mxu0 0.0
    %8200 = vmatpush1.msra.mxu0 0.0
    %8201 = vmatprep.subr.mxu0 0.0
    %8202 = vmatpush1.msra.mxu0 0.0
    %8203 = vmatprep.subr.mxu0 0.0
    %8204 = vmatpush1.msra.mxu0 0.0
    %8205 = vmatprep.subr.mxu0 0.0
    %8206 = vmatpush1.msra.mxu0 0.0
    %8207 = vmatprep.subr.mxu0 0.0
    %8208 = vmatpush1.msra.mxu0 0.0
    %8209 = vmatprep.subr.mxu0 0.0
    %8210 = vmatpush1.msra.mxu0 0.0
    %8211 = vmatprep.subr.mxu0 0.0
    %8212 = vmatpush1.msra.mxu0 0.0
    %8213 = vmatprep.subr.mxu0 0.0
    %8214 = vmatpush1.msra.mxu0 0.0
    %8215 = vmatprep.subr.mxu0 0.0
    %8216 = vmatpush1.msra.mxu0 0.0
    %8217 = vmatprep.subr.mxu0 0.0
    %8218 = vmatpush1.msra.mxu0 0.0
    %8219 = vmatprep.subr.mxu0 0.0
    %8220 = vmatpush1.msra.mxu0 0.0
    %8221 = vmatprep.subr.mxu0 0.0
    %8222 = vmatpush1.msra.mxu0 0.0
    %8223 = vmatprep.mubr.f32.mxu0 0.0
    %v8224 = vand.u32 %v7979, 4294901760
    %v8225 = vsub.f32 %v7979, %v8224
    %8226 = vmatmul.mubr.f32.gmra.mrb[0].mxu0 %v8225
    %v8227 = vpop.f32.mrb[0].mxu0
    %v8228 = vadd.f32 %v8148, %v8227
    %v8229 = vpop.f32.mrb[0].mxu0
    %8230 = vdwg.mxu0
    %8231 = vmatprep.subr.mxu0 0.0
    %v8232 = vand.u32 %v37, 4294901760
    %8233 = vmatpush1.msra.mxu0 %v8232
    %8234 = vmatprep.subr.mxu0 0.0
    %v8235 = vand.u32 %v38, 4294901760
    %8236 = vmatpush1.msra.mxu0 %v8235
    %8237 = vmatprep.subr.mxu0 0.0
    %v8238 = vand.u32 %v39, 4294901760
    %8239 = vmatpush1.msra.mxu0 %v8238
    %8240 = vmatprep.subr.mxu0 0.0
    %v8241 = vand.u32 %v40, 4294901760
    %8242 = vmatpush1.msra.mxu0 %v8241
    %8243 = vmatprep.subr.mxu0 0.0
    %8244 = vmatpush1.msra.mxu0 0.0
    %8245 = vmatprep.subr.mxu0 0.0
    %8246 = vmatpush1.msra.mxu0 0.0
    %8247 = vmatprep.subr.mxu0 0.0
    %8248 = vmatpush1.msra.mxu0 0.0
    %8249 = vmatprep.subr.mxu0 0.0
    %8250 = vmatpush1.msra.mxu0 0.0
    %8251 = vmatprep.subr.mxu0 0.0
    %8252 = vmatpush1.msra.mxu0 0.0
    %8253 = vmatprep.subr.mxu0 0.0
    %8254 = vmatpush1.msra.mxu0 0.0
    %8255 = vmatprep.subr.mxu0 0.0
    %8256 = vmatpush1.msra.mxu0 0.0
    %8257 = vmatprep.subr.mxu0 0.0
    %8258 = vmatpush1.msra.mxu0 0.0
    %8259 = vmatprep.subr.mxu0 0.0
    %8260 = vmatpush1.msra.mxu0 0.0
    %8261 = vmatprep.subr.mxu0 0.0
    %8262 = vmatpush1.msra.mxu0 0.0
    %8263 = vmatprep.subr.mxu0 0.0
    %8264 = vmatpush1.msra.mxu0 0.0
    %8265 = vmatprep.subr.mxu0 0.0
    %8266 = vmatpush1.msra.mxu0 0.0
    %8267 = vmatprep.subr.mxu0 0.0
    %8268 = vmatpush1.msra.mxu0 0.0
    %8269 = vmatprep.subr.mxu0 0.0
    %8270 = vmatpush1.msra.mxu0 0.0
    %8271 = vmatprep.subr.mxu0 0.0
    %8272 = vmatpush1.msra.mxu0 0.0
    %8273 = vmatprep.subr.mxu0 0.0
    %8274 = vmatpush1.msra.mxu0 0.0
    %8275 = vmatprep.subr.mxu0 0.0
    %8276 = vmatpush1.msra.mxu0 0.0
    %8277 = vmatprep.subr.mxu0 0.0
    %8278 = vmatpush1.msra.mxu0 0.0
    %8279 = vmatprep.subr.mxu0 0.0
    %8280 = vmatpush1.msra.mxu0 0.0
    %8281 = vmatprep.subr.mxu0 0.0
    %8282 = vmatpush1.msra.mxu0 0.0
    %8283 = vmatprep.subr.mxu0 0.0
    %8284 = vmatpush1.msra.mxu0 0.0
    %8285 = vmatprep.subr.mxu0 0.0
    %8286 = vmatpush1.msra.mxu0 0.0
    %8287 = vmatprep.subr.mxu0 0.0
    %8288 = vmatpush1.msra.mxu0 0.0
    %8289 = vmatprep.subr.mxu0 0.0
    %8290 = vmatpush1.msra.mxu0 0.0
    %8291 = vmatprep.subr.mxu0 0.0
    %8292 = vmatpush1.msra.mxu0 0.0
    %8293 = vmatprep.subr.mxu0 0.0
    %8294 = vmatpush1.msra.mxu0 0.0
    %8295 = vmatprep.subr.mxu0 0.0
    %8296 = vmatpush1.msra.mxu0 0.0
    %8297 = vmatprep.subr.mxu0 0.0
    %8298 = vmatpush1.msra.mxu0 0.0
    %8299 = vmatprep.mubr.f32.mxu0 0.0
    %v8300 = vand.u32 %v7979, 4294901760
    %v8301 = vsub.f32 %v7979, %v8300
    %v8302 = vand.u32 %v8301, 4294901760
    %8303 = vmatmul.mubr.f32.gmra.mrb[0].mxu0 %v8302
    %v8304 = vpop.f32.mrb[0].mxu0
    %v8305 = vadd.f32 %v8228, %v8304
    %v8306 = vpop.f32.mrb[0].mxu0
    %8307 = vdwg.mxu0
    %8308 = vmatprep.subr.mxu0 0.0
    %v8309 = vand.u32 %v37, 4294901760
    %v8310 = vsub.f32 %v37, %v8309
    %v8311 = vand.u32 %v8310, 4294901760
    %8312 = vmatpush1.msra.mxu0 %v8311
    %8313 = vmatprep.subr.mxu0 0.0
    %v8314 = vand.u32 %v38, 4294901760
    %v8315 = vsub.f32 %v38, %v8314
    %v8316 = vand.u32 %v8315, 4294901760
    %8317 = vmatpush1.msra.mxu0 %v8316
    %8318 = vmatprep.subr.mxu0 0.0
    %v8319 = vand.u32 %v39, 4294901760
    %v8320 = vsub.f32 %v39, %v8319
    %v8321 = vand.u32 %v8320, 4294901760
    %8322 = vmatpush1.msra.mxu0 %v8321
    %8323 = vmatprep.subr.mxu0 0.0
    %v8324 = vand.u32 %v40, 4294901760
    %v8325 = vsub.f32 %v40, %v8324
    %v8326 = vand.u32 %v8325, 4294901760
    %8327 = vmatpush1.msra.mxu0 %v8326
    %8328 = vmatprep.subr.mxu0 0.0
    %8329 = vmatpush1.msra.mxu0 0.0
    %8330 = vmatprep.subr.mxu0 0.0
    %8331 = vmatpush1.msra.mxu0 0.0
    %8332 = vmatprep.subr.mxu0 0.0
    %8333 = vmatpush1.msra.mxu0 0.0
    %8334 = vmatprep.subr.mxu0 0.0
    %8335 = vmatpush1.msra.mxu0 0.0
    %8336 = vmatprep.subr.mxu0 0.0
    %8337 = vmatpush1.msra.mxu0 0.0
    %8338 = vmatprep.subr.mxu0 0.0
    %8339 = vmatpush1.msra.mxu0 0.0
    %8340 = vmatprep.subr.mxu0 0.0
    %8341 = vmatpush1.msra.mxu0 0.0
    %8342 = vmatprep.subr.mxu0 0.0
    %8343 = vmatpush1.msra.mxu0 0.0
    %8344 = vmatprep.subr.mxu0 0.0
    %8345 = vmatpush1.msra.mxu0 0.0
    %8346 = vmatprep.subr.mxu0 0.0
    %8347 = vmatpush1.msra.mxu0 0.0
    %8348 = vmatprep.subr.mxu0 0.0
    %8349 = vmatpush1.msra.mxu0 0.0
    %8350 = vmatprep.subr.mxu0 0.0
    %8351 = vmatpush1.msra.mxu0 0.0
    %8352 = vmatprep.subr.mxu0 0.0
    %8353 = vmatpush1.msra.mxu0 0.0
    %8354 = vmatprep.subr.mxu0 0.0
    %8355 = vmatpush1.msra.mxu0 0.0
    %8356 = vmatprep.subr.mxu0 0.0
    %8357 = vmatpush1.msra.mxu0 0.0
    %8358 = vmatprep.subr.mxu0 0.0
    %8359 = vmatpush1.msra.mxu0 0.0
    %8360 = vmatprep.subr.mxu0 0.0
    %8361 = vmatpush1.msra.mxu0 0.0
    %8362 = vmatprep.subr.mxu0 0.0
    %8363 = vmatpush1.msra.mxu0 0.0
    %8364 = vmatprep.subr.mxu0 0.0
    %8365 = vmatpush1.msra.mxu0 0.0
    %8366 = vmatprep.subr.mxu0 0.0
    %8367 = vmatpush1.msra.mxu0 0.0
    %8368 = vmatprep.subr.mxu0 0.0
    %8369 = vmatpush1.msra.mxu0 0.0
    %8370 = vmatprep.subr.mxu0 0.0
    %8371 = vmatpush1.msra.mxu0 0.0
    %8372 = vmatprep.subr.mxu0 0.0
    %8373 = vmatpush1.msra.mxu0 0.0
    %8374 = vmatprep.subr.mxu0 0.0
    %8375 = vmatpush1.msra.mxu0 0.0
    %8376 = vmatprep.subr.mxu0 0.0
    %8377 = vmatpush1.msra.mxu0 0.0
    %8378 = vmatprep.subr.mxu0 0.0
    %8379 = vmatpush1.msra.mxu0 0.0
    %8380 = vmatprep.subr.mxu0 0.0
    %8381 = vmatpush1.msra.mxu0 0.0
    %8382 = vmatprep.subr.mxu0 0.0
    %8383 = vmatpush1.msra.mxu0 0.0
    %8384 = vmatprep.mubr.f32.mxu0 0.0
    %v8385 = vand.u32 %v7979, 4294901760
    %8386 = vmatmul.mubr.f32.gmra.mrb[0].mxu0 %v8385
    %v8387 = vpop.f32.mrb[0].mxu0
    %v8388 = vadd.f32 %v8305, %v8387
    %v8389 = vpop.f32.mrb[0].mxu0
    %8390 = vdwg.mxu0
    %8391 = vmatprep.subr.mxu0 0.0
    %v8392 = vand.u32 %v37, 4294901760
    %8393 = vmatpush1.msra.mxu0 %v8392
    %8394 = vmatprep.subr.mxu0 0.0
    %v8395 = vand.u32 %v38, 4294901760
    %8396 = vmatpush1.msra.mxu0 %v8395
    %8397 = vmatprep.subr.mxu0 0.0
    %v8398 = vand.u32 %v39, 4294901760
    %8399 = vmatpush1.msra.mxu0 %v8398
    %8400 = vmatprep.subr.mxu0 0.0
    %v8401 = vand.u32 %v40, 4294901760
    %8402 = vmatpush1.msra.mxu0 %v8401
    %8403 = vmatprep.subr.mxu0 0.0
    %8404 = vmatpush1.msra.mxu0 0.0
    %8405 = vmatprep.subr.mxu0 0.0
    %8406 = vmatpush1.msra.mxu0 0.0
    %8407 = vmatprep.subr.mxu0 0.0
    %8408 = vmatpush1.msra.mxu0 0.0
    %8409 = vmatprep.subr.mxu0 0.0
    %8410 = vmatpush1.msra.mxu0 0.0
    %8411 = vmatprep.subr.mxu0 0.0
    %8412 = vmatpush1.msra.mxu0 0.0
    %8413 = vmatprep.subr.mxu0 0.0
    %8414 = vmatpush1.msra.mxu0 0.0
    %8415 = vmatprep.subr.mxu0 0.0
    %8416 = vmatpush1.msra.mxu0 0.0
    %8417 = vmatprep.subr.mxu0 0.0
    %8418 = vmatpush1.msra.mxu0 0.0
    %8419 = vmatprep.subr.mxu0 0.0
    %8420 = vmatpush1.msra.mxu0 0.0
    %8421 = vmatprep.subr.mxu0 0.0
    %8422 = vmatpush1.msra.mxu0 0.0
    %8423 = vmatprep.subr.mxu0 0.0
    %8424 = vmatpush1.msra.mxu0 0.0
    %8425 = vmatprep.subr.mxu0 0.0
    %8426 = vmatpush1.msra.mxu0 0.0
    %8427 = vmatprep.subr.mxu0 0.0
    %8428 = vmatpush1.msra.mxu0 0.0
    %8429 = vmatprep.subr.mxu0 0.0
    %8430 = vmatpush1.msra.mxu0 0.0
    %8431 = vmatprep.subr.mxu0 0.0
    %8432 = vmatpush1.msra.mxu0 0.0
    %8433 = vmatprep.subr.mxu0 0.0
    %8434 = vmatpush1.msra.mxu0 0.0
    %8435 = vmatprep.subr.mxu0 0.0
    %8436 = vmatpush1.msra.mxu0 0.0
    %8437 = vmatprep.subr.mxu0 0.0
    %8438 = vmatpush1.msra.mxu0 0.0
    %8439 = vmatprep.subr.mxu0 0.0
    %8440 = vmatpush1.msra.mxu0 0.0
    %8441 = vmatprep.subr.mxu0 0.0
    %8442 = vmatpush1.msra.mxu0 0.0
    %8443 = vmatprep.subr.mxu0 0.0
    %8444 = vmatpush1.msra.mxu0 0.0
    %8445 = vmatprep.subr.mxu0 0.0
    %8446 = vmatpush1.msra.mxu0 0.0
    %8447 = vmatprep.subr.mxu0 0.0
    %8448 = vmatpush1.msra.mxu0 0.0
    %8449 = vmatprep.subr.mxu0 0.0
    %8450 = vmatpush1.msra.mxu0 0.0
    %8451 = vmatprep.subr.mxu0 0.0
    %8452 = vmatpush1.msra.mxu0 0.0
    %8453 = vmatprep.subr.mxu0 0.0
    %8454 = vmatpush1.msra.mxu0 0.0
    %8455 = vmatprep.subr.mxu0 0.0
    %8456 = vmatpush1.msra.mxu0 0.0
    %8457 = vmatprep.subr.mxu0 0.0
    %8458 = vmatpush1.msra.mxu0 0.0
    %8459 = vmatprep.mubr.f32.mxu0 0.0
    %v8460 = vand.u32 %v7979, 4294901760
    %8461 = vmatmul.mubr.f32.gmra.mrb[0].mxu0 %v8460
    %v8462 = vpop.f32.mrb[0].mxu0
    %v8463 = vadd.f32 %v8388, %v8462
    %v8464 = vpop.f32.mrb[0].mxu0
    %8465 = vdwg.mxu0
    %v8466 = vadd.f32 %v2712, %v8463
    %v8467 = vxor.u32 %v8466, 2147483648
    %v8468 = vmul.f32 %v8467, 1.442695
    %v8469 = vpow.pop %v8468
    %v8470 = vadd.f32 %v8469, 1.0
    %v8471 = vrcp.pop %v8470
    %v8472 = vmul.f32 1.0, %v8471
    %8474 = vrot.lane.b32.xlu0 %v8463, 64
    %v8475 = vpop.permute.xlu0 %8474
    %v8477 = vmul.f32 %v8472, %v8475
    %8479 = vrot.lane.b32.xlu0 %v8477, 64
    %v8480 = vpop.permute.xlu0 %8479
    %v8482 = vadd.f32 %v2712, %v8480
    %v8483 = vtanh.pop %v8482
    %v8484 = vsub.f32 1.0, %v8472
    %8486 = vrot.lane.b32.xlu0 %v8483, 96
    %v8487 = vpop.permute.xlu0 %8486
    %v8489 = vmul.f32 %v8484, %v8487
    %v8490 = vmul.f32 %v8472, %v7975
    %v8491 = vadd.f32 %v8489, %v8490
    %8493 = vrot.lane.b32.xlu0 %v8491, 96
    %v8494 = vpop.permute.xlu0 %8493
    %v8495 = vsel %vm95, %v8494, 0
    %8497 = vmatprep.subr.mxu0 0.0
    %v8498 = vand.u32 %v37, 4294901760
    %8499 = vmatpush1.msra.mxu0 %v8498
    %8500 = vmatprep.subr.mxu0 0.0
    %v8501 = vand.u32 %v38, 4294901760
    %8502 = vmatpush1.msra.mxu0 %v8501
    %8503 = vmatprep.subr.mxu0 0.0
    %v8504 = vand.u32 %v39, 4294901760
    %8505 = vmatpush1.msra.mxu0 %v8504
    %8506 = vmatprep.subr.mxu0 0.0
    %v8507 = vand.u32 %v40, 4294901760
    %8508 = vmatpush1.msra.mxu0 %v8507
    %8509 = vmatprep.subr.mxu0 0.0
    %8510 = vmatpush1.msra.mxu0 0.0
    %8511 = vmatprep.subr.mxu0 0.0
    %8512 = vmatpush1.msra.mxu0 0.0
    %8513 = vmatprep.subr.mxu0 0.0
    %8514 = vmatpush1.msra.mxu0 0.0
    %8515 = vmatprep.subr.mxu0 0.0
    %8516 = vmatpush1.msra.mxu0 0.0
    %8517 = vmatprep.subr.mxu0 0.0
    %8518 = vmatpush1.msra.mxu0 0.0
    %8519 = vmatprep.subr.mxu0 0.0
    %8520 = vmatpush1.msra.mxu0 0.0
    %8521 = vmatprep.subr.mxu0 0.0
    %8522 = vmatpush1.msra.mxu0 0.0
    %8523 = vmatprep.subr.mxu0 0.0
    %8524 = vmatpush1.msra.mxu0 0.0
    %8525 = vmatprep.subr.mxu0 0.0
    %8526 = vmatpush1.msra.mxu0 0.0
    %8527 = vmatprep.subr.mxu0 0.0
    %8528 = vmatpush1.msra.mxu0 0.0
    %8529 = vmatprep.subr.mxu0 0.0
    %8530 = vmatpush1.msra.mxu0 0.0
    %8531 = vmatprep.subr.mxu0 0.0
    %8532 = vmatpush1.msra.mxu0 0.0
    %8533 = vmatprep.subr.mxu0 0.0
    %8534 = vmatpush1.msra.mxu0 0.0
    %8535 = vmatprep.subr.mxu0 0.0
    %8536 = vmatpush1.msra.mxu0 0.0
    %8537 = vmatprep.subr.mxu0 0.0
    %8538 = vmatpush1.msra.mxu0 0.0
    %8539 = vmatprep.subr.mxu0 0.0
    %8540 = vmatpush1.msra.mxu0 0.0
    %8541 = vmatprep.subr.mxu0 0.0
    %8542 = vmatpush1.msra.mxu0 0.0
    %8543 = vmatprep.subr.mxu0 0.0
    %8544 = vmatpush1.msra.mxu0 0.0
    %8545 = vmatprep.subr.mxu0 0.0
    %8546 = vmatpush1.msra.mxu0 0.0
    %8547 = vmatprep.subr.mxu0 0.0
    %8548 = vmatpush1.msra.mxu0 0.0
    %8549 = vmatprep.subr.mxu0 0.0
    %8550 = vmatpush1.msra.mxu0 0.0
    %8551 = vmatprep.subr.mxu0 0.0
    %8552 = vmatpush1.msra.mxu0 0.0
    %8553 = vmatprep.subr.mxu0 0.0
    %8554 = vmatpush1.msra.mxu0 0.0
    %8555 = vmatprep.subr.mxu0 0.0
    %8556 = vmatpush1.msra.mxu0 0.0
    %8557 = vmatprep.subr.mxu0 0.0
    %8558 = vmatpush1.msra.mxu0 0.0
    %8559 = vmatprep.subr.mxu0 0.0
    %8560 = vmatpush1.msra.mxu0 0.0
    %8561 = vmatprep.subr.mxu0 0.0
    %8562 = vmatpush1.msra.mxu0 0.0
    %8563 = vmatprep.subr.mxu0 0.0
    %8564 = vmatpush1.msra.mxu0 0.0
    %8565 = vmatprep.mubr.f32.mxu0 0.0
    %v8566 = vand.u32 %v8495, 4294901760
    %v8567 = vsub.f32 %v8495, %v8566
    %v8568 = vand.u32 %v8567, 4294901760
    %v8569 = vsub.f32 %v8567, %v8568
    %v8570 = vand.u32 %v8569, 4294901760
    %8571 = vmatmul.mubr.f32.gmra.mrb[0].mxu0 %v8570
    %v8572 = vpop.f32.mrb[0].mxu0
    %v8573 = vadd.f32 %v63, %v8572
    %v8574 = vpop.f32.mrb[0].mxu0
    %8575 = vdwg.mxu0
    %8576 = vmatprep.subr.mxu0 0.0
    %v8577 = vand.u32 %v37, 4294901760
    %v8578 = vsub.f32 %v37, %v8577
    %v8579 = vand.u32 %v8578, 4294901760
    %v8580 = vsub.f32 %v8578, %v8579
    %v8581 = vand.u32 %v8580, 4294901760
    %8582 = vmatpush1.msra.mxu0 %v8581
    %8583 = vmatprep.subr.mxu0 0.0
    %v8584 = vand.u32 %v38, 4294901760
    %v8585 = vsub.f32 %v38, %v8584
    %v8586 = vand.u32 %v8585, 4294901760
    %v8587 = vsub.f32 %v8585, %v8586
    %v8588 = vand.u32 %v8587, 4294901760
    %8589 = vmatpush1.msra.mxu0 %v8588
    %8590 = vmatprep.subr.mxu0 0.0
    %v8591 = vand.u32 %v39, 4294901760
    %v8592 = vsub.f32 %v39, %v8591
    %v8593 = vand.u32 %v8592, 4294901760
    %v8594 = vsub.f32 %v8592, %v8593
    %v8595 = vand.u32 %v8594, 4294901760
    %8596 = vmatpush1.msra.mxu0 %v8595
    %8597 = vmatprep.subr.mxu0 0.0
    %v8598 = vand.u32 %v40, 4294901760
    %v8599 = vsub.f32 %v40, %v8598
    %v8600 = vand.u32 %v8599, 4294901760
    %v8601 = vsub.f32 %v8599, %v8600
    %v8602 = vand.u32 %v8601, 4294901760
    %8603 = vmatpush1.msra.mxu0 %v8602
    %8604 = vmatprep.subr.mxu0 0.0
    %8605 = vmatpush1.msra.mxu0 0.0
    %8606 = vmatprep.subr.mxu0 0.0
    %8607 = vmatpush1.msra.mxu0 0.0
    %8608 = vmatprep.subr.mxu0 0.0
    %8609 = vmatpush1.msra.mxu0 0.0
    %8610 = vmatprep.subr.mxu0 0.0
    %8611 = vmatpush1.msra.mxu0 0.0
    %8612 = vmatprep.subr.mxu0 0.0
    %8613 = vmatpush1.msra.mxu0 0.0
    %8614 = vmatprep.subr.mxu0 0.0
    %8615 = vmatpush1.msra.mxu0 0.0
    %8616 = vmatprep.subr.mxu0 0.0
    %8617 = vmatpush1.msra.mxu0 0.0
    %8618 = vmatprep.subr.mxu0 0.0
    %8619 = vmatpush1.msra.mxu0 0.0
    %8620 = vmatprep.subr.mxu0 0.0
    %8621 = vmatpush1.msra.mxu0 0.0
    %8622 = vmatprep.subr.mxu0 0.0
    %8623 = vmatpush1.msra.mxu0 0.0
    %8624 = vmatprep.subr.mxu0 0.0
    %8625 = vmatpush1.msra.mxu0 0.0
    %8626 = vmatprep.subr.mxu0 0.0
    %8627 = vmatpush1.msra.mxu0 0.0
    %8628 = vmatprep.subr.mxu0 0.0
    %8629 = vmatpush1.msra.mxu0 0.0
    %8630 = vmatprep.subr.mxu0 0.0
    %8631 = vmatpush1.msra.mxu0 0.0
    %8632 = vmatprep.subr.mxu0 0.0
    %8633 = vmatpush1.msra.mxu0 0.0
    %8634 = vmatprep.subr.mxu0 0.0
    %8635 = vmatpush1.msra.mxu0 0.0
    %8636 = vmatprep.subr.mxu0 0.0
    %8637 = vmatpush1.msra.mxu0 0.0
    %8638 = vmatprep.subr.mxu0 0.0
    %8639 = vmatpush1.msra.mxu0 0.0
    %8640 = vmatprep.subr.mxu0 0.0
    %8641 = vmatpush1.msra.mxu0 0.0
    %8642 = vmatprep.subr.mxu0 0.0
    %8643 = vmatpush1.msra.mxu0 0.0
    %8644 = vmatprep.subr.mxu0 0.0
    %8645 = vmatpush1.msra.mxu0 0.0
    %8646 = vmatprep.subr.mxu0 0.0
    %8647 = vmatpush1.msra.mxu0 0.0
    %8648 = vmatprep.subr.mxu0 0.0
    %8649 = vmatpush1.msra.mxu0 0.0
    %8650 = vmatprep.subr.mxu0 0.0
    %8651 = vmatpush1.msra.mxu0 0.0
    %8652 = vmatprep.subr.mxu0 0.0
    %8653 = vmatpush1.msra.mxu0 0.0
    %8654 = vmatprep.subr.mxu0 0.0
    %8655 = vmatpush1.msra.mxu0 0.0
    %8656 = vmatprep.subr.mxu0 0.0
    %8657 = vmatpush1.msra.mxu0 0.0
    %8658 = vmatprep.subr.mxu0 0.0
    %8659 = vmatpush1.msra.mxu0 0.0
    %8660 = vmatprep.mubr.f32.mxu0 0.0
    %v8661 = vand.u32 %v8495, 4294901760
    %8662 = vmatmul.mubr.f32.gmra.mrb[0].mxu0 %v8661
    %v8663 = vpop.f32.mrb[0].mxu0
    %v8664 = vadd.f32 %v8573, %v8663
    %v8665 = vpop.f32.mrb[0].mxu0
    %8666 = vdwg.mxu0
    %8667 = vmatprep.subr.mxu0 0.0
    %v8668 = vand.u32 %v37, 4294901760
    %v8669 = vsub.f32 %v37, %v8668
    %8670 = vmatpush1.msra.mxu0 %v8669
    %8671 = vmatprep.subr.mxu0 0.0
    %v8672 = vand.u32 %v38, 4294901760
    %v8673 = vsub.f32 %v38, %v8672
    %8674 = vmatpush1.msra.mxu0 %v8673
    %8675 = vmatprep.subr.mxu0 0.0
    %v8676 = vand.u32 %v39, 4294901760
    %v8677 = vsub.f32 %v39, %v8676
    %8678 = vmatpush1.msra.mxu0 %v8677
    %8679 = vmatprep.subr.mxu0 0.0
    %v8680 = vand.u32 %v40, 4294901760
    %v8681 = vsub.f32 %v40, %v8680
    %8682 = vmatpush1.msra.mxu0 %v8681
    %8683 = vmatprep.subr.mxu0 0.0
    %8684 = vmatpush1.msra.mxu0 0.0
    %8685 = vmatprep.subr.mxu0 0.0
    %8686 = vmatpush1.msra.mxu0 0.0
    %8687 = vmatprep.subr.mxu0 0.0
    %8688 = vmatpush1.msra.mxu0 0.0
    %8689 = vmatprep.subr.mxu0 0.0
    %8690 = vmatpush1.msra.mxu0 0.0
    %8691 = vmatprep.subr.mxu0 0.0
    %8692 = vmatpush1.msra.mxu0 0.0
    %8693 = vmatprep.subr.mxu0 0.0
    %8694 = vmatpush1.msra.mxu0 0.0
    %8695 = vmatprep.subr.mxu0 0.0
    %8696 = vmatpush1.msra.mxu0 0.0
    %8697 = vmatprep.subr.mxu0 0.0
    %8698 = vmatpush1.msra.mxu0 0.0
    %8699 = vmatprep.subr.mxu0 0.0
    %8700 = vmatpush1.msra.mxu0 0.0
    %8701 = vmatprep.subr.mxu0 0.0
    %8702 = vmatpush1.msra.mxu0 0.0
    %8703 = vmatprep.subr.mxu0 0.0
    %8704 = vmatpush1.msra.mxu0 0.0
    %8705 = vmatprep.subr.mxu0 0.0
    %8706 = vmatpush1.msra.mxu0 0.0
    %8707 = vmatprep.subr.mxu0 0.0
    %8708 = vmatpush1.msra.mxu0 0.0
    %8709 = vmatprep.subr.mxu0 0.0
    %8710 = vmatpush1.msra.mxu0 0.0
    %8711 = vmatprep.subr.mxu0 0.0
    %8712 = vmatpush1.msra.mxu0 0.0
    %8713 = vmatprep.subr.mxu0 0.0
    %8714 = vmatpush1.msra.mxu0 0.0
    %8715 = vmatprep.subr.mxu0 0.0
    %8716 = vmatpush1.msra.mxu0 0.0
    %8717 = vmatprep.subr.mxu0 0.0
    %8718 = vmatpush1.msra.mxu0 0.0
    %8719 = vmatprep.subr.mxu0 0.0
    %8720 = vmatpush1.msra.mxu0 0.0
    %8721 = vmatprep.subr.mxu0 0.0
    %8722 = vmatpush1.msra.mxu0 0.0
    %8723 = vmatprep.subr.mxu0 0.0
    %8724 = vmatpush1.msra.mxu0 0.0
    %8725 = vmatprep.subr.mxu0 0.0
    %8726 = vmatpush1.msra.mxu0 0.0
    %8727 = vmatprep.subr.mxu0 0.0
    %8728 = vmatpush1.msra.mxu0 0.0
    %8729 = vmatprep.subr.mxu0 0.0
    %8730 = vmatpush1.msra.mxu0 0.0
    %8731 = vmatprep.subr.mxu0 0.0
    %8732 = vmatpush1.msra.mxu0 0.0
    %8733 = vmatprep.subr.mxu0 0.0
    %8734 = vmatpush1.msra.mxu0 0.0
    %8735 = vmatprep.subr.mxu0 0.0
    %8736 = vmatpush1.msra.mxu0 0.0
    %8737 = vmatprep.subr.mxu0 0.0
    %8738 = vmatpush1.msra.mxu0 0.0
    %8739 = vmatprep.mubr.f32.mxu0 0.0
    %v8740 = vand.u32 %v8495, 4294901760
    %v8741 = vsub.f32 %v8495, %v8740
    %8742 = vmatmul.mubr.f32.gmra.mrb[0].mxu0 %v8741
    %v8743 = vpop.f32.mrb[0].mxu0
    %v8744 = vadd.f32 %v8664, %v8743
    %v8745 = vpop.f32.mrb[0].mxu0
    %8746 = vdwg.mxu0
    %8747 = vmatprep.subr.mxu0 0.0
    %v8748 = vand.u32 %v37, 4294901760
    %8749 = vmatpush1.msra.mxu0 %v8748
    %8750 = vmatprep.subr.mxu0 0.0
    %v8751 = vand.u32 %v38, 4294901760
    %8752 = vmatpush1.msra.mxu0 %v8751
    %8753 = vmatprep.subr.mxu0 0.0
    %v8754 = vand.u32 %v39, 4294901760
    %8755 = vmatpush1.msra.mxu0 %v8754
    %8756 = vmatprep.subr.mxu0 0.0
    %v8757 = vand.u32 %v40, 4294901760
    %8758 = vmatpush1.msra.mxu0 %v8757
    %8759 = vmatprep.subr.mxu0 0.0
    %8760 = vmatpush1.msra.mxu0 0.0
    %8761 = vmatprep.subr.mxu0 0.0
    %8762 = vmatpush1.msra.mxu0 0.0
    %8763 = vmatprep.subr.mxu0 0.0
    %8764 = vmatpush1.msra.mxu0 0.0
    %8765 = vmatprep.subr.mxu0 0.0
    %8766 = vmatpush1.msra.mxu0 0.0
    %8767 = vmatprep.subr.mxu0 0.0
    %8768 = vmatpush1.msra.mxu0 0.0
    %8769 = vmatprep.subr.mxu0 0.0
    %8770 = vmatpush1.msra.mxu0 0.0
    %8771 = vmatprep.subr.mxu0 0.0
    %8772 = vmatpush1.msra.mxu0 0.0
    %8773 = vmatprep.subr.mxu0 0.0
    %8774 = vmatpush1.msra.mxu0 0.0
    %8775 = vmatprep.subr.mxu0 0.0
    %8776 = vmatpush1.msra.mxu0 0.0
    %8777 = vmatprep.subr.mxu0 0.0
    %8778 = vmatpush1.msra.mxu0 0.0
    %8779 = vmatprep.subr.mxu0 0.0
    %8780 = vmatpush1.msra.mxu0 0.0
    %8781 = vmatprep.subr.mxu0 0.0
    %8782 = vmatpush1.msra.mxu0 0.0
    %8783 = vmatprep.subr.mxu0 0.0
    %8784 = vmatpush1.msra.mxu0 0.0
    %8785 = vmatprep.subr.mxu0 0.0
    %8786 = vmatpush1.msra.mxu0 0.0
    %8787 = vmatprep.subr.mxu0 0.0
    %8788 = vmatpush1.msra.mxu0 0.0
    %8789 = vmatprep.subr.mxu0 0.0
    %8790 = vmatpush1.msra.mxu0 0.0
    %8791 = vmatprep.subr.mxu0 0.0
    %8792 = vmatpush1.msra.mxu0 0.0
    %8793 = vmatprep.subr.mxu0 0.0
    %8794 = vmatpush1.msra.mxu0 0.0
    %8795 = vmatprep.subr.mxu0 0.0
    %8796 = vmatpush1.msra.mxu0 0.0
    %8797 = vmatprep.subr.mxu0 0.0
    %8798 = vmatpush1.msra.mxu0 0.0
    %8799 = vmatprep.subr.mxu0 0.0
    %8800 = vmatpush1.msra.mxu0 0.0
    %8801 = vmatprep.subr.mxu0 0.0
    %8802 = vmatpush1.msra.mxu0 0.0
    %8803 = vmatprep.subr.mxu0 0.0
    %8804 = vmatpush1.msra.mxu0 0.0
    %8805 = vmatprep.subr.mxu0 0.0
    %8806 = vmatpush1.msra.mxu0 0.0
    %8807 = vmatprep.subr.mxu0 0.0
    %8808 = vmatpush1.msra.mxu0 0.0
    %8809 = vmatprep.subr.mxu0 0.0
    %8810 = vmatpush1.msra.mxu0 0.0
    %8811 = vmatprep.subr.mxu0 0.0
    %8812 = vmatpush1.msra.mxu0 0.0
    %8813 = vmatprep.subr.mxu0 0.0
    %8814 = vmatpush1.msra.mxu0 0.0
    %8815 = vmatprep.mubr.f32.mxu0 0.0
    %v8816 = vand.u32 %v8495, 4294901760
    %v8817 = vsub.f32 %v8495, %v8816
    %v8818 = vand.u32 %v8817, 4294901760
    %8819 = vmatmul.mubr.f32.gmra.mrb[0].mxu0 %v8818
    %v8820 = vpop.f32.mrb[0].mxu0
    %v8821 = vadd.f32 %v8744, %v8820
    %v8822 = vpop.f32.mrb[0].mxu0
    %8823 = vdwg.mxu0
    %8824 = vmatprep.subr.mxu0 0.0
    %v8825 = vand.u32 %v37, 4294901760
    %v8826 = vsub.f32 %v37, %v8825
    %v8827 = vand.u32 %v8826, 4294901760
    %8828 = vmatpush1.msra.mxu0 %v8827
    %8829 = vmatprep.subr.mxu0 0.0
    %v8830 = vand.u32 %v38, 4294901760
    %v8831 = vsub.f32 %v38, %v8830
    %v8832 = vand.u32 %v8831, 4294901760
    %8833 = vmatpush1.msra.mxu0 %v8832
    %8834 = vmatprep.subr.mxu0 0.0
    %v8835 = vand.u32 %v39, 4294901760
    %v8836 = vsub.f32 %v39, %v8835
    %v8837 = vand.u32 %v8836, 4294901760
    %8838 = vmatpush1.msra.mxu0 %v8837
    %8839 = vmatprep.subr.mxu0 0.0
    %v8840 = vand.u32 %v40, 4294901760
    %v8841 = vsub.f32 %v40, %v8840
    %v8842 = vand.u32 %v8841, 4294901760
    %8843 = vmatpush1.msra.mxu0 %v8842
    %8844 = vmatprep.subr.mxu0 0.0
    %8845 = vmatpush1.msra.mxu0 0.0
    %8846 = vmatprep.subr.mxu0 0.0
    %8847 = vmatpush1.msra.mxu0 0.0
    %8848 = vmatprep.subr.mxu0 0.0
    %8849 = vmatpush1.msra.mxu0 0.0
    %8850 = vmatprep.subr.mxu0 0.0
    %8851 = vmatpush1.msra.mxu0 0.0
    %8852 = vmatprep.subr.mxu0 0.0
    %8853 = vmatpush1.msra.mxu0 0.0
    %8854 = vmatprep.subr.mxu0 0.0
    %8855 = vmatpush1.msra.mxu0 0.0
    %8856 = vmatprep.subr.mxu0 0.0
    %8857 = vmatpush1.msra.mxu0 0.0
    %8858 = vmatprep.subr.mxu0 0.0
    %8859 = vmatpush1.msra.mxu0 0.0
    %8860 = vmatprep.subr.mxu0 0.0
    %8861 = vmatpush1.msra.mxu0 0.0
    %8862 = vmatprep.subr.mxu0 0.0
    %8863 = vmatpush1.msra.mxu0 0.0
    %8864 = vmatprep.subr.mxu0 0.0
    %8865 = vmatpush1.msra.mxu0 0.0
    %8866 = vmatprep.subr.mxu0 0.0
    %8867 = vmatpush1.msra.mxu0 0.0
    %8868 = vmatprep.subr.mxu0 0.0
    %8869 = vmatpush1.msra.mxu0 0.0
    %8870 = vmatprep.subr.mxu0 0.0
    %8871 = vmatpush1.msra.mxu0 0.0
    %8872 = vmatprep.subr.mxu0 0.0
    %8873 = vmatpush1.msra.mxu0 0.0
    %8874 = vmatprep.subr.mxu0 0.0
    %8875 = vmatpush1.msra.mxu0 0.0
    %8876 = vmatprep.subr.mxu0 0.0
    %8877 = vmatpush1.msra.mxu0 0.0
    %8878 = vmatprep.subr.mxu0 0.0
    %8879 = vmatpush1.msra.mxu0 0.0
    %8880 = vmatprep.subr.mxu0 0.0
    %8881 = vmatpush1.msra.mxu0 0.0
    %8882 = vmatprep.subr.mxu0 0.0
    %8883 = vmatpush1.msra.mxu0 0.0
    %8884 = vmatprep.subr.mxu0 0.0
    %8885 = vmatpush1.msra.mxu0 0.0
    %8886 = vmatprep.subr.mxu0 0.0
    %8887 = vmatpush1.msra.mxu0 0.0
    %8888 = vmatprep.subr.mxu0 0.0
    %8889 = vmatpush1.msra.mxu0 0.0
    %8890 = vmatprep.subr.mxu0 0.0
    %8891 = vmatpush1.msra.mxu0 0.0
    %8892 = vmatprep.subr.mxu0 0.0
    %8893 = vmatpush1.msra.mxu0 0.0
    %8894 = vmatprep.subr.mxu0 0.0
    %8895 = vmatpush1.msra.mxu0 0.0
    %8896 = vmatprep.subr.mxu0 0.0
    %8897 = vmatpush1.msra.mxu0 0.0
    %8898 = vmatprep.subr.mxu0 0.0
    %8899 = vmatpush1.msra.mxu0 0.0
    %8900 = vmatprep.mubr.f32.mxu0 0.0
    %v8901 = vand.u32 %v8495, 4294901760
    %8902 = vmatmul.mubr.f32.gmra.mrb[0].mxu0 %v8901
    %v8903 = vpop.f32.mrb[0].mxu0
    %v8904 = vadd.f32 %v8821, %v8903
    %v8905 = vpop.f32.mrb[0].mxu0
    %8906 = vdwg.mxu0
    %8907 = vmatprep.subr.mxu0 0.0
    %v8908 = vand.u32 %v37, 4294901760
    %8909 = vmatpush1.msra.mxu0 %v8908
    %8910 = vmatprep.subr.mxu0 0.0
    %v8911 = vand.u32 %v38, 4294901760
    %8912 = vmatpush1.msra.mxu0 %v8911
    %8913 = vmatprep.subr.mxu0 0.0
    %v8914 = vand.u32 %v39, 4294901760
    %8915 = vmatpush1.msra.mxu0 %v8914
    %8916 = vmatprep.subr.mxu0 0.0
    %v8917 = vand.u32 %v40, 4294901760
    %8918 = vmatpush1.msra.mxu0 %v8917
    %8919 = vmatprep.subr.mxu0 0.0
    %8920 = vmatpush1.msra.mxu0 0.0
    %8921 = vmatprep.subr.mxu0 0.0
    %8922 = vmatpush1.msra.mxu0 0.0
    %8923 = vmatprep.subr.mxu0 0.0
    %8924 = vmatpush1.msra.mxu0 0.0
    %8925 = vmatprep.subr.mxu0 0.0
    %8926 = vmatpush1.msra.mxu0 0.0
    %8927 = vmatprep.subr.mxu0 0.0
    %8928 = vmatpush1.msra.mxu0 0.0
    %8929 = vmatprep.subr.mxu0 0.0
    %8930 = vmatpush1.msra.mxu0 0.0
    %8931 = vmatprep.subr.mxu0 0.0
    %8932 = vmatpush1.msra.mxu0 0.0
    %8933 = vmatprep.subr.mxu0 0.0
    %8934 = vmatpush1.msra.mxu0 0.0
    %8935 = vmatprep.subr.mxu0 0.0
    %8936 = vmatpush1.msra.mxu0 0.0
    %8937 = vmatprep.subr.mxu0 0.0
    %8938 = vmatpush1.msra.mxu0 0.0
    %8939 = vmatprep.subr.mxu0 0.0
    %8940 = vmatpush1.msra.mxu0 0.0
    %8941 = vmatprep.subr.mxu0 0.0
    %8942 = vmatpush1.msra.mxu0 0.0
    %8943 = vmatprep.subr.mxu0 0.0
    %8944 = vmatpush1.msra.mxu0 0.0
    %8945 = vmatprep.subr.mxu0 0.0
    %8946 = vmatpush1.msra.mxu0 0.0
    %8947 = vmatprep.subr.mxu0 0.0
    %8948 = vmatpush1.msra.mxu0 0.0
    %8949 = vmatprep.subr.mxu0 0.0
    %8950 = vmatpush1.msra.mxu0 0.0
    %8951 = vmatprep.subr.mxu0 0.0
    %8952 = vmatpush1.msra.mxu0 0.0
    %8953 = vmatprep.subr.mxu0 0.0
    %8954 = vmatpush1.msra.mxu0 0.0
    %8955 = vmatprep.subr.mxu0 0.0
    %8956 = vmatpush1.msra.mxu0 0.0
    %8957 = vmatprep.subr.mxu0 0.0
    %8958 = vmatpush1.msra.mxu0 0.0
    %8959 = vmatprep.subr.mxu0 0.0
    %8960 = vmatpush1.msra.mxu0 0.0
    %8961 = vmatprep.subr.mxu0 0.0
    %8962 = vmatpush1.msra.mxu0 0.0
    %8963 = vmatprep.subr.mxu0 0.0
    %8964 = vmatpush1.msra.mxu0 0.0
    %8965 = vmatprep.subr.mxu0 0.0
    %8966 = vmatpush1.msra.mxu0 0.0
    %8967 = vmatprep.subr.mxu0 0.0
    %8968 = vmatpush1.msra.mxu0 0.0
    %8969 = vmatprep.subr.mxu0 0.0
    %8970 = vmatpush1.msra.mxu0 0.0
    %8971 = vmatprep.subr.mxu0 0.0
    %8972 = vmatpush1.msra.mxu0 0.0
    %8973 = vmatprep.subr.mxu0 0.0
    %8974 = vmatpush1.msra.mxu0 0.0
    %8975 = vmatprep.mubr.f32.mxu0 0.0
    %v8976 = vand.u32 %v8495, 4294901760
    %8977 = vmatmul.mubr.f32.gmra.mrb[0].mxu0 %v8976
    %v8978 = vpop.f32.mrb[0].mxu0
    %v8979 = vadd.f32 %v8904, %v8978
    %v8980 = vpop.f32.mrb[0].mxu0
    %8981 = vdwg.mxu0
    %v8982 = vadd.f32 %v2718, %v8979
    %v8983 = vxor.u32 %v8982, 2147483648
    %v8984 = vmul.f32 %v8983, 1.442695
    %v8985 = vpow.pop %v8984
    %v8986 = vadd.f32 %v8985, 1.0
    %v8987 = vrcp.pop %v8986
    %v8988 = vmul.f32 1.0, %v8987
    %8990 = vrot.lane.b32.xlu0 %v8979, 64
    %v8991 = vpop.permute.xlu0 %8990
    %v8993 = vmul.f32 %v8988, %v8991
    %8995 = vrot.lane.b32.xlu0 %v8993, 64
    %v8996 = vpop.permute.xlu0 %8995
    %v8998 = vadd.f32 %v2718, %v8996
    %v8999 = vtanh.pop %v8998
    %v9000 = vsub.f32 1.0, %v8988
    %9002 = vrot.lane.b32.xlu0 %v8999, 96
    %v9003 = vpop.permute.xlu0 %9002
    %v9005 = vmul.f32 %v9000, %v9003
    %v9006 = vmul.f32 %v8988, %v8491
    %v9007 = vadd.f32 %v9005, %v9006
    %9009 = vrot.lane.b32.xlu0 %v9007, 96
    %v9010 = vpop.permute.xlu0 %9009
    %v9011 = vsel %vm95, %v9010, 0
    %9013 = vmatprep.subr.mxu0 0.0
    %v9014 = vand.u32 %v37, 4294901760
    %9015 = vmatpush1.msra.mxu0 %v9014
    %9016 = vmatprep.subr.mxu0 0.0
    %v9017 = vand.u32 %v38, 4294901760
    %9018 = vmatpush1.msra.mxu0 %v9017
    %9019 = vmatprep.subr.mxu0 0.0
    %v9020 = vand.u32 %v39, 4294901760
    %9021 = vmatpush1.msra.mxu0 %v9020
    %9022 = vmatprep.subr.mxu0 0.0
    %v9023 = vand.u32 %v40, 4294901760
    %9024 = vmatpush1.msra.mxu0 %v9023
    %9025 = vmatprep.subr.mxu0 0.0
    %9026 = vmatpush1.msra.mxu0 0.0
    %9027 = vmatprep.subr.mxu0 0.0
    %9028 = vmatpush1.msra.mxu0 0.0
    %9029 = vmatprep.subr.mxu0 0.0
    %9030 = vmatpush1.msra.mxu0 0.0
    %9031 = vmatprep.subr.mxu0 0.0
    %9032 = vmatpush1.msra.mxu0 0.0
    %9033 = vmatprep.subr.mxu0 0.0
    %9034 = vmatpush1.msra.mxu0 0.0
    %9035 = vmatprep.subr.mxu0 0.0
    %9036 = vmatpush1.msra.mxu0 0.0
    %9037 = vmatprep.subr.mxu0 0.0
    %9038 = vmatpush1.msra.mxu0 0.0
    %9039 = vmatprep.subr.mxu0 0.0
    %9040 = vmatpush1.msra.mxu0 0.0
    %9041 = vmatprep.subr.mxu0 0.0
    %9042 = vmatpush1.msra.mxu0 0.0
    %9043 = vmatprep.subr.mxu0 0.0
    %9044 = vmatpush1.msra.mxu0 0.0
    %9045 = vmatprep.subr.mxu0 0.0
    %9046 = vmatpush1.msra.mxu0 0.0
    %9047 = vmatprep.subr.mxu0 0.0
    %9048 = vmatpush1.msra.mxu0 0.0
    %9049 = vmatprep.subr.mxu0 0.0
    %9050 = vmatpush1.msra.mxu0 0.0
    %9051 = vmatprep.subr.mxu0 0.0
    %9052 = vmatpush1.msra.mxu0 0.0
    %9053 = vmatprep.subr.mxu0 0.0
    %9054 = vmatpush1.msra.mxu0 0.0
    %9055 = vmatprep.subr.mxu0 0.0
    %9056 = vmatpush1.msra.mxu0 0.0
    %9057 = vmatprep.subr.mxu0 0.0
    %9058 = vmatpush1.msra.mxu0 0.0
    %9059 = vmatprep.subr.mxu0 0.0
    %9060 = vmatpush1.msra.mxu0 0.0
    %9061 = vmatprep.subr.mxu0 0.0
    %9062 = vmatpush1.msra.mxu0 0.0
    %9063 = vmatprep.subr.mxu0 0.0
    %9064 = vmatpush1.msra.mxu0 0.0
    %9065 = vmatprep.subr.mxu0 0.0
    %9066 = vmatpush1.msra.mxu0 0.0
    %9067 = vmatprep.subr.mxu0 0.0
    %9068 = vmatpush1.msra.mxu0 0.0
    %9069 = vmatprep.subr.mxu0 0.0
    %9070 = vmatpush1.msra.mxu0 0.0
    %9071 = vmatprep.subr.mxu0 0.0
    %9072 = vmatpush1.msra.mxu0 0.0
    %9073 = vmatprep.subr.mxu0 0.0
    %9074 = vmatpush1.msra.mxu0 0.0
    %9075 = vmatprep.subr.mxu0 0.0
    %9076 = vmatpush1.msra.mxu0 0.0
    %9077 = vmatprep.subr.mxu0 0.0
    %9078 = vmatpush1.msra.mxu0 0.0
    %9079 = vmatprep.subr.mxu0 0.0
    %9080 = vmatpush1.msra.mxu0 0.0
    %9081 = vmatprep.mubr.f32.mxu0 0.0
    %v9082 = vand.u32 %v9011, 4294901760
    %v9083 = vsub.f32 %v9011, %v9082
    %v9084 = vand.u32 %v9083, 4294901760
    %v9085 = vsub.f32 %v9083, %v9084
    %v9086 = vand.u32 %v9085, 4294901760
    %9087 = vmatmul.mubr.f32.gmra.mrb[0].mxu0 %v9086
    %v9088 = vpop.f32.mrb[0].mxu0
    %v9089 = vadd.f32 %v63, %v9088
    %v9090 = vpop.f32.mrb[0].mxu0
    %9091 = vdwg.mxu0
    %9092 = vmatprep.subr.mxu0 0.0
    %v9093 = vand.u32 %v37, 4294901760
    %v9094 = vsub.f32 %v37, %v9093
    %v9095 = vand.u32 %v9094, 4294901760
    %v9096 = vsub.f32 %v9094, %v9095
    %v9097 = vand.u32 %v9096, 4294901760
    %9098 = vmatpush1.msra.mxu0 %v9097
    %9099 = vmatprep.subr.mxu0 0.0
    %v9100 = vand.u32 %v38, 4294901760
    %v9101 = vsub.f32 %v38, %v9100
    %v9102 = vand.u32 %v9101, 4294901760
    %v9103 = vsub.f32 %v9101, %v9102
    %v9104 = vand.u32 %v9103, 4294901760
    %9105 = vmatpush1.msra.mxu0 %v9104
    %9106 = vmatprep.subr.mxu0 0.0
    %v9107 = vand.u32 %v39, 4294901760
    %v9108 = vsub.f32 %v39, %v9107
    %v9109 = vand.u32 %v9108, 4294901760
    %v9110 = vsub.f32 %v9108, %v9109
    %v9111 = vand.u32 %v9110, 4294901760
    %9112 = vmatpush1.msra.mxu0 %v9111
    %9113 = vmatprep.subr.mxu0 0.0
    %v9114 = vand.u32 %v40, 4294901760
    %v9115 = vsub.f32 %v40, %v9114
    %v9116 = vand.u32 %v9115, 4294901760
    %v9117 = vsub.f32 %v9115, %v9116
    %v9118 = vand.u32 %v9117, 4294901760
    %9119 = vmatpush1.msra.mxu0 %v9118
    %9120 = vmatprep.subr.mxu0 0.0
    %9121 = vmatpush1.msra.mxu0 0.0
    %9122 = vmatprep.subr.mxu0 0.0
    %9123 = vmatpush1.msra.mxu0 0.0
    %9124 = vmatprep.subr.mxu0 0.0
    %9125 = vmatpush1.msra.mxu0 0.0
    %9126 = vmatprep.subr.mxu0 0.0
    %9127 = vmatpush1.msra.mxu0 0.0
    %9128 = vmatprep.subr.mxu0 0.0
    %9129 = vmatpush1.msra.mxu0 0.0
    %9130 = vmatprep.subr.mxu0 0.0
    %9131 = vmatpush1.msra.mxu0 0.0
    %9132 = vmatprep.subr.mxu0 0.0
    %9133 = vmatpush1.msra.mxu0 0.0
    %9134 = vmatprep.subr.mxu0 0.0
    %9135 = vmatpush1.msra.mxu0 0.0
    %9136 = vmatprep.subr.mxu0 0.0
    %9137 = vmatpush1.msra.mxu0 0.0
    %9138 = vmatprep.subr.mxu0 0.0
    %9139 = vmatpush1.msra.mxu0 0.0
    %9140 = vmatprep.subr.mxu0 0.0
    %9141 = vmatpush1.msra.mxu0 0.0
    %9142 = vmatprep.subr.mxu0 0.0
    %9143 = vmatpush1.msra.mxu0 0.0
    %9144 = vmatprep.subr.mxu0 0.0
    %9145 = vmatpush1.msra.mxu0 0.0
    %9146 = vmatprep.subr.mxu0 0.0
    %9147 = vmatpush1.msra.mxu0 0.0
    %9148 = vmatprep.subr.mxu0 0.0
    %9149 = vmatpush1.msra.mxu0 0.0
    %9150 = vmatprep.subr.mxu0 0.0
    %9151 = vmatpush1.msra.mxu0 0.0
    %9152 = vmatprep.subr.mxu0 0.0
    %9153 = vmatpush1.msra.mxu0 0.0
    %9154 = vmatprep.subr.mxu0 0.0
    %9155 = vmatpush1.msra.mxu0 0.0
    %9156 = vmatprep.subr.mxu0 0.0
    %9157 = vmatpush1.msra.mxu0 0.0
    %9158 = vmatprep.subr.mxu0 0.0
    %9159 = vmatpush1.msra.mxu0 0.0
    %9160 = vmatprep.subr.mxu0 0.0
    %9161 = vmatpush1.msra.mxu0 0.0
    %9162 = vmatprep.subr.mxu0 0.0
    %9163 = vmatpush1.msra.mxu0 0.0
    %9164 = vmatprep.subr.mxu0 0.0
    %9165 = vmatpush1.msra.mxu0 0.0
    %9166 = vmatprep.subr.mxu0 0.0
    %9167 = vmatpush1.msra.mxu0 0.0
    %9168 = vmatprep.subr.mxu0 0.0
    %9169 = vmatpush1.msra.mxu0 0.0
    %9170 = vmatprep.subr.mxu0 0.0
    %9171 = vmatpush1.msra.mxu0 0.0
    %9172 = vmatprep.subr.mxu0 0.0
    %9173 = vmatpush1.msra.mxu0 0.0
    %9174 = vmatprep.subr.mxu0 0.0
    %9175 = vmatpush1.msra.mxu0 0.0
    %9176 = vmatprep.mubr.f32.mxu0 0.0
    %v9177 = vand.u32 %v9011, 4294901760
    %9178 = vmatmul.mubr.f32.gmra.mrb[0].mxu0 %v9177
    %v9179 = vpop.f32.mrb[0].mxu0
    %v9180 = vadd.f32 %v9089, %v9179
    %v9181 = vpop.f32.mrb[0].mxu0
    %9182 = vdwg.mxu0
    %9183 = vmatprep.subr.mxu0 0.0
    %v9184 = vand.u32 %v37, 4294901760
    %v9185 = vsub.f32 %v37, %v9184
    %9186 = vmatpush1.msra.mxu0 %v9185
    %9187 = vmatprep.subr.mxu0 0.0
    %v9188 = vand.u32 %v38, 4294901760
    %v9189 = vsub.f32 %v38, %v9188
    %9190 = vmatpush1.msra.mxu0 %v9189
    %9191 = vmatprep.subr.mxu0 0.0
    %v9192 = vand.u32 %v39, 4294901760
    %v9193 = vsub.f32 %v39, %v9192
    %9194 = vmatpush1.msra.mxu0 %v9193
    %9195 = vmatprep.subr.mxu0 0.0
    %v9196 = vand.u32 %v40, 4294901760
    %v9197 = vsub.f32 %v40, %v9196
    %9198 = vmatpush1.msra.mxu0 %v9197
    %9199 = vmatprep.subr.mxu0 0.0
    %9200 = vmatpush1.msra.mxu0 0.0
    %9201 = vmatprep.subr.mxu0 0.0
    %9202 = vmatpush1.msra.mxu0 0.0
    %9203 = vmatprep.subr.mxu0 0.0
    %9204 = vmatpush1.msra.mxu0 0.0
    %9205 = vmatprep.subr.mxu0 0.0
    %9206 = vmatpush1.msra.mxu0 0.0
    %9207 = vmatprep.subr.mxu0 0.0
    %9208 = vmatpush1.msra.mxu0 0.0
    %9209 = vmatprep.subr.mxu0 0.0
    %9210 = vmatpush1.msra.mxu0 0.0
    %9211 = vmatprep.subr.mxu0 0.0
    %9212 = vmatpush1.msra.mxu0 0.0
    %9213 = vmatprep.subr.mxu0 0.0
    %9214 = vmatpush1.msra.mxu0 0.0
    %9215 = vmatprep.subr.mxu0 0.0
    %9216 = vmatpush1.msra.mxu0 0.0
    %9217 = vmatprep.subr.mxu0 0.0
    %9218 = vmatpush1.msra.mxu0 0.0
    %9219 = vmatprep.subr.mxu0 0.0
    %9220 = vmatpush1.msra.mxu0 0.0
    %9221 = vmatprep.subr.mxu0 0.0
    %9222 = vmatpush1.msra.mxu0 0.0
    %9223 = vmatprep.subr.mxu0 0.0
    %9224 = vmatpush1.msra.mxu0 0.0
    %9225 = vmatprep.subr.mxu0 0.0
    %9226 = vmatpush1.msra.mxu0 0.0
    %9227 = vmatprep.subr.mxu0 0.0
    %9228 = vmatpush1.msra.mxu0 0.0
    %9229 = vmatprep.subr.mxu0 0.0
    %9230 = vmatpush1.msra.mxu0 0.0
    %9231 = vmatprep.subr.mxu0 0.0
    %9232 = vmatpush1.msra.mxu0 0.0
    %9233 = vmatprep.subr.mxu0 0.0
    %9234 = vmatpush1.msra.mxu0 0.0
    %9235 = vmatprep.subr.mxu0 0.0
    %9236 = vmatpush1.msra.mxu0 0.0
    %9237 = vmatprep.subr.mxu0 0.0
    %9238 = vmatpush1.msra.mxu0 0.0
    %9239 = vmatprep.subr.mxu0 0.0
    %9240 = vmatpush1.msra.mxu0 0.0
    %9241 = vmatprep.subr.mxu0 0.0
    %9242 = vmatpush1.msra.mxu0 0.0
    %9243 = vmatprep.subr.mxu0 0.0
    %9244 = vmatpush1.msra.mxu0 0.0
    %9245 = vmatprep.subr.mxu0 0.0
    %9246 = vmatpush1.msra.mxu0 0.0
    %9247 = vmatprep.subr.mxu0 0.0
    %9248 = vmatpush1.msra.mxu0 0.0
    %9249 = vmatprep.subr.mxu0 0.0
    %9250 = vmatpush1.msra.mxu0 0.0
    %9251 = vmatprep.subr.mxu0 0.0
    %9252 = vmatpush1.msra.mxu0 0.0
    %9253 = vmatprep.subr.mxu0 0.0
    %9254 = vmatpush1.msra.mxu0 0.0
    %9255 = vmatprep.mubr.f32.mxu0 0.0
    %v9256 = vand.u32 %v9011, 4294901760
    %v9257 = vsub.f32 %v9011, %v9256
    %9258 = vmatmul.mubr.f32.gmra.mrb[0].mxu0 %v9257
    %v9259 = vpop.f32.mrb[0].mxu0
    %v9260 = vadd.f32 %v9180, %v9259
    %v9261 = vpop.f32.mrb[0].mxu0
    %9262 = vdwg.mxu0
    %9263 = vmatprep.subr.mxu0 0.0
    %v9264 = vand.u32 %v37, 4294901760
    %9265 = vmatpush1.msra.mxu0 %v9264
    %9266 = vmatprep.subr.mxu0 0.0
    %v9267 = vand.u32 %v38, 4294901760
    %9268 = vmatpush1.msra.mxu0 %v9267
    %9269 = vmatprep.subr.mxu0 0.0
    %v9270 = vand.u32 %v39, 4294901760
    %9271 = vmatpush1.msra.mxu0 %v9270
    %9272 = vmatprep.subr.mxu0 0.0
    %v9273 = vand.u32 %v40, 4294901760
    %9274 = vmatpush1.msra.mxu0 %v9273
    %9275 = vmatprep.subr.mxu0 0.0
    %9276 = vmatpush1.msra.mxu0 0.0
    %9277 = vmatprep.subr.mxu0 0.0
    %9278 = vmatpush1.msra.mxu0 0.0
    %9279 = vmatprep.subr.mxu0 0.0
    %9280 = vmatpush1.msra.mxu0 0.0
    %9281 = vmatprep.subr.mxu0 0.0
    %9282 = vmatpush1.msra.mxu0 0.0
    %9283 = vmatprep.subr.mxu0 0.0
    %9284 = vmatpush1.msra.mxu0 0.0
    %9285 = vmatprep.subr.mxu0 0.0
    %9286 = vmatpush1.msra.mxu0 0.0
    %9287 = vmatprep.subr.mxu0 0.0
    %9288 = vmatpush1.msra.mxu0 0.0
    %9289 = vmatprep.subr.mxu0 0.0
    %9290 = vmatpush1.msra.mxu0 0.0
    %9291 = vmatprep.subr.mxu0 0.0
    %9292 = vmatpush1.msra.mxu0 0.0
    %9293 = vmatprep.subr.mxu0 0.0
    %9294 = vmatpush1.msra.mxu0 0.0
    %9295 = vmatprep.subr.mxu0 0.0
    %9296 = vmatpush1.msra.mxu0 0.0
    %9297 = vmatprep.subr.mxu0 0.0
    %9298 = vmatpush1.msra.mxu0 0.0
    %9299 = vmatprep.subr.mxu0 0.0
    %9300 = vmatpush1.msra.mxu0 0.0
    %9301 = vmatprep.subr.mxu0 0.0
    %9302 = vmatpush1.msra.mxu0 0.0
    %9303 = vmatprep.subr.mxu0 0.0
    %9304 = vmatpush1.msra.mxu0 0.0
    %9305 = vmatprep.subr.mxu0 0.0
    %9306 = vmatpush1.msra.mxu0 0.0
    %9307 = vmatprep.subr.mxu0 0.0
    %9308 = vmatpush1.msra.mxu0 0.0
    %9309 = vmatprep.subr.mxu0 0.0
    %9310 = vmatpush1.msra.mxu0 0.0
    %9311 = vmatprep.subr.mxu0 0.0
    %9312 = vmatpush1.msra.mxu0 0.0
    %9313 = vmatprep.subr.mxu0 0.0
    %9314 = vmatpush1.msra.mxu0 0.0
    %9315 = vmatprep.subr.mxu0 0.0
    %9316 = vmatpush1.msra.mxu0 0.0
    %9317 = vmatprep.subr.mxu0 0.0
    %9318 = vmatpush1.msra.mxu0 0.0
    %9319 = vmatprep.subr.mxu0 0.0
    %9320 = vmatpush1.msra.mxu0 0.0
    %9321 = vmatprep.subr.mxu0 0.0
    %9322 = vmatpush1.msra.mxu0 0.0
    %9323 = vmatprep.subr.mxu0 0.0
    %9324 = vmatpush1.msra.mxu0 0.0
    %9325 = vmatprep.subr.mxu0 0.0
    %9326 = vmatpush1.msra.mxu0 0.0
    %9327 = vmatprep.subr.mxu0 0.0
    %9328 = vmatpush1.msra.mxu0 0.0
    %9329 = vmatprep.subr.mxu0 0.0
    %9330 = vmatpush1.msra.mxu0 0.0
    %9331 = vmatprep.mubr.f32.mxu0 0.0
    %v9332 = vand.u32 %v9011, 4294901760
    %v9333 = vsub.f32 %v9011, %v9332
    %v9334 = vand.u32 %v9333, 4294901760
    %9335 = vmatmul.mubr.f32.gmra.mrb[0].mxu0 %v9334
    %v9336 = vpop.f32.mrb[0].mxu0
    %v9337 = vadd.f32 %v9260, %v9336
    %v9338 = vpop.f32.mrb[0].mxu0
    %9339 = vdwg.mxu0
    %9340 = vmatprep.subr.mxu0 0.0
    %v9341 = vand.u32 %v37, 4294901760
    %v9342 = vsub.f32 %v37, %v9341
    %v9343 = vand.u32 %v9342, 4294901760
    %9344 = vmatpush1.msra.mxu0 %v9343
    %9345 = vmatprep.subr.mxu0 0.0
    %v9346 = vand.u32 %v38, 4294901760
    %v9347 = vsub.f32 %v38, %v9346
    %v9348 = vand.u32 %v9347, 4294901760
    %9349 = vmatpush1.msra.mxu0 %v9348
    %9350 = vmatprep.subr.mxu0 0.0
    %v9351 = vand.u32 %v39, 4294901760
    %v9352 = vsub.f32 %v39, %v9351
    %v9353 = vand.u32 %v9352, 4294901760
    %9354 = vmatpush1.msra.mxu0 %v9353
    %9355 = vmatprep.subr.mxu0 0.0
    %v9356 = vand.u32 %v40, 4294901760
    %v9357 = vsub.f32 %v40, %v9356
    %v9358 = vand.u32 %v9357, 4294901760
    %9359 = vmatpush1.msra.mxu0 %v9358
    %9360 = vmatprep.subr.mxu0 0.0
    %9361 = vmatpush1.msra.mxu0 0.0
    %9362 = vmatprep.subr.mxu0 0.0
    %9363 = vmatpush1.msra.mxu0 0.0
    %9364 = vmatprep.subr.mxu0 0.0
    %9365 = vmatpush1.msra.mxu0 0.0
    %9366 = vmatprep.subr.mxu0 0.0
    %9367 = vmatpush1.msra.mxu0 0.0
    %9368 = vmatprep.subr.mxu0 0.0
    %9369 = vmatpush1.msra.mxu0 0.0
    %9370 = vmatprep.subr.mxu0 0.0
    %9371 = vmatpush1.msra.mxu0 0.0
    %9372 = vmatprep.subr.mxu0 0.0
    %9373 = vmatpush1.msra.mxu0 0.0
    %9374 = vmatprep.subr.mxu0 0.0
    %9375 = vmatpush1.msra.mxu0 0.0
    %9376 = vmatprep.subr.mxu0 0.0
    %9377 = vmatpush1.msra.mxu0 0.0
    %9378 = vmatprep.subr.mxu0 0.0
    %9379 = vmatpush1.msra.mxu0 0.0
    %9380 = vmatprep.subr.mxu0 0.0
    %9381 = vmatpush1.msra.mxu0 0.0
    %9382 = vmatprep.subr.mxu0 0.0
    %9383 = vmatpush1.msra.mxu0 0.0
    %9384 = vmatprep.subr.mxu0 0.0
    %9385 = vmatpush1.msra.mxu0 0.0
    %9386 = vmatprep.subr.mxu0 0.0
    %9387 = vmatpush1.msra.mxu0 0.0
    %9388 = vmatprep.subr.mxu0 0.0
    %9389 = vmatpush1.msra.mxu0 0.0
    %9390 = vmatprep.subr.mxu0 0.0
    %9391 = vmatpush1.msra.mxu0 0.0
    %9392 = vmatprep.subr.mxu0 0.0
    %9393 = vmatpush1.msra.mxu0 0.0
    %9394 = vmatprep.subr.mxu0 0.0
    %9395 = vmatpush1.msra.mxu0 0.0
    %9396 = vmatprep.subr.mxu0 0.0
    %9397 = vmatpush1.msra.mxu0 0.0
    %9398 = vmatprep.subr.mxu0 0.0
    %9399 = vmatpush1.msra.mxu0 0.0
    %9400 = vmatprep.subr.mxu0 0.0
    %9401 = vmatpush1.msra.mxu0 0.0
    %9402 = vmatprep.subr.mxu0 0.0
    %9403 = vmatpush1.msra.mxu0 0.0
    %9404 = vmatprep.subr.mxu0 0.0
    %9405 = vmatpush1.msra.mxu0 0.0
    %9406 = vmatprep.subr.mxu0 0.0
    %9407 = vmatpush1.msra.mxu0 0.0
    %9408 = vmatprep.subr.mxu0 0.0
    %9409 = vmatpush1.msra.mxu0 0.0
    %9410 = vmatprep.subr.mxu0 0.0
    %9411 = vmatpush1.msra.mxu0 0.0
    %9412 = vmatprep.subr.mxu0 0.0
    %9413 = vmatpush1.msra.mxu0 0.0
    %9414 = vmatprep.subr.mxu0 0.0
    %9415 = vmatpush1.msra.mxu0 0.0
    %9416 = vmatprep.mubr.f32.mxu0 0.0
    %v9417 = vand.u32 %v9011, 4294901760
    %9418 = vmatmul.mubr.f32.gmra.mrb[0].mxu0 %v9417
    %v9419 = vpop.f32.mrb[0].mxu0
    %v9420 = vadd.f32 %v9337, %v9419
    %v9421 = vpop.f32.mrb[0].mxu0
    %9422 = vdwg.mxu0
    %9423 = vmatprep.subr.mxu0 0.0
    %v9424 = vand.u32 %v37, 4294901760
    %9425 = vmatpush1.msra.mxu0 %v9424
    %9426 = vmatprep.subr.mxu0 0.0
    %v9427 = vand.u32 %v38, 4294901760
    %9428 = vmatpush1.msra.mxu0 %v9427
    %9429 = vmatprep.subr.mxu0 0.0
    %v9430 = vand.u32 %v39, 4294901760
    %9431 = vmatpush1.msra.mxu0 %v9430
    %9432 = vmatprep.subr.mxu0 0.0
    %v9433 = vand.u32 %v40, 4294901760
    %9434 = vmatpush1.msra.mxu0 %v9433
    %9435 = vmatprep.subr.mxu0 0.0
    %9436 = vmatpush1.msra.mxu0 0.0
    %9437 = vmatprep.subr.mxu0 0.0
    %9438 = vmatpush1.msra.mxu0 0.0
    %9439 = vmatprep.subr.mxu0 0.0
    %9440 = vmatpush1.msra.mxu0 0.0
    %9441 = vmatprep.subr.mxu0 0.0
    %9442 = vmatpush1.msra.mxu0 0.0
    %9443 = vmatprep.subr.mxu0 0.0
    %9444 = vmatpush1.msra.mxu0 0.0
    %9445 = vmatprep.subr.mxu0 0.0
    %9446 = vmatpush1.msra.mxu0 0.0
    %9447 = vmatprep.subr.mxu0 0.0
    %9448 = vmatpush1.msra.mxu0 0.0
    %9449 = vmatprep.subr.mxu0 0.0
    %9450 = vmatpush1.msra.mxu0 0.0
    %9451 = vmatprep.subr.mxu0 0.0
    %9452 = vmatpush1.msra.mxu0 0.0
    %9453 = vmatprep.subr.mxu0 0.0
    %9454 = vmatpush1.msra.mxu0 0.0
    %9455 = vmatprep.subr.mxu0 0.0
    %9456 = vmatpush1.msra.mxu0 0.0
    %9457 = vmatprep.subr.mxu0 0.0
    %9458 = vmatpush1.msra.mxu0 0.0
    %9459 = vmatprep.subr.mxu0 0.0
    %9460 = vmatpush1.msra.mxu0 0.0
    %9461 = vmatprep.subr.mxu0 0.0
    %9462 = vmatpush1.msra.mxu0 0.0
    %9463 = vmatprep.subr.mxu0 0.0
    %9464 = vmatpush1.msra.mxu0 0.0
    %9465 = vmatprep.subr.mxu0 0.0
    %9466 = vmatpush1.msra.mxu0 0.0
    %9467 = vmatprep.subr.mxu0 0.0
    %9468 = vmatpush1.msra.mxu0 0.0
    %9469 = vmatprep.subr.mxu0 0.0
    %9470 = vmatpush1.msra.mxu0 0.0
    %9471 = vmatprep.subr.mxu0 0.0
    %9472 = vmatpush1.msra.mxu0 0.0
    %9473 = vmatprep.subr.mxu0 0.0
    %9474 = vmatpush1.msra.mxu0 0.0
    %9475 = vmatprep.subr.mxu0 0.0
    %9476 = vmatpush1.msra.mxu0 0.0
    %9477 = vmatprep.subr.mxu0 0.0
    %9478 = vmatpush1.msra.mxu0 0.0
    %9479 = vmatprep.subr.mxu0 0.0
    %9480 = vmatpush1.msra.mxu0 0.0
    %9481 = vmatprep.subr.mxu0 0.0
    %9482 = vmatpush1.msra.mxu0 0.0
    %9483 = vmatprep.subr.mxu0 0.0
    %9484 = vmatpush1.msra.mxu0 0.0
    %9485 = vmatprep.subr.mxu0 0.0
    %9486 = vmatpush1.msra.mxu0 0.0
    %9487 = vmatprep.subr.mxu0 0.0
    %9488 = vmatpush1.msra.mxu0 0.0
    %9489 = vmatprep.subr.mxu0 0.0
    %9490 = vmatpush1.msra.mxu0 0.0
    %9491 = vmatprep.mubr.f32.mxu0 0.0
    %v9492 = vand.u32 %v9011, 4294901760
    %9493 = vmatmul.mubr.f32.gmra.mrb[0].mxu0 %v9492
    %v9494 = vpop.f32.mrb[0].mxu0
    %v9495 = vadd.f32 %v9420, %v9494
    %v9496 = vpop.f32.mrb[0].mxu0
    %9497 = vdwg.mxu0
    %v9498 = vadd.f32 %v2724, %v9495
    %v9499 = vxor.u32 %v9498, 2147483648
    %v9500 = vmul.f32 %v9499, 1.442695
    %v9501 = vpow.pop %v9500
    %v9502 = vadd.f32 %v9501, 1.0
    %v9503 = vrcp.pop %v9502
    %v9504 = vmul.f32 1.0, %v9503
    %9506 = vrot.lane.b32.xlu0 %v9495, 64
    %v9507 = vpop.permute.xlu0 %9506
    %v9509 = vmul.f32 %v9504, %v9507
    %9511 = vrot.lane.b32.xlu0 %v9509, 64
    %v9512 = vpop.permute.xlu0 %9511
    %v9514 = vadd.f32 %v2724, %v9512
    %v9515 = vtanh.pop %v9514
    %v9516 = vsub.f32 1.0, %v9504
    %9518 = vrot.lane.b32.xlu0 %v9515, 96
    %v9519 = vpop.permute.xlu0 %9518
    %v9521 = vmul.f32 %v9516, %v9519
    %v9522 = vmul.f32 %v9504, %v9007
    %v9523 = vadd.f32 %v9521, %v9522
    %9525 = vrot.lane.b32.xlu0 %v9523, 96
    %v9526 = vpop.permute.xlu0 %9525
    %v9527 = vsel %vm95, %v9526, 0
    %9529 = vmatprep.subr.mxu0 0.0
    %v9530 = vand.u32 %v42, 4294901760
    %9531 = vmatpush1.msra.mxu0 %v9530
    %9532 = vmatprep.subr.mxu0 0.0
    %v9533 = vand.u32 %v43, 4294901760
    %9534 = vmatpush1.msra.mxu0 %v9533
    %9535 = vmatprep.subr.mxu0 0.0
    %v9536 = vand.u32 %v44, 4294901760
    %9537 = vmatpush1.msra.mxu0 %v9536
    %9538 = vmatprep.subr.mxu0 0.0
    %v9539 = vand.u32 %v45, 4294901760
    %9540 = vmatpush1.msra.mxu0 %v9539
    %9541 = vmatprep.subr.mxu0 0.0
    %9542 = vmatpush1.msra.mxu0 0.0
    %9543 = vmatprep.subr.mxu0 0.0
    %9544 = vmatpush1.msra.mxu0 0.0
    %9545 = vmatprep.subr.mxu0 0.0
    %9546 = vmatpush1.msra.mxu0 0.0
    %9547 = vmatprep.subr.mxu0 0.0
    %9548 = vmatpush1.msra.mxu0 0.0
    %9549 = vmatprep.subr.mxu0 0.0
    %9550 = vmatpush1.msra.mxu0 0.0
    %9551 = vmatprep.subr.mxu0 0.0
    %9552 = vmatpush1.msra.mxu0 0.0
    %9553 = vmatprep.subr.mxu0 0.0
    %9554 = vmatpush1.msra.mxu0 0.0
    %9555 = vmatprep.subr.mxu0 0.0
    %9556 = vmatpush1.msra.mxu0 0.0
    %9557 = vmatprep.subr.mxu0 0.0
    %9558 = vmatpush1.msra.mxu0 0.0
    %9559 = vmatprep.subr.mxu0 0.0
    %9560 = vmatpush1.msra.mxu0 0.0
    %9561 = vmatprep.subr.mxu0 0.0
    %9562 = vmatpush1.msra.mxu0 0.0
    %9563 = vmatprep.subr.mxu0 0.0
    %9564 = vmatpush1.msra.mxu0 0.0
    %9565 = vmatprep.subr.mxu0 0.0
    %9566 = vmatpush1.msra.mxu0 0.0
    %9567 = vmatprep.subr.mxu0 0.0
    %9568 = vmatpush1.msra.mxu0 0.0
    %9569 = vmatprep.subr.mxu0 0.0
    %9570 = vmatpush1.msra.mxu0 0.0
    %9571 = vmatprep.subr.mxu0 0.0
    %9572 = vmatpush1.msra.mxu0 0.0
    %9573 = vmatprep.subr.mxu0 0.0
    %9574 = vmatpush1.msra.mxu0 0.0
    %9575 = vmatprep.subr.mxu0 0.0
    %9576 = vmatpush1.msra.mxu0 0.0
    %9577 = vmatprep.subr.mxu0 0.0
    %9578 = vmatpush1.msra.mxu0 0.0
    %9579 = vmatprep.subr.mxu0 0.0
    %9580 = vmatpush1.msra.mxu0 0.0
    %9581 = vmatprep.subr.mxu0 0.0
    %9582 = vmatpush1.msra.mxu0 0.0
    %9583 = vmatprep.subr.mxu0 0.0
    %9584 = vmatpush1.msra.mxu0 0.0
    %9585 = vmatprep.subr.mxu0 0.0
    %9586 = vmatpush1.msra.mxu0 0.0
    %9587 = vmatprep.subr.mxu0 0.0
    %9588 = vmatpush1.msra.mxu0 0.0
    %9589 = vmatprep.subr.mxu0 0.0
    %9590 = vmatpush1.msra.mxu0 0.0
    %9591 = vmatprep.subr.mxu0 0.0
    %9592 = vmatpush1.msra.mxu0 0.0
    %9593 = vmatprep.subr.mxu0 0.0
    %9594 = vmatpush1.msra.mxu0 0.0
    %9595 = vmatprep.subr.mxu0 0.0
    %9596 = vmatpush1.msra.mxu0 0.0
    %9597 = vmatprep.mubr.f32.mxu0 0.0
    %v9598 = vand.u32 %v7463, 4294901760
    %v9599 = vsub.f32 %v7463, %v9598
    %v9600 = vand.u32 %v9599, 4294901760
    %v9601 = vsub.f32 %v9599, %v9600
    %v9602 = vand.u32 %v9601, 4294901760
    %9603 = vmatmul.mubr.f32.gmra.mrb[0].mxu0 %v9602
    %v9604 = vpop.f32.mrb[0].mxu0
    %v9605 = vadd.f32 0.0, %v9604
    %v9606 = vpop.f32.mrb[0].mxu0
    %9607 = vmatprep.mubr.f32.mxu0 0.0
    %v9608 = vand.u32 %v7979, 4294901760
    %v9609 = vsub.f32 %v7979, %v9608
    %v9610 = vand.u32 %v9609, 4294901760
    %v9611 = vsub.f32 %v9609, %v9610
    %v9612 = vand.u32 %v9611, 4294901760
    %9613 = vmatmul.mubr.f32.gmra.mrb[0].mxu0 %v9612
    %v9614 = vpop.f32.mrb[0].mxu0
    %v9615 = vadd.f32 0.0, %v9614
    %v9616 = vpop.f32.mrb[0].mxu0
    %9617 = vmatprep.mubr.f32.mxu0 0.0
    %v9618 = vand.u32 %v8495, 4294901760
    %v9619 = vsub.f32 %v8495, %v9618
    %v9620 = vand.u32 %v9619, 4294901760
    %v9621 = vsub.f32 %v9619, %v9620
    %v9622 = vand.u32 %v9621, 4294901760
    %9623 = vmatmul.mubr.f32.gmra.mrb[0].mxu0 %v9622
    %v9624 = vpop.f32.mrb[0].mxu0
    %v9625 = vadd.f32 0.0, %v9624
    %v9626 = vpop.f32.mrb[0].mxu0
    %9627 = vmatprep.mubr.f32.mxu0 0.0
    %v9628 = vand.u32 %v9011, 4294901760
    %v9629 = vsub.f32 %v9011, %v9628
    %v9630 = vand.u32 %v9629, 4294901760
    %v9631 = vsub.f32 %v9629, %v9630
    %v9632 = vand.u32 %v9631, 4294901760
    %9633 = vmatmul.mubr.f32.gmra.mrb[0].mxu0 %v9632
    %v9634 = vpop.f32.mrb[0].mxu0
    %v9635 = vadd.f32 0.0, %v9634
    %v9636 = vpop.f32.mrb[0].mxu0
    %9637 = vmatprep.mubr.f32.mxu0 0.0
    %v9638 = vand.u32 %v9527, 4294901760
    %v9639 = vsub.f32 %v9527, %v9638
    %v9640 = vand.u32 %v9639, 4294901760
    %v9641 = vsub.f32 %v9639, %v9640
    %v9642 = vand.u32 %v9641, 4294901760
    %9643 = vmatmul.mubr.f32.gmra.mrb[0].mxu0 %v9642
    %v9644 = vpop.f32.mrb[0].mxu0
    %v9645 = vadd.f32 0.0, %v9644
    %v9646 = vpop.f32.mrb[0].mxu0
    %9647 = vdwg.mxu0
    %9648 = vmatprep.subr.mxu0 0.0
    %v9649 = vand.u32 %v42, 4294901760
    %v9650 = vsub.f32 %v42, %v9649
    %v9651 = vand.u32 %v9650, 4294901760
    %v9652 = vsub.f32 %v9650, %v9651
    %v9653 = vand.u32 %v9652, 4294901760
    %9654 = vmatpush1.msra.mxu0 %v9653
    %9655 = vmatprep.subr.mxu0 0.0
    %v9656 = vand.u32 %v43, 4294901760
    %v9657 = vsub.f32 %v43, %v9656
    %v9658 = vand.u32 %v9657, 4294901760
    %v9659 = vsub.f32 %v9657, %v9658
    %v9660 = vand.u32 %v9659, 4294901760
    %9661 = vmatpush1.msra.mxu0 %v9660
    %9662 = vmatprep.subr.mxu0 0.0
    %v9663 = vand.u32 %v44, 4294901760
    %v9664 = vsub.f32 %v44, %v9663
    %v9665 = vand.u32 %v9664, 4294901760
    %v9666 = vsub.f32 %v9664, %v9665
    %v9667 = vand.u32 %v9666, 4294901760
    %9668 = vmatpush1.msra.mxu0 %v9667
    %9669 = vmatprep.subr.mxu0 0.0
    %v9670 = vand.u32 %v45, 4294901760
    %v9671 = vsub.f32 %v45, %v9670
    %v9672 = vand.u32 %v9671, 4294901760
    %v9673 = vsub.f32 %v9671, %v9672
    %v9674 = vand.u32 %v9673, 4294901760
    %9675 = vmatpush1.msra.mxu0 %v9674
    %9676 = vmatprep.subr.mxu0 0.0
    %9677 = vmatpush1.msra.mxu0 0.0
    %9678 = vmatprep.subr.mxu0 0.0
    %9679 = vmatpush1.msra.mxu0 0.0
    %9680 = vmatprep.subr.mxu0 0.0
    %9681 = vmatpush1.msra.mxu0 0.0
    %9682 = vmatprep.subr.mxu0 0.0
    %9683 = vmatpush1.msra.mxu0 0.0
    %9684 = vmatprep.subr.mxu0 0.0
    %9685 = vmatpush1.msra.mxu0 0.0
    %9686 = vmatprep.subr.mxu0 0.0
    %9687 = vmatpush1.msra.mxu0 0.0
    %9688 = vmatprep.subr.mxu0 0.0
    %9689 = vmatpush1.msra.mxu0 0.0
    %9690 = vmatprep.subr.mxu0 0.0
    %9691 = vmatpush1.msra.mxu0 0.0
    %9692 = vmatprep.subr.mxu0 0.0
    %9693 = vmatpush1.msra.mxu0 0.0
    %9694 = vmatprep.subr.mxu0 0.0
    %9695 = vmatpush1.msra.mxu0 0.0
    %9696 = vmatprep.subr.mxu0 0.0
    %9697 = vmatpush1.msra.mxu0 0.0
    %9698 = vmatprep.subr.mxu0 0.0
    %9699 = vmatpush1.msra.mxu0 0.0
    %9700 = vmatprep.subr.mxu0 0.0
    %9701 = vmatpush1.msra.mxu0 0.0
    %9702 = vmatprep.subr.mxu0 0.0
    %9703 = vmatpush1.msra.mxu0 0.0
    %9704 = vmatprep.subr.mxu0 0.0
    %9705 = vmatpush1.msra.mxu0 0.0
    %9706 = vmatprep.subr.mxu0 0.0
    %9707 = vmatpush1.msra.mxu0 0.0
    %9708 = vmatprep.subr.mxu0 0.0
    %9709 = vmatpush1.msra.mxu0 0.0
    %9710 = vmatprep.subr.mxu0 0.0
    %9711 = vmatpush1.msra.mxu0 0.0
    %9712 = vmatprep.subr.mxu0 0.0
    %9713 = vmatpush1.msra.mxu0 0.0
    %9714 = vmatprep.subr.mxu0 0.0
    %9715 = vmatpush1.msra.mxu0 0.0
    %9716 = vmatprep.subr.mxu0 0.0
    %9717 = vmatpush1.msra.mxu0 0.0
    %9718 = vmatprep.subr.mxu0 0.0
    %9719 = vmatpush1.msra.mxu0 0.0
    %9720 = vmatprep.subr.mxu0 0.0
    %9721 = vmatpush1.msra.mxu0 0.0
    %9722 = vmatprep.subr.mxu0 0.0
    %9723 = vmatpush1.msra.mxu0 0.0
    %9724 = vmatprep.subr.mxu0 0.0
    %9725 = vmatpush1.msra.mxu0 0.0
    %9726 = vmatprep.subr.mxu0 0.0
    %9727 = vmatpush1.msra.mxu0 0.0
    %9728 = vmatprep.subr.mxu0 0.0
    %9729 = vmatpush1.msra.mxu0 0.0
    %9730 = vmatprep.subr.mxu0 0.0
    %9731 = vmatpush1.msra.mxu0 0.0
    %9732 = vmatprep.mubr.f32.mxu0 0.0
    %v9733 = vand.u32 %v7463, 4294901760
    %9734 = vmatmul.mubr.f32.gmra.mrb[0].mxu0 %v9733
    %v9735 = vpop.f32.mrb[0].mxu0
    %v9736 = vadd.f32 %v9605, %v9735
    %v9737 = vpop.f32.mrb[0].mxu0
    %9738 = vmatprep.mubr.f32.mxu0 0.0
    %v9739 = vand.u32 %v7979, 4294901760
    %9740 = vmatmul.mubr.f32.gmra.mrb[0].mxu0 %v9739
    %v9741 = vpop.f32.mrb[0].mxu0
    %v9742 = vadd.f32 %v9615, %v9741
    %v9743 = vpop.f32.mrb[0].mxu0
    %9744 = vmatprep.mubr.f32.mxu0 0.0
    %v9745 = vand.u32 %v8495, 4294901760
    %9746 = vmatmul.mubr.f32.gmra.mrb[0].mxu0 %v9745
    %v9747 = vpop.f32.mrb[0].mxu0
    %v9748 = vadd.f32 %v9625, %v9747
    %v9749 = vpop.f32.mrb[0].mxu0
    %9750 = vmatprep.mubr.f32.mxu0 0.0
    %v9751 = vand.u32 %v9011, 4294901760
    %9752 = vmatmul.mubr.f32.gmra.mrb[0].mxu0 %v9751
    %v9753 = vpop.f32.mrb[0].mxu0
    %v9754 = vadd.f32 %v9635, %v9753
    %v9755 = vpop.f32.mrb[0].mxu0
    %9756 = vmatprep.mubr.f32.mxu0 0.0
    %v9757 = vand.u32 %v9527, 4294901760
    %9758 = vmatmul.mubr.f32.gmra.mrb[0].mxu0 %v9757
    %v9759 = vpop.f32.mrb[0].mxu0
    %v9760 = vadd.f32 %v9645, %v9759
    %v9761 = vpop.f32.mrb[0].mxu0
    %9762 = vdwg.mxu0
    %9763 = vmatprep.subr.mxu0 0.0
    %v9764 = vand.u32 %v42, 4294901760
    %v9765 = vsub.f32 %v42, %v9764
    %9766 = vmatpush1.msra.mxu0 %v9765
    %9767 = vmatprep.subr.mxu0 0.0
    %v9768 = vand.u32 %v43, 4294901760
    %v9769 = vsub.f32 %v43, %v9768
    %9770 = vmatpush1.msra.mxu0 %v9769
    %9771 = vmatprep.subr.mxu0 0.0
    %v9772 = vand.u32 %v44, 4294901760
    %v9773 = vsub.f32 %v44, %v9772
    %9774 = vmatpush1.msra.mxu0 %v9773
    %9775 = vmatprep.subr.mxu0 0.0
    %v9776 = vand.u32 %v45, 4294901760
    %v9777 = vsub.f32 %v45, %v9776
    %9778 = vmatpush1.msra.mxu0 %v9777
    %9779 = vmatprep.subr.mxu0 0.0
    %9780 = vmatpush1.msra.mxu0 0.0
    %9781 = vmatprep.subr.mxu0 0.0
    %9782 = vmatpush1.msra.mxu0 0.0
    %9783 = vmatprep.subr.mxu0 0.0
    %9784 = vmatpush1.msra.mxu0 0.0
    %9785 = vmatprep.subr.mxu0 0.0
    %9786 = vmatpush1.msra.mxu0 0.0
    %9787 = vmatprep.subr.mxu0 0.0
    %9788 = vmatpush1.msra.mxu0 0.0
    %9789 = vmatprep.subr.mxu0 0.0
    %9790 = vmatpush1.msra.mxu0 0.0
    %9791 = vmatprep.subr.mxu0 0.0
    %9792 = vmatpush1.msra.mxu0 0.0
    %9793 = vmatprep.subr.mxu0 0.0
    %9794 = vmatpush1.msra.mxu0 0.0
    %9795 = vmatprep.subr.mxu0 0.0
    %9796 = vmatpush1.msra.mxu0 0.0
    %9797 = vmatprep.subr.mxu0 0.0
    %9798 = vmatpush1.msra.mxu0 0.0
    %9799 = vmatprep.subr.mxu0 0.0
    %9800 = vmatpush1.msra.mxu0 0.0
    %9801 = vmatprep.subr.mxu0 0.0
    %9802 = vmatpush1.msra.mxu0 0.0
    %9803 = vmatprep.subr.mxu0 0.0
    %9804 = vmatpush1.msra.mxu0 0.0
    %9805 = vmatprep.subr.mxu0 0.0
    %9806 = vmatpush1.msra.mxu0 0.0
    %9807 = vmatprep.subr.mxu0 0.0
    %9808 = vmatpush1.msra.mxu0 0.0
    %9809 = vmatprep.subr.mxu0 0.0
    %9810 = vmatpush1.msra.mxu0 0.0
    %9811 = vmatprep.subr.mxu0 0.0
    %9812 = vmatpush1.msra.mxu0 0.0
    %9813 = vmatprep.subr.mxu0 0.0
    %9814 = vmatpush1.msra.mxu0 0.0
    %9815 = vmatprep.subr.mxu0 0.0
    %9816 = vmatpush1.msra.mxu0 0.0
    %9817 = vmatprep.subr.mxu0 0.0
    %9818 = vmatpush1.msra.mxu0 0.0
    %9819 = vmatprep.subr.mxu0 0.0
    %9820 = vmatpush1.msra.mxu0 0.0
    %9821 = vmatprep.subr.mxu0 0.0
    %9822 = vmatpush1.msra.mxu0 0.0
    %9823 = vmatprep.subr.mxu0 0.0
    %9824 = vmatpush1.msra.mxu0 0.0
    %9825 = vmatprep.subr.mxu0 0.0
    %9826 = vmatpush1.msra.mxu0 0.0
    %9827 = vmatprep.subr.mxu0 0.0
    %9828 = vmatpush1.msra.mxu0 0.0
    %9829 = vmatprep.subr.mxu0 0.0
    %9830 = vmatpush1.msra.mxu0 0.0
    %9831 = vmatprep.subr.mxu0 0.0
    %9832 = vmatpush1.msra.mxu0 0.0
    %9833 = vmatprep.subr.mxu0 0.0
    %9834 = vmatpush1.msra.mxu0 0.0
    %9835 = vmatprep.mubr.f32.mxu0 0.0
    %v9836 = vand.u32 %v7463, 4294901760
    %v9837 = vsub.f32 %v7463, %v9836
    %9838 = vmatmul.mubr.f32.gmra.mrb[0].mxu0 %v9837
    %v9839 = vpop.f32.mrb[0].mxu0
    %v9840 = vadd.f32 %v9736, %v9839
    %v9841 = vpop.f32.mrb[0].mxu0
    %9842 = vmatprep.mubr.f32.mxu0 0.0
    %v9843 = vand.u32 %v7979, 4294901760
    %v9844 = vsub.f32 %v7979, %v9843
    %9845 = vmatmul.mubr.f32.gmra.mrb[0].mxu0 %v9844
    %v9846 = vpop.f32.mrb[0].mxu0
    %v9847 = vadd.f32 %v9742, %v9846
    %v9848 = vpop.f32.mrb[0].mxu0
    %9849 = vmatprep.mubr.f32.mxu0 0.0
    %v9850 = vand.u32 %v8495, 4294901760
    %v9851 = vsub.f32 %v8495, %v9850
    %9852 = vmatmul.mubr.f32.gmra.mrb[0].mxu0 %v9851
    %v9853 = vpop.f32.mrb[0].mxu0
    %v9854 = vadd.f32 %v9748, %v9853
    %v9855 = vpop.f32.mrb[0].mxu0
    %9856 = vmatprep.mubr.f32.mxu0 0.0
    %v9857 = vand.u32 %v9011, 4294901760
    %v9858 = vsub.f32 %v9011, %v9857
    %9859 = vmatmul.mubr.f32.gmra.mrb[0].mxu0 %v9858
    %v9860 = vpop.f32.mrb[0].mxu0
    %v9861 = vadd.f32 %v9754, %v9860
    %v9862 = vpop.f32.mrb[0].mxu0
    %9863 = vmatprep.mubr.f32.mxu0 0.0
    %v9864 = vand.u32 %v9527, 4294901760
    %v9865 = vsub.f32 %v9527, %v9864
    %9866 = vmatmul.mubr.f32.gmra.mrb[0].mxu0 %v9865
    %v9867 = vpop.f32.mrb[0].mxu0
    %v9868 = vadd.f32 %v9760, %v9867
    %v9869 = vpop.f32.mrb[0].mxu0
    %9870 = vdwg.mxu0
    %9871 = vmatprep.subr.mxu0 0.0
    %v9872 = vand.u32 %v42, 4294901760
    %9873 = vmatpush1.msra.mxu0 %v9872
    %9874 = vmatprep.subr.mxu0 0.0
    %v9875 = vand.u32 %v43, 4294901760
    %9876 = vmatpush1.msra.mxu0 %v9875
    %9877 = vmatprep.subr.mxu0 0.0
    %v9878 = vand.u32 %v44, 4294901760
    %9879 = vmatpush1.msra.mxu0 %v9878
    %9880 = vmatprep.subr.mxu0 0.0
    %v9881 = vand.u32 %v45, 4294901760
    %9882 = vmatpush1.msra.mxu0 %v9881
    %9883 = vmatprep.subr.mxu0 0.0
    %9884 = vmatpush1.msra.mxu0 0.0
    %9885 = vmatprep.subr.mxu0 0.0
    %9886 = vmatpush1.msra.mxu0 0.0
    %9887 = vmatprep.subr.mxu0 0.0
    %9888 = vmatpush1.msra.mxu0 0.0
    %9889 = vmatprep.subr.mxu0 0.0
    %9890 = vmatpush1.msra.mxu0 0.0
    %9891 = vmatprep.subr.mxu0 0.0
    %9892 = vmatpush1.msra.mxu0 0.0
    %9893 = vmatprep.subr.mxu0 0.0
    %9894 = vmatpush1.msra.mxu0 0.0
    %9895 = vmatprep.subr.mxu0 0.0
    %9896 = vmatpush1.msra.mxu0 0.0
    %9897 = vmatprep.subr.mxu0 0.0
    %9898 = vmatpush1.msra.mxu0 0.0
    %9899 = vmatprep.subr.mxu0 0.0
    %9900 = vmatpush1.msra.mxu0 0.0
    %9901 = vmatprep.subr.mxu0 0.0
    %9902 = vmatpush1.msra.mxu0 0.0
    %9903 = vmatprep.subr.mxu0 0.0
    %9904 = vmatpush1.msra.mxu0 0.0
    %9905 = vmatprep.subr.mxu0 0.0
    %9906 = vmatpush1.msra.mxu0 0.0
    %9907 = vmatprep.subr.mxu0 0.0
    %9908 = vmatpush1.msra.mxu0 0.0
    %9909 = vmatprep.subr.mxu0 0.0
    %9910 = vmatpush1.msra.mxu0 0.0
    %9911 = vmatprep.subr.mxu0 0.0
    %9912 = vmatpush1.msra.mxu0 0.0
    %9913 = vmatprep.subr.mxu0 0.0
    %9914 = vmatpush1.msra.mxu0 0.0
    %9915 = vmatprep.subr.mxu0 0.0
    %9916 = vmatpush1.msra.mxu0 0.0
    %9917 = vmatprep.subr.mxu0 0.0
    %9918 = vmatpush1.msra.mxu0 0.0
    %9919 = vmatprep.subr.mxu0 0.0
    %9920 = vmatpush1.msra.mxu0 0.0
    %9921 = vmatprep.subr.mxu0 0.0
    %9922 = vmatpush1.msra.mxu0 0.0
    %9923 = vmatprep.subr.mxu0 0.0
    %9924 = vmatpush1.msra.mxu0 0.0
    %9925 = vmatprep.subr.mxu0 0.0
    %9926 = vmatpush1.msra.mxu0 0.0
    %9927 = vmatprep.subr.mxu0 0.0
    %9928 = vmatpush1.msra.mxu0 0.0
    %9929 = vmatprep.subr.mxu0 0.0
    %9930 = vmatpush1.msra.mxu0 0.0
    %9931 = vmatprep.subr.mxu0 0.0
    %9932 = vmatpush1.msra.mxu0 0.0
    %9933 = vmatprep.subr.mxu0 0.0
    %9934 = vmatpush1.msra.mxu0 0.0
    %9935 = vmatprep.subr.mxu0 0.0
    %9936 = vmatpush1.msra.mxu0 0.0
    %9937 = vmatprep.subr.mxu0 0.0
    %9938 = vmatpush1.msra.mxu0 0.0
    %9939 = vmatprep.mubr.f32.mxu0 0.0
    %v9940 = vand.u32 %v7463, 4294901760
    %v9941 = vsub.f32 %v7463, %v9940
    %v9942 = vand.u32 %v9941, 4294901760
    %9943 = vmatmul.mubr.f32.gmra.mrb[0].mxu0 %v9942
    %v9944 = vpop.f32.mrb[0].mxu0
    %v9945 = vadd.f32 %v9840, %v9944
    %v9946 = vpop.f32.mrb[0].mxu0
    %9947 = vmatprep.mubr.f32.mxu0 0.0
    %v9948 = vand.u32 %v7979, 4294901760
    %v9949 = vsub.f32 %v7979, %v9948
    %v9950 = vand.u32 %v9949, 4294901760
    %9951 = vmatmul.mubr.f32.gmra.mrb[0].mxu0 %v9950
    %v9952 = vpop.f32.mrb[0].mxu0
    %v9953 = vadd.f32 %v9847, %v9952
    %v9954 = vpop.f32.mrb[0].mxu0
    %9955 = vmatprep.mubr.f32.mxu0 0.0
    %v9956 = vand.u32 %v8495, 4294901760
    %v9957 = vsub.f32 %v8495, %v9956
    %v9958 = vand.u32 %v9957, 4294901760
    %9959 = vmatmul.mubr.f32.gmra.mrb[0].mxu0 %v9958
    %v9960 = vpop.f32.mrb[0].mxu0
    %v9961 = vadd.f32 %v9854, %v9960
    %v9962 = vpop.f32.mrb[0].mxu0
    %9963 = vmatprep.mubr.f32.mxu0 0.0
    %v9964 = vand.u32 %v9011, 4294901760
    %v9965 = vsub.f32 %v9011, %v9964
    %v9966 = vand.u32 %v9965, 4294901760
    %9967 = vmatmul.mubr.f32.gmra.mrb[0].mxu0 %v9966
    %v9968 = vpop.f32.mrb[0].mxu0
    %v9969 = vadd.f32 %v9861, %v9968
    %v9970 = vpop.f32.mrb[0].mxu0
    %9971 = vmatprep.mubr.f32.mxu0 0.0
    %v9972 = vand.u32 %v9527, 4294901760
    %v9973 = vsub.f32 %v9527, %v9972
    %v9974 = vand.u32 %v9973, 4294901760
    %9975 = vmatmul.mubr.f32.gmra.mrb[0].mxu0 %v9974
    %v9976 = vpop.f32.mrb[0].mxu0
    %v9977 = vadd.f32 %v9868, %v9976
    %v9978 = vpop.f32.mrb[0].mxu0
    %9979 = vdwg.mxu0
    %9980 = vmatprep.subr.mxu0 0.0
    %v9981 = vand.u32 %v42, 4294901760
    %v9982 = vsub.f32 %v42, %v9981
    %v9983 = vand.u32 %v9982, 4294901760
    %9984 = vmatpush1.msra.mxu0 %v9983
    %9985 = vmatprep.subr.mxu0 0.0
    %v9986 = vand.u32 %v43, 4294901760
    %v9987 = vsub.f32 %v43, %v9986
    %v9988 = vand.u32 %v9987, 4294901760
    %9989 = vmatpush1.msra.mxu0 %v9988
    %9990 = vmatprep.subr.mxu0 0.0
    %v9991 = vand.u32 %v44, 4294901760
    %v9992 = vsub.f32 %v44, %v9991
    %v9993 = vand.u32 %v9992, 4294901760
    %9994 = vmatpush1.msra.mxu0 %v9993
    %9995 = vmatprep.subr.mxu0 0.0
    %v9996 = vand.u32 %v45, 4294901760
    %v9997 = vsub.f32 %v45, %v9996
    %v9998 = vand.u32 %v9997, 4294901760
    %9999 = vmatpush1.msra.mxu0 %v9998
    %10000 = vmatprep.subr.mxu0 0.0
    %10001 = vmatpush1.msra.mxu0 0.0
    %10002 = vmatprep.subr.mxu0 0.0
    %10003 = vmatpush1.msra.mxu0 0.0
    %10004 = vmatprep.subr.mxu0 0.0
    %10005 = vmatpush1.msra.mxu0 0.0
    %10006 = vmatprep.subr.mxu0 0.0
    %10007 = vmatpush1.msra.mxu0 0.0
    %10008 = vmatprep.subr.mxu0 0.0
    %10009 = vmatpush1.msra.mxu0 0.0
    %10010 = vmatprep.subr.mxu0 0.0
    %10011 = vmatpush1.msra.mxu0 0.0
    %10012 = vmatprep.subr.mxu0 0.0
    %10013 = vmatpush1.msra.mxu0 0.0
    %10014 = vmatprep.subr.mxu0 0.0
    %10015 = vmatpush1.msra.mxu0 0.0
    %10016 = vmatprep.subr.mxu0 0.0
    %10017 = vmatpush1.msra.mxu0 0.0
    %10018 = vmatprep.subr.mxu0 0.0
    %10019 = vmatpush1.msra.mxu0 0.0
    %10020 = vmatprep.subr.mxu0 0.0
    %10021 = vmatpush1.msra.mxu0 0.0
    %10022 = vmatprep.subr.mxu0 0.0
    %10023 = vmatpush1.msra.mxu0 0.0
    %10024 = vmatprep.subr.mxu0 0.0
    %10025 = vmatpush1.msra.mxu0 0.0
    %10026 = vmatprep.subr.mxu0 0.0
    %10027 = vmatpush1.msra.mxu0 0.0
    %10028 = vmatprep.subr.mxu0 0.0
    %10029 = vmatpush1.msra.mxu0 0.0
    %10030 = vmatprep.subr.mxu0 0.0
    %10031 = vmatpush1.msra.mxu0 0.0
    %10032 = vmatprep.subr.mxu0 0.0
    %10033 = vmatpush1.msra.mxu0 0.0
    %10034 = vmatprep.subr.mxu0 0.0
    %10035 = vmatpush1.msra.mxu0 0.0
    %10036 = vmatprep.subr.mxu0 0.0
    %10037 = vmatpush1.msra.mxu0 0.0
    %10038 = vmatprep.subr.mxu0 0.0
    %10039 = vmatpush1.msra.mxu0 0.0
    %10040 = vmatprep.subr.mxu0 0.0
    %10041 = vmatpush1.msra.mxu0 0.0
    %10042 = vmatprep.subr.mxu0 0.0
    %10043 = vmatpush1.msra.mxu0 0.0
    %10044 = vmatprep.subr.mxu0 0.0
    %10045 = vmatpush1.msra.mxu0 0.0
    %10046 = vmatprep.subr.mxu0 0.0
    %10047 = vmatpush1.msra.mxu0 0.0
    %10048 = vmatprep.subr.mxu0 0.0
    %10049 = vmatpush1.msra.mxu0 0.0
    %10050 = vmatprep.subr.mxu0 0.0
    %10051 = vmatpush1.msra.mxu0 0.0
    %10052 = vmatprep.subr.mxu0 0.0
    %10053 = vmatpush1.msra.mxu0 0.0
    %10054 = vmatprep.subr.mxu0 0.0
    %10055 = vmatpush1.msra.mxu0 0.0
    %10056 = vmatprep.mubr.f32.mxu0 0.0
    %v10057 = vand.u32 %v7463, 4294901760
    %10058 = vmatmul.mubr.f32.gmra.mrb[0].mxu0 %v10057
    %v10059 = vpop.f32.mrb[0].mxu0
    %v10060 = vadd.f32 %v9945, %v10059
    %v10061 = vpop.f32.mrb[0].mxu0
    %10062 = vmatprep.mubr.f32.mxu0 0.0
    %v10063 = vand.u32 %v7979, 4294901760
    %10064 = vmatmul.mubr.f32.gmra.mrb[0].mxu0 %v10063
    %v10065 = vpop.f32.mrb[0].mxu0
    %v10066 = vadd.f32 %v9953, %v10065
    %v10067 = vpop.f32.mrb[0].mxu0
    %10068 = vmatprep.mubr.f32.mxu0 0.0
    %v10069 = vand.u32 %v8495, 4294901760
    %10070 = vmatmul.mubr.f32.gmra.mrb[0].mxu0 %v10069
    %v10071 = vpop.f32.mrb[0].mxu0
    %v10072 = vadd.f32 %v9961, %v10071
    %v10073 = vpop.f32.mrb[0].mxu0
    %10074 = vmatprep.mubr.f32.mxu0 0.0
    %v10075 = vand.u32 %v9011, 4294901760
    %10076 = vmatmul.mubr.f32.gmra.mrb[0].mxu0 %v10075
    %v10077 = vpop.f32.mrb[0].mxu0
    %v10078 = vadd.f32 %v9969, %v10077
    %v10079 = vpop.f32.mrb[0].mxu0
    %10080 = vmatprep.mubr.f32.mxu0 0.0
    %v10081 = vand.u32 %v9527, 4294901760
    %10082 = vmatmul.mubr.f32.gmra.mrb[0].mxu0 %v10081
    %v10083 = vpop.f32.mrb[0].mxu0
    %v10084 = vadd.f32 %v9977, %v10083
    %v10085 = vpop.f32.mrb[0].mxu0
    %10086 = vdwg.mxu0
    %10087 = vmatprep.subr.mxu0 0.0
    %v10088 = vand.u32 %v42, 4294901760
    %10089 = vmatpush1.msra.mxu0 %v10088
    %10090 = vmatprep.subr.mxu0 0.0
    %v10091 = vand.u32 %v43, 4294901760
    %10092 = vmatpush1.msra.mxu0 %v10091
    %10093 = vmatprep.subr.mxu0 0.0
    %v10094 = vand.u32 %v44, 4294901760
    %10095 = vmatpush1.msra.mxu0 %v10094
    %10096 = vmatprep.subr.mxu0 0.0
    %v10097 = vand.u32 %v45, 4294901760
    %10098 = vmatpush1.msra.mxu0 %v10097
    %10099 = vmatprep.subr.mxu0 0.0
    %10100 = vmatpush1.msra.mxu0 0.0
    %10101 = vmatprep.subr.mxu0 0.0
    %10102 = vmatpush1.msra.mxu0 0.0
    %10103 = vmatprep.subr.mxu0 0.0
    %10104 = vmatpush1.msra.mxu0 0.0
    %10105 = vmatprep.subr.mxu0 0.0
    %10106 = vmatpush1.msra.mxu0 0.0
    %10107 = vmatprep.subr.mxu0 0.0
    %10108 = vmatpush1.msra.mxu0 0.0
    %10109 = vmatprep.subr.mxu0 0.0
    %10110 = vmatpush1.msra.mxu0 0.0
    %10111 = vmatprep.subr.mxu0 0.0
    %10112 = vmatpush1.msra.mxu0 0.0
    %10113 = vmatprep.subr.mxu0 0.0
    %10114 = vmatpush1.msra.mxu0 0.0
    %10115 = vmatprep.subr.mxu0 0.0
    %10116 = vmatpush1.msra.mxu0 0.0
    %10117 = vmatprep.subr.mxu0 0.0
    %10118 = vmatpush1.msra.mxu0 0.0
    %10119 = vmatprep.subr.mxu0 0.0
    %10120 = vmatpush1.msra.mxu0 0.0
    %10121 = vmatprep.subr.mxu0 0.0
    %10122 = vmatpush1.msra.mxu0 0.0
    %10123 = vmatprep.subr.mxu0 0.0
    %10124 = vmatpush1.msra.mxu0 0.0
    %10125 = vmatprep.subr.mxu0 0.0
    %10126 = vmatpush1.msra.mxu0 0.0
    %10127 = vmatprep.subr.mxu0 0.0
    %10128 = vmatpush1.msra.mxu0 0.0
    %10129 = vmatprep.subr.mxu0 0.0
    %10130 = vmatpush1.msra.mxu0 0.0
    %10131 = vmatprep.subr.mxu0 0.0
    %10132 = vmatpush1.msra.mxu0 0.0
    %10133 = vmatprep.subr.mxu0 0.0
    %10134 = vmatpush1.msra.mxu0 0.0
    %10135 = vmatprep.subr.mxu0 0.0
    %10136 = vmatpush1.msra.mxu0 0.0
    %10137 = vmatprep.subr.mxu0 0.0
    %10138 = vmatpush1.msra.mxu0 0.0
    %10139 = vmatprep.subr.mxu0 0.0
    %10140 = vmatpush1.msra.mxu0 0.0
    %10141 = vmatprep.subr.mxu0 0.0
    %10142 = vmatpush1.msra.mxu0 0.0
    %10143 = vmatprep.subr.mxu0 0.0
    %10144 = vmatpush1.msra.mxu0 0.0
    %10145 = vmatprep.subr.mxu0 0.0
    %10146 = vmatpush1.msra.mxu0 0.0
    %10147 = vmatprep.subr.mxu0 0.0
    %10148 = vmatpush1.msra.mxu0 0.0
    %10149 = vmatprep.subr.mxu0 0.0
    %10150 = vmatpush1.msra.mxu0 0.0
    %10151 = vmatprep.subr.mxu0 0.0
    %10152 = vmatpush1.msra.mxu0 0.0
    %10153 = vmatprep.subr.mxu0 0.0
    %10154 = vmatpush1.msra.mxu0 0.0
    %10155 = vmatprep.mubr.f32.mxu0 0.0
    %v10156 = vand.u32 %v7463, 4294901760
    %10157 = vmatmul.mubr.f32.gmra.mrb[0].mxu0 %v10156
    %v10158 = vpop.f32.mrb[0].mxu0
    %v10159 = vadd.f32 %v10060, %v10158
    %v10160 = vpop.f32.mrb[0].mxu0
    %10161 = vmatprep.mubr.f32.mxu0 0.0
    %v10162 = vand.u32 %v7979, 4294901760
    %10163 = vmatmul.mubr.f32.gmra.mrb[0].mxu0 %v10162
    %v10164 = vpop.f32.mrb[0].mxu0
    %v10165 = vadd.f32 %v10066, %v10164
    %v10166 = vpop.f32.mrb[0].mxu0
    %10167 = vmatprep.mubr.f32.mxu0 0.0
    %v10168 = vand.u32 %v8495, 4294901760
    %10169 = vmatmul.mubr.f32.gmra.mrb[0].mxu0 %v10168
    %v10170 = vpop.f32.mrb[0].mxu0
    %v10171 = vadd.f32 %v10072, %v10170
    %v10172 = vpop.f32.mrb[0].mxu0
    %10173 = vmatprep.mubr.f32.mxu0 0.0
    %v10174 = vand.u32 %v9011, 4294901760
    %10175 = vmatmul.mubr.f32.gmra.mrb[0].mxu0 %v10174
    %v10176 = vpop.f32.mrb[0].mxu0
    %v10177 = vadd.f32 %v10078, %v10176
    %v10178 = vpop.f32.mrb[0].mxu0
    %10179 = vmatprep.mubr.f32.mxu0 0.0
    %v10180 = vand.u32 %v9527, 4294901760
    %10181 = vmatmul.mubr.f32.gmra.mrb[0].mxu0 %v10180
    %v10182 = vpop.f32.mrb[0].mxu0
    %v10183 = vadd.f32 %v10084, %v10182
    %v10184 = vpop.f32.mrb[0].mxu0
    %10185 = vdwg.mxu0
    %10187 = vrot.lane.b32.xlu0 %v3246, 96
    %v10188 = vpop.permute.xlu0 %10187
    %v10190 = vmul.f32 %v10159, %v10188
    %v10191 = vmul.f32 %v10165, %v10188
    %v10192 = vmul.f32 %v10171, %v10188
    %v10193 = vmul.f32 %v10177, %v10188
    %v10194 = vmul.f32 %v10183, %v10188
    %v10195 = vsel %vm95, %v10190, 0.0
    %10196 = vadd.xlane.f32.xlu0 %v10195
    %v10197 = vpop.xlane.xlu0 %10196
    %v10198 = vsel %vm95, %v10191, 0.0
    %10199 = vadd.xlane.f32.xlu0 %v10198
    %v10200 = vpop.xlane.xlu0 %10199
    %v10201 = vsel %vm95, %v10192, 0.0
    %10202 = vadd.xlane.f32.xlu0 %v10201
    %v10203 = vpop.xlane.xlu0 %10202
    %v10204 = vsel %vm95, %v10193, 0.0
    %10205 = vadd.xlane.f32.xlu0 %v10204
    %v10206 = vpop.xlane.xlu0 %10205
    %v10207 = vsel %vm95, %v10194, 0.0
    %10208 = vadd.xlane.f32.xlu0 %v10207
    %v10209 = vpop.xlane.xlu0 %10208
    %10211 = vrot.lane.b32.xlu0 %v3775, 96
    %v10212 = vpop.permute.xlu0 %10211
    %v10214 = vmul.f32 %v10159, %v10212
    %v10215 = vmul.f32 %v10165, %v10212
    %v10216 = vmul.f32 %v10171, %v10212
    %v10217 = vmul.f32 %v10177, %v10212
    %v10218 = vmul.f32 %v10183, %v10212
    %v10219 = vsel %vm95, %v10214, 0.0
    %10220 = vadd.xlane.f32.xlu0 %v10219
    %v10221 = vpop.xlane.xlu0 %10220
    %v10222 = vsel %vm95, %v10215, 0.0
    %10223 = vadd.xlane.f32.xlu0 %v10222
    %v10224 = vpop.xlane.xlu0 %10223
    %v10225 = vsel %vm95, %v10216, 0.0
    %10226 = vadd.xlane.f32.xlu0 %v10225
    %v10227 = vpop.xlane.xlu0 %10226
    %v10228 = vsel %vm95, %v10217, 0.0
    %10229 = vadd.xlane.f32.xlu0 %v10228
    %v10230 = vpop.xlane.xlu0 %10229
    %v10231 = vsel %vm95, %v10218, 0.0
    %10232 = vadd.xlane.f32.xlu0 %v10231
    %v10233 = vpop.xlane.xlu0 %10232
    %10235 = vrot.lane.b32.xlu0 %v4302, 96
    %v10236 = vpop.permute.xlu0 %10235
    %v10238 = vmul.f32 %v10159, %v10236
    %v10239 = vmul.f32 %v10165, %v10236
    %v10240 = vmul.f32 %v10171, %v10236
    %v10241 = vmul.f32 %v10177, %v10236
    %v10242 = vmul.f32 %v10183, %v10236
    %v10243 = vsel %vm95, %v10238, 0.0
    %10244 = vadd.xlane.f32.xlu0 %v10243
    %v10245 = vpop.xlane.xlu0 %10244
    %v10246 = vsel %vm95, %v10239, 0.0
    %10247 = vadd.xlane.f32.xlu0 %v10246
    %v10248 = vpop.xlane.xlu0 %10247
    %v10249 = vsel %vm95, %v10240, 0.0
    %10250 = vadd.xlane.f32.xlu0 %v10249
    %v10251 = vpop.xlane.xlu0 %10250
    %v10252 = vsel %vm95, %v10241, 0.0
    %10253 = vadd.xlane.f32.xlu0 %v10252
    %v10254 = vpop.xlane.xlu0 %10253
    %v10255 = vsel %vm95, %v10242, 0.0
    %10256 = vadd.xlane.f32.xlu0 %v10255
    %v10257 = vpop.xlane.xlu0 %10256
    %10259 = vrot.lane.b32.xlu0 %v4829, 96
    %v10260 = vpop.permute.xlu0 %10259
    %v10262 = vmul.f32 %v10159, %v10260
    %v10263 = vmul.f32 %v10165, %v10260
    %v10264 = vmul.f32 %v10171, %v10260
    %v10265 = vmul.f32 %v10177, %v10260
    %v10266 = vmul.f32 %v10183, %v10260
    %v10267 = vsel %vm95, %v10262, 0.0
    %10268 = vadd.xlane.f32.xlu0 %v10267
    %v10269 = vpop.xlane.xlu0 %10268
    %v10270 = vsel %vm95, %v10263, 0.0
    %10271 = vadd.xlane.f32.xlu0 %v10270
    %v10272 = vpop.xlane.xlu0 %10271
    %v10273 = vsel %vm95, %v10264, 0.0
    %10274 = vadd.xlane.f32.xlu0 %v10273
    %v10275 = vpop.xlane.xlu0 %10274
    %v10276 = vsel %vm95, %v10265, 0.0
    %10277 = vadd.xlane.f32.xlu0 %v10276
    %v10278 = vpop.xlane.xlu0 %10277
    %v10279 = vsel %vm95, %v10266, 0.0
    %10280 = vadd.xlane.f32.xlu0 %v10279
    %v10281 = vpop.xlane.xlu0 %10280
    %10283 = vrot.lane.b32.xlu0 %v5356, 96
    %v10284 = vpop.permute.xlu0 %10283
    %v10286 = vmul.f32 %v10159, %v10284
    %v10287 = vmul.f32 %v10165, %v10284
    %v10288 = vmul.f32 %v10171, %v10284
    %v10289 = vmul.f32 %v10177, %v10284
    %v10290 = vmul.f32 %v10183, %v10284
    %v10291 = vsel %vm95, %v10286, 0.0
    %10292 = vadd.xlane.f32.xlu0 %v10291
    %v10293 = vpop.xlane.xlu0 %10292
    %v10294 = vsel %vm95, %v10287, 0.0
    %10295 = vadd.xlane.f32.xlu0 %v10294
    %v10296 = vpop.xlane.xlu0 %10295
    %v10297 = vsel %vm95, %v10288, 0.0
    %10298 = vadd.xlane.f32.xlu0 %v10297
    %v10299 = vpop.xlane.xlu0 %10298
    %v10300 = vsel %vm95, %v10289, 0.0
    %10301 = vadd.xlane.f32.xlu0 %v10300
    %v10302 = vpop.xlane.xlu0 %10301
    %v10303 = vsel %vm95, %v10290, 0.0
    %10304 = vadd.xlane.f32.xlu0 %v10303
    %v10305 = vpop.xlane.xlu0 %10304
    %10307 = vrot.lane.b32.xlu0 %v5883, 96
    %v10308 = vpop.permute.xlu0 %10307
    %v10310 = vmul.f32 %v10159, %v10308
    %v10311 = vmul.f32 %v10165, %v10308
    %v10312 = vmul.f32 %v10171, %v10308
    %v10313 = vmul.f32 %v10177, %v10308
    %v10314 = vmul.f32 %v10183, %v10308
    %v10315 = vsel %vm95, %v10310, 0.0
    %10316 = vadd.xlane.f32.xlu0 %v10315
    %v10317 = vpop.xlane.xlu0 %10316
    %v10318 = vsel %vm95, %v10311, 0.0
    %10319 = vadd.xlane.f32.xlu0 %v10318
    %v10320 = vpop.xlane.xlu0 %10319
    %v10321 = vsel %vm95, %v10312, 0.0
    %10322 = vadd.xlane.f32.xlu0 %v10321
    %v10323 = vpop.xlane.xlu0 %10322
    %v10324 = vsel %vm95, %v10313, 0.0
    %10325 = vadd.xlane.f32.xlu0 %v10324
    %v10326 = vpop.xlane.xlu0 %10325
    %v10327 = vsel %vm95, %v10314, 0.0
    %10328 = vadd.xlane.f32.xlu0 %v10327
    %v10329 = vpop.xlane.xlu0 %10328
    %10331 = vrot.lane.b32.xlu0 %v6410, 96
    %v10332 = vpop.permute.xlu0 %10331
    %v10334 = vmul.f32 %v10159, %v10332
    %v10335 = vmul.f32 %v10165, %v10332
    %v10336 = vmul.f32 %v10171, %v10332
    %v10337 = vmul.f32 %v10177, %v10332
    %v10338 = vmul.f32 %v10183, %v10332
    %v10339 = vsel %vm95, %v10334, 0.0
    %10340 = vadd.xlane.f32.xlu0 %v10339
    %v10341 = vpop.xlane.xlu0 %10340
    %v10342 = vsel %vm95, %v10335, 0.0
    %10343 = vadd.xlane.f32.xlu0 %v10342
    %v10344 = vpop.xlane.xlu0 %10343
    %v10345 = vsel %vm95, %v10336, 0.0
    %10346 = vadd.xlane.f32.xlu0 %v10345
    %v10347 = vpop.xlane.xlu0 %10346
    %v10348 = vsel %vm95, %v10337, 0.0
    %10349 = vadd.xlane.f32.xlu0 %v10348
    %v10350 = vpop.xlane.xlu0 %10349
    %v10351 = vsel %vm95, %v10338, 0.0
    %10352 = vadd.xlane.f32.xlu0 %v10351
    %v10353 = vpop.xlane.xlu0 %10352
    %10355 = vrot.lane.b32.xlu0 %v6937, 96
    %v10356 = vpop.permute.xlu0 %10355
    %v10358 = vmul.f32 %v10159, %v10356
    %v10359 = vmul.f32 %v10165, %v10356
    %v10360 = vmul.f32 %v10171, %v10356
    %v10361 = vmul.f32 %v10177, %v10356
    %v10362 = vmul.f32 %v10183, %v10356
    %v10363 = vsel %vm95, %v10358, 0.0
    %10364 = vadd.xlane.f32.xlu0 %v10363
    %v10365 = vpop.xlane.xlu0 %10364
    %v10366 = vsel %vm95, %v10359, 0.0
    %10367 = vadd.xlane.f32.xlu0 %v10366
    %v10368 = vpop.xlane.xlu0 %10367
    %v10369 = vsel %vm95, %v10360, 0.0
    %10370 = vadd.xlane.f32.xlu0 %v10369
    %v10371 = vpop.xlane.xlu0 %10370
    %v10372 = vsel %vm95, %v10361, 0.0
    %10373 = vadd.xlane.f32.xlu0 %v10372
    %v10374 = vpop.xlane.xlu0 %10373
    %v10375 = vsel %vm95, %v10362, 0.0
    %10376 = vadd.xlane.f32.xlu0 %v10375
    %v10377 = vpop.xlane.xlu0 %10376
    %vm10378 = vcmask 7168
    %v10379 = vsel %vm10378, %v10197, %v10221
    %v10380 = vsel %vm10378, %v10200, %v10224
    %v10381 = vsel %vm10378, %v10203, %v10227
    %v10382 = vsel %vm10378, %v10206, %v10230
    %v10383 = vsel %vm10378, %v10209, %v10233
    %vm10384 = vcmask 15360
    %v10385 = vsel %vm10384, %v10379, %v10245
    %v10386 = vsel %vm10384, %v10380, %v10248
    %v10387 = vsel %vm10384, %v10381, %v10251
    %v10388 = vsel %vm10384, %v10382, %v10254
    %v10389 = vsel %vm10384, %v10383, %v10257
    %vm10390 = vcmask 23552
    %v10391 = vsel %vm10390, %v10385, %v10269
    %v10392 = vsel %vm10390, %v10386, %v10272
    %v10393 = vsel %vm10390, %v10387, %v10275
    %v10394 = vsel %vm10390, %v10388, %v10278
    %v10395 = vsel %vm10390, %v10389, %v10281
    %vm10396 = vcmask 31744
    %v10397 = vsel %vm10396, %v10391, %v10293
    %v10398 = vsel %vm10396, %v10392, %v10296
    %v10399 = vsel %vm10396, %v10393, %v10299
    %v10400 = vsel %vm10396, %v10394, %v10302
    %v10401 = vsel %vm10396, %v10395, %v10305
    %vm10402 = vcmask 39936
    %v10403 = vsel %vm10402, %v10397, %v10317
    %v10404 = vsel %vm10402, %v10398, %v10320
    %v10405 = vsel %vm10402, %v10399, %v10323
    %v10406 = vsel %vm10402, %v10400, %v10326
    %v10407 = vsel %vm10402, %v10401, %v10329
    %vm10408 = vcmask 48128
    %v10409 = vsel %vm10408, %v10403, %v10341
    %v10410 = vsel %vm10408, %v10404, %v10344
    %v10411 = vsel %vm10408, %v10405, %v10347
    %v10412 = vsel %vm10408, %v10406, %v10350
    %v10413 = vsel %vm10408, %v10407, %v10353
    %vm10414 = vcmask 56320
    %v10415 = vsel %vm10414, %v10409, %v10365
    %v10416 = vsel %vm10414, %v10410, %v10368
    %v10417 = vsel %vm10414, %v10411, %v10371
    %v10418 = vsel %vm10414, %v10412, %v10374
    %v10419 = vsel %vm10414, %v10413, %v10377
    %vm10420 = vcmp.gt.f32.partialorder %v94, 0.5
    %v10421 = vsel %vm10420, 1, 0
    %vm10422 = vcmp.eq.s32.totalorder %v10421, 1
    %v10423 = vsel %vm10422, %v10415, -1e+09
    %v10424 = vsel %vm10422, %v10416, -1e+09
    %v10425 = vsel %vm10422, %v10417, -1e+09
    %v10426 = vsel %vm10422, %v10418, -1e+09
    %v10427 = vsel %vm10422, %v10419, -1e+09
    %v10428 = vsel %vm78, %v10423, -inf
    %10429 = vmax.xlane.f32.xlu0 %v10428
    %v10430 = vpop.xlane.xlu0 %10429
    %v10431 = vsel %vm78, %v10424, -inf
    %10432 = vmax.xlane.f32.xlu0 %v10431
    %v10433 = vpop.xlane.xlu0 %10432
    %v10434 = vsel %vm78, %v10425, -inf
    %10435 = vmax.xlane.f32.xlu0 %v10434
    %v10436 = vpop.xlane.xlu0 %10435
    %v10437 = vsel %vm78, %v10426, -inf
    %10438 = vmax.xlane.f32.xlu0 %v10437
    %v10439 = vpop.xlane.xlu0 %10438
    %v10440 = vsel %vm78, %v10427, -inf
    %10441 = vmax.xlane.f32.xlu0 %v10440
    %v10442 = vpop.xlane.xlu0 %10441
    %v10443 = vsub.f32 %v10423, %v10430
    %v10444 = vsub.f32 %v10424, %v10433
    %v10445 = vsub.f32 %v10425, %v10436
    %v10446 = vsub.f32 %v10426, %v10439
    %v10447 = vsub.f32 %v10427, %v10442
    %v10448 = vmul.f32 %v10443, 1.442695
    %v10449 = vpow.pop %v10448
    %v10450 = vmul.f32 %v10444, 1.442695
    %v10451 = vpow.pop %v10450
    %v10452 = vmul.f32 %v10445, 1.442695
    %v10453 = vpow.pop %v10452
    %v10454 = vmul.f32 %v10446, 1.442695
    %v10455 = vpow.pop %v10454
    %v10456 = vmul.f32 %v10447, 1.442695
    %v10457 = vpow.pop %v10456
    %v10458 = vsel %vm78, %v10449, 0.0
    %10459 = vadd.xlane.f32.xlu0 %v10458
    %v10460 = vpop.xlane.xlu0 %10459
    %v10461 = vsel %vm78, %v10451, 0.0
    %10462 = vadd.xlane.f32.xlu0 %v10461
    %v10463 = vpop.xlane.xlu0 %10462
    %v10464 = vsel %vm78, %v10453, 0.0
    %10465 = vadd.xlane.f32.xlu0 %v10464
    %v10466 = vpop.xlane.xlu0 %10465
    %v10467 = vsel %vm78, %v10455, 0.0
    %10468 = vadd.xlane.f32.xlu0 %v10467
    %v10469 = vpop.xlane.xlu0 %10468
    %v10470 = vsel %vm78, %v10457, 0.0
    %10471 = vadd.xlane.f32.xlu0 %v10470
    %v10472 = vpop.xlane.xlu0 %10471
    %v10473 = vrcp.pop %v10460
    %v10474 = vrcp.pop %v10463
    %v10475 = vrcp.pop %v10466
    %v10476 = vrcp.pop %v10469
    %v10477 = vrcp.pop %v10472
    %v10478 = vmul.f32 %v10449, %v10473
    %v10479 = vmul.f32 %v10451, %v10474
    %v10480 = vmul.f32 %v10453, %v10475
    %v10481 = vmul.f32 %v10455, %v10476
    %v10482 = vmul.f32 %v10457, %v10477
    %10484 = vset.pattern.permute.xlu0 0
    %10485 = vperm.xlu0 %10484, %v10478
    %v10486 = vpop.permute.xlu0 %10485
    %10489 = vset.pattern.permute.xlu0 0
    %10490 = vperm.xlu0 %10489, %v10479
    %v10491 = vpop.permute.xlu0 %10490
    %10494 = vset.pattern.permute.xlu0 0
    %10495 = vperm.xlu0 %10494, %v10480
    %v10496 = vpop.permute.xlu0 %10495
    %10499 = vset.pattern.permute.xlu0 0
    %10500 = vperm.xlu0 %10499, %v10481
    %v10501 = vpop.permute.xlu0 %10500
    %10504 = vset.pattern.permute.xlu0 0
    %10505 = vperm.xlu0 %10504, %v10482
    %v10506 = vpop.permute.xlu0 %10505
    %v10508 = vmul.f32 %v10486, %v3246
    %v10509 = vmul.f32 %v10491, %v3246
    %v10510 = vmul.f32 %v10496, %v3246
    %v10511 = vmul.f32 %v10501, %v3246
    %v10512 = vmul.f32 %v10506, %v3246
    %v10513 = vadd.f32 %v10508, 0.0
    %v10514 = vadd.f32 %v10509, 0.0
    %v10515 = vadd.f32 %v10510, 0.0
    %v10516 = vadd.f32 %v10511, 0.0
    %v10517 = vadd.f32 %v10512, 0.0
    %10518 = vset.pattern.permute.xlu0 1
    %10519 = vperm.xlu0 %10518, %v10478
    %v10520 = vpop.permute.xlu0 %10519
    %10522 = vset.pattern.permute.xlu0 1
    %10523 = vperm.xlu0 %10522, %v10479
    %v10524 = vpop.permute.xlu0 %10523
    %10526 = vset.pattern.permute.xlu0 1
    %10527 = vperm.xlu0 %10526, %v10480
    %v10528 = vpop.permute.xlu0 %10527
    %10530 = vset.pattern.permute.xlu0 1
    %10531 = vperm.xlu0 %10530, %v10481
    %v10532 = vpop.permute.xlu0 %10531
    %10534 = vset.pattern.permute.xlu0 1
    %10535 = vperm.xlu0 %10534, %v10482
    %v10536 = vpop.permute.xlu0 %10535
    %v10538 = vmul.f32 %v10520, %v3775
    %v10539 = vmul.f32 %v10524, %v3775
    %v10540 = vmul.f32 %v10528, %v3775
    %v10541 = vmul.f32 %v10532, %v3775
    %v10542 = vmul.f32 %v10536, %v3775
    %v10543 = vadd.f32 %v10513, %v10538
    %v10544 = vadd.f32 %v10514, %v10539
    %v10545 = vadd.f32 %v10515, %v10540
    %v10546 = vadd.f32 %v10516, %v10541
    %v10547 = vadd.f32 %v10517, %v10542
    %10548 = vset.pattern.permute.xlu0 2
    %10549 = vperm.xlu0 %10548, %v10478
    %v10550 = vpop.permute.xlu0 %10549
    %10552 = vset.pattern.permute.xlu0 2
    %10553 = vperm.xlu0 %10552, %v10479
    %v10554 = vpop.permute.xlu0 %10553
    %10556 = vset.pattern.permute.xlu0 2
    %10557 = vperm.xlu0 %10556, %v10480
    %v10558 = vpop.permute.xlu0 %10557
    %10560 = vset.pattern.permute.xlu0 2
    %10561 = vperm.xlu0 %10560, %v10481
    %v10562 = vpop.permute.xlu0 %10561
    %10564 = vset.pattern.permute.xlu0 2
    %10565 = vperm.xlu0 %10564, %v10482
    %v10566 = vpop.permute.xlu0 %10565
    %v10568 = vmul.f32 %v10550, %v4302
    %v10569 = vmul.f32 %v10554, %v4302
    %v10570 = vmul.f32 %v10558, %v4302
    %v10571 = vmul.f32 %v10562, %v4302
    %v10572 = vmul.f32 %v10566, %v4302
    %v10573 = vadd.f32 %v10543, %v10568
    %v10574 = vadd.f32 %v10544, %v10569
    %v10575 = vadd.f32 %v10545, %v10570
    %v10576 = vadd.f32 %v10546, %v10571
    %v10577 = vadd.f32 %v10547, %v10572
    %10578 = vset.pattern.permute.xlu0 3
    %10579 = vperm.xlu0 %10578, %v10478
    %v10580 = vpop.permute.xlu0 %10579
    %10582 = vset.pattern.permute.xlu0 3
    %10583 = vperm.xlu0 %10582, %v10479
    %v10584 = vpop.permute.xlu0 %10583
    %10586 = vset.pattern.permute.xlu0 3
    %10587 = vperm.xlu0 %10586, %v10480
    %v10588 = vpop.permute.xlu0 %10587
    %10590 = vset.pattern.permute.xlu0 3
    %10591 = vperm.xlu0 %10590, %v10481
    %v10592 = vpop.permute.xlu0 %10591
    %10594 = vset.pattern.permute.xlu0 3
    %10595 = vperm.xlu0 %10594, %v10482
    %v10596 = vpop.permute.xlu0 %10595
    %v10598 = vmul.f32 %v10580, %v4829
    %v10599 = vmul.f32 %v10584, %v4829
    %v10600 = vmul.f32 %v10588, %v4829
    %v10601 = vmul.f32 %v10592, %v4829
    %v10602 = vmul.f32 %v10596, %v4829
    %v10603 = vadd.f32 %v10573, %v10598
    %v10604 = vadd.f32 %v10574, %v10599
    %v10605 = vadd.f32 %v10575, %v10600
    %v10606 = vadd.f32 %v10576, %v10601
    %v10607 = vadd.f32 %v10577, %v10602
    %10608 = vset.pattern.permute.xlu0 4
    %10609 = vperm.xlu0 %10608, %v10478
    %v10610 = vpop.permute.xlu0 %10609
    %10612 = vset.pattern.permute.xlu0 4
    %10613 = vperm.xlu0 %10612, %v10479
    %v10614 = vpop.permute.xlu0 %10613
    %10616 = vset.pattern.permute.xlu0 4
    %10617 = vperm.xlu0 %10616, %v10480
    %v10618 = vpop.permute.xlu0 %10617
    %10620 = vset.pattern.permute.xlu0 4
    %10621 = vperm.xlu0 %10620, %v10481
    %v10622 = vpop.permute.xlu0 %10621
    %10624 = vset.pattern.permute.xlu0 4
    %10625 = vperm.xlu0 %10624, %v10482
    %v10626 = vpop.permute.xlu0 %10625
    %v10628 = vmul.f32 %v10610, %v5356
    %v10629 = vmul.f32 %v10614, %v5356
    %v10630 = vmul.f32 %v10618, %v5356
    %v10631 = vmul.f32 %v10622, %v5356
    %v10632 = vmul.f32 %v10626, %v5356
    %v10633 = vadd.f32 %v10603, %v10628
    %v10634 = vadd.f32 %v10604, %v10629
    %v10635 = vadd.f32 %v10605, %v10630
    %v10636 = vadd.f32 %v10606, %v10631
    %v10637 = vadd.f32 %v10607, %v10632
    %10638 = vset.pattern.permute.xlu0 5
    %10639 = vperm.xlu0 %10638, %v10478
    %v10640 = vpop.permute.xlu0 %10639
    %10642 = vset.pattern.permute.xlu0 5
    %10643 = vperm.xlu0 %10642, %v10479
    %v10644 = vpop.permute.xlu0 %10643
    %10646 = vset.pattern.permute.xlu0 5
    %10647 = vperm.xlu0 %10646, %v10480
    %v10648 = vpop.permute.xlu0 %10647
    %10650 = vset.pattern.permute.xlu0 5
    %10651 = vperm.xlu0 %10650, %v10481
    %v10652 = vpop.permute.xlu0 %10651
    %10654 = vset.pattern.permute.xlu0 5
    %10655 = vperm.xlu0 %10654, %v10482
    %v10656 = vpop.permute.xlu0 %10655
    %v10658 = vmul.f32 %v10640, %v5883
    %v10659 = vmul.f32 %v10644, %v5883
    %v10660 = vmul.f32 %v10648, %v5883
    %v10661 = vmul.f32 %v10652, %v5883
    %v10662 = vmul.f32 %v10656, %v5883
    %v10663 = vadd.f32 %v10633, %v10658
    %v10664 = vadd.f32 %v10634, %v10659
    %v10665 = vadd.f32 %v10635, %v10660
    %v10666 = vadd.f32 %v10636, %v10661
    %v10667 = vadd.f32 %v10637, %v10662
    %10668 = vset.pattern.permute.xlu0 6
    %10669 = vperm.xlu0 %10668, %v10478
    %v10670 = vpop.permute.xlu0 %10669
    %10672 = vset.pattern.permute.xlu0 6
    %10673 = vperm.xlu0 %10672, %v10479
    %v10674 = vpop.permute.xlu0 %10673
    %10676 = vset.pattern.permute.xlu0 6
    %10677 = vperm.xlu0 %10676, %v10480
    %v10678 = vpop.permute.xlu0 %10677
    %10680 = vset.pattern.permute.xlu0 6
    %10681 = vperm.xlu0 %10680, %v10481
    %v10682 = vpop.permute.xlu0 %10681
    %10684 = vset.pattern.permute.xlu0 6
    %10685 = vperm.xlu0 %10684, %v10482
    %v10686 = vpop.permute.xlu0 %10685
    %v10688 = vmul.f32 %v10670, %v6410
    %v10689 = vmul.f32 %v10674, %v6410
    %v10690 = vmul.f32 %v10678, %v6410
    %v10691 = vmul.f32 %v10682, %v6410
    %v10692 = vmul.f32 %v10686, %v6410
    %v10693 = vadd.f32 %v10663, %v10688
    %v10694 = vadd.f32 %v10664, %v10689
    %v10695 = vadd.f32 %v10665, %v10690
    %v10696 = vadd.f32 %v10666, %v10691
    %v10697 = vadd.f32 %v10667, %v10692
    %10698 = vset.pattern.permute.xlu0 7
    %10699 = vperm.xlu0 %10698, %v10478
    %v10700 = vpop.permute.xlu0 %10699
    %10702 = vset.pattern.permute.xlu0 7
    %10703 = vperm.xlu0 %10702, %v10479
    %v10704 = vpop.permute.xlu0 %10703
    %10706 = vset.pattern.permute.xlu0 7
    %10707 = vperm.xlu0 %10706, %v10480
    %v10708 = vpop.permute.xlu0 %10707
    %10710 = vset.pattern.permute.xlu0 7
    %10711 = vperm.xlu0 %10710, %v10481
    %v10712 = vpop.permute.xlu0 %10711
    %10714 = vset.pattern.permute.xlu0 7
    %10715 = vperm.xlu0 %10714, %v10482
    %v10716 = vpop.permute.xlu0 %10715
    %v10718 = vmul.f32 %v10700, %v6937
    %v10719 = vmul.f32 %v10704, %v6937
    %v10720 = vmul.f32 %v10708, %v6937
    %v10721 = vmul.f32 %v10712, %v6937
    %v10722 = vmul.f32 %v10716, %v6937
    %v10723 = vadd.f32 %v10693, %v10718
    %v10724 = vadd.f32 %v10694, %v10719
    %v10725 = vadd.f32 %v10695, %v10720
    %v10726 = vadd.f32 %v10696, %v10721
    %v10727 = vadd.f32 %v10697, %v10722
    %10733 = vrot.lane.b32.xlu0 %v10723, 96
    %v10734 = vpop.permute.xlu0 %10733
    %10735 = vrot.lane.b32.xlu0 %v10724, 96
    %v10736 = vpop.permute.xlu0 %10735
    %10737 = vrot.lane.b32.xlu0 %v10725, 96
    %v10738 = vpop.permute.xlu0 %10737
    %10739 = vrot.lane.b32.xlu0 %v10726, 96
    %v10740 = vpop.permute.xlu0 %10739
    %10741 = vrot.lane.b32.xlu0 %v10727, 96
    %v10742 = vpop.permute.xlu0 %10741
    %v10748 = vsel %vm95, %v10734, %v7459
    %v10749 = vsel %vm95, %v10736, %v7975
    %v10750 = vsel %vm95, %v10738, %v8491
    %v10751 = vsel %vm95, %v10740, %v9007
    %v10752 = vsel %vm95, %v10742, %v9523
    %vm10753 = vcmask 523264
    %v10755 = vsel %vm10753, %v10748, 0
    %v10758 = vsel %vm10753, %v10749, 0
    %v10761 = vsel %vm10753, %v10750, 0
    %v10764 = vsel %vm10753, %v10751, 0
    %v10767 = vsel %vm10753, %v10752, 0
    %10769 = vmatprep.subr.mxu0 0.0
    %v10770 = vand.u32 %v46, 4294901760
    %10771 = vmatpush1.msra.mxu0 %v10770
    %10772 = vmatprep.subr.mxu0 0.0
    %v10773 = vand.u32 %v47, 4294901760
    %10774 = vmatpush1.msra.mxu0 %v10773
    %10775 = vmatprep.subr.mxu0 0.0
    %v10776 = vand.u32 %v48, 4294901760
    %10777 = vmatpush1.msra.mxu0 %v10776
    %10778 = vmatprep.subr.mxu0 0.0
    %v10779 = vand.u32 %v49, 4294901760
    %10780 = vmatpush1.msra.mxu0 %v10779
    %10781 = vmatprep.subr.mxu0 0.0
    %v10782 = vand.u32 %v50, 4294901760
    %10783 = vmatpush1.msra.mxu0 %v10782
    %10784 = vmatprep.subr.mxu0 0.0
    %v10785 = vand.u32 %v51, 4294901760
    %10786 = vmatpush1.msra.mxu0 %v10785
    %10787 = vmatprep.subr.mxu0 0.0
    %v10788 = vand.u32 %v52, 4294901760
    %10789 = vmatpush1.msra.mxu0 %v10788
    %10790 = vmatprep.subr.mxu0 0.0
    %v10791 = vand.u32 %v53, 4294901760
    %10792 = vmatpush1.msra.mxu0 %v10791
    %10793 = vmatprep.subr.mxu0 0.0
    %10794 = vmatpush1.msra.mxu0 0.0
    %10795 = vmatprep.subr.mxu0 0.0
    %10796 = vmatpush1.msra.mxu0 0.0
    %10797 = vmatprep.subr.mxu0 0.0
    %10798 = vmatpush1.msra.mxu0 0.0
    %10799 = vmatprep.subr.mxu0 0.0
    %10800 = vmatpush1.msra.mxu0 0.0
    %10801 = vmatprep.subr.mxu0 0.0
    %10802 = vmatpush1.msra.mxu0 0.0
    %10803 = vmatprep.subr.mxu0 0.0
    %10804 = vmatpush1.msra.mxu0 0.0
    %10805 = vmatprep.subr.mxu0 0.0
    %10806 = vmatpush1.msra.mxu0 0.0
    %10807 = vmatprep.subr.mxu0 0.0
    %10808 = vmatpush1.msra.mxu0 0.0
    %10809 = vmatprep.subr.mxu0 0.0
    %10810 = vmatpush1.msra.mxu0 0.0
    %10811 = vmatprep.subr.mxu0 0.0
    %10812 = vmatpush1.msra.mxu0 0.0
    %10813 = vmatprep.subr.mxu0 0.0
    %10814 = vmatpush1.msra.mxu0 0.0
    %10815 = vmatprep.subr.mxu0 0.0
    %10816 = vmatpush1.msra.mxu0 0.0
    %10817 = vmatprep.subr.mxu0 0.0
    %10818 = vmatpush1.msra.mxu0 0.0
    %10819 = vmatprep.subr.mxu0 0.0
    %10820 = vmatpush1.msra.mxu0 0.0
    %10821 = vmatprep.subr.mxu0 0.0
    %10822 = vmatpush1.msra.mxu0 0.0
    %10823 = vmatprep.subr.mxu0 0.0
    %10824 = vmatpush1.msra.mxu0 0.0
    %10825 = vmatprep.subr.mxu0 0.0
    %10826 = vmatpush1.msra.mxu0 0.0
    %10827 = vmatprep.subr.mxu0 0.0
    %10828 = vmatpush1.msra.mxu0 0.0
    %10829 = vmatprep.subr.mxu0 0.0
    %10830 = vmatpush1.msra.mxu0 0.0
    %10831 = vmatprep.subr.mxu0 0.0
    %10832 = vmatpush1.msra.mxu0 0.0
    %10833 = vmatprep.subr.mxu0 0.0
    %10834 = vmatpush1.msra.mxu0 0.0
    %10835 = vmatprep.subr.mxu0 0.0
    %10836 = vmatpush1.msra.mxu0 0.0
    %10837 = vmatprep.subr.mxu0 0.0
    %10838 = vmatpush1.msra.mxu0 0.0
    %10839 = vmatprep.subr.mxu0 0.0
    %10840 = vmatpush1.msra.mxu0 0.0
    %10841 = vmatprep.mubr.f32.mxu0 0.0
    %v10842 = vand.u32 %v10755, 4294901760
    %v10843 = vsub.f32 %v10755, %v10842
    %v10844 = vand.u32 %v10843, 4294901760
    %v10845 = vsub.f32 %v10843, %v10844
    %v10846 = vand.u32 %v10845, 4294901760
    %10847 = vmatmul.mubr.f32.gmra.mrb[0].mxu0 %v10846
    %v10848 = vpop.f32.mrb[0].mxu0
    %v10849 = vadd.f32 0.0, %v10848
    %v10850 = vpop.f32.mrb[0].mxu0
    %10851 = vmatprep.mubr.f32.mxu0 0.0
    %v10852 = vand.u32 %v10758, 4294901760
    %v10853 = vsub.f32 %v10758, %v10852
    %v10854 = vand.u32 %v10853, 4294901760
    %v10855 = vsub.f32 %v10853, %v10854
    %v10856 = vand.u32 %v10855, 4294901760
    %10857 = vmatmul.mubr.f32.gmra.mrb[0].mxu0 %v10856
    %v10858 = vpop.f32.mrb[0].mxu0
    %v10859 = vadd.f32 0.0, %v10858
    %v10860 = vpop.f32.mrb[0].mxu0
    %10861 = vmatprep.mubr.f32.mxu0 0.0
    %v10862 = vand.u32 %v10761, 4294901760
    %v10863 = vsub.f32 %v10761, %v10862
    %v10864 = vand.u32 %v10863, 4294901760
    %v10865 = vsub.f32 %v10863, %v10864
    %v10866 = vand.u32 %v10865, 4294901760
    %10867 = vmatmul.mubr.f32.gmra.mrb[0].mxu0 %v10866
    %v10868 = vpop.f32.mrb[0].mxu0
    %v10869 = vadd.f32 0.0, %v10868
    %v10870 = vpop.f32.mrb[0].mxu0
    %10871 = vmatprep.mubr.f32.mxu0 0.0
    %v10872 = vand.u32 %v10764, 4294901760
    %v10873 = vsub.f32 %v10764, %v10872
    %v10874 = vand.u32 %v10873, 4294901760
    %v10875 = vsub.f32 %v10873, %v10874
    %v10876 = vand.u32 %v10875, 4294901760
    %10877 = vmatmul.mubr.f32.gmra.mrb[0].mxu0 %v10876
    %v10878 = vpop.f32.mrb[0].mxu0
    %v10879 = vadd.f32 0.0, %v10878
    %v10880 = vpop.f32.mrb[0].mxu0
    %10881 = vmatprep.mubr.f32.mxu0 0.0
    %v10882 = vand.u32 %v10767, 4294901760
    %v10883 = vsub.f32 %v10767, %v10882
    %v10884 = vand.u32 %v10883, 4294901760
    %v10885 = vsub.f32 %v10883, %v10884
    %v10886 = vand.u32 %v10885, 4294901760
    %10887 = vmatmul.mubr.f32.gmra.mrb[0].mxu0 %v10886
    %v10888 = vpop.f32.mrb[0].mxu0
    %v10889 = vadd.f32 0.0, %v10888
    %v10890 = vpop.f32.mrb[0].mxu0
    %10891 = vdwg.mxu0
    %10892 = vmatprep.subr.mxu0 0.0
    %v10893 = vand.u32 %v46, 4294901760
    %v10894 = vsub.f32 %v46, %v10893
    %v10895 = vand.u32 %v10894, 4294901760
    %v10896 = vsub.f32 %v10894, %v10895
    %v10897 = vand.u32 %v10896, 4294901760
    %10898 = vmatpush1.msra.mxu0 %v10897
    %10899 = vmatprep.subr.mxu0 0.0
    %v10900 = vand.u32 %v47, 4294901760
    %v10901 = vsub.f32 %v47, %v10900
    %v10902 = vand.u32 %v10901, 4294901760
    %v10903 = vsub.f32 %v10901, %v10902
    %v10904 = vand.u32 %v10903, 4294901760
    %10905 = vmatpush1.msra.mxu0 %v10904
    %10906 = vmatprep.subr.mxu0 0.0
    %v10907 = vand.u32 %v48, 4294901760
    %v10908 = vsub.f32 %v48, %v10907
    %v10909 = vand.u32 %v10908, 4294901760
    %v10910 = vsub.f32 %v10908, %v10909
    %v10911 = vand.u32 %v10910, 4294901760
    %10912 = vmatpush1.msra.mxu0 %v10911
    %10913 = vmatprep.subr.mxu0 0.0
    %v10914 = vand.u32 %v49, 4294901760
    %v10915 = vsub.f32 %v49, %v10914
    %v10916 = vand.u32 %v10915, 4294901760
    %v10917 = vsub.f32 %v10915, %v10916
    %v10918 = vand.u32 %v10917, 4294901760
    %10919 = vmatpush1.msra.mxu0 %v10918
    %10920 = vmatprep.subr.mxu0 0.0
    %v10921 = vand.u32 %v50, 4294901760
    %v10922 = vsub.f32 %v50, %v10921
    %v10923 = vand.u32 %v10922, 4294901760
    %v10924 = vsub.f32 %v10922, %v10923
    %v10925 = vand.u32 %v10924, 4294901760
    %10926 = vmatpush1.msra.mxu0 %v10925
    %10927 = vmatprep.subr.mxu0 0.0
    %v10928 = vand.u32 %v51, 4294901760
    %v10929 = vsub.f32 %v51, %v10928
    %v10930 = vand.u32 %v10929, 4294901760
    %v10931 = vsub.f32 %v10929, %v10930
    %v10932 = vand.u32 %v10931, 4294901760
    %10933 = vmatpush1.msra.mxu0 %v10932
    %10934 = vmatprep.subr.mxu0 0.0
    %v10935 = vand.u32 %v52, 4294901760
    %v10936 = vsub.f32 %v52, %v10935
    %v10937 = vand.u32 %v10936, 4294901760
    %v10938 = vsub.f32 %v10936, %v10937
    %v10939 = vand.u32 %v10938, 4294901760
    %10940 = vmatpush1.msra.mxu0 %v10939
    %10941 = vmatprep.subr.mxu0 0.0
    %v10942 = vand.u32 %v53, 4294901760
    %v10943 = vsub.f32 %v53, %v10942
    %v10944 = vand.u32 %v10943, 4294901760
    %v10945 = vsub.f32 %v10943, %v10944
    %v10946 = vand.u32 %v10945, 4294901760
    %10947 = vmatpush1.msra.mxu0 %v10946
    %10948 = vmatprep.subr.mxu0 0.0
    %10949 = vmatpush1.msra.mxu0 0.0
    %10950 = vmatprep.subr.mxu0 0.0
    %10951 = vmatpush1.msra.mxu0 0.0
    %10952 = vmatprep.subr.mxu0 0.0
    %10953 = vmatpush1.msra.mxu0 0.0
    %10954 = vmatprep.subr.mxu0 0.0
    %10955 = vmatpush1.msra.mxu0 0.0
    %10956 = vmatprep.subr.mxu0 0.0
    %10957 = vmatpush1.msra.mxu0 0.0
    %10958 = vmatprep.subr.mxu0 0.0
    %10959 = vmatpush1.msra.mxu0 0.0
    %10960 = vmatprep.subr.mxu0 0.0
    %10961 = vmatpush1.msra.mxu0 0.0
    %10962 = vmatprep.subr.mxu0 0.0
    %10963 = vmatpush1.msra.mxu0 0.0
    %10964 = vmatprep.subr.mxu0 0.0
    %10965 = vmatpush1.msra.mxu0 0.0
    %10966 = vmatprep.subr.mxu0 0.0
    %10967 = vmatpush1.msra.mxu0 0.0
    %10968 = vmatprep.subr.mxu0 0.0
    %10969 = vmatpush1.msra.mxu0 0.0
    %10970 = vmatprep.subr.mxu0 0.0
    %10971 = vmatpush1.msra.mxu0 0.0
    %10972 = vmatprep.subr.mxu0 0.0
    %10973 = vmatpush1.msra.mxu0 0.0
    %10974 = vmatprep.subr.mxu0 0.0
    %10975 = vmatpush1.msra.mxu0 0.0
    %10976 = vmatprep.subr.mxu0 0.0
    %10977 = vmatpush1.msra.mxu0 0.0
    %10978 = vmatprep.subr.mxu0 0.0
    %10979 = vmatpush1.msra.mxu0 0.0
    %10980 = vmatprep.subr.mxu0 0.0
    %10981 = vmatpush1.msra.mxu0 0.0
    %10982 = vmatprep.subr.mxu0 0.0
    %10983 = vmatpush1.msra.mxu0 0.0
    %10984 = vmatprep.subr.mxu0 0.0
    %10985 = vmatpush1.msra.mxu0 0.0
    %10986 = vmatprep.subr.mxu0 0.0
    %10987 = vmatpush1.msra.mxu0 0.0
    %10988 = vmatprep.subr.mxu0 0.0
    %10989 = vmatpush1.msra.mxu0 0.0
    %10990 = vmatprep.subr.mxu0 0.0
    %10991 = vmatpush1.msra.mxu0 0.0
    %10992 = vmatprep.subr.mxu0 0.0
    %10993 = vmatpush1.msra.mxu0 0.0
    %10994 = vmatprep.subr.mxu0 0.0
    %10995 = vmatpush1.msra.mxu0 0.0
    %10996 = vmatprep.mubr.f32.mxu0 0.0
    %v10997 = vand.u32 %v10755, 4294901760
    %10998 = vmatmul.mubr.f32.gmra.mrb[0].mxu0 %v10997
    %v10999 = vpop.f32.mrb[0].mxu0
    %v11000 = vadd.f32 %v10849, %v10999
    %v11001 = vpop.f32.mrb[0].mxu0
    %11002 = vmatprep.mubr.f32.mxu0 0.0
    %v11003 = vand.u32 %v10758, 4294901760
    %11004 = vmatmul.mubr.f32.gmra.mrb[0].mxu0 %v11003
    %v11005 = vpop.f32.mrb[0].mxu0
    %v11006 = vadd.f32 %v10859, %v11005
    %v11007 = vpop.f32.mrb[0].mxu0
    %11008 = vmatprep.mubr.f32.mxu0 0.0
    %v11009 = vand.u32 %v10761, 4294901760
    %11010 = vmatmul.mubr.f32.gmra.mrb[0].mxu0 %v11009
    %v11011 = vpop.f32.mrb[0].mxu0
    %v11012 = vadd.f32 %v10869, %v11011
    %v11013 = vpop.f32.mrb[0].mxu0
    %11014 = vmatprep.mubr.f32.mxu0 0.0
    %v11015 = vand.u32 %v10764, 4294901760
    %11016 = vmatmul.mubr.f32.gmra.mrb[0].mxu0 %v11015
    %v11017 = vpop.f32.mrb[0].mxu0
    %v11018 = vadd.f32 %v10879, %v11017
    %v11019 = vpop.f32.mrb[0].mxu0
    %11020 = vmatprep.mubr.f32.mxu0 0.0
    %v11021 = vand.u32 %v10767, 4294901760
    %11022 = vmatmul.mubr.f32.gmra.mrb[0].mxu0 %v11021
    %v11023 = vpop.f32.mrb[0].mxu0
    %v11024 = vadd.f32 %v10889, %v11023
    %v11025 = vpop.f32.mrb[0].mxu0
    %11026 = vdwg.mxu0
    %11027 = vmatprep.subr.mxu0 0.0
    %v11028 = vand.u32 %v46, 4294901760
    %v11029 = vsub.f32 %v46, %v11028
    %11030 = vmatpush1.msra.mxu0 %v11029
    %11031 = vmatprep.subr.mxu0 0.0
    %v11032 = vand.u32 %v47, 4294901760
    %v11033 = vsub.f32 %v47, %v11032
    %11034 = vmatpush1.msra.mxu0 %v11033
    %11035 = vmatprep.subr.mxu0 0.0
    %v11036 = vand.u32 %v48, 4294901760
    %v11037 = vsub.f32 %v48, %v11036
    %11038 = vmatpush1.msra.mxu0 %v11037
    %11039 = vmatprep.subr.mxu0 0.0
    %v11040 = vand.u32 %v49, 4294901760
    %v11041 = vsub.f32 %v49, %v11040
    %11042 = vmatpush1.msra.mxu0 %v11041
    %11043 = vmatprep.subr.mxu0 0.0
    %v11044 = vand.u32 %v50, 4294901760
    %v11045 = vsub.f32 %v50, %v11044
    %11046 = vmatpush1.msra.mxu0 %v11045
    %11047 = vmatprep.subr.mxu0 0.0
    %v11048 = vand.u32 %v51, 4294901760
    %v11049 = vsub.f32 %v51, %v11048
    %11050 = vmatpush1.msra.mxu0 %v11049
    %11051 = vmatprep.subr.mxu0 0.0
    %v11052 = vand.u32 %v52, 4294901760
    %v11053 = vsub.f32 %v52, %v11052
    %11054 = vmatpush1.msra.mxu0 %v11053
    %11055 = vmatprep.subr.mxu0 0.0
    %v11056 = vand.u32 %v53, 4294901760
    %v11057 = vsub.f32 %v53, %v11056
    %11058 = vmatpush1.msra.mxu0 %v11057
    %11059 = vmatprep.subr.mxu0 0.0
    %11060 = vmatpush1.msra.mxu0 0.0
    %11061 = vmatprep.subr.mxu0 0.0
    %11062 = vmatpush1.msra.mxu0 0.0
    %11063 = vmatprep.subr.mxu0 0.0
    %11064 = vmatpush1.msra.mxu0 0.0
    %11065 = vmatprep.subr.mxu0 0.0
    %11066 = vmatpush1.msra.mxu0 0.0
    %11067 = vmatprep.subr.mxu0 0.0
    %11068 = vmatpush1.msra.mxu0 0.0
    %11069 = vmatprep.subr.mxu0 0.0
    %11070 = vmatpush1.msra.mxu0 0.0
    %11071 = vmatprep.subr.mxu0 0.0
    %11072 = vmatpush1.msra.mxu0 0.0
    %11073 = vmatprep.subr.mxu0 0.0
    %11074 = vmatpush1.msra.mxu0 0.0
    %11075 = vmatprep.subr.mxu0 0.0
    %11076 = vmatpush1.msra.mxu0 0.0
    %11077 = vmatprep.subr.mxu0 0.0
    %11078 = vmatpush1.msra.mxu0 0.0
    %11079 = vmatprep.subr.mxu0 0.0
    %11080 = vmatpush1.msra.mxu0 0.0
    %11081 = vmatprep.subr.mxu0 0.0
    %11082 = vmatpush1.msra.mxu0 0.0
    %11083 = vmatprep.subr.mxu0 0.0
    %11084 = vmatpush1.msra.mxu0 0.0
    %11085 = vmatprep.subr.mxu0 0.0
    %11086 = vmatpush1.msra.mxu0 0.0
    %11087 = vmatprep.subr.mxu0 0.0
    %11088 = vmatpush1.msra.mxu0 0.0
    %11089 = vmatprep.subr.mxu0 0.0
    %11090 = vmatpush1.msra.mxu0 0.0
    %11091 = vmatprep.subr.mxu0 0.0
    %11092 = vmatpush1.msra.mxu0 0.0
    %11093 = vmatprep.subr.mxu0 0.0
    %11094 = vmatpush1.msra.mxu0 0.0
    %11095 = vmatprep.subr.mxu0 0.0
    %11096 = vmatpush1.msra.mxu0 0.0
    %11097 = vmatprep.subr.mxu0 0.0
    %11098 = vmatpush1.msra.mxu0 0.0
    %11099 = vmatprep.subr.mxu0 0.0
    %11100 = vmatpush1.msra.mxu0 0.0
    %11101 = vmatprep.subr.mxu0 0.0
    %11102 = vmatpush1.msra.mxu0 0.0
    %11103 = vmatprep.subr.mxu0 0.0
    %11104 = vmatpush1.msra.mxu0 0.0
    %11105 = vmatprep.subr.mxu0 0.0
    %11106 = vmatpush1.msra.mxu0 0.0
    %11107 = vmatprep.mubr.f32.mxu0 0.0
    %v11108 = vand.u32 %v10755, 4294901760
    %v11109 = vsub.f32 %v10755, %v11108
    %11110 = vmatmul.mubr.f32.gmra.mrb[0].mxu0 %v11109
    %v11111 = vpop.f32.mrb[0].mxu0
    %v11112 = vadd.f32 %v11000, %v11111
    %v11113 = vpop.f32.mrb[0].mxu0
    %11114 = vmatprep.mubr.f32.mxu0 0.0
    %v11115 = vand.u32 %v10758, 4294901760
    %v11116 = vsub.f32 %v10758, %v11115
    %11117 = vmatmul.mubr.f32.gmra.mrb[0].mxu0 %v11116
    %v11118 = vpop.f32.mrb[0].mxu0
    %v11119 = vadd.f32 %v11006, %v11118
    %v11120 = vpop.f32.mrb[0].mxu0
    %11121 = vmatprep.mubr.f32.mxu0 0.0
    %v11122 = vand.u32 %v10761, 4294901760
    %v11123 = vsub.f32 %v10761, %v11122
    %11124 = vmatmul.mubr.f32.gmra.mrb[0].mxu0 %v11123
    %v11125 = vpop.f32.mrb[0].mxu0
    %v11126 = vadd.f32 %v11012, %v11125
    %v11127 = vpop.f32.mrb[0].mxu0
    %11128 = vmatprep.mubr.f32.mxu0 0.0
    %v11129 = vand.u32 %v10764, 4294901760
    %v11130 = vsub.f32 %v10764, %v11129
    %11131 = vmatmul.mubr.f32.gmra.mrb[0].mxu0 %v11130
    %v11132 = vpop.f32.mrb[0].mxu0
    %v11133 = vadd.f32 %v11018, %v11132
    %v11134 = vpop.f32.mrb[0].mxu0
    %11135 = vmatprep.mubr.f32.mxu0 0.0
    %v11136 = vand.u32 %v10767, 4294901760
    %v11137 = vsub.f32 %v10767, %v11136
    %11138 = vmatmul.mubr.f32.gmra.mrb[0].mxu0 %v11137
    %v11139 = vpop.f32.mrb[0].mxu0
    %v11140 = vadd.f32 %v11024, %v11139
    %v11141 = vpop.f32.mrb[0].mxu0
    %11142 = vdwg.mxu0
    %11143 = vmatprep.subr.mxu0 0.0
    %v11144 = vand.u32 %v46, 4294901760
    %11145 = vmatpush1.msra.mxu0 %v11144
    %11146 = vmatprep.subr.mxu0 0.0
    %v11147 = vand.u32 %v47, 4294901760
    %11148 = vmatpush1.msra.mxu0 %v11147
    %11149 = vmatprep.subr.mxu0 0.0
    %v11150 = vand.u32 %v48, 4294901760
    %11151 = vmatpush1.msra.mxu0 %v11150
    %11152 = vmatprep.subr.mxu0 0.0
    %v11153 = vand.u32 %v49, 4294901760
    %11154 = vmatpush1.msra.mxu0 %v11153
    %11155 = vmatprep.subr.mxu0 0.0
    %v11156 = vand.u32 %v50, 4294901760
    %11157 = vmatpush1.msra.mxu0 %v11156
    %11158 = vmatprep.subr.mxu0 0.0
    %v11159 = vand.u32 %v51, 4294901760
    %11160 = vmatpush1.msra.mxu0 %v11159
    %11161 = vmatprep.subr.mxu0 0.0
    %v11162 = vand.u32 %v52, 4294901760
    %11163 = vmatpush1.msra.mxu0 %v11162
    %11164 = vmatprep.subr.mxu0 0.0
    %v11165 = vand.u32 %v53, 4294901760
    %11166 = vmatpush1.msra.mxu0 %v11165
    %11167 = vmatprep.subr.mxu0 0.0
    %11168 = vmatpush1.msra.mxu0 0.0
    %11169 = vmatprep.subr.mxu0 0.0
    %11170 = vmatpush1.msra.mxu0 0.0
    %11171 = vmatprep.subr.mxu0 0.0
    %11172 = vmatpush1.msra.mxu0 0.0
    %11173 = vmatprep.subr.mxu0 0.0
    %11174 = vmatpush1.msra.mxu0 0.0
    %11175 = vmatprep.subr.mxu0 0.0
    %11176 = vmatpush1.msra.mxu0 0.0
    %11177 = vmatprep.subr.mxu0 0.0
    %11178 = vmatpush1.msra.mxu0 0.0
    %11179 = vmatprep.subr.mxu0 0.0
    %11180 = vmatpush1.msra.mxu0 0.0
    %11181 = vmatprep.subr.mxu0 0.0
    %11182 = vmatpush1.msra.mxu0 0.0
    %11183 = vmatprep.subr.mxu0 0.0
    %11184 = vmatpush1.msra.mxu0 0.0
    %11185 = vmatprep.subr.mxu0 0.0
    %11186 = vmatpush1.msra.mxu0 0.0
    %11187 = vmatprep.subr.mxu0 0.0
    %11188 = vmatpush1.msra.mxu0 0.0
    %11189 = vmatprep.subr.mxu0 0.0
    %11190 = vmatpush1.msra.mxu0 0.0
    %11191 = vmatprep.subr.mxu0 0.0
    %11192 = vmatpush1.msra.mxu0 0.0
    %11193 = vmatprep.subr.mxu0 0.0
    %11194 = vmatpush1.msra.mxu0 0.0
    %11195 = vmatprep.subr.mxu0 0.0
    %11196 = vmatpush1.msra.mxu0 0.0
    %11197 = vmatprep.subr.mxu0 0.0
    %11198 = vmatpush1.msra.mxu0 0.0
    %11199 = vmatprep.subr.mxu0 0.0
    %11200 = vmatpush1.msra.mxu0 0.0
    %11201 = vmatprep.subr.mxu0 0.0
    %11202 = vmatpush1.msra.mxu0 0.0
    %11203 = vmatprep.subr.mxu0 0.0
    %11204 = vmatpush1.msra.mxu0 0.0
    %11205 = vmatprep.subr.mxu0 0.0
    %11206 = vmatpush1.msra.mxu0 0.0
    %11207 = vmatprep.subr.mxu0 0.0
    %11208 = vmatpush1.msra.mxu0 0.0
    %11209 = vmatprep.subr.mxu0 0.0
    %11210 = vmatpush1.msra.mxu0 0.0
    %11211 = vmatprep.subr.mxu0 0.0
    %11212 = vmatpush1.msra.mxu0 0.0
    %11213 = vmatprep.subr.mxu0 0.0
    %11214 = vmatpush1.msra.mxu0 0.0
    %11215 = vmatprep.mubr.f32.mxu0 0.0
    %v11216 = vand.u32 %v10755, 4294901760
    %v11217 = vsub.f32 %v10755, %v11216
    %v11218 = vand.u32 %v11217, 4294901760
    %11219 = vmatmul.mubr.f32.gmra.mrb[0].mxu0 %v11218
    %v11220 = vpop.f32.mrb[0].mxu0
    %v11221 = vadd.f32 %v11112, %v11220
    %v11222 = vpop.f32.mrb[0].mxu0
    %11223 = vmatprep.mubr.f32.mxu0 0.0
    %v11224 = vand.u32 %v10758, 4294901760
    %v11225 = vsub.f32 %v10758, %v11224
    %v11226 = vand.u32 %v11225, 4294901760
    %11227 = vmatmul.mubr.f32.gmra.mrb[0].mxu0 %v11226
    %v11228 = vpop.f32.mrb[0].mxu0
    %v11229 = vadd.f32 %v11119, %v11228
    %v11230 = vpop.f32.mrb[0].mxu0
    %11231 = vmatprep.mubr.f32.mxu0 0.0
    %v11232 = vand.u32 %v10761, 4294901760
    %v11233 = vsub.f32 %v10761, %v11232
    %v11234 = vand.u32 %v11233, 4294901760
    %11235 = vmatmul.mubr.f32.gmra.mrb[0].mxu0 %v11234
    %v11236 = vpop.f32.mrb[0].mxu0
    %v11237 = vadd.f32 %v11126, %v11236
    %v11238 = vpop.f32.mrb[0].mxu0
    %11239 = vmatprep.mubr.f32.mxu0 0.0
    %v11240 = vand.u32 %v10764, 4294901760
    %v11241 = vsub.f32 %v10764, %v11240
    %v11242 = vand.u32 %v11241, 4294901760
    %11243 = vmatmul.mubr.f32.gmra.mrb[0].mxu0 %v11242
    %v11244 = vpop.f32.mrb[0].mxu0
    %v11245 = vadd.f32 %v11133, %v11244
    %v11246 = vpop.f32.mrb[0].mxu0
    %11247 = vmatprep.mubr.f32.mxu0 0.0
    %v11248 = vand.u32 %v10767, 4294901760
    %v11249 = vsub.f32 %v10767, %v11248
    %v11250 = vand.u32 %v11249, 4294901760
    %11251 = vmatmul.mubr.f32.gmra.mrb[0].mxu0 %v11250
    %v11252 = vpop.f32.mrb[0].mxu0
    %v11253 = vadd.f32 %v11140, %v11252
    %v11254 = vpop.f32.mrb[0].mxu0
    %11255 = vdwg.mxu0
    %11256 = vmatprep.subr.mxu0 0.0
    %v11257 = vand.u32 %v46, 4294901760
    %v11258 = vsub.f32 %v46, %v11257
    %v11259 = vand.u32 %v11258, 4294901760
    %11260 = vmatpush1.msra.mxu0 %v11259
    %11261 = vmatprep.subr.mxu0 0.0
    %v11262 = vand.u32 %v47, 4294901760
    %v11263 = vsub.f32 %v47, %v11262
    %v11264 = vand.u32 %v11263, 4294901760
    %11265 = vmatpush1.msra.mxu0 %v11264
    %11266 = vmatprep.subr.mxu0 0.0
    %v11267 = vand.u32 %v48, 4294901760
    %v11268 = vsub.f32 %v48, %v11267
    %v11269 = vand.u32 %v11268, 4294901760
    %11270 = vmatpush1.msra.mxu0 %v11269
    %11271 = vmatprep.subr.mxu0 0.0
    %v11272 = vand.u32 %v49, 4294901760
    %v11273 = vsub.f32 %v49, %v11272
    %v11274 = vand.u32 %v11273, 4294901760
    %11275 = vmatpush1.msra.mxu0 %v11274
    %11276 = vmatprep.subr.mxu0 0.0
    %v11277 = vand.u32 %v50, 4294901760
    %v11278 = vsub.f32 %v50, %v11277
    %v11279 = vand.u32 %v11278, 4294901760
    %11280 = vmatpush1.msra.mxu0 %v11279
    %11281 = vmatprep.subr.mxu0 0.0
    %v11282 = vand.u32 %v51, 4294901760
    %v11283 = vsub.f32 %v51, %v11282
    %v11284 = vand.u32 %v11283, 4294901760
    %11285 = vmatpush1.msra.mxu0 %v11284
    %11286 = vmatprep.subr.mxu0 0.0
    %v11287 = vand.u32 %v52, 4294901760
    %v11288 = vsub.f32 %v52, %v11287
    %v11289 = vand.u32 %v11288, 4294901760
    %11290 = vmatpush1.msra.mxu0 %v11289
    %11291 = vmatprep.subr.mxu0 0.0
    %v11292 = vand.u32 %v53, 4294901760
    %v11293 = vsub.f32 %v53, %v11292
    %v11294 = vand.u32 %v11293, 4294901760
    %11295 = vmatpush1.msra.mxu0 %v11294
    %11296 = vmatprep.subr.mxu0 0.0
    %11297 = vmatpush1.msra.mxu0 0.0
    %11298 = vmatprep.subr.mxu0 0.0
    %11299 = vmatpush1.msra.mxu0 0.0
    %11300 = vmatprep.subr.mxu0 0.0
    %11301 = vmatpush1.msra.mxu0 0.0
    %11302 = vmatprep.subr.mxu0 0.0
    %11303 = vmatpush1.msra.mxu0 0.0
    %11304 = vmatprep.subr.mxu0 0.0
    %11305 = vmatpush1.msra.mxu0 0.0
    %11306 = vmatprep.subr.mxu0 0.0
    %11307 = vmatpush1.msra.mxu0 0.0
    %11308 = vmatprep.subr.mxu0 0.0
    %11309 = vmatpush1.msra.mxu0 0.0
    %11310 = vmatprep.subr.mxu0 0.0
    %11311 = vmatpush1.msra.mxu0 0.0
    %11312 = vmatprep.subr.mxu0 0.0
    %11313 = vmatpush1.msra.mxu0 0.0
    %11314 = vmatprep.subr.mxu0 0.0
    %11315 = vmatpush1.msra.mxu0 0.0
    %11316 = vmatprep.subr.mxu0 0.0
    %11317 = vmatpush1.msra.mxu0 0.0
    %11318 = vmatprep.subr.mxu0 0.0
    %11319 = vmatpush1.msra.mxu0 0.0
    %11320 = vmatprep.subr.mxu0 0.0
    %11321 = vmatpush1.msra.mxu0 0.0
    %11322 = vmatprep.subr.mxu0 0.0
    %11323 = vmatpush1.msra.mxu0 0.0
    %11324 = vmatprep.subr.mxu0 0.0
    %11325 = vmatpush1.msra.mxu0 0.0
    %11326 = vmatprep.subr.mxu0 0.0
    %11327 = vmatpush1.msra.mxu0 0.0
    %11328 = vmatprep.subr.mxu0 0.0
    %11329 = vmatpush1.msra.mxu0 0.0
    %11330 = vmatprep.subr.mxu0 0.0
    %11331 = vmatpush1.msra.mxu0 0.0
    %11332 = vmatprep.subr.mxu0 0.0
    %11333 = vmatpush1.msra.mxu0 0.0
    %11334 = vmatprep.subr.mxu0 0.0
    %11335 = vmatpush1.msra.mxu0 0.0
    %11336 = vmatprep.subr.mxu0 0.0
    %11337 = vmatpush1.msra.mxu0 0.0
    %11338 = vmatprep.subr.mxu0 0.0
    %11339 = vmatpush1.msra.mxu0 0.0
    %11340 = vmatprep.subr.mxu0 0.0
    %11341 = vmatpush1.msra.mxu0 0.0
    %11342 = vmatprep.subr.mxu0 0.0
    %11343 = vmatpush1.msra.mxu0 0.0
    %11344 = vmatprep.mubr.f32.mxu0 0.0
    %v11345 = vand.u32 %v10755, 4294901760
    %11346 = vmatmul.mubr.f32.gmra.mrb[0].mxu0 %v11345
    %v11347 = vpop.f32.mrb[0].mxu0
    %v11348 = vadd.f32 %v11221, %v11347
    %v11349 = vpop.f32.mrb[0].mxu0
    %11350 = vmatprep.mubr.f32.mxu0 0.0
    %v11351 = vand.u32 %v10758, 4294901760
    %11352 = vmatmul.mubr.f32.gmra.mrb[0].mxu0 %v11351
    %v11353 = vpop.f32.mrb[0].mxu0
    %v11354 = vadd.f32 %v11229, %v11353
    %v11355 = vpop.f32.mrb[0].mxu0
    %11356 = vmatprep.mubr.f32.mxu0 0.0
    %v11357 = vand.u32 %v10761, 4294901760
    %11358 = vmatmul.mubr.f32.gmra.mrb[0].mxu0 %v11357
    %v11359 = vpop.f32.mrb[0].mxu0
    %v11360 = vadd.f32 %v11237, %v11359
    %v11361 = vpop.f32.mrb[0].mxu0
    %11362 = vmatprep.mubr.f32.mxu0 0.0
    %v11363 = vand.u32 %v10764, 4294901760
    %11364 = vmatmul.mubr.f32.gmra.mrb[0].mxu0 %v11363
    %v11365 = vpop.f32.mrb[0].mxu0
    %v11366 = vadd.f32 %v11245, %v11365
    %v11367 = vpop.f32.mrb[0].mxu0
    %11368 = vmatprep.mubr.f32.mxu0 0.0
    %v11369 = vand.u32 %v10767, 4294901760
    %11370 = vmatmul.mubr.f32.gmra.mrb[0].mxu0 %v11369
    %v11371 = vpop.f32.mrb[0].mxu0
    %v11372 = vadd.f32 %v11253, %v11371
    %v11373 = vpop.f32.mrb[0].mxu0
    %11374 = vdwg.mxu0
    %11375 = vmatprep.subr.mxu0 0.0
    %v11376 = vand.u32 %v46, 4294901760
    %11377 = vmatpush1.msra.mxu0 %v11376
    %11378 = vmatprep.subr.mxu0 0.0
    %v11379 = vand.u32 %v47, 4294901760
    %11380 = vmatpush1.msra.mxu0 %v11379
    %11381 = vmatprep.subr.mxu0 0.0
    %v11382 = vand.u32 %v48, 4294901760
    %11383 = vmatpush1.msra.mxu0 %v11382
    %11384 = vmatprep.subr.mxu0 0.0
    %v11385 = vand.u32 %v49, 4294901760
    %11386 = vmatpush1.msra.mxu0 %v11385
    %11387 = vmatprep.subr.mxu0 0.0
    %v11388 = vand.u32 %v50, 4294901760
    %11389 = vmatpush1.msra.mxu0 %v11388
    %11390 = vmatprep.subr.mxu0 0.0
    %v11391 = vand.u32 %v51, 4294901760
    %11392 = vmatpush1.msra.mxu0 %v11391
    %11393 = vmatprep.subr.mxu0 0.0
    %v11394 = vand.u32 %v52, 4294901760
    %11395 = vmatpush1.msra.mxu0 %v11394
    %11396 = vmatprep.subr.mxu0 0.0
    %v11397 = vand.u32 %v53, 4294901760
    %11398 = vmatpush1.msra.mxu0 %v11397
    %11399 = vmatprep.subr.mxu0 0.0
    %11400 = vmatpush1.msra.mxu0 0.0
    %11401 = vmatprep.subr.mxu0 0.0
    %11402 = vmatpush1.msra.mxu0 0.0
    %11403 = vmatprep.subr.mxu0 0.0
    %11404 = vmatpush1.msra.mxu0 0.0
    %11405 = vmatprep.subr.mxu0 0.0
    %11406 = vmatpush1.msra.mxu0 0.0
    %11407 = vmatprep.subr.mxu0 0.0
    %11408 = vmatpush1.msra.mxu0 0.0
    %11409 = vmatprep.subr.mxu0 0.0
    %11410 = vmatpush1.msra.mxu0 0.0
    %11411 = vmatprep.subr.mxu0 0.0
    %11412 = vmatpush1.msra.mxu0 0.0
    %11413 = vmatprep.subr.mxu0 0.0
    %11414 = vmatpush1.msra.mxu0 0.0
    %11415 = vmatprep.subr.mxu0 0.0
    %11416 = vmatpush1.msra.mxu0 0.0
    %11417 = vmatprep.subr.mxu0 0.0
    %11418 = vmatpush1.msra.mxu0 0.0
    %11419 = vmatprep.subr.mxu0 0.0
    %11420 = vmatpush1.msra.mxu0 0.0
    %11421 = vmatprep.subr.mxu0 0.0
    %11422 = vmatpush1.msra.mxu0 0.0
    %11423 = vmatprep.subr.mxu0 0.0
    %11424 = vmatpush1.msra.mxu0 0.0
    %11425 = vmatprep.subr.mxu0 0.0
    %11426 = vmatpush1.msra.mxu0 0.0
    %11427 = vmatprep.subr.mxu0 0.0
    %11428 = vmatpush1.msra.mxu0 0.0
    %11429 = vmatprep.subr.mxu0 0.0
    %11430 = vmatpush1.msra.mxu0 0.0
    %11431 = vmatprep.subr.mxu0 0.0
    %11432 = vmatpush1.msra.mxu0 0.0
    %11433 = vmatprep.subr.mxu0 0.0
    %11434 = vmatpush1.msra.mxu0 0.0
    %11435 = vmatprep.subr.mxu0 0.0
    %11436 = vmatpush1.msra.mxu0 0.0
    %11437 = vmatprep.subr.mxu0 0.0
    %11438 = vmatpush1.msra.mxu0 0.0
    %11439 = vmatprep.subr.mxu0 0.0
    %11440 = vmatpush1.msra.mxu0 0.0
    %11441 = vmatprep.subr.mxu0 0.0
    %11442 = vmatpush1.msra.mxu0 0.0
    %11443 = vmatprep.subr.mxu0 0.0
    %11444 = vmatpush1.msra.mxu0 0.0
    %11445 = vmatprep.subr.mxu0 0.0
    %11446 = vmatpush1.msra.mxu0 0.0
    %11447 = vmatprep.mubr.f32.mxu0 0.0
    %v11448 = vand.u32 %v10755, 4294901760
    %11449 = vmatmul.mubr.f32.gmra.mrb[0].mxu0 %v11448
    %v11450 = vpop.f32.mrb[0].mxu0
    %v11451 = vadd.f32 %v11348, %v11450
    %v11452 = vpop.f32.mrb[0].mxu0
    %11453 = vmatprep.mubr.f32.mxu0 0.0
    %v11454 = vand.u32 %v10758, 4294901760
    %11455 = vmatmul.mubr.f32.gmra.mrb[0].mxu0 %v11454
    %v11456 = vpop.f32.mrb[0].mxu0
    %v11457 = vadd.f32 %v11354, %v11456
    %v11458 = vpop.f32.mrb[0].mxu0
    %11459 = vmatprep.mubr.f32.mxu0 0.0
    %v11460 = vand.u32 %v10761, 4294901760
    %11461 = vmatmul.mubr.f32.gmra.mrb[0].mxu0 %v11460
    %v11462 = vpop.f32.mrb[0].mxu0
    %v11463 = vadd.f32 %v11360, %v11462
    %v11464 = vpop.f32.mrb[0].mxu0
    %11465 = vmatprep.mubr.f32.mxu0 0.0
    %v11466 = vand.u32 %v10764, 4294901760
    %11467 = vmatmul.mubr.f32.gmra.mrb[0].mxu0 %v11466
    %v11468 = vpop.f32.mrb[0].mxu0
    %v11469 = vadd.f32 %v11366, %v11468
    %v11470 = vpop.f32.mrb[0].mxu0
    %11471 = vmatprep.mubr.f32.mxu0 0.0
    %v11472 = vand.u32 %v10767, 4294901760
    %11473 = vmatmul.mubr.f32.gmra.mrb[0].mxu0 %v11472
    %v11474 = vpop.f32.mrb[0].mxu0
    %v11475 = vadd.f32 %v11372, %v11474
    %v11476 = vpop.f32.mrb[0].mxu0
    %11477 = vdwg.mxu0
    %v11478 = vtanh.pop %v11451
    %v11479 = vtanh.pop %v11457
    %v11480 = vtanh.pop %v11463
    %v11481 = vtanh.pop %v11469
    %v11482 = vtanh.pop %v11475
    %11484 = vrot.lane.b32.xlu0 %v11479, 32
    %v11485 = vpop.permute.xlu0 %11484
    %11488 = vrot.lane.b32.xlu0 %v11480, 64
    %v11489 = vpop.permute.xlu0 %11488
    %11492 = vrot.lane.b32.xlu0 %v11481, 96
    %v11493 = vpop.permute.xlu0 %11492
    %11495 = vrot.lane.b32.xlu0 %v10478, 32
    %v11496 = vpop.permute.xlu0 %11495
    %11498 = vrot.lane.b32.xlu0 %v10479, 40
    %v11499 = vpop.permute.xlu0 %11498
    %11501 = vrot.lane.b32.xlu0 %v10480, 48
    %v11502 = vpop.permute.xlu0 %11501
    %11504 = vrot.lane.b32.xlu0 %v10481, 56
    %v11505 = vpop.permute.xlu0 %11504
    %11507 = vrot.lane.b32.xlu0 %v10482, 64
    %v11508 = vpop.permute.xlu0 %11507
    %11510 = vrot.lane.b32.xlu0 %v9523, 40
    %v11511 = vpop.permute.xlu0 %11510
    %11513 = vrot.lane.b32.xlu0 %v3246, 72
    %v11514 = vpop.permute.xlu0 %11513
    %11516 = vrot.lane.b32.xlu0 %v3775, 104
    %v11517 = vpop.permute.xlu0 %11516
    %11519 = vrot.lane.b32.xlu0 %v4302, 8
    %v11520 = vpop.permute.xlu0 %11519
    %11522 = vrot.lane.b32.xlu0 %v4829, 40
    %v11523 = vpop.permute.xlu0 %11522
    %11525 = vrot.lane.b32.xlu0 %v5356, 72
    %v11526 = vpop.permute.xlu0 %11525
    %v11528 = vsel %vm95, %v11478, %v11485
    %v11529 = vsel %vm10753, %v11528, %v11489
    %vm11530 = vcmask 785408
    %v11531 = vsel %vm11530, %v11529, %v11493
    %v11532 = vsel %vm95, %v11482, %v11496
    %vm11533 = vcmask 326656
    %v11534 = vsel %vm11533, %v11532, %v11499
    %vm11535 = vcmask 392192
    %v11536 = vsel %vm11535, %v11534, %v11502
    %vm11537 = vcmask 457728
    %v11538 = vsel %vm11537, %v11536, %v11505
    %v11539 = vsel %vm10753, %v11538, %v11508
    %vm11540 = vcmask 588800
    %v11541 = vsel %vm11540, %v11539, %v11511
    %vm11542 = vcmask 850944
    %v11543 = vsel %vm11542, %v11541, %v11514
    %v11544 = vsel %vm78, %v11514, %v11517
    %v11545 = vsel %vm11533, %v11544, %v11520
    %v11546 = vsel %vm11540, %v11545, %v11523
    %v11547 = vsel %vm11542, %v11546, %v11526
    %11548 = vrot.lane.b32.xlu0 %v6937, 32
    %v11549 = vpop.permute.xlu0 %11548
    %v11551 = vsel %vm95, %v10308, %v6410
    %v11552 = vsel %vm10753, %v11551, %v11549
    %v11553 = vsel %vm11530, %v11552, 0.0
    %11555 = vrot.lane.b32.xlu0 %v11553, 8
    %v11556 = vpop.permute.xlu0 %11555
    %v11558 = vsel %vm78, %v11526, %v11556
    %11559 = vst [vmem:[%s2] sm:$0xff] %v11531
    %11560 = vst [vmem:[%s2 + $0x8] sm:$0xff] %v11543
    %11561 = vst [vmem:[%s2 + $0x10] sm:$0xff] %v11547
    %11562 = vst [vmem:[%s2 + $0x18] sm:$0xff] %v11558
    // Predicated region
    $region14: #{nmt_forward.1} parent=1 // pred_check
      _
    $region15: #{nmt_forward.1} parent=1 // pred_check_branch
      %11564 = sbr.rel (0) target = $region17
    $region16: #{nmt_forward.1} parent=1 // pred_region
      _
    $region17: #{nmt_forward.1} parent=1 // pred_fallthru
      _
    // Predicated region
    $region18: #{nmt_forward.1} parent=1 // pred_check
      _
    $region19: #{nmt_forward.1} parent=1 // pred_check_branch
      %11566 = sbr.rel (0) target = $region21
    $region20: #{nmt_forward.1} parent=1 // pred_region
      _
    $region21: #{nmt_forward.1} parent=1 // pred_fallthru
      _
    %11567 = vsyncpa [#allocation3], 1

</llo_original>
